<compile_context>
chip_gen: v7x
topology: tpu7x:2x2x1
jax: 0.10.0
libtpu: 0.0.40
codegen_flags: <defaults>
</compile_context>

<pallas_src>
import jax
import jax.numpy as jnp
from jax import lax
from jax.experimental import pallas as pl
from jax.experimental.pallas import tpu as pltpu


def _round_up(x, m):
    return (x + m - 1) // m * m


def _vmem_capacity_bytes():
    try:
        cap = getattr(pltpu.get_tpu_info(), "vmem_capacity_bytes", None)
        if cap:
            return int(cap)
    except Exception:
        pass
    return 64 * 1024 * 1024  # conservative (v7x-sized) fallback


def _default_batch_blocks(B):
    """Use 2 batch blocks only when the chip has 2 TensorCores and B >= 16."""
    if B < 16:
        return 1
    try:
        kind = jax.devices()[0].device_kind.lower()
    except Exception:
        kind = ""
    return 2 if "v7" in kind else 1


def _estimate_vmem_bytes(Bblk, tc, I, Hp, Op, x_itemsize):
    G = 4 * Hp
    est = 2 * Bblk * tc * I * x_itemsize                      # double-buffered x chunk
    est += (I * G * x_itemsize + Hp * G * 4 + G * 4           # resident weights
            + Hp * Op * 4 + Op * 4)                           # (single-buffered)
    est += tc * Bblk * G * 4                                  # gx scratch
    est += 2 * Bblk * Hp * 4                                  # h, c state
    est += 2 * Bblk * Op * 4                                  # output block
    return est


def _make_lstm_kernel(*, tc, t_valid, t_padded, Hp, unroll):
    """Static closure: tc (steps per chunk), t_valid (real T), t_padded,
    Hp (lane-aligned per-gate width), unroll (fori_loop unroll factor)."""
    G = 4 * Hp
    mask_time = t_padded != t_valid

    def kernel(x_ref, w_ih_ref, w_hh_ref, b_ref, w_fc_ref, b_fc_ref,
               out_ref, h_ref, c_ref, gx_ref):
        Bblk = h_ref.shape[0]
        I = x_ref.shape[2]
        t_chunk = pl.program_id(1)

        @pl.when(t_chunk == 0)
        def _init():
            h_ref[...] = jnp.zeros_like(h_ref)
            c_ref[...] = jnp.zeros_like(c_ref)

        # ---- Hoisted input projection: ONE MXU matmul per chunk ----
        # (Bblk, tc, I) -> (Bblk*tc, I) is a free relabel (tc multiple of the
        # sublane tile by construction).
        x_flat = x_ref[...].reshape(Bblk * tc, I)
        gx = jnp.dot(x_flat, w_ih_ref[...], preferred_element_type=jnp.float32)
        gx = (gx + b_ref[...]).reshape(Bblk, tc, G)     # batch-major, f32

        # Rearrange to time-major scratch once per chunk (static slice copies,
        # off the serial h-dependence chain).
        for t in range(tc):
            gx_ref[t] = gx[:, t, :]

        # Lane mask selecting the tanh (g) gate columns (PyTorch order i,f,g,o)
        # plus the constants of the single-tanh trick:
        #   sigmoid(x) = 0.5 * tanh(0.5 * x) + 0.5
        col = lax.broadcasted_iota(jnp.int32, (Bblk, G), 1)
        is_g = jnp.logical_and(col >= 2 * Hp, col < 3 * Hp)
        m = jnp.where(is_g, 1.0, 0.5).astype(jnp.float32)     # pre/post scale
        off = jnp.where(is_g, 0.0, 0.5).astype(jnp.float32)   # post offset

        w_hh = w_hh_ref[...]                # hoisted loop-invariant load
        chunk_start = t_chunk * tc

        def cell_step(t, carry):
            h, c = carry
            gates = gx_ref[t] + jnp.dot(h, w_hh,
                                        preferred_element_type=jnp.float32)
            act = jnp.tanh(gates * m) * m + off      # one EUP pass per step
            i_g = act[:, 0 * Hp:1 * Hp]
            f_g = act[:, 1 * Hp:2 * Hp]
            g_g = act[:, 2 * Hp:3 * Hp]
            o_g = act[:, 3 * Hp:4 * Hp]
            c_new = f_g * c + i_g * g_g
            h_new = o_g * jnp.tanh(c_new)
            if mask_time:                            # padded timesteps keep state
                valid = (chunk_start + t) < t_valid
                h_new = jnp.where(valid, h_new, h)
                c_new = jnp.where(valid, c_new, c)
            return (h_new, c_new)

        h, c = lax.fori_loop(0, tc, cell_step, (h_ref[...], c_ref[...]),
                             unroll=unroll)
        h_ref[...] = h
        c_ref[...] = c

        @pl.when(t_chunk == pl.num_programs(1) - 1)
        def _finalize():
            out_ref[...] = (
                jnp.dot(h, w_fc_ref[...], preferred_element_type=jnp.float32)
                + b_fc_ref[...]).astype(out_ref.dtype)

    return kernel


def lstm_model_forward(x, params, *, time_chunk=32, use_bf16_matmul=False,
                       batch_blocks=None):
    """x: (B, T, I) batch_first, like the PyTorch module. Returns (B, O)."""
    B, T, I = x.shape
    H = params["w_hh"].shape[1]
    O = params["w_fc"].shape[0]
    f32 = jnp.float32

    Hp = _round_up(H, 128)        # lane-aligned per-gate width
    G = 4 * Hp
    Op = _round_up(O, 128)        # lane-dense output store

    n_bblk = batch_blocks if batch_blocks is not None else _default_batch_blocks(B)
    n_bblk = max(1, int(n_bblk))
    Bp = _round_up(B, 8 * n_bblk)
    Bblk = Bp // n_bblk

    # ---- time chunk: multiple of the sublane tile; T padded (no divisor fallback)
    x_dt = jnp.bfloat16 if use_bf16_matmul else f32
    x_isz = 2 if use_bf16_matmul else 4
    tmult = 16 if use_bf16_matmul else 8
    tc = _round_up(max(1, min(time_chunk, T)), tmult)
    vmem_cap = _vmem_capacity_bytes()
    while tc > tmult and _estimate_vmem_bytes(Bblk, tc, I, Hp, Op, x_isz) > int(0.6 * vmem_cap):
        tc = max(tmult, _round_up(tc // 2, tmult))
    Tp = _round_up(T, tc)
    n_chunks = Tp // tc

    # ---- pad / cast inputs and weights ----
    x_p = x.astype(x_dt)
    if Bp != B or Tp != T:
        x_p = jnp.pad(x_p, ((0, Bp - B), (0, Tp - T), (0, 0)))

    def pad_gate_rows(w):   # (4H, cols) -> (4Hp, cols), zero-padding each gate block
        w4 = w.reshape(4, H, -1).astype(f32)
        out = jnp.zeros((4, Hp, w4.shape[-1]), f32).at[:, :H, :].set(w4)
        return out.reshape(4 * Hp, -1)

    w_ih_t = pad_gate_rows(params["w_ih"]).T.astype(x_dt)            # (I, 4Hp)
    w_hh_t = jnp.zeros((Hp, G), f32).at[:H, :].set(
        pad_gate_rows(params["w_hh"]).T)                             # (Hp, 4Hp) f32
    bias = pad_gate_rows(
        (params["b_ih"] + params["b_hh"]).reshape(4 * H, 1)).reshape(1, G)
    w_fc_t = jnp.zeros((Hp, Op), f32).at[:H, :O].set(params["w_fc"].T.astype(f32))
    b_fc = jnp.zeros((1, Op), f32).at[0, :O].set(params["b_fc"].astype(f32))

    # ---- loop unroll capped by a vreg budget ----
    tile_vregs = max(1, (Bblk // 8) * (G // 128))
    unroll = True if tc * tile_vregs <= 32 else int(max(1, min(8, 32 // tile_vregs)))

    kernel = _make_lstm_kernel(tc=tc, t_valid=T, t_padded=Tp, Hp=Hp, unroll=unroll)

    scratch = [
        pltpu.VMEM((Bblk, Hp), f32),        # h state
        pltpu.VMEM((Bblk, Hp), f32),        # c state
        pltpu.VMEM((tc, Bblk, G), f32),     # time-major hoisted input projection
    ]

    est = _estimate_vmem_bytes(Bblk, tc, I, Hp, Op, x_isz)
    vmem_limit = int(min(vmem_cap * 3 // 4, max(4 * est, 32 * 1024 * 1024)))

    def _resident(shape, single_buffer):
        index_map = lambda b, t: (0,) * len(shape)
        if single_buffer:
            # Constant-index resident operands: 1 buffer (no wasted double-buffer VMEM).
            return pl.BlockSpec(shape, index_map, pipeline_mode=pl.Buffered(1))
        return pl.BlockSpec(shape, index_map)

    def _run(single_buffer_weights):
        grid_spec = pltpu.PrefetchScalarGridSpec(
            num_scalar_prefetch=0,
            grid=(n_bblk, n_chunks),
            in_specs=[
                pl.BlockSpec((Bblk, tc, I), lambda b, t: (b, t, 0)),  # streamed x
                _resident((I, G), single_buffer_weights),             # W_ih^T
                _resident((Hp, G), single_buffer_weights),            # W_hh^T
                _resident((1, G), single_buffer_weights),             # bias
                _resident((Hp, Op), single_buffer_weights),           # W_fc^T
                _resident((1, Op), single_buffer_weights),            # b_fc
            ],
            out_specs=pl.BlockSpec((Bblk, Op), lambda b, t: (b, 0)),
            scratch_shapes=scratch,
        )
        return pl.pallas_call(
            kernel,
            out_shape=jax.ShapeDtypeStruct((Bp, Op), f32),
            grid_spec=grid_spec,
            compiler_params=pltpu.CompilerParams(
                dimension_semantics=("parallel", "arbitrary"),
                vmem_limit_bytes=vmem_limit,
            ),
        )(x_p, w_ih_t, w_hh_t, bias, w_fc_t, b_fc)

    try:
        out = _run(True)
    except Exception:     # pl.Buffered(1) unsupported -> default double-buffering
        out = _run(False)
    return out[:B, :O]


def lstm_model_reference(x, params):
    """Pure-JAX reference matching torch.nn.LSTM (batch_first) + Linear."""
    B, T, I = x.shape
    H = params["w_hh"].shape[1]

    def cell(carry, x_t):
        h, c = carry
        gates = (x_t @ params["w_ih"].T + params["b_ih"]
                 + h @ params["w_hh"].T + params["b_hh"])
        i_g = jax.nn.sigmoid(gates[:, 0 * H:1 * H])
        f_g = jax.nn.sigmoid(gates[:, 1 * H:2 * H])
        g_g = jnp.tanh(gates[:, 2 * H:3 * H])
        o_g = jax.nn.sigmoid(gates[:, 3 * H:4 * H])
        c = f_g * c + i_g * g_g
        h = o_g * jnp.tanh(c)
        return (h, c), None

    h0 = jnp.zeros((B, H), jnp.float32)
    (h, _), _ = lax.scan(cell, (h0, h0), jnp.transpose(x, (1, 0, 2)))
    return h @ params["w_fc"].T + params["b_fc"]


def init_params(key, input_size, hidden_size, output_size):
    """PyTorch-shaped params, U(-1/sqrt(H), 1/sqrt(H)) init."""
    ks = jax.random.split(key, 6)
    s = 1.0 / jnp.sqrt(jnp.float32(hidden_size))
    u = lambda k, shape: jax.random.uniform(k, shape, jnp.float32, -s, s)
    return {
        "w_ih": u(ks[0], (4 * hidden_size, input_size)),
        "w_hh": u(ks[1], (4 * hidden_size, hidden_size)),
        "b_ih": u(ks[2], (4 * hidden_size,)),
        "b_hh": u(ks[3], (4 * hidden_size,)),
        "w_fc": u(ks[4], (output_size, hidden_size)),
        "b_fc": u(ks[5], (output_size,)),
    }


if __name__ == "__main__":
    B, T, I, H, O = 2, 20, 16, 32, 8
    key = jax.random.PRNGKey(0)
    k_x, k_p, k_x2 = jax.random.split(key, 3)
    x = jax.random.normal(k_x, (B, T, I), jnp.float32)
    params = init_params(k_p, I, H, O)
    ref = lstm_model_reference(x, params)

    # f32 path: time_chunk=8 -> 3 streamed chunks with 4 masked (padded) steps,
    # exercising the pipeline, the T-padding mask and the aligned-gate layout.
    out = jax.block_until_ready(lstm_model_forward(x, params, time_chunk=8))
    assert out.shape == (B, O)
    err = jnp.max(jnp.abs(out - ref))
    assert jnp.allclose(out, ref, atol=1e-4, rtol=1e-4), f"f32 max err {err}"

    # bf16 streamed input projection (recurrence and state stay f32).
    out_bf16 = jax.block_until_ready(
        lstm_model_forward(x, params, time_chunk=8, use_bf16_matmul=True))
    err_bf = jnp.max(jnp.abs(out_bf16 - ref))
    assert jnp.allclose(out_bf16, ref, atol=5e-2, rtol=5e-2), f"bf16 max err {err_bf}"

    # Two parallel batch blocks (v7x megacore layout) — correct on any chip.
    B2 = 16
    x2 = jax.random.normal(k_x2, (B2, T, I), jnp.float32)
    ref2 = lstm_model_reference(x2, params)
    out2 = jax.block_until_ready(
        lstm_model_forward(x2, params, time_chunk=8, batch_blocks=2))
    err2 = jnp.max(jnp.abs(out2 - ref2))
    assert jnp.allclose(out2, ref2, atol=1e-4, rtol=1e-4), f"batch-block max err {err2}"

    print("KERNEL_OK")
</pallas_src>

<mosaic_0001>
module attributes {stable_mosaic.version = 11 : i64} {
  func.func @kernel(%arg0: i32, %arg1: i32, %arg2: memref<8x8x16xf32, #tpu.memory_space<vmem>>, %arg3: memref<16x512xf32, #tpu.memory_space<vmem>>, %arg4: memref<128x512xf32, #tpu.memory_space<vmem>>, %arg5: memref<1x512xf32, #tpu.memory_space<vmem>>, %arg6: memref<128x128xf32, #tpu.memory_space<vmem>>, %arg7: memref<1x128xf32, #tpu.memory_space<vmem>>, %arg8: memref<8x128xf32, #tpu.memory_space<vmem>>, %arg9: memref<8x128xf32, #tpu.memory_space<vmem>>, %arg10: memref<8x128xf32, #tpu.memory_space<vmem>>, %arg11: memref<8x8x512xf32, #tpu.memory_space<vmem>>) attributes {dimension_semantics = [#tpu.dimension_semantics<parallel>, #tpu.dimension_semantics<arbitrary>], iteration_bounds = array<i64: 1, 3>, scalar_prefetch = 0 : i64, scratch_operands = 3 : i64, tpu.core_type = #tpu.core_type<tc>, window_params = [{transform_indices = @transform_0, window_bounds = array<i64: 8, 8, 16>}, {pipeline_mode = #tpu.pipeline_mode<synchronous>, transform_indices = @transform_1, window_bounds = array<i64: 16, 512>}, {pipeline_mode = #tpu.pipeline_mode<synchronous>, transform_indices = @transform_2, window_bounds = array<i64: 128, 512>}, {pipeline_mode = #tpu.pipeline_mode<synchronous>, transform_indices = @transform_3, window_bounds = array<i64: 1, 512>}, {pipeline_mode = #tpu.pipeline_mode<synchronous>, transform_indices = @transform_4, window_bounds = array<i64: 128, 128>}, {pipeline_mode = #tpu.pipeline_mode<synchronous>, transform_indices = @transform_5, window_bounds = array<i64: 1, 128>}, {transform_indices = @transform_6, window_bounds = array<i64: 8, 128>}]} {
    %c0_i32 = arith.constant 0 : i32
    %0 = arith.cmpi eq, %arg1, %c0_i32 : i32
    %1 = arith.extui %0 : i1 to i32
    %c0_i32_0 = arith.constant 0 : i32
    %2 = arith.cmpi ne, %1, %c0_i32_0 : i32
    scf.if %2 {
      %cst_73 = arith.constant 0.000000e+00 : f32
      %248 = vector.broadcast %cst_73 : f32 to vector<8x128xf32>
      %c0_74 = arith.constant 0 : index
      %c0_75 = arith.constant 0 : index
      %249 = vector.load %arg9[%c0_74, %c0_75] : memref<8x128xf32, #tpu.memory_space<vmem>>, vector<8x128xf32>
      tpu.vector_store %arg9[%c0_74, %c0_75], %248 {strides = array<i32>} : memref<8x128xf32, #tpu.memory_space<vmem>>, vector<8x128xf32>,
      %cst_76 = arith.constant 0.000000e+00 : f32
      %250 = vector.broadcast %cst_76 : f32 to vector<8x128xf32>
      %c0_77 = arith.constant 0 : index
      %c0_78 = arith.constant 0 : index
      %251 = vector.load %arg10[%c0_77, %c0_78] : memref<8x128xf32, #tpu.memory_space<vmem>>, vector<8x128xf32>
      tpu.vector_store %arg10[%c0_77, %c0_78], %250 {strides = array<i32>} : memref<8x128xf32, #tpu.memory_space<vmem>>, vector<8x128xf32>,
    } else {
    }
    %c0 = arith.constant 0 : index
    %c0_1 = arith.constant 0 : index
    %c0_2 = arith.constant 0 : index
    %3 = vector.load %arg2[%c0, %c0_1, %c0_2] : memref<8x8x16xf32, #tpu.memory_space<vmem>>, vector<8x8x16xf32>
    %4 = vector.shape_cast %3 : vector<8x8x16xf32> to vector<64x16xf32>
    %c0_3 = arith.constant 0 : index
    %c0_4 = arith.constant 0 : index
    %5 = vector.load %arg3[%c0_3, %c0_4] : memref<16x512xf32, #tpu.memory_space<vmem>>, vector<16x512xf32>
    %cst = arith.constant dense<0.000000e+00> : vector<64x512xf32>
    %6 = tpu.matmul %4, %5, %cst {dimension_numbers = #tpu.dot_dimension_numbers<[1], [0], [0], [1], [0, 0, 1, 1], [], []>} : vector<64x16xf32>, vector<16x512xf32>, vector<64x512xf32> -> vector<64x512xf32>
    %c0_5 = arith.constant 0 : index
    %c0_6 = arith.constant 0 : index
    %7 = vector.load %arg5[%c0_5, %c0_6] : memref<1x512xf32, #tpu.memory_space<vmem>>, vector<1x512xf32>
    %8 = vector.broadcast %7 : vector<1x512xf32> to vector<64x512xf32>
    %9 = arith.addf %6, %8 : vector<64x512xf32>
    %10 = vector.shape_cast %9 : vector<64x512xf32> to vector<8x8x512xf32>
    %11 = vector.extract_strided_slice %10 {offsets = [0, 0, 0], sizes = [8, 1, 512], strides = [1, 1, 1]} : vector<8x8x512xf32> to vector<8x1x512xf32>
    %12 = vector.shape_cast %11 : vector<8x1x512xf32> to vector<8x512xf32>
    %c0_7 = arith.constant 0 : index
    %c0_8 = arith.constant 0 : index
    %c0_9 = arith.constant 0 : index
    %13 = vector.load %arg11[%c0_7, %c0_8, %c0_9] : memref<8x8x512xf32, #tpu.memory_space<vmem>>, vector<1x8x512xf32>
    %14 = vector.shape_cast %13 : vector<1x8x512xf32> to vector<8x512xf32>
    %15 = vector.shape_cast %12 : vector<8x512xf32> to vector<1x8x512xf32>
    tpu.vector_store %arg11[%c0_7, %c0_8, %c0_9], %15 {strides = array<i32>} : memref<8x8x512xf32, #tpu.memory_space<vmem>>, vector<1x8x512xf32>,
    %16 = vector.extract_strided_slice %10 {offsets = [0, 1, 0], sizes = [8, 1, 512], strides = [1, 1, 1]} : vector<8x8x512xf32> to vector<8x1x512xf32>
    %17 = vector.shape_cast %16 : vector<8x1x512xf32> to vector<8x512xf32>
    %c1 = arith.constant 1 : index
    %c0_10 = arith.constant 0 : index
    %c0_11 = arith.constant 0 : index
    %18 = vector.load %arg11[%c1, %c0_10, %c0_11] : memref<8x8x512xf32, #tpu.memory_space<vmem>>, vector<1x8x512xf32>
    %19 = vector.shape_cast %18 : vector<1x8x512xf32> to vector<8x512xf32>
    %20 = vector.shape_cast %17 : vector<8x512xf32> to vector<1x8x512xf32>
    tpu.vector_store %arg11[%c1, %c0_10, %c0_11], %20 {strides = array<i32>} : memref<8x8x512xf32, #tpu.memory_space<vmem>>, vector<1x8x512xf32>,
    %21 = vector.extract_strided_slice %10 {offsets = [0, 2, 0], sizes = [8, 1, 512], strides = [1, 1, 1]} : vector<8x8x512xf32> to vector<8x1x512xf32>
    %22 = vector.shape_cast %21 : vector<8x1x512xf32> to vector<8x512xf32>
    %c2 = arith.constant 2 : index
    %c0_12 = arith.constant 0 : index
    %c0_13 = arith.constant 0 : index
    %23 = vector.load %arg11[%c2, %c0_12, %c0_13] : memref<8x8x512xf32, #tpu.memory_space<vmem>>, vector<1x8x512xf32>
    %24 = vector.shape_cast %23 : vector<1x8x512xf32> to vector<8x512xf32>
    %25 = vector.shape_cast %22 : vector<8x512xf32> to vector<1x8x512xf32>
    tpu.vector_store %arg11[%c2, %c0_12, %c0_13], %25 {strides = array<i32>} : memref<8x8x512xf32, #tpu.memory_space<vmem>>, vector<1x8x512xf32>,
    %26 = vector.extract_strided_slice %10 {offsets = [0, 3, 0], sizes = [8, 1, 512], strides = [1, 1, 1]} : vector<8x8x512xf32> to vector<8x1x512xf32>
    %27 = vector.shape_cast %26 : vector<8x1x512xf32> to vector<8x512xf32>
    %c3 = arith.constant 3 : index
    %c0_14 = arith.constant 0 : index
    %c0_15 = arith.constant 0 : index
    %28 = vector.load %arg11[%c3, %c0_14, %c0_15] : memref<8x8x512xf32, #tpu.memory_space<vmem>>, vector<1x8x512xf32>
    %29 = vector.shape_cast %28 : vector<1x8x512xf32> to vector<8x512xf32>
    %30 = vector.shape_cast %27 : vector<8x512xf32> to vector<1x8x512xf32>
    tpu.vector_store %arg11[%c3, %c0_14, %c0_15], %30 {strides = array<i32>} : memref<8x8x512xf32, #tpu.memory_space<vmem>>, vector<1x8x512xf32>,
    %31 = vector.extract_strided_slice %10 {offsets = [0, 4, 0], sizes = [8, 1, 512], strides = [1, 1, 1]} : vector<8x8x512xf32> to vector<8x1x512xf32>
    %32 = vector.shape_cast %31 : vector<8x1x512xf32> to vector<8x512xf32>
    %c4 = arith.constant 4 : index
    %c0_16 = arith.constant 0 : index
    %c0_17 = arith.constant 0 : index
    %33 = vector.load %arg11[%c4, %c0_16, %c0_17] : memref<8x8x512xf32, #tpu.memory_space<vmem>>, vector<1x8x512xf32>
    %34 = vector.shape_cast %33 : vector<1x8x512xf32> to vector<8x512xf32>
    %35 = vector.shape_cast %32 : vector<8x512xf32> to vector<1x8x512xf32>
    tpu.vector_store %arg11[%c4, %c0_16, %c0_17], %35 {strides = array<i32>} : memref<8x8x512xf32, #tpu.memory_space<vmem>>, vector<1x8x512xf32>,
    %36 = vector.extract_strided_slice %10 {offsets = [0, 5, 0], sizes = [8, 1, 512], strides = [1, 1, 1]} : vector<8x8x512xf32> to vector<8x1x512xf32>
    %37 = vector.shape_cast %36 : vector<8x1x512xf32> to vector<8x512xf32>
    %c5 = arith.constant 5 : index
    %c0_18 = arith.constant 0 : index
    %c0_19 = arith.constant 0 : index
    %38 = vector.load %arg11[%c5, %c0_18, %c0_19] : memref<8x8x512xf32, #tpu.memory_space<vmem>>, vector<1x8x512xf32>
    %39 = vector.shape_cast %38 : vector<1x8x512xf32> to vector<8x512xf32>
    %40 = vector.shape_cast %37 : vector<8x512xf32> to vector<1x8x512xf32>
    tpu.vector_store %arg11[%c5, %c0_18, %c0_19], %40 {strides = array<i32>} : memref<8x8x512xf32, #tpu.memory_space<vmem>>, vector<1x8x512xf32>,
    %41 = vector.extract_strided_slice %10 {offsets = [0, 6, 0], sizes = [8, 1, 512], strides = [1, 1, 1]} : vector<8x8x512xf32> to vector<8x1x512xf32>
    %42 = vector.shape_cast %41 : vector<8x1x512xf32> to vector<8x512xf32>
    %c6 = arith.constant 6 : index
    %c0_20 = arith.constant 0 : index
    %c0_21 = arith.constant 0 : index
    %43 = vector.load %arg11[%c6, %c0_20, %c0_21] : memref<8x8x512xf32, #tpu.memory_space<vmem>>, vector<1x8x512xf32>
    %44 = vector.shape_cast %43 : vector<1x8x512xf32> to vector<8x512xf32>
    %45 = vector.shape_cast %42 : vector<8x512xf32> to vector<1x8x512xf32>
    tpu.vector_store %arg11[%c6, %c0_20, %c0_21], %45 {strides = array<i32>} : memref<8x8x512xf32, #tpu.memory_space<vmem>>, vector<1x8x512xf32>,
    %46 = vector.extract_strided_slice %10 {offsets = [0, 7, 0], sizes = [8, 1, 512], strides = [1, 1, 1]} : vector<8x8x512xf32> to vector<8x1x512xf32>
    %47 = vector.shape_cast %46 : vector<8x1x512xf32> to vector<8x512xf32>
    %c7 = arith.constant 7 : index
    %c0_22 = arith.constant 0 : index
    %c0_23 = arith.constant 0 : index
    %48 = vector.load %arg11[%c7, %c0_22, %c0_23] : memref<8x8x512xf32, #tpu.memory_space<vmem>>, vector<1x8x512xf32>
    %49 = vector.shape_cast %48 : vector<1x8x512xf32> to vector<8x512xf32>
    %50 = vector.shape_cast %47 : vector<8x512xf32> to vector<1x8x512xf32>
    tpu.vector_store %arg11[%c7, %c0_22, %c0_23], %50 {strides = array<i32>} : memref<8x8x512xf32, #tpu.memory_space<vmem>>, vector<1x8x512xf32>,
    %51 = tpu.iota {dimensions = array<i32: 1>} : vector<8x512xi32>
    %c256_i32 = arith.constant 256 : i32
    %52 = vector.broadcast %c256_i32 : i32 to vector<8x512xi32>
    %53 = arith.cmpi sge, %51, %52 : vector<8x512xi32>
    %c384_i32 = arith.constant 384 : i32
    %54 = vector.broadcast %c384_i32 : i32 to vector<8x512xi32>
    %55 = arith.cmpi slt, %51, %54 : vector<8x512xi32>
    %56 = arith.andi %53, %55 : vector<8x512xi1>
    %cst_24 = arith.constant 1.000000e+00 : f32
    %cst_25 = arith.constant 5.000000e-01 : f32
    %57 = vector.broadcast %cst_24 : f32 to vector<8x512xf32>
    %58 = vector.broadcast %cst_25 : f32 to vector<8x512xf32>
    %59 = arith.select %56, %57, %58 : vector<8x512xi1>, vector<8x512xf32>
    %cst_26 = arith.constant 0.000000e+00 : f32
    %cst_27 = arith.constant 5.000000e-01 : f32
    %60 = vector.broadcast %cst_26 : f32 to vector<8x512xf32>
    %61 = vector.broadcast %cst_27 : f32 to vector<8x512xf32>
    %62 = arith.select %56, %60, %61 : vector<8x512xi1>, vector<8x512xf32>
    %c0_28 = arith.constant 0 : index
    %c0_29 = arith.constant 0 : index
    %63 = vector.load %arg4[%c0_28, %c0_29] : memref<128x512xf32, #tpu.memory_space<vmem>>, vector<128x512xf32>
    %c8_i32 = arith.constant 8 : i32
    %64 = arith.muli %arg1, %c8_i32 : i32
    %c0_30 = arith.constant 0 : index
    %c0_31 = arith.constant 0 : index
    %65 = vector.load %arg9[%c0_30, %c0_31] : memref<8x128xf32, #tpu.memory_space<vmem>>, vector<8x128xf32>
    %c0_32 = arith.constant 0 : index
    %c0_33 = arith.constant 0 : index
    %66 = vector.load %arg10[%c0_32, %c0_33] : memref<8x128xf32, #tpu.memory_space<vmem>>, vector<8x128xf32>
    %c0_i32_34 = arith.constant 0 : i32
    %67 = arith.index_cast %c0_i32_34 : i32 to index
    %c0_35 = arith.constant 0 : index
    %c0_36 = arith.constant 0 : index
    %68 = vector.load %arg11[%67, %c0_35, %c0_36] : memref<8x8x512xf32, #tpu.memory_space<vmem>>, vector<1x8x512xf32>
    %69 = vector.shape_cast %68 : vector<1x8x512xf32> to vector<8x512xf32>
    %cst_37 = arith.constant dense<0.000000e+00> : vector<8x512xf32>
    %70 = tpu.matmul %65, %63, %cst_37 {dimension_numbers = #tpu.dot_dimension_numbers<[1], [0], [0], [1], [0, 0, 1, 1], [], []>} : vector<8x128xf32>, vector<128x512xf32>, vector<8x512xf32> -> vector<8x512xf32>
    %71 = arith.addf %69, %70 : vector<8x512xf32>
    %72 = arith.mulf %71, %59 : vector<8x512xf32>
    %73 = math.tanh %72 : vector<8x512xf32>
    %74 = arith.mulf %73, %59 : vector<8x512xf32>
    %75 = arith.addf %74, %62 : vector<8x512xf32>
    %76 = vector.extract_strided_slice %75 {offsets = [0, 0], sizes = [8, 128], strides = [1, 1]} : vector<8x512xf32> to vector<8x128xf32>
    %77 = vector.extract_strided_slice %75 {offsets = [0, 128], sizes = [8, 128], strides = [1, 1]} : vector<8x512xf32> to vector<8x128xf32>
    %78 = vector.extract_strided_slice %75 {offsets = [0, 256], sizes = [8, 128], strides = [1, 1]} : vector<8x512xf32> to vector<8x128xf32>
    %79 = vector.extract_strided_slice %75 {offsets = [0, 384], sizes = [8, 128], strides = [1, 1]} : vector<8x512xf32> to vector<8x128xf32>
    %80 = arith.mulf %77, %66 : vector<8x128xf32>
    %81 = arith.mulf %76, %78 : vector<8x128xf32>
    %82 = arith.addf %80, %81 : vector<8x128xf32>
    %83 = math.tanh %82 : vector<8x128xf32>
    %84 = arith.mulf %79, %83 : vector<8x128xf32>
    %85 = arith.addi %64, %c0_i32_34 : i32
    %c20_i32 = arith.constant 20 : i32
    %86 = arith.cmpi slt, %85, %c20_i32 : i32
    %87 = arith.select %86, %84, %65 : vector<8x128xf32>
    %88 = arith.select %86, %82, %66 : vector<8x128xf32>
    %c1_i32 = arith.constant 1 : i32
    %89 = arith.index_cast %c1_i32 : i32 to index
    %c0_38 = arith.constant 0 : index
    %c0_39 = arith.constant 0 : index
    %90 = vector.load %arg11[%89, %c0_38, %c0_39] : memref<8x8x512xf32, #tpu.memory_space<vmem>>, vector<1x8x512xf32>
    %91 = vector.shape_cast %90 : vector<1x8x512xf32> to vector<8x512xf32>
    %cst_40 = arith.constant dense<0.000000e+00> : vector<8x512xf32>
    %92 = tpu.matmul %87, %63, %cst_40 {dimension_numbers = #tpu.dot_dimension_numbers<[1], [0], [0], [1], [0, 0, 1, 1], [], []>} : vector<8x128xf32>, vector<128x512xf32>, vector<8x512xf32> -> vector<8x512xf32>
    %93 = arith.addf %91, %92 : vector<8x512xf32>
    %94 = arith.mulf %93, %59 : vector<8x512xf32>
    %95 = math.tanh %94 : vector<8x512xf32>
    %96 = arith.mulf %95, %59 : vector<8x512xf32>
    %97 = arith.addf %96, %62 : vector<8x512xf32>
    %98 = vector.extract_strided_slice %97 {offsets = [0, 0], sizes = [8, 128], strides = [1, 1]} : vector<8x512xf32> to vector<8x128xf32>
    %99 = vector.extract_strided_slice %97 {offsets = [0, 128], sizes = [8, 128], strides = [1, 1]} : vector<8x512xf32> to vector<8x128xf32>
    %100 = vector.extract_strided_slice %97 {offsets = [0, 256], sizes = [8, 128], strides = [1, 1]} : vector<8x512xf32> to vector<8x128xf32>
    %101 = vector.extract_strided_slice %97 {offsets = [0, 384], sizes = [8, 128], strides = [1, 1]} : vector<8x512xf32> to vector<8x128xf32>
    %102 = arith.mulf %99, %88 : vector<8x128xf32>
    %103 = arith.mulf %98, %100 : vector<8x128xf32>
    %104 = arith.addf %102, %103 : vector<8x128xf32>
    %105 = math.tanh %104 : vector<8x128xf32>
    %106 = arith.mulf %101, %105 : vector<8x128xf32>
    %107 = arith.addi %64, %c1_i32 : i32
    %c20_i32_41 = arith.constant 20 : i32
    %108 = arith.cmpi slt, %107, %c20_i32_41 : i32
    %109 = arith.select %108, %106, %87 : vector<8x128xf32>
    %110 = arith.select %108, %104, %88 : vector<8x128xf32>
    %c2_i32 = arith.constant 2 : i32
    %111 = arith.index_cast %c2_i32 : i32 to index
    %c0_42 = arith.constant 0 : index
    %c0_43 = arith.constant 0 : index
    %112 = vector.load %arg11[%111, %c0_42, %c0_43] : memref<8x8x512xf32, #tpu.memory_space<vmem>>, vector<1x8x512xf32>
    %113 = vector.shape_cast %112 : vector<1x8x512xf32> to vector<8x512xf32>
    %cst_44 = arith.constant dense<0.000000e+00> : vector<8x512xf32>
    %114 = tpu.matmul %109, %63, %cst_44 {dimension_numbers = #tpu.dot_dimension_numbers<[1], [0], [0], [1], [0, 0, 1, 1], [], []>} : vector<8x128xf32>, vector<128x512xf32>, vector<8x512xf32> -> vector<8x512xf32>
    %115 = arith.addf %113, %114 : vector<8x512xf32>
    %116 = arith.mulf %115, %59 : vector<8x512xf32>
    %117 = math.tanh %116 : vector<8x512xf32>
    %118 = arith.mulf %117, %59 : vector<8x512xf32>
    %119 = arith.addf %118, %62 : vector<8x512xf32>
    %120 = vector.extract_strided_slice %119 {offsets = [0, 0], sizes = [8, 128], strides = [1, 1]} : vector<8x512xf32> to vector<8x128xf32>
    %121 = vector.extract_strided_slice %119 {offsets = [0, 128], sizes = [8, 128], strides = [1, 1]} : vector<8x512xf32> to vector<8x128xf32>
    %122 = vector.extract_strided_slice %119 {offsets = [0, 256], sizes = [8, 128], strides = [1, 1]} : vector<8x512xf32> to vector<8x128xf32>
    %123 = vector.extract_strided_slice %119 {offsets = [0, 384], sizes = [8, 128], strides = [1, 1]} : vector<8x512xf32> to vector<8x128xf32>
    %124 = arith.mulf %121, %110 : vector<8x128xf32>
    %125 = arith.mulf %120, %122 : vector<8x128xf32>
    %126 = arith.addf %124, %125 : vector<8x128xf32>
    %127 = math.tanh %126 : vector<8x128xf32>
    %128 = arith.mulf %123, %127 : vector<8x128xf32>
    %129 = arith.addi %64, %c2_i32 : i32
    %c20_i32_45 = arith.constant 20 : i32
    %130 = arith.cmpi slt, %129, %c20_i32_45 : i32
    %131 = arith.select %130, %128, %109 : vector<8x128xf32>
    %132 = arith.select %130, %126, %110 : vector<8x128xf32>
    %c3_i32 = arith.constant 3 : i32
    %133 = arith.index_cast %c3_i32 : i32 to index
    %c0_46 = arith.constant 0 : index
    %c0_47 = arith.constant 0 : index
    %134 = vector.load %arg11[%133, %c0_46, %c0_47] : memref<8x8x512xf32, #tpu.memory_space<vmem>>, vector<1x8x512xf32>
    %135 = vector.shape_cast %134 : vector<1x8x512xf32> to vector<8x512xf32>
    %cst_48 = arith.constant dense<0.000000e+00> : vector<8x512xf32>
    %136 = tpu.matmul %131, %63, %cst_48 {dimension_numbers = #tpu.dot_dimension_numbers<[1], [0], [0], [1], [0, 0, 1, 1], [], []>} : vector<8x128xf32>, vector<128x512xf32>, vector<8x512xf32> -> vector<8x512xf32>
    %137 = arith.addf %135, %136 : vector<8x512xf32>
    %138 = arith.mulf %137, %59 : vector<8x512xf32>
    %139 = math.tanh %138 : vector<8x512xf32>
    %140 = arith.mulf %139, %59 : vector<8x512xf32>
    %141 = arith.addf %140, %62 : vector<8x512xf32>
    %142 = vector.extract_strided_slice %141 {offsets = [0, 0], sizes = [8, 128], strides = [1, 1]} : vector<8x512xf32> to vector<8x128xf32>
    %143 = vector.extract_strided_slice %141 {offsets = [0, 128], sizes = [8, 128], strides = [1, 1]} : vector<8x512xf32> to vector<8x128xf32>
    %144 = vector.extract_strided_slice %141 {offsets = [0, 256], sizes = [8, 128], strides = [1, 1]} : vector<8x512xf32> to vector<8x128xf32>
    %145 = vector.extract_strided_slice %141 {offsets = [0, 384], sizes = [8, 128], strides = [1, 1]} : vector<8x512xf32> to vector<8x128xf32>
    %146 = arith.mulf %143, %132 : vector<8x128xf32>
    %147 = arith.mulf %142, %144 : vector<8x128xf32>
    %148 = arith.addf %146, %147 : vector<8x128xf32>
    %149 = math.tanh %148 : vector<8x128xf32>
    %150 = arith.mulf %145, %149 : vector<8x128xf32>
    %151 = arith.addi %64, %c3_i32 : i32
    %c20_i32_49 = arith.constant 20 : i32
    %152 = arith.cmpi slt, %151, %c20_i32_49 : i32
    %153 = arith.select %152, %150, %131 : vector<8x128xf32>
    %154 = arith.select %152, %148, %132 : vector<8x128xf32>
    %c4_i32 = arith.constant 4 : i32
    %155 = arith.index_cast %c4_i32 : i32 to index
    %c0_50 = arith.constant 0 : index
    %c0_51 = arith.constant 0 : index
    %156 = vector.load %arg11[%155, %c0_50, %c0_51] : memref<8x8x512xf32, #tpu.memory_space<vmem>>, vector<1x8x512xf32>
    %157 = vector.shape_cast %156 : vector<1x8x512xf32> to vector<8x512xf32>
    %cst_52 = arith.constant dense<0.000000e+00> : vector<8x512xf32>
    %158 = tpu.matmul %153, %63, %cst_52 {dimension_numbers = #tpu.dot_dimension_numbers<[1], [0], [0], [1], [0, 0, 1, 1], [], []>} : vector<8x128xf32>, vector<128x512xf32>, vector<8x512xf32> -> vector<8x512xf32>
    %159 = arith.addf %157, %158 : vector<8x512xf32>
    %160 = arith.mulf %159, %59 : vector<8x512xf32>
    %161 = math.tanh %160 : vector<8x512xf32>
    %162 = arith.mulf %161, %59 : vector<8x512xf32>
    %163 = arith.addf %162, %62 : vector<8x512xf32>
    %164 = vector.extract_strided_slice %163 {offsets = [0, 0], sizes = [8, 128], strides = [1, 1]} : vector<8x512xf32> to vector<8x128xf32>
    %165 = vector.extract_strided_slice %163 {offsets = [0, 128], sizes = [8, 128], strides = [1, 1]} : vector<8x512xf32> to vector<8x128xf32>
    %166 = vector.extract_strided_slice %163 {offsets = [0, 256], sizes = [8, 128], strides = [1, 1]} : vector<8x512xf32> to vector<8x128xf32>
    %167 = vector.extract_strided_slice %163 {offsets = [0, 384], sizes = [8, 128], strides = [1, 1]} : vector<8x512xf32> to vector<8x128xf32>
    %168 = arith.mulf %165, %154 : vector<8x128xf32>
    %169 = arith.mulf %164, %166 : vector<8x128xf32>
    %170 = arith.addf %168, %169 : vector<8x128xf32>
    %171 = math.tanh %170 : vector<8x128xf32>
    %172 = arith.mulf %167, %171 : vector<8x128xf32>
    %173 = arith.addi %64, %c4_i32 : i32
    %c20_i32_53 = arith.constant 20 : i32
    %174 = arith.cmpi slt, %173, %c20_i32_53 : i32
    %175 = arith.select %174, %172, %153 : vector<8x128xf32>
    %176 = arith.select %174, %170, %154 : vector<8x128xf32>
    %c5_i32 = arith.constant 5 : i32
    %177 = arith.index_cast %c5_i32 : i32 to index
    %c0_54 = arith.constant 0 : index
    %c0_55 = arith.constant 0 : index
    %178 = vector.load %arg11[%177, %c0_54, %c0_55] : memref<8x8x512xf32, #tpu.memory_space<vmem>>, vector<1x8x512xf32>
    %179 = vector.shape_cast %178 : vector<1x8x512xf32> to vector<8x512xf32>
    %cst_56 = arith.constant dense<0.000000e+00> : vector<8x512xf32>
    %180 = tpu.matmul %175, %63, %cst_56 {dimension_numbers = #tpu.dot_dimension_numbers<[1], [0], [0], [1], [0, 0, 1, 1], [], []>} : vector<8x128xf32>, vector<128x512xf32>, vector<8x512xf32> -> vector<8x512xf32>
    %181 = arith.addf %179, %180 : vector<8x512xf32>
    %182 = arith.mulf %181, %59 : vector<8x512xf32>
    %183 = math.tanh %182 : vector<8x512xf32>
    %184 = arith.mulf %183, %59 : vector<8x512xf32>
    %185 = arith.addf %184, %62 : vector<8x512xf32>
    %186 = vector.extract_strided_slice %185 {offsets = [0, 0], sizes = [8, 128], strides = [1, 1]} : vector<8x512xf32> to vector<8x128xf32>
    %187 = vector.extract_strided_slice %185 {offsets = [0, 128], sizes = [8, 128], strides = [1, 1]} : vector<8x512xf32> to vector<8x128xf32>
    %188 = vector.extract_strided_slice %185 {offsets = [0, 256], sizes = [8, 128], strides = [1, 1]} : vector<8x512xf32> to vector<8x128xf32>
    %189 = vector.extract_strided_slice %185 {offsets = [0, 384], sizes = [8, 128], strides = [1, 1]} : vector<8x512xf32> to vector<8x128xf32>
    %190 = arith.mulf %187, %176 : vector<8x128xf32>
    %191 = arith.mulf %186, %188 : vector<8x128xf32>
    %192 = arith.addf %190, %191 : vector<8x128xf32>
    %193 = math.tanh %192 : vector<8x128xf32>
    %194 = arith.mulf %189, %193 : vector<8x128xf32>
    %195 = arith.addi %64, %c5_i32 : i32
    %c20_i32_57 = arith.constant 20 : i32
    %196 = arith.cmpi slt, %195, %c20_i32_57 : i32
    %197 = arith.select %196, %194, %175 : vector<8x128xf32>
    %198 = arith.select %196, %192, %176 : vector<8x128xf32>
    %c6_i32 = arith.constant 6 : i32
    %199 = arith.index_cast %c6_i32 : i32 to index
    %c0_58 = arith.constant 0 : index
    %c0_59 = arith.constant 0 : index
    %200 = vector.load %arg11[%199, %c0_58, %c0_59] : memref<8x8x512xf32, #tpu.memory_space<vmem>>, vector<1x8x512xf32>
    %201 = vector.shape_cast %200 : vector<1x8x512xf32> to vector<8x512xf32>
    %cst_60 = arith.constant dense<0.000000e+00> : vector<8x512xf32>
    %202 = tpu.matmul %197, %63, %cst_60 {dimension_numbers = #tpu.dot_dimension_numbers<[1], [0], [0], [1], [0, 0, 1, 1], [], []>} : vector<8x128xf32>, vector<128x512xf32>, vector<8x512xf32> -> vector<8x512xf32>
    %203 = arith.addf %201, %202 : vector<8x512xf32>
    %204 = arith.mulf %203, %59 : vector<8x512xf32>
    %205 = math.tanh %204 : vector<8x512xf32>
    %206 = arith.mulf %205, %59 : vector<8x512xf32>
    %207 = arith.addf %206, %62 : vector<8x512xf32>
    %208 = vector.extract_strided_slice %207 {offsets = [0, 0], sizes = [8, 128], strides = [1, 1]} : vector<8x512xf32> to vector<8x128xf32>
    %209 = vector.extract_strided_slice %207 {offsets = [0, 128], sizes = [8, 128], strides = [1, 1]} : vector<8x512xf32> to vector<8x128xf32>
    %210 = vector.extract_strided_slice %207 {offsets = [0, 256], sizes = [8, 128], strides = [1, 1]} : vector<8x512xf32> to vector<8x128xf32>
    %211 = vector.extract_strided_slice %207 {offsets = [0, 384], sizes = [8, 128], strides = [1, 1]} : vector<8x512xf32> to vector<8x128xf32>
    %212 = arith.mulf %209, %198 : vector<8x128xf32>
    %213 = arith.mulf %208, %210 : vector<8x128xf32>
    %214 = arith.addf %212, %213 : vector<8x128xf32>
    %215 = math.tanh %214 : vector<8x128xf32>
    %216 = arith.mulf %211, %215 : vector<8x128xf32>
    %217 = arith.addi %64, %c6_i32 : i32
    %c20_i32_61 = arith.constant 20 : i32
    %218 = arith.cmpi slt, %217, %c20_i32_61 : i32
    %219 = arith.select %218, %216, %197 : vector<8x128xf32>
    %220 = arith.select %218, %214, %198 : vector<8x128xf32>
    %c7_i32 = arith.constant 7 : i32
    %221 = arith.index_cast %c7_i32 : i32 to index
    %c0_62 = arith.constant 0 : index
    %c0_63 = arith.constant 0 : index
    %222 = vector.load %arg11[%221, %c0_62, %c0_63] : memref<8x8x512xf32, #tpu.memory_space<vmem>>, vector<1x8x512xf32>
    %223 = vector.shape_cast %222 : vector<1x8x512xf32> to vector<8x512xf32>
    %cst_64 = arith.constant dense<0.000000e+00> : vector<8x512xf32>
    %224 = tpu.matmul %219, %63, %cst_64 {dimension_numbers = #tpu.dot_dimension_numbers<[1], [0], [0], [1], [0, 0, 1, 1], [], []>} : vector<8x128xf32>, vector<128x512xf32>, vector<8x512xf32> -> vector<8x512xf32>
    %225 = arith.addf %223, %224 : vector<8x512xf32>
    %226 = arith.mulf %225, %59 : vector<8x512xf32>
    %227 = math.tanh %226 : vector<8x512xf32>
    %228 = arith.mulf %227, %59 : vector<8x512xf32>
    %229 = arith.addf %228, %62 : vector<8x512xf32>
    %230 = vector.extract_strided_slice %229 {offsets = [0, 0], sizes = [8, 128], strides = [1, 1]} : vector<8x512xf32> to vector<8x128xf32>
    %231 = vector.extract_strided_slice %229 {offsets = [0, 128], sizes = [8, 128], strides = [1, 1]} : vector<8x512xf32> to vector<8x128xf32>
    %232 = vector.extract_strided_slice %229 {offsets = [0, 256], sizes = [8, 128], strides = [1, 1]} : vector<8x512xf32> to vector<8x128xf32>
    %233 = vector.extract_strided_slice %229 {offsets = [0, 384], sizes = [8, 128], strides = [1, 1]} : vector<8x512xf32> to vector<8x128xf32>
    %234 = arith.mulf %231, %220 : vector<8x128xf32>
    %235 = arith.mulf %230, %232 : vector<8x128xf32>
    %236 = arith.addf %234, %235 : vector<8x128xf32>
    %237 = math.tanh %236 : vector<8x128xf32>
    %238 = arith.mulf %233, %237 : vector<8x128xf32>
    %239 = arith.addi %64, %c7_i32 : i32
    %c20_i32_65 = arith.constant 20 : i32
    %240 = arith.cmpi slt, %239, %c20_i32_65 : i32
    %241 = arith.select %240, %238, %219 : vector<8x128xf32>
    %242 = arith.select %240, %236, %220 : vector<8x128xf32>
    %c8_i32_66 = arith.constant 8 : i32
    %c0_67 = arith.constant 0 : index
    %c0_68 = arith.constant 0 : index
    %243 = vector.load %arg9[%c0_67, %c0_68] : memref<8x128xf32, #tpu.memory_space<vmem>>, vector<8x128xf32>
    tpu.vector_store %arg9[%c0_67, %c0_68], %241 {strides = array<i32>} : memref<8x128xf32, #tpu.memory_space<vmem>>, vector<8x128xf32>,
    %c0_69 = arith.constant 0 : index
    %c0_70 = arith.constant 0 : index
    %244 = vector.load %arg10[%c0_69, %c0_70] : memref<8x128xf32, #tpu.memory_space<vmem>>, vector<8x128xf32>
    tpu.vector_store %arg10[%c0_69, %c0_70], %242 {strides = array<i32>} : memref<8x128xf32, #tpu.memory_space<vmem>>, vector<8x128xf32>,
    %c2_i32_71 = arith.constant 2 : i32
    %245 = arith.cmpi eq, %arg1, %c2_i32_71 : i32
    %246 = arith.extui %245 : i1 to i32
    %c0_i32_72 = arith.constant 0 : i32
    %247 = arith.cmpi ne, %246, %c0_i32_72 : i32
    scf.if %247 {
      %c0_73 = arith.constant 0 : index
      %c0_74 = arith.constant 0 : index
      %248 = vector.load %arg6[%c0_73, %c0_74] : memref<128x128xf32, #tpu.memory_space<vmem>>, vector<128x128xf32>
      %cst_75 = arith.constant dense<0.000000e+00> : vector<8x128xf32>
      %249 = tpu.matmul %241, %248, %cst_75 {dimension_numbers = #tpu.dot_dimension_numbers<[1], [0], [0], [1], [0, 0, 1, 1], [], []>} : vector<8x128xf32>, vector<128x128xf32>, vector<8x128xf32> -> vector<8x128xf32>
      %c0_76 = arith.constant 0 : index
      %c0_77 = arith.constant 0 : index
      %250 = vector.load %arg7[%c0_76, %c0_77] : memref<1x128xf32, #tpu.memory_space<vmem>>, vector<1x128xf32>
      %251 = vector.broadcast %250 : vector<1x128xf32> to vector<8x128xf32>
      %252 = arith.addf %249, %251 : vector<8x128xf32>
      %c0_78 = arith.constant 0 : index
      %c0_79 = arith.constant 0 : index
      %253 = vector.load %arg8[%c0_78, %c0_79] : memref<8x128xf32, #tpu.memory_space<vmem>>, vector<8x128xf32>
      tpu.vector_store %arg8[%c0_78, %c0_79], %252 {strides = array<i32>} : memref<8x128xf32, #tpu.memory_space<vmem>>, vector<8x128xf32>,
    } else {
    }
    return
  }
  func.func @transform_0(%arg0: i32, %arg1: i32) -> (i32, i32, i32) {
    %c0_i32 = arith.constant 0 : i32
    %c0_i32_0 = arith.constant 0 : i32
    return %arg0, %arg1, %c0_i32 : i32, i32, i32
  }
  func.func @transform_1(%arg0: i32, %arg1: i32) -> (i32, i32) {
    %c0_i32 = arith.constant 0 : i32
    %c0_i32_0 = arith.constant 0 : i32
    %c0_i32_1 = arith.constant 0 : i32
    return %c0_i32, %c0_i32_0 : i32, i32
  }
  func.func @transform_2(%arg0: i32, %arg1: i32) -> (i32, i32) {
    %c0_i32 = arith.constant 0 : i32
    %c0_i32_0 = arith.constant 0 : i32
    %c0_i32_1 = arith.constant 0 : i32
    return %c0_i32, %c0_i32_0 : i32, i32
  }
  func.func @transform_3(%arg0: i32, %arg1: i32) -> (i32, i32) {
    %c0_i32 = arith.constant 0 : i32
    %c0_i32_0 = arith.constant 0 : i32
    %c0_i32_1 = arith.constant 0 : i32
    return %c0_i32, %c0_i32_0 : i32, i32
  }
  func.func @transform_4(%arg0: i32, %arg1: i32) -> (i32, i32) {
    %c0_i32 = arith.constant 0 : i32
    %c0_i32_0 = arith.constant 0 : i32
    %c0_i32_1 = arith.constant 0 : i32
    return %c0_i32, %c0_i32_0 : i32, i32
  }
  func.func @transform_5(%arg0: i32, %arg1: i32) -> (i32, i32) {
    %c0_i32 = arith.constant 0 : i32
    %c0_i32_0 = arith.constant 0 : i32
    %c0_i32_1 = arith.constant 0 : i32
    return %c0_i32, %c0_i32_0 : i32, i32
  }
  func.func @transform_6(%arg0: i32, %arg1: i32) -> (i32, i32) {
    %c0_i32 = arith.constant 0 : i32
    %c0_i32_0 = arith.constant 0 : i32
    return %arg0, %c0_i32 : i32, i32
  }
}

module attributes {stable_mosaic.version = 11 : i64} {
  func.func @kernel(%arg0: i32, %arg1: i32, %arg2: memref<8x8x16xf32, #tpu.memory_space<vmem>>, %arg3: memref<16x512xf32, #tpu.memory_space<vmem>>, %arg4: memref<128x512xf32, #tpu.memory_space<vmem>>, %arg5: memref<1x512xf32, #tpu.memory_space<vmem>>, %arg6: memref<128x128xf32, #tpu.memory_space<vmem>>, %arg7: memref<1x128xf32, #tpu.memory_space<vmem>>, %arg8: memref<8x128xf32, #tpu.memory_space<vmem>>, %arg9: memref<8x128xf32, #tpu.memory_space<vmem>>, %arg10: memref<8x128xf32, #tpu.memory_space<vmem>>, %arg11: memref<8x8x512xf32, #tpu.memory_space<vmem>>) attributes {dimension_semantics = [#tpu.dimension_semantics<parallel>, #tpu.dimension_semantics<arbitrary>], iteration_bounds = array<i64: 1, 3>, scalar_prefetch = 0 : i64, scratch_operands = 3 : i64, tpu.core_type = #tpu.core_type<tc>, window_params = [{transform_indices = @transform_0, window_bounds = array<i64: 8, 8, 16>}, {pipeline_mode = #tpu.pipeline_mode<synchronous>, transform_indices = @transform_1, window_bounds = array<i64: 16, 512>}, {pipeline_mode = #tpu.pipeline_mode<synchronous>, transform_indices = @transform_2, window_bounds = array<i64: 128, 512>}, {pipeline_mode = #tpu.pipeline_mode<synchronous>, transform_indices = @transform_3, window_bounds = array<i64: 1, 512>}, {pipeline_mode = #tpu.pipeline_mode<synchronous>, transform_indices = @transform_4, window_bounds = array<i64: 128, 128>}, {pipeline_mode = #tpu.pipeline_mode<synchronous>, transform_indices = @transform_5, window_bounds = array<i64: 1, 128>}, {transform_indices = @transform_6, window_bounds = array<i64: 8, 128>}]} {
    %c0_i32 = arith.constant 0 : i32
    %0 = arith.cmpi eq, %arg1, %c0_i32 : i32
    %1 = arith.extui %0 : i1 to i32
    %c0_i32_0 = arith.constant 0 : i32
    %2 = arith.cmpi ne, %1, %c0_i32_0 : i32
    scf.if %2 {
      %cst_73 = arith.constant 0.000000e+00 : f32
      %248 = vector.broadcast %cst_73 : f32 to vector<8x128xf32>
      %c0_74 = arith.constant 0 : index
      %c0_75 = arith.constant 0 : index
      %249 = vector.load %arg9[%c0_74, %c0_75] : memref<8x128xf32, #tpu.memory_space<vmem>>, vector<8x128xf32>
      tpu.vector_store %arg9[%c0_74, %c0_75], %248 {strides = array<i32>} : memref<8x128xf32, #tpu.memory_space<vmem>>, vector<8x128xf32>,
      %cst_76 = arith.constant 0.000000e+00 : f32
      %250 = vector.broadcast %cst_76 : f32 to vector<8x128xf32>
      %c0_77 = arith.constant 0 : index
      %c0_78 = arith.constant 0 : index
      %251 = vector.load %arg10[%c0_77, %c0_78] : memref<8x128xf32, #tpu.memory_space<vmem>>, vector<8x128xf32>
      tpu.vector_store %arg10[%c0_77, %c0_78], %250 {strides = array<i32>} : memref<8x128xf32, #tpu.memory_space<vmem>>, vector<8x128xf32>,
    } else {
    }
    %c0 = arith.constant 0 : index
    %c0_1 = arith.constant 0 : index
    %c0_2 = arith.constant 0 : index
    %3 = vector.load %arg2[%c0, %c0_1, %c0_2] : memref<8x8x16xf32, #tpu.memory_space<vmem>>, vector<8x8x16xf32>
    %4 = vector.shape_cast %3 : vector<8x8x16xf32> to vector<64x16xf32>
    %c0_3 = arith.constant 0 : index
    %c0_4 = arith.constant 0 : index
    %5 = vector.load %arg3[%c0_3, %c0_4] : memref<16x512xf32, #tpu.memory_space<vmem>>, vector<16x512xf32>
    %cst = arith.constant dense<0.000000e+00> : vector<64x512xf32>
    %6 = tpu.matmul %4, %5, %cst {dimension_numbers = #tpu.dot_dimension_numbers<[1], [0], [0], [1], [0, 0, 1, 1], [], []>} : vector<64x16xf32>, vector<16x512xf32>, vector<64x512xf32> -> vector<64x512xf32>
    %c0_5 = arith.constant 0 : index
    %c0_6 = arith.constant 0 : index
    %7 = vector.load %arg5[%c0_5, %c0_6] : memref<1x512xf32, #tpu.memory_space<vmem>>, vector<1x512xf32>
    %8 = vector.broadcast %7 : vector<1x512xf32> to vector<64x512xf32>
    %9 = arith.addf %6, %8 : vector<64x512xf32>
    %10 = vector.shape_cast %9 : vector<64x512xf32> to vector<8x8x512xf32>
    %11 = vector.extract_strided_slice %10 {offsets = [0, 0, 0], sizes = [8, 1, 512], strides = [1, 1, 1]} : vector<8x8x512xf32> to vector<8x1x512xf32>
    %12 = vector.shape_cast %11 : vector<8x1x512xf32> to vector<8x512xf32>
    %c0_7 = arith.constant 0 : index
    %c0_8 = arith.constant 0 : index
    %c0_9 = arith.constant 0 : index
    %13 = vector.load %arg11[%c0_7, %c0_8, %c0_9] : memref<8x8x512xf32, #tpu.memory_space<vmem>>, vector<1x8x512xf32>
    %14 = vector.shape_cast %13 : vector<1x8x512xf32> to vector<8x512xf32>
    %15 = vector.shape_cast %12 : vector<8x512xf32> to vector<1x8x512xf32>
    tpu.vector_store %arg11[%c0_7, %c0_8, %c0_9], %15 {strides = array<i32>} : memref<8x8x512xf32, #tpu.memory_space<vmem>>, vector<1x8x512xf32>,
    %16 = vector.extract_strided_slice %10 {offsets = [0, 1, 0], sizes = [8, 1, 512], strides = [1, 1, 1]} : vector<8x8x512xf32> to vector<8x1x512xf32>
    %17 = vector.shape_cast %16 : vector<8x1x512xf32> to vector<8x512xf32>
    %c1 = arith.constant 1 : index
    %c0_10 = arith.constant 0 : index
    %c0_11 = arith.constant 0 : index
    %18 = vector.load %arg11[%c1, %c0_10, %c0_11] : memref<8x8x512xf32, #tpu.memory_space<vmem>>, vector<1x8x512xf32>
    %19 = vector.shape_cast %18 : vector<1x8x512xf32> to vector<8x512xf32>
    %20 = vector.shape_cast %17 : vector<8x512xf32> to vector<1x8x512xf32>
    tpu.vector_store %arg11[%c1, %c0_10, %c0_11], %20 {strides = array<i32>} : memref<8x8x512xf32, #tpu.memory_space<vmem>>, vector<1x8x512xf32>,
    %21 = vector.extract_strided_slice %10 {offsets = [0, 2, 0], sizes = [8, 1, 512], strides = [1, 1, 1]} : vector<8x8x512xf32> to vector<8x1x512xf32>
    %22 = vector.shape_cast %21 : vector<8x1x512xf32> to vector<8x512xf32>
    %c2 = arith.constant 2 : index
    %c0_12 = arith.constant 0 : index
    %c0_13 = arith.constant 0 : index
    %23 = vector.load %arg11[%c2, %c0_12, %c0_13] : memref<8x8x512xf32, #tpu.memory_space<vmem>>, vector<1x8x512xf32>
    %24 = vector.shape_cast %23 : vector<1x8x512xf32> to vector<8x512xf32>
    %25 = vector.shape_cast %22 : vector<8x512xf32> to vector<1x8x512xf32>
    tpu.vector_store %arg11[%c2, %c0_12, %c0_13], %25 {strides = array<i32>} : memref<8x8x512xf32, #tpu.memory_space<vmem>>, vector<1x8x512xf32>,
    %26 = vector.extract_strided_slice %10 {offsets = [0, 3, 0], sizes = [8, 1, 512], strides = [1, 1, 1]} : vector<8x8x512xf32> to vector<8x1x512xf32>
    %27 = vector.shape_cast %26 : vector<8x1x512xf32> to vector<8x512xf32>
    %c3 = arith.constant 3 : index
    %c0_14 = arith.constant 0 : index
    %c0_15 = arith.constant 0 : index
    %28 = vector.load %arg11[%c3, %c0_14, %c0_15] : memref<8x8x512xf32, #tpu.memory_space<vmem>>, vector<1x8x512xf32>
    %29 = vector.shape_cast %28 : vector<1x8x512xf32> to vector<8x512xf32>
    %30 = vector.shape_cast %27 : vector<8x512xf32> to vector<1x8x512xf32>
    tpu.vector_store %arg11[%c3, %c0_14, %c0_15], %30 {strides = array<i32>} : memref<8x8x512xf32, #tpu.memory_space<vmem>>, vector<1x8x512xf32>,
    %31 = vector.extract_strided_slice %10 {offsets = [0, 4, 0], sizes = [8, 1, 512], strides = [1, 1, 1]} : vector<8x8x512xf32> to vector<8x1x512xf32>
    %32 = vector.shape_cast %31 : vector<8x1x512xf32> to vector<8x512xf32>
    %c4 = arith.constant 4 : index
    %c0_16 = arith.constant 0 : index
    %c0_17 = arith.constant 0 : index
    %33 = vector.load %arg11[%c4, %c0_16, %c0_17] : memref<8x8x512xf32, #tpu.memory_space<vmem>>, vector<1x8x512xf32>
    %34 = vector.shape_cast %33 : vector<1x8x512xf32> to vector<8x512xf32>
    %35 = vector.shape_cast %32 : vector<8x512xf32> to vector<1x8x512xf32>
    tpu.vector_store %arg11[%c4, %c0_16, %c0_17], %35 {strides = array<i32>} : memref<8x8x512xf32, #tpu.memory_space<vmem>>, vector<1x8x512xf32>,
    %36 = vector.extract_strided_slice %10 {offsets = [0, 5, 0], sizes = [8, 1, 512], strides = [1, 1, 1]} : vector<8x8x512xf32> to vector<8x1x512xf32>
    %37 = vector.shape_cast %36 : vector<8x1x512xf32> to vector<8x512xf32>
    %c5 = arith.constant 5 : index
    %c0_18 = arith.constant 0 : index
    %c0_19 = arith.constant 0 : index
    %38 = vector.load %arg11[%c5, %c0_18, %c0_19] : memref<8x8x512xf32, #tpu.memory_space<vmem>>, vector<1x8x512xf32>
    %39 = vector.shape_cast %38 : vector<1x8x512xf32> to vector<8x512xf32>
    %40 = vector.shape_cast %37 : vector<8x512xf32> to vector<1x8x512xf32>
    tpu.vector_store %arg11[%c5, %c0_18, %c0_19], %40 {strides = array<i32>} : memref<8x8x512xf32, #tpu.memory_space<vmem>>, vector<1x8x512xf32>,
    %41 = vector.extract_strided_slice %10 {offsets = [0, 6, 0], sizes = [8, 1, 512], strides = [1, 1, 1]} : vector<8x8x512xf32> to vector<8x1x512xf32>
    %42 = vector.shape_cast %41 : vector<8x1x512xf32> to vector<8x512xf32>
    %c6 = arith.constant 6 : index
    %c0_20 = arith.constant 0 : index
    %c0_21 = arith.constant 0 : index
    %43 = vector.load %arg11[%c6, %c0_20, %c0_21] : memref<8x8x512xf32, #tpu.memory_space<vmem>>, vector<1x8x512xf32>
    %44 = vector.shape_cast %43 : vector<1x8x512xf32> to vector<8x512xf32>
    %45 = vector.shape_cast %42 : vector<8x512xf32> to vector<1x8x512xf32>
    tpu.vector_store %arg11[%c6, %c0_20, %c0_21], %45 {strides = array<i32>} : memref<8x8x512xf32, #tpu.memory_space<vmem>>, vector<1x8x512xf32>,
    %46 = vector.extract_strided_slice %10 {offsets = [0, 7, 0], sizes = [8, 1, 512], strides = [1, 1, 1]} : vector<8x8x512xf32> to vector<8x1x512xf32>
    %47 = vector.shape_cast %46 : vector<8x1x512xf32> to vector<8x512xf32>
    %c7 = arith.constant 7 : index
    %c0_22 = arith.constant 0 : index
    %c0_23 = arith.constant 0 : index
    %48 = vector.load %arg11[%c7, %c0_22, %c0_23] : memref<8x8x512xf32, #tpu.memory_space<vmem>>, vector<1x8x512xf32>
    %49 = vector.shape_cast %48 : vector<1x8x512xf32> to vector<8x512xf32>
    %50 = vector.shape_cast %47 : vector<8x512xf32> to vector<1x8x512xf32>
    tpu.vector_store %arg11[%c7, %c0_22, %c0_23], %50 {strides = array<i32>} : memref<8x8x512xf32, #tpu.memory_space<vmem>>, vector<1x8x512xf32>,
    %51 = tpu.iota {dimensions = array<i32: 1>} : vector<8x512xi32>
    %c256_i32 = arith.constant 256 : i32
    %52 = vector.broadcast %c256_i32 : i32 to vector<8x512xi32>
    %53 = arith.cmpi sge, %51, %52 : vector<8x512xi32>
    %c384_i32 = arith.constant 384 : i32
    %54 = vector.broadcast %c384_i32 : i32 to vector<8x512xi32>
    %55 = arith.cmpi slt, %51, %54 : vector<8x512xi32>
    %56 = arith.andi %53, %55 : vector<8x512xi1>
    %cst_24 = arith.constant 1.000000e+00 : f32
    %cst_25 = arith.constant 5.000000e-01 : f32
    %57 = vector.broadcast %cst_24 : f32 to vector<8x512xf32>
    %58 = vector.broadcast %cst_25 : f32 to vector<8x512xf32>
    %59 = arith.select %56, %57, %58 : vector<8x512xi1>, vector<8x512xf32>
    %cst_26 = arith.constant 0.000000e+00 : f32
    %cst_27 = arith.constant 5.000000e-01 : f32
    %60 = vector.broadcast %cst_26 : f32 to vector<8x512xf32>
    %61 = vector.broadcast %cst_27 : f32 to vector<8x512xf32>
    %62 = arith.select %56, %60, %61 : vector<8x512xi1>, vector<8x512xf32>
    %c0_28 = arith.constant 0 : index
    %c0_29 = arith.constant 0 : index
    %63 = vector.load %arg4[%c0_28, %c0_29] : memref<128x512xf32, #tpu.memory_space<vmem>>, vector<128x512xf32>
    %c8_i32 = arith.constant 8 : i32
    %64 = arith.muli %arg1, %c8_i32 : i32
    %c0_30 = arith.constant 0 : index
    %c0_31 = arith.constant 0 : index
    %65 = vector.load %arg9[%c0_30, %c0_31] : memref<8x128xf32, #tpu.memory_space<vmem>>, vector<8x128xf32>
    %c0_32 = arith.constant 0 : index
    %c0_33 = arith.constant 0 : index
    %66 = vector.load %arg10[%c0_32, %c0_33] : memref<8x128xf32, #tpu.memory_space<vmem>>, vector<8x128xf32>
    %c0_i32_34 = arith.constant 0 : i32
    %67 = arith.index_cast %c0_i32_34 : i32 to index
    %c0_35 = arith.constant 0 : index
    %c0_36 = arith.constant 0 : index
    %68 = vector.load %arg11[%67, %c0_35, %c0_36] : memref<8x8x512xf32, #tpu.memory_space<vmem>>, vector<1x8x512xf32>
    %69 = vector.shape_cast %68 : vector<1x8x512xf32> to vector<8x512xf32>
    %cst_37 = arith.constant dense<0.000000e+00> : vector<8x512xf32>
    %70 = tpu.matmul %65, %63, %cst_37 {dimension_numbers = #tpu.dot_dimension_numbers<[1], [0], [0], [1], [0, 0, 1, 1], [], []>} : vector<8x128xf32>, vector<128x512xf32>, vector<8x512xf32> -> vector<8x512xf32>
    %71 = arith.addf %69, %70 : vector<8x512xf32>
    %72 = arith.mulf %71, %59 : vector<8x512xf32>
    %73 = math.tanh %72 : vector<8x512xf32>
    %74 = arith.mulf %73, %59 : vector<8x512xf32>
    %75 = arith.addf %74, %62 : vector<8x512xf32>
    %76 = vector.extract_strided_slice %75 {offsets = [0, 0], sizes = [8, 128], strides = [1, 1]} : vector<8x512xf32> to vector<8x128xf32>
    %77 = vector.extract_strided_slice %75 {offsets = [0, 128], sizes = [8, 128], strides = [1, 1]} : vector<8x512xf32> to vector<8x128xf32>
    %78 = vector.extract_strided_slice %75 {offsets = [0, 256], sizes = [8, 128], strides = [1, 1]} : vector<8x512xf32> to vector<8x128xf32>
    %79 = vector.extract_strided_slice %75 {offsets = [0, 384], sizes = [8, 128], strides = [1, 1]} : vector<8x512xf32> to vector<8x128xf32>
    %80 = arith.mulf %77, %66 : vector<8x128xf32>
    %81 = arith.mulf %76, %78 : vector<8x128xf32>
    %82 = arith.addf %80, %81 : vector<8x128xf32>
    %83 = math.tanh %82 : vector<8x128xf32>
    %84 = arith.mulf %79, %83 : vector<8x128xf32>
    %85 = arith.addi %64, %c0_i32_34 : i32
    %c20_i32 = arith.constant 20 : i32
    %86 = arith.cmpi slt, %85, %c20_i32 : i32
    %87 = arith.select %86, %84, %65 : vector<8x128xf32>
    %88 = arith.select %86, %82, %66 : vector<8x128xf32>
    %c1_i32 = arith.constant 1 : i32
    %89 = arith.index_cast %c1_i32 : i32 to index
    %c0_38 = arith.constant 0 : index
    %c0_39 = arith.constant 0 : index
    %90 = vector.load %arg11[%89, %c0_38, %c0_39] : memref<8x8x512xf32, #tpu.memory_space<vmem>>, vector<1x8x512xf32>
    %91 = vector.shape_cast %90 : vector<1x8x512xf32> to vector<8x512xf32>
    %cst_40 = arith.constant dense<0.000000e+00> : vector<8x512xf32>
    %92 = tpu.matmul %87, %63, %cst_40 {dimension_numbers = #tpu.dot_dimension_numbers<[1], [0], [0], [1], [0, 0, 1, 1], [], []>} : vector<8x128xf32>, vector<128x512xf32>, vector<8x512xf32> -> vector<8x512xf32>
    %93 = arith.addf %91, %92 : vector<8x512xf32>
    %94 = arith.mulf %93, %59 : vector<8x512xf32>
    %95 = math.tanh %94 : vector<8x512xf32>
    %96 = arith.mulf %95, %59 : vector<8x512xf32>
    %97 = arith.addf %96, %62 : vector<8x512xf32>
    %98 = vector.extract_strided_slice %97 {offsets = [0, 0], sizes = [8, 128], strides = [1, 1]} : vector<8x512xf32> to vector<8x128xf32>
    %99 = vector.extract_strided_slice %97 {offsets = [0, 128], sizes = [8, 128], strides = [1, 1]} : vector<8x512xf32> to vector<8x128xf32>
    %100 = vector.extract_strided_slice %97 {offsets = [0, 256], sizes = [8, 128], strides = [1, 1]} : vector<8x512xf32> to vector<8x128xf32>
    %101 = vector.extract_strided_slice %97 {offsets = [0, 384], sizes = [8, 128], strides = [1, 1]} : vector<8x512xf32> to vector<8x128xf32>
    %102 = arith.mulf %99, %88 : vector<8x128xf32>
    %103 = arith.mulf %98, %100 : vector<8x128xf32>
    %104 = arith.addf %102, %103 : vector<8x128xf32>
    %105 = math.tanh %104 : vector<8x128xf32>
    %106 = arith.mulf %101, %105 : vector<8x128xf32>
    %107 = arith.addi %64, %c1_i32 : i32
    %c20_i32_41 = arith.constant 20 : i32
    %108 = arith.cmpi slt, %107, %c20_i32_41 : i32
    %109 = arith.select %108, %106, %87 : vector<8x128xf32>
    %110 = arith.select %108, %104, %88 : vector<8x128xf32>
    %c2_i32 = arith.constant 2 : i32
    %111 = arith.index_cast %c2_i32 : i32 to index
    %c0_42 = arith.constant 0 : index
    %c0_43 = arith.constant 0 : index
    %112 = vector.load %arg11[%111, %c0_42, %c0_43] : memref<8x8x512xf32, #tpu.memory_space<vmem>>, vector<1x8x512xf32>
    %113 = vector.shape_cast %112 : vector<1x8x512xf32> to vector<8x512xf32>
    %cst_44 = arith.constant dense<0.000000e+00> : vector<8x512xf32>
    %114 = tpu.matmul %109, %63, %cst_44 {dimension_numbers = #tpu.dot_dimension_numbers<[1], [0], [0], [1], [0, 0, 1, 1], [], []>} : vector<8x128xf32>, vector<128x512xf32>, vector<8x512xf32> -> vector<8x512xf32>
    %115 = arith.addf %113, %114 : vector<8x512xf32>
    %116 = arith.mulf %115, %59 : vector<8x512xf32>
    %117 = math.tanh %116 : vector<8x512xf32>
    %118 = arith.mulf %117, %59 : vector<8x512xf32>
    %119 = arith.addf %118, %62 : vector<8x512xf32>
    %120 = vector.extract_strided_slice %119 {offsets = [0, 0], sizes = [8, 128], strides = [1, 1]} : vector<8x512xf32> to vector<8x128xf32>
    %121 = vector.extract_strided_slice %119 {offsets = [0, 128], sizes = [8, 128], strides = [1, 1]} : vector<8x512xf32> to vector<8x128xf32>
    %122 = vector.extract_strided_slice %119 {offsets = [0, 256], sizes = [8, 128], strides = [1, 1]} : vector<8x512xf32> to vector<8x128xf32>
    %123 = vector.extract_strided_slice %119 {offsets = [0, 384], sizes = [8, 128], strides = [1, 1]} : vector<8x512xf32> to vector<8x128xf32>
    %124 = arith.mulf %121, %110 : vector<8x128xf32>
    %125 = arith.mulf %120, %122 : vector<8x128xf32>
    %126 = arith.addf %124, %125 : vector<8x128xf32>
    %127 = math.tanh %126 : vector<8x128xf32>
    %128 = arith.mulf %123, %127 : vector<8x128xf32>
    %129 = arith.addi %64, %c2_i32 : i32
    %c20_i32_45 = arith.constant 20 : i32
    %130 = arith.cmpi slt, %129, %c20_i32_45 : i32
    %131 = arith.select %130, %128, %109 : vector<8x128xf32>
    %132 = arith.select %130, %126, %110 : vector<8x128xf32>
    %c3_i32 = arith.constant 3 : i32
    %133 = arith.index_cast %c3_i32 : i32 to index
    %c0_46 = arith.constant 0 : index
    %c0_47 = arith.constant 0 : index
    %134 = vector.load %arg11[%133, %c0_46, %c0_47] : memref<8x8x512xf32, #tpu.memory_space<vmem>>, vector<1x8x512xf32>
    %135 = vector.shape_cast %134 : vector<1x8x512xf32> to vector<8x512xf32>
    %cst_48 = arith.constant dense<0.000000e+00> : vector<8x512xf32>
    %136 = tpu.matmul %131, %63, %cst_48 {dimension_numbers = #tpu.dot_dimension_numbers<[1], [0], [0], [1], [0, 0, 1, 1], [], []>} : vector<8x128xf32>, vector<128x512xf32>, vector<8x512xf32> -> vector<8x512xf32>
    %137 = arith.addf %135, %136 : vector<8x512xf32>
    %138 = arith.mulf %137, %59 : vector<8x512xf32>
    %139 = math.tanh %138 : vector<8x512xf32>
    %140 = arith.mulf %139, %59 : vector<8x512xf32>
    %141 = arith.addf %140, %62 : vector<8x512xf32>
    %142 = vector.extract_strided_slice %141 {offsets = [0, 0], sizes = [8, 128], strides = [1, 1]} : vector<8x512xf32> to vector<8x128xf32>
    %143 = vector.extract_strided_slice %141 {offsets = [0, 128], sizes = [8, 128], strides = [1, 1]} : vector<8x512xf32> to vector<8x128xf32>
    %144 = vector.extract_strided_slice %141 {offsets = [0, 256], sizes = [8, 128], strides = [1, 1]} : vector<8x512xf32> to vector<8x128xf32>
    %145 = vector.extract_strided_slice %141 {offsets = [0, 384], sizes = [8, 128], strides = [1, 1]} : vector<8x512xf32> to vector<8x128xf32>
    %146 = arith.mulf %143, %132 : vector<8x128xf32>
    %147 = arith.mulf %142, %144 : vector<8x128xf32>
    %148 = arith.addf %146, %147 : vector<8x128xf32>
    %149 = math.tanh %148 : vector<8x128xf32>
    %150 = arith.mulf %145, %149 : vector<8x128xf32>
    %151 = arith.addi %64, %c3_i32 : i32
    %c20_i32_49 = arith.constant 20 : i32
    %152 = arith.cmpi slt, %151, %c20_i32_49 : i32
    %153 = arith.select %152, %150, %131 : vector<8x128xf32>
    %154 = arith.select %152, %148, %132 : vector<8x128xf32>
    %c4_i32 = arith.constant 4 : i32
    %155 = arith.index_cast %c4_i32 : i32 to index
    %c0_50 = arith.constant 0 : index
    %c0_51 = arith.constant 0 : index
    %156 = vector.load %arg11[%155, %c0_50, %c0_51] : memref<8x8x512xf32, #tpu.memory_space<vmem>>, vector<1x8x512xf32>
    %157 = vector.shape_cast %156 : vector<1x8x512xf32> to vector<8x512xf32>
    %cst_52 = arith.constant dense<0.000000e+00> : vector<8x512xf32>
    %158 = tpu.matmul %153, %63, %cst_52 {dimension_numbers = #tpu.dot_dimension_numbers<[1], [0], [0], [1], [0, 0, 1, 1], [], []>} : vector<8x128xf32>, vector<128x512xf32>, vector<8x512xf32> -> vector<8x512xf32>
    %159 = arith.addf %157, %158 : vector<8x512xf32>
    %160 = arith.mulf %159, %59 : vector<8x512xf32>
    %161 = math.tanh %160 : vector<8x512xf32>
    %162 = arith.mulf %161, %59 : vector<8x512xf32>
    %163 = arith.addf %162, %62 : vector<8x512xf32>
    %164 = vector.extract_strided_slice %163 {offsets = [0, 0], sizes = [8, 128], strides = [1, 1]} : vector<8x512xf32> to vector<8x128xf32>
    %165 = vector.extract_strided_slice %163 {offsets = [0, 128], sizes = [8, 128], strides = [1, 1]} : vector<8x512xf32> to vector<8x128xf32>
    %166 = vector.extract_strided_slice %163 {offsets = [0, 256], sizes = [8, 128], strides = [1, 1]} : vector<8x512xf32> to vector<8x128xf32>
    %167 = vector.extract_strided_slice %163 {offsets = [0, 384], sizes = [8, 128], strides = [1, 1]} : vector<8x512xf32> to vector<8x128xf32>
    %168 = arith.mulf %165, %154 : vector<8x128xf32>
    %169 = arith.mulf %164, %166 : vector<8x128xf32>
    %170 = arith.addf %168, %169 : vector<8x128xf32>
    %171 = math.tanh %170 : vector<8x128xf32>
    %172 = arith.mulf %167, %171 : vector<8x128xf32>
    %173 = arith.addi %64, %c4_i32 : i32
    %c20_i32_53 = arith.constant 20 : i32
    %174 = arith.cmpi slt, %173, %c20_i32_53 : i32
    %175 = arith.select %174, %172, %153 : vector<8x128xf32>
    %176 = arith.select %174, %170, %154 : vector<8x128xf32>
    %c5_i32 = arith.constant 5 : i32
    %177 = arith.index_cast %c5_i32 : i32 to index
    %c0_54 = arith.constant 0 : index
    %c0_55 = arith.constant 0 : index
    %178 = vector.load %arg11[%177, %c0_54, %c0_55] : memref<8x8x512xf32, #tpu.memory_space<vmem>>, vector<1x8x512xf32>
    %179 = vector.shape_cast %178 : vector<1x8x512xf32> to vector<8x512xf32>
    %cst_56 = arith.constant dense<0.000000e+00> : vector<8x512xf32>
    %180 = tpu.matmul %175, %63, %cst_56 {dimension_numbers = #tpu.dot_dimension_numbers<[1], [0], [0], [1], [0, 0, 1, 1], [], []>} : vector<8x128xf32>, vector<128x512xf32>, vector<8x512xf32> -> vector<8x512xf32>
    %181 = arith.addf %179, %180 : vector<8x512xf32>
    %182 = arith.mulf %181, %59 : vector<8x512xf32>
    %183 = math.tanh %182 : vector<8x512xf32>
    %184 = arith.mulf %183, %59 : vector<8x512xf32>
    %185 = arith.addf %184, %62 : vector<8x512xf32>
    %186 = vector.extract_strided_slice %185 {offsets = [0, 0], sizes = [8, 128], strides = [1, 1]} : vector<8x512xf32> to vector<8x128xf32>
    %187 = vector.extract_strided_slice %185 {offsets = [0, 128], sizes = [8, 128], strides = [1, 1]} : vector<8x512xf32> to vector<8x128xf32>
    %188 = vector.extract_strided_slice %185 {offsets = [0, 256], sizes = [8, 128], strides = [1, 1]} : vector<8x512xf32> to vector<8x128xf32>
    %189 = vector.extract_strided_slice %185 {offsets = [0, 384], sizes = [8, 128], strides = [1, 1]} : vector<8x512xf32> to vector<8x128xf32>
    %190 = arith.mulf %187, %176 : vector<8x128xf32>
    %191 = arith.mulf %186, %188 : vector<8x128xf32>
    %192 = arith.addf %190, %191 : vector<8x128xf32>
    %193 = math.tanh %192 : vector<8x128xf32>
    %194 = arith.mulf %189, %193 : vector<8x128xf32>
    %195 = arith.addi %64, %c5_i32 : i32
    %c20_i32_57 = arith.constant 20 : i32
    %196 = arith.cmpi slt, %195, %c20_i32_57 : i32
    %197 = arith.select %196, %194, %175 : vector<8x128xf32>
    %198 = arith.select %196, %192, %176 : vector<8x128xf32>
    %c6_i32 = arith.constant 6 : i32
    %199 = arith.index_cast %c6_i32 : i32 to index
    %c0_58 = arith.constant 0 : index
    %c0_59 = arith.constant 0 : index
    %200 = vector.load %arg11[%199, %c0_58, %c0_59] : memref<8x8x512xf32, #tpu.memory_space<vmem>>, vector<1x8x512xf32>
    %201 = vector.shape_cast %200 : vector<1x8x512xf32> to vector<8x512xf32>
    %cst_60 = arith.constant dense<0.000000e+00> : vector<8x512xf32>
    %202 = tpu.matmul %197, %63, %cst_60 {dimension_numbers = #tpu.dot_dimension_numbers<[1], [0], [0], [1], [0, 0, 1, 1], [], []>} : vector<8x128xf32>, vector<128x512xf32>, vector<8x512xf32> -> vector<8x512xf32>
    %203 = arith.addf %201, %202 : vector<8x512xf32>
    %204 = arith.mulf %203, %59 : vector<8x512xf32>
    %205 = math.tanh %204 : vector<8x512xf32>
    %206 = arith.mulf %205, %59 : vector<8x512xf32>
    %207 = arith.addf %206, %62 : vector<8x512xf32>
    %208 = vector.extract_strided_slice %207 {offsets = [0, 0], sizes = [8, 128], strides = [1, 1]} : vector<8x512xf32> to vector<8x128xf32>
    %209 = vector.extract_strided_slice %207 {offsets = [0, 128], sizes = [8, 128], strides = [1, 1]} : vector<8x512xf32> to vector<8x128xf32>
    %210 = vector.extract_strided_slice %207 {offsets = [0, 256], sizes = [8, 128], strides = [1, 1]} : vector<8x512xf32> to vector<8x128xf32>
    %211 = vector.extract_strided_slice %207 {offsets = [0, 384], sizes = [8, 128], strides = [1, 1]} : vector<8x512xf32> to vector<8x128xf32>
    %212 = arith.mulf %209, %198 : vector<8x128xf32>
    %213 = arith.mulf %208, %210 : vector<8x128xf32>
    %214 = arith.addf %212, %213 : vector<8x128xf32>
    %215 = math.tanh %214 : vector<8x128xf32>
    %216 = arith.mulf %211, %215 : vector<8x128xf32>
    %217 = arith.addi %64, %c6_i32 : i32
    %c20_i32_61 = arith.constant 20 : i32
    %218 = arith.cmpi slt, %217, %c20_i32_61 : i32
    %219 = arith.select %218, %216, %197 : vector<8x128xf32>
    %220 = arith.select %218, %214, %198 : vector<8x128xf32>
    %c7_i32 = arith.constant 7 : i32
    %221 = arith.index_cast %c7_i32 : i32 to index
    %c0_62 = arith.constant 0 : index
    %c0_63 = arith.constant 0 : index
    %222 = vector.load %arg11[%221, %c0_62, %c0_63] : memref<8x8x512xf32, #tpu.memory_space<vmem>>, vector<1x8x512xf32>
    %223 = vector.shape_cast %222 : vector<1x8x512xf32> to vector<8x512xf32>
    %cst_64 = arith.constant dense<0.000000e+00> : vector<8x512xf32>
    %224 = tpu.matmul %219, %63, %cst_64 {dimension_numbers = #tpu.dot_dimension_numbers<[1], [0], [0], [1], [0, 0, 1, 1], [], []>} : vector<8x128xf32>, vector<128x512xf32>, vector<8x512xf32> -> vector<8x512xf32>
    %225 = arith.addf %223, %224 : vector<8x512xf32>
    %226 = arith.mulf %225, %59 : vector<8x512xf32>
    %227 = math.tanh %226 : vector<8x512xf32>
    %228 = arith.mulf %227, %59 : vector<8x512xf32>
    %229 = arith.addf %228, %62 : vector<8x512xf32>
    %230 = vector.extract_strided_slice %229 {offsets = [0, 0], sizes = [8, 128], strides = [1, 1]} : vector<8x512xf32> to vector<8x128xf32>
    %231 = vector.extract_strided_slice %229 {offsets = [0, 128], sizes = [8, 128], strides = [1, 1]} : vector<8x512xf32> to vector<8x128xf32>
    %232 = vector.extract_strided_slice %229 {offsets = [0, 256], sizes = [8, 128], strides = [1, 1]} : vector<8x512xf32> to vector<8x128xf32>
    %233 = vector.extract_strided_slice %229 {offsets = [0, 384], sizes = [8, 128], strides = [1, 1]} : vector<8x512xf32> to vector<8x128xf32>
    %234 = arith.mulf %231, %220 : vector<8x128xf32>
    %235 = arith.mulf %230, %232 : vector<8x128xf32>
    %236 = arith.addf %234, %235 : vector<8x128xf32>
    %237 = math.tanh %236 : vector<8x128xf32>
    %238 = arith.mulf %233, %237 : vector<8x128xf32>
    %239 = arith.addi %64, %c7_i32 : i32
    %c20_i32_65 = arith.constant 20 : i32
    %240 = arith.cmpi slt, %239, %c20_i32_65 : i32
    %241 = arith.select %240, %238, %219 : vector<8x128xf32>
    %242 = arith.select %240, %236, %220 : vector<8x128xf32>
    %c8_i32_66 = arith.constant 8 : i32
    %c0_67 = arith.constant 0 : index
    %c0_68 = arith.constant 0 : index
    %243 = vector.load %arg9[%c0_67, %c0_68] : memref<8x128xf32, #tpu.memory_space<vmem>>, vector<8x128xf32>
    tpu.vector_store %arg9[%c0_67, %c0_68], %241 {strides = array<i32>} : memref<8x128xf32, #tpu.memory_space<vmem>>, vector<8x128xf32>,
    %c0_69 = arith.constant 0 : index
    %c0_70 = arith.constant 0 : index
    %244 = vector.load %arg10[%c0_69, %c0_70] : memref<8x128xf32, #tpu.memory_space<vmem>>, vector<8x128xf32>
    tpu.vector_store %arg10[%c0_69, %c0_70], %242 {strides = array<i32>} : memref<8x128xf32, #tpu.memory_space<vmem>>, vector<8x128xf32>,
    %c2_i32_71 = arith.constant 2 : i32
    %245 = arith.cmpi eq, %arg1, %c2_i32_71 : i32
    %246 = arith.extui %245 : i1 to i32
    %c0_i32_72 = arith.constant 0 : i32
    %247 = arith.cmpi ne, %246, %c0_i32_72 : i32
    scf.if %247 {
      %c0_73 = arith.constant 0 : index
      %c0_74 = arith.constant 0 : index
      %248 = vector.load %arg6[%c0_73, %c0_74] : memref<128x128xf32, #tpu.memory_space<vmem>>, vector<128x128xf32>
      %cst_75 = arith.constant dense<0.000000e+00> : vector<8x128xf32>
      %249 = tpu.matmul %241, %248, %cst_75 {dimension_numbers = #tpu.dot_dimension_numbers<[1], [0], [0], [1], [0, 0, 1, 1], [], []>} : vector<8x128xf32>, vector<128x128xf32>, vector<8x128xf32> -> vector<8x128xf32>
      %c0_76 = arith.constant 0 : index
      %c0_77 = arith.constant 0 : index
      %250 = vector.load %arg7[%c0_76, %c0_77] : memref<1x128xf32, #tpu.memory_space<vmem>>, vector<1x128xf32>
      %251 = vector.broadcast %250 : vector<1x128xf32> to vector<8x128xf32>
      %252 = arith.addf %249, %251 : vector<8x128xf32>
      %c0_78 = arith.constant 0 : index
      %c0_79 = arith.constant 0 : index
      %253 = vector.load %arg8[%c0_78, %c0_79] : memref<8x128xf32, #tpu.memory_space<vmem>>, vector<8x128xf32>
      tpu.vector_store %arg8[%c0_78, %c0_79], %252 {strides = array<i32>} : memref<8x128xf32, #tpu.memory_space<vmem>>, vector<8x128xf32>,
    } else {
    }
    return
  }
  func.func @transform_0(%arg0: i32, %arg1: i32) -> (i32, i32, i32) {
    %c0_i32 = arith.constant 0 : i32
    %c0_i32_0 = arith.constant 0 : i32
    return %arg0, %arg1, %c0_i32 : i32, i32, i32
  }
  func.func @transform_1(%arg0: i32, %arg1: i32) -> (i32, i32) {
    %c0_i32 = arith.constant 0 : i32
    %c0_i32_0 = arith.constant 0 : i32
    %c0_i32_1 = arith.constant 0 : i32
    return %c0_i32, %c0_i32_0 : i32, i32
  }
  func.func @transform_2(%arg0: i32, %arg1: i32) -> (i32, i32) {
    %c0_i32 = arith.constant 0 : i32
    %c0_i32_0 = arith.constant 0 : i32
    %c0_i32_1 = arith.constant 0 : i32
    return %c0_i32, %c0_i32_0 : i32, i32
  }
  func.func @transform_3(%arg0: i32, %arg1: i32) -> (i32, i32) {
    %c0_i32 = arith.constant 0 : i32
    %c0_i32_0 = arith.constant 0 : i32
    %c0_i32_1 = arith.constant 0 : i32
    return %c0_i32, %c0_i32_0 : i32, i32
  }
  func.func @transform_4(%arg0: i32, %arg1: i32) -> (i32, i32) {
    %c0_i32 = arith.constant 0 : i32
    %c0_i32_0 = arith.constant 0 : i32
    %c0_i32_1 = arith.constant 0 : i32
    return %c0_i32, %c0_i32_0 : i32, i32
  }
  func.func @transform_5(%arg0: i32, %arg1: i32) -> (i32, i32) {
    %c0_i32 = arith.constant 0 : i32
    %c0_i32_0 = arith.constant 0 : i32
    %c0_i32_1 = arith.constant 0 : i32
    return %c0_i32, %c0_i32_0 : i32, i32
  }
  func.func @transform_6(%arg0: i32, %arg1: i32) -> (i32, i32) {
    %c0_i32 = arith.constant 0 : i32
    %c0_i32_0 = arith.constant 0 : i32
    return %arg0, %c0_i32 : i32, i32
  }
}

</mosaic_0001>

<llo_original>
// kernel: tpu_custom_call.1
$region0: #{tpu_custom_call.1}
  #allocation0 [shape = 'u32[]', space=smem, size = 0x4, offset = 0x4, fixed_abs, tag = 'smem constant byte address 0x4 - core index']
  #allocation1 [shape = 'u32[144,128]{1,0:T(1,128)}', space=vmem, size = 0x12000, scoped, tag = 'internal scratch']
  #allocation2 [shape = 'f32[8,128]{1,0:T(8,128)}', space=vmem, size = 0x1000, scoped, tag = 'scratch operand']
  #allocation3 [shape = 'f32[8,128]{1,0:T(8,128)}', space=vmem, size = 0x1000, scoped, tag = 'scratch operand']
  #allocation4 [shape = 'f32[8,8,512]{2,1,0:T(8,128)}', space=vmem, size = 0x20000, scoped, tag = 'scratch operand']
  %s0 = inlined_call_operand.vmem [shape: f32[8,24,16], index: 0, kind: input, shape index: {}]
  %s1 = inlined_call_operand.vmem [shape: f32[16,512], index: 1, kind: input, shape index: {}]
  %s2 = inlined_call_operand.hbm [shape: f32[128,512], index: 2, kind: input, shape index: {}]
  %s3 = inlined_call_operand.vmem [shape: f32[1,512], index: 3, kind: input, shape index: {}]
  %s4 = inlined_call_operand.vmem [shape: f32[128,128], index: 4, kind: input, shape index: {}]
  %s5 = inlined_call_operand.vmem [shape: f32[1,128], index: 5, kind: input, shape index: {}]
  %s6 = inlined_call_operand.hbm [shape: f32[8,128], index: 6, kind: output, shape index: {}]
  %s7 = sld [smem:[#allocation0]]
  $region107: #{tpu_custom_call.1} parent=0
    _
  %s9 = ssub.s32 1, %s7
  %s10 = scalar_select 0, %s9, %s7
  $region1: #{tpu_custom_call.1} parent=0
    #allocation5 [shape = 'u8[65536]{0}', space=vmem, size = 0x10000, scoped, tag = 'input window, operand 0']
    #allocation6 [shape = 'u8[262144]{0}', space=vmem, size = 0x40000, scoped, tag = 'input window, operand 2, single buffered']
    #allocation7 [shape = 's32[2]{0}', space=sflag, size = 0x8, scoped, tag = 'scoped memory for tpu_custom_call.1']
    #allocation8 [shape = 's32[2]{0}', space=sflag, size = 0x8, scoped, tag = 'scoped memory for tpu_custom_call.1']
    #allocation9 [shape = 'u8[4096]{0}', space=vmem, size = 0x1000, scoped, tag = 'output window, operand 0, single buffered']
    %11 = vsyncpa [#allocation7], 0
    %12 = vsyncpa [#allocation8], 0
    loop: start=0, step=1, limit=5
    $region2: #{tpu_custom_call.1} parent=1 // loop_pre_header
      _
    $region3: #{tpu_custom_call.1} parent=1 // loop_header
      %s14 = sphi 0, %s18
      %p15 = scmp.ge.s32.totalorder %s14, 5
      %s21 = sphi 0, %s33
      %s22 = sphi 0, %s29
      %s23 = sphi 0, %s21
      %s24 = sphi 0, %s22
      %s25 = sphi 0, %s23
      %s26 = sphi 0, %s24
      %s38 = sphi 0, %s40
      %s41 = sphi 0, %s38
      %s42 = sphi 0, %s41
      %s58 = sphi 0, %s42
      %s62 = sphi 0, %s62
      %s64 = sphi 0, %s62
      %s65 = sphi 0, %s64
      %s79 = sphi 0, %s65
      %s83 = sphi 0, %s83
      %s85 = sphi 0, %s83
      %s86 = sphi 0, %s85
      %s100 = sphi 0, %s86
      %s104 = sphi 0, %s104
      %s106 = sphi 0, %s104
      %s107 = sphi 0, %s106
      %s121 = sphi 0, %s107
      %s125 = sphi 0, %s125
      %s127 = sphi 0, %s125
      %s128 = sphi 0, %s127
      %s142 = sphi 0, %s128
      %s146 = sphi 0, %s146
      %s148 = sphi 0, %s146
      %s149 = sphi 0, %s148
      %s163 = sphi 0, %s149
      %s169 = sphi 0, %s171
      %s172 = sphi 0, %s169
      %s173 = sphi 0, %s172
      %s189 = sphi 0, %s173
    $region4: #{tpu_custom_call.1} parent=1 // loop_header_branch
      %17 = sbr.rel (%p15) target = $region8
    $region5: #{tpu_custom_call.1} parent=1 // loop_body
      %s19 = ssub.s32 %s14, 1
      %s20 = ssub.s32 %s14, 2
      %s27 = sadd.s32 1, %s22
      %p28 = scmp.ge.s32.totalorder %s27, 3
      %s29 = scalar_select %p28, 0, %s27
      %s30 = sadd.s32 1, %s21
      %s31 = scalar_select %p28, %s30, %s21
      %p32 = scmp.ge.s32.totalorder %s31, 1
      %s33 = scalar_select %p32, 0, %s31
      %s34 = ssub.s32 %s21, %s33
      %s35 = ssub.s32 %s22, %s29
      %s36 = sor.u32 %s34, %s35
      %p37 = scmp.eq.s32.totalorder %s36, 0
      %s39 = sadd.s32 %s38, 1
      %s40 = scalar_select %p37, %s38, %s39
      %p43 = pneg %p37
      %p44 = scmp.eq.s32.totalorder %s14, 2
      %p45 = por %p43, %p44
      %p46 = scmp.ne.s32.totalorder %s38, %s41
      %p47 = scmp.eq.s32.totalorder %s14, 0
      %p48 = por %p46, %p47
      %p49 = scmp.ne.s32.totalorder %s38, %s41
      %p50 = scmp.eq.s32.totalorder %s19, 2
      %p51 = por %p49, %p50
      %p52 = scmp.ne.s32.totalorder %s41, %s42
      %p53 = scmp.eq.s32.totalorder %s19, 0
      %p54 = por %p52, %p53
      %p55 = scmp.ne.s32.totalorder %s41, %s42
      %p56 = scmp.eq.s32.totalorder %s20, 2
      %p57 = por %p55, %p56
      %p59 = scmp.ne.s32.totalorder %s42, %s58
      %p60 = scmp.eq.s32.totalorder %s20, 0
      %p61 = por %p59, %p60
      %s63 = sadd.s32 %s62, 1
      %p66 = scmp.eq.s32.totalorder %s14, 2
      %p67 = scmp.ne.s32.totalorder %s62, %s64
      %p68 = scmp.eq.s32.totalorder %s14, 0
      %p69 = por %p67, %p68
      %p70 = scmp.ne.s32.totalorder %s62, %s64
      %p71 = scmp.eq.s32.totalorder %s19, 2
      %p72 = por %p70, %p71
      %p73 = scmp.ne.s32.totalorder %s64, %s65
      %p74 = scmp.eq.s32.totalorder %s19, 0
      %p75 = por %p73, %p74
      %p76 = scmp.ne.s32.totalorder %s64, %s65
      %p77 = scmp.eq.s32.totalorder %s20, 2
      %p78 = por %p76, %p77
      %p80 = scmp.ne.s32.totalorder %s65, %s79
      %p81 = scmp.eq.s32.totalorder %s20, 0
      %p82 = por %p80, %p81
      %s84 = sadd.s32 %s83, 1
      %p87 = scmp.eq.s32.totalorder %s14, 2
      %p88 = scmp.ne.s32.totalorder %s83, %s85
      %p89 = scmp.eq.s32.totalorder %s14, 0
      %p90 = por %p88, %p89
      %p91 = scmp.ne.s32.totalorder %s83, %s85
      %p92 = scmp.eq.s32.totalorder %s19, 2
      %p93 = por %p91, %p92
      %p94 = scmp.ne.s32.totalorder %s85, %s86
      %p95 = scmp.eq.s32.totalorder %s19, 0
      %p96 = por %p94, %p95
      %p97 = scmp.ne.s32.totalorder %s85, %s86
      %p98 = scmp.eq.s32.totalorder %s20, 2
      %p99 = por %p97, %p98
      %p101 = scmp.ne.s32.totalorder %s86, %s100
      %p102 = scmp.eq.s32.totalorder %s20, 0
      %p103 = por %p101, %p102
      %s105 = sadd.s32 %s104, 1
      %p108 = scmp.eq.s32.totalorder %s14, 2
      %p109 = scmp.ne.s32.totalorder %s104, %s106
      %p110 = scmp.eq.s32.totalorder %s14, 0
      %p111 = por %p109, %p110
      %p112 = scmp.ne.s32.totalorder %s104, %s106
      %p113 = scmp.eq.s32.totalorder %s19, 2
      %p114 = por %p112, %p113
      %p115 = scmp.ne.s32.totalorder %s106, %s107
      %p116 = scmp.eq.s32.totalorder %s19, 0
      %p117 = por %p115, %p116
      %p118 = scmp.ne.s32.totalorder %s106, %s107
      %p119 = scmp.eq.s32.totalorder %s20, 2
      %p120 = por %p118, %p119
      %p122 = scmp.ne.s32.totalorder %s107, %s121
      %p123 = scmp.eq.s32.totalorder %s20, 0
      %p124 = por %p122, %p123
      %s126 = sadd.s32 %s125, 1
      %p129 = scmp.eq.s32.totalorder %s14, 2
      %p130 = scmp.ne.s32.totalorder %s125, %s127
      %p131 = scmp.eq.s32.totalorder %s14, 0
      %p132 = por %p130, %p131
      %p133 = scmp.ne.s32.totalorder %s125, %s127
      %p134 = scmp.eq.s32.totalorder %s19, 2
      %p135 = por %p133, %p134
      %p136 = scmp.ne.s32.totalorder %s127, %s128
      %p137 = scmp.eq.s32.totalorder %s19, 0
      %p138 = por %p136, %p137
      %p139 = scmp.ne.s32.totalorder %s127, %s128
      %p140 = scmp.eq.s32.totalorder %s20, 2
      %p141 = por %p139, %p140
      %p143 = scmp.ne.s32.totalorder %s128, %s142
      %p144 = scmp.eq.s32.totalorder %s20, 0
      %p145 = por %p143, %p144
      %s147 = sadd.s32 %s146, 1
      %p150 = scmp.eq.s32.totalorder %s14, 2
      %p151 = scmp.ne.s32.totalorder %s146, %s148
      %p152 = scmp.eq.s32.totalorder %s14, 0
      %p153 = por %p151, %p152
      %p154 = scmp.ne.s32.totalorder %s146, %s148
      %p155 = scmp.eq.s32.totalorder %s19, 2
      %p156 = por %p154, %p155
      %p157 = scmp.ne.s32.totalorder %s148, %s149
      %p158 = scmp.eq.s32.totalorder %s19, 0
      %p159 = por %p157, %p158
      %p160 = scmp.ne.s32.totalorder %s148, %s149
      %p161 = scmp.eq.s32.totalorder %s20, 2
      %p162 = por %p160, %p161
      %p164 = scmp.ne.s32.totalorder %s149, %s163
      %p165 = scmp.eq.s32.totalorder %s20, 0
      %p166 = por %p164, %p165
      %s167 = ssub.s32 %s21, %s33
      %p168 = scmp.eq.s32.totalorder %s167, 0
      %s170 = sadd.s32 %s169, 1
      %s171 = scalar_select %p168, %s169, %s170
      %p174 = pneg %p168
      %p175 = scmp.eq.s32.totalorder %s14, 2
      %p176 = por %p174, %p175
      %p177 = scmp.ne.s32.totalorder %s169, %s172
      %p178 = scmp.eq.s32.totalorder %s14, 0
      %p179 = por %p177, %p178
      %p180 = scmp.ne.s32.totalorder %s169, %s172
      %p181 = scmp.eq.s32.totalorder %s19, 2
      %p182 = por %p180, %p181
      %p183 = scmp.ne.s32.totalorder %s172, %s173
      %p184 = scmp.eq.s32.totalorder %s19, 0
      %p185 = por %p183, %p184
      %p186 = scmp.ne.s32.totalorder %s172, %s173
      %p187 = scmp.eq.s32.totalorder %s20, 2
      %p188 = por %p186, %p187
      %p190 = scmp.ne.s32.totalorder %s173, %s189
      %p191 = scmp.eq.s32.totalorder %s20, 0
      %p192 = por %p190, %p191
      %p193 = scmp.le.s32.totalorder 1, %s14
      %p194 = scmp.lt.s32.totalorder %s14, 4
      %p195 = pnand %p193, %p194
      %p196 = pneg %p195
      // Predicated region
      $region9: #{tpu_custom_call.1} parent=5 // pred_check
        _
      $region10: #{tpu_custom_call.1} parent=5 // pred_check_branch
        %198 = sbr.rel (%p195) target = $region12
      $region11: #{tpu_custom_call.1} parent=5 // pred_region
        %s199 = ssub.s32 %s14, 1
        // Predicated region
        $region13: #{tpu_custom_call.1} parent=11 // pred_check
          %p200 = pneg %p75
        $region14: #{tpu_custom_call.1} parent=11 // pred_check_branch
          %202 = sbr.rel (%p200) target = $region16
        $region15: #{tpu_custom_call.1} parent=11 // pred_region
          _
        $region16: #{tpu_custom_call.1} parent=11 // pred_fallthru
          _
        // Predicated region
        $region17: #{tpu_custom_call.1} parent=11 // pred_check
          %p203 = pneg %p96
        $region18: #{tpu_custom_call.1} parent=11 // pred_check_branch
          %205 = sbr.rel (%p203) target = $region20
        $region19: #{tpu_custom_call.1} parent=11 // pred_region
          %s207 = ssub.s32 8192, 8192
          %208 = vsyncadd [#allocation7], %s207
          %s209 = sshll.u32 [#allocation6], 4
          %s210 = int_to_ptr.vmem [resolvable:$true] %s209
          %215 = dma.hbm_to_vmem [thread:$0]  %s2, 8192, %s210, [#allocation7], 512, 512, 32
        $region20: #{tpu_custom_call.1} parent=11 // pred_fallthru
          _
        // Predicated region
        $region21: #{tpu_custom_call.1} parent=11 // pred_check
          %p216 = pneg %p117
        $region22: #{tpu_custom_call.1} parent=11 // pred_check_branch
          %218 = sbr.rel (%p216) target = $region24
        $region23: #{tpu_custom_call.1} parent=11 // pred_region
          _
        $region24: #{tpu_custom_call.1} parent=11 // pred_fallthru
          _
        // Predicated region
        $region25: #{tpu_custom_call.1} parent=11 // pred_check
          %p219 = pneg %p138
        $region26: #{tpu_custom_call.1} parent=11 // pred_check_branch
          %221 = sbr.rel (%p219) target = $region28
        $region27: #{tpu_custom_call.1} parent=11 // pred_region
          _
        $region28: #{tpu_custom_call.1} parent=11 // pred_fallthru
          _
        // Predicated region
        $region29: #{tpu_custom_call.1} parent=11 // pred_check
          %p222 = pneg %p159
        $region30: #{tpu_custom_call.1} parent=11 // pred_check_branch
          %224 = sbr.rel (%p222) target = $region32
        $region31: #{tpu_custom_call.1} parent=11 // pred_region
          _
        $region32: #{tpu_custom_call.1} parent=11 // pred_fallthru
          _
      $region12: #{tpu_custom_call.1} parent=5 // pred_fallthru
        _
      %p225 = scmp.lt.s32.totalorder %s14, 3
      // Predicated region
      $region33: #{tpu_custom_call.1} parent=5 // pred_check
        %p226 = pneg %p225
      $region34: #{tpu_custom_call.1} parent=5 // pred_check_branch
        %228 = sbr.rel (%p226) target = $region36
      $region35: #{tpu_custom_call.1} parent=5 // pred_region
        // Predicated region
        $region37: #{tpu_custom_call.1} parent=35 // pred_check
          %p229 = pneg %p48
        $region38: #{tpu_custom_call.1} parent=35 // pred_check_branch
          %231 = sbr.rel (%p229) target = $region40
        $region39: #{tpu_custom_call.1} parent=35 // pred_region
          %s232 = sand.u32 %s38, 1
          %s233 = sand.u32 %s38, 1
          %s234 = smul.addr %s233, 64
          %s235 = scalar_lea.vmem [#allocation5], %s234
          %s236 = smul.u32 8, %s21
          %s237 = smul.addr %s236, 3
          %s238 = sadd.s32 %s22, %s237
          %s239 = smul.addr %s238, 8
          %s240 = scalar_lea.vmem %s0, %s239
          // Predicated region
          $region41: #{tpu_custom_call.1} parent=39 // pred_check
            _
          $region42: #{tpu_custom_call.1} parent=39 // pred_check_branch
            %242 = sbr.rel (0) target = $region44
          $region43: #{tpu_custom_call.1} parent=39 // pred_region
            // Predicated region
            $region45: #{tpu_custom_call.1} parent=43 // pred_check
              _
            $region46: #{tpu_custom_call.1} parent=43 // pred_check_branch
              %244 = sbr.rel (0) target = $region48
            $region47: #{tpu_custom_call.1} parent=43 // pred_region
              // Predicated region
              $region60: #{tpu_custom_call.1} parent=47 // pred_check
                _
              $region61: #{tpu_custom_call.1} parent=47 // pred_check_branch
                %273 = sbr.rel (0) target = $region63
              $region62: #{tpu_custom_call.1} parent=47 // pred_region
                loop: start=0, step=1, limit=1
                $region64: #{tpu_custom_call.1} parent=62 // loop_pre_header
                  _
                $region65: #{tpu_custom_call.1} parent=62 // loop_header
                  %s275 = sphi 0, %s279
                  %p276 = scmp.ge.s32.totalorder %s275, 1
                  %s280 = sphi %s240, %s240
                  %s281 = sphi %s235, %s235
                $region66: #{tpu_custom_call.1} parent=62 // loop_header_branch
                  %278 = sbr.rel (%p276) target = $region70
                $region67: #{tpu_custom_call.1} parent=62 // loop_body
                  %v282 = vld [vmem:[%s280] sm:$0xff]
                  %283 = vst [vmem:[%s281] sm:$0xff] %v282
                  %v284 = vld [vmem:[%s280 + $0x18] sm:$0xff]
                  %285 = vst [vmem:[%s281 + $0x8] sm:$0xff] %v284
                  %v286 = vld [vmem:[%s280 + $0x30] sm:$0xff]
                  %287 = vst [vmem:[%s281 + $0x10] sm:$0xff] %v286
                  %v288 = vld [vmem:[%s280 + $0x48] sm:$0xff]
                  %289 = vst [vmem:[%s281 + $0x18] sm:$0xff] %v288
                  %v290 = vld [vmem:[%s280 + $0x60] sm:$0xff]
                  %291 = vst [vmem:[%s281 + $0x20] sm:$0xff] %v290
                  %v292 = vld [vmem:[%s280 + $0x78] sm:$0xff]
                  %293 = vst [vmem:[%s281 + $0x28] sm:$0xff] %v292
                  %v294 = vld [vmem:[%s280 + $0x90] sm:$0xff]
                  %295 = vst [vmem:[%s281 + $0x30] sm:$0xff] %v294
                  %v296 = vld [vmem:[%s280 + $0xa8] sm:$0xff]
                  %297 = vst [vmem:[%s281 + $0x38] sm:$0xff] %v296
                $region68: #{tpu_custom_call.1} parent=62 // loop_footer
                  %s279 = sadd.s32 1, %s275
                $region69: #{tpu_custom_call.1} parent=62 // loop_footer_branch
                  %274 = sbr.rel target = $region65
                $region70: #{tpu_custom_call.1} parent=62 // loop_exit
                  _
              $region63: #{tpu_custom_call.1} parent=47 // pred_fallthru
                _
              // Predicated region
              $region71: #{tpu_custom_call.1} parent=47 // pred_check
                _
              $region72: #{tpu_custom_call.1} parent=47 // pred_check_branch
                %299 = sbr.rel target = $region74
              $region73: #{tpu_custom_call.1} parent=47 // pred_region
                _
              $region74: #{tpu_custom_call.1} parent=47 // pred_fallthru
                _
            $region48: #{tpu_custom_call.1} parent=43 // pred_fallthru
              _
            // Predicated region
            $region49: #{tpu_custom_call.1} parent=43 // pred_check
              _
            $region50: #{tpu_custom_call.1} parent=43 // pred_check_branch
              %246 = sbr.rel target = $region52
            $region51: #{tpu_custom_call.1} parent=43 // pred_region
              loop: start=0, step=1, limit=1
              $region53: #{tpu_custom_call.1} parent=51 // loop_pre_header
                _
              $region54: #{tpu_custom_call.1} parent=51 // loop_header
                %s249 = sphi 0, %s253
                %p250 = scmp.ge.s32.totalorder %s249, 1
                %s254 = sphi %s240, %s240
                %s255 = sphi %s235, %s235
              $region55: #{tpu_custom_call.1} parent=51 // loop_header_branch
                %252 = sbr.rel (%p250) target = $region59
              $region56: #{tpu_custom_call.1} parent=51 // loop_body
                %v256 = vld [vmem:[%s254] sm:$0xff]
                %257 = vst [vmem:[%s255] sm:$0xff] %v256
                %v258 = vld [vmem:[%s254 + $0x18] sm:$0xff]
                %259 = vst [vmem:[%s255 + $0x8] sm:$0xff] %v258
                %v260 = vld [vmem:[%s254 + $0x30] sm:$0xff]
                %261 = vst [vmem:[%s255 + $0x10] sm:$0xff] %v260
                %v262 = vld [vmem:[%s254 + $0x48] sm:$0xff]
                %263 = vst [vmem:[%s255 + $0x18] sm:$0xff] %v262
                %v264 = vld [vmem:[%s254 + $0x60] sm:$0xff]
                %265 = vst [vmem:[%s255 + $0x20] sm:$0xff] %v264
                %v266 = vld [vmem:[%s254 + $0x78] sm:$0xff]
                %267 = vst [vmem:[%s255 + $0x28] sm:$0xff] %v266
                %v268 = vld [vmem:[%s254 + $0x90] sm:$0xff]
                %269 = vst [vmem:[%s255 + $0x30] sm:$0xff] %v268
                %v270 = vld [vmem:[%s254 + $0xa8] sm:$0xff]
                %271 = vst [vmem:[%s255 + $0x38] sm:$0xff] %v270
              $region57: #{tpu_custom_call.1} parent=51 // loop_footer
                %s253 = sadd.s32 1, %s249
              $region58: #{tpu_custom_call.1} parent=51 // loop_footer_branch
                %248 = sbr.rel target = $region54
              $region59: #{tpu_custom_call.1} parent=51 // loop_exit
                _
            $region52: #{tpu_custom_call.1} parent=43 // pred_fallthru
              _
          $region44: #{tpu_custom_call.1} parent=39 // pred_fallthru
            _
          %300 = vnop
        $region40: #{tpu_custom_call.1} parent=35 // pred_fallthru
          _
      $region36: #{tpu_custom_call.1} parent=5 // pred_fallthru
        _
      %p301 = scmp.le.s32.totalorder 1, %s14
      %p302 = scmp.lt.s32.totalorder %s14, 4
      %p303 = pnand %p301, %p302
      %p304 = pneg %p303
      // Predicated region
      $region75: #{tpu_custom_call.1} parent=5 // pred_check
        _
      $region76: #{tpu_custom_call.1} parent=5 // pred_check_branch
        %306 = sbr.rel (%p303) target = $region78
      $region77: #{tpu_custom_call.1} parent=5 // pred_region
        %s307 = ssub.s32 %s14, 1
        %s308 = sand.u32 %s41, 1
        %s309 = sand.u32 %s41, 1
        %s310 = smul.addr %s309, 64
        %s311 = scalar_lea.vmem [#allocation5], %s310
        // Predicated region
        $region79: #{tpu_custom_call.1} parent=77 // pred_check
          %p312 = pneg %p54
        $region80: #{tpu_custom_call.1} parent=77 // pred_check_branch
          %314 = sbr.rel (%p312) target = $region82
        $region81: #{tpu_custom_call.1} parent=77 // pred_region
          _
        $region82: #{tpu_custom_call.1} parent=77 // pred_fallthru
          _
        // Predicated region
        $region83: #{tpu_custom_call.1} parent=77 // pred_check
          %p315 = pneg %p96
        $region84: #{tpu_custom_call.1} parent=77 // pred_check_branch
          %317 = sbr.rel (%p315) target = $region86
        $region85: #{tpu_custom_call.1} parent=77 // pred_region
          %318 = dma.done [#allocation7], 8192
        $region86: #{tpu_custom_call.1} parent=77 // pred_fallthru
          _
        %s319 = sand.u32 %s41, 1
        %s320 = sand.u32 %s41, 1
        %s321 = smul.addr %s320, 64
        %s322 = scalar_lea.vmem [#allocation5], %s321
        %p323 = pneg %p54
        %p324 = pneg %p51
        %p325 = pneg %p75
        %p326 = pneg %p72
        %p327 = pneg %p96
        %p328 = pneg %p93
        %p329 = pneg %p117
        %p330 = pneg %p114
        %p331 = pneg %p138
        %p332 = pneg %p135
        %p333 = pneg %p159
        %p334 = pneg %p156
        %p335 = pneg %p185
        %p336 = pneg %p182
        %s337 = smul.u32 8, %s23
        %p338 = scmp.eq.s32.totalorder %s24, 0
        // Predicated region
        $region87: #{tpu_custom_call.1} parent=77 // pred_check
          %p339 = pneg %p338
        $region88: #{tpu_custom_call.1} parent=77 // pred_check_branch
          %341 = sbr.rel (%p339) target = $region90
        $region89: #{tpu_custom_call.1} parent=77 // pred_region
          %342 = vst [vmem:[#allocation2] sm:$0xff] 0.0
          %343 = vst [vmem:[#allocation3] sm:$0xff] 0.0
        $region90: #{tpu_custom_call.1} parent=77 // pred_fallthru
          _
        %v344 = vld [vmem:[%s311] sm:$0xff]
        %v345 = vld [vmem:[%s311 + $0x8] sm:$0xff]
        %v346 = vld [vmem:[%s311 + $0x10] sm:$0xff]
        %v347 = vld [vmem:[%s311 + $0x18] sm:$0xff]
        %v348 = vld [vmem:[%s311 + $0x20] sm:$0xff]
        %v349 = vld [vmem:[%s311 + $0x28] sm:$0xff]
        %v350 = vld [vmem:[%s311 + $0x30] sm:$0xff]
        %v351 = vld [vmem:[%s311 + $0x38] sm:$0xff]
        %v352 = vld [vmem:[%s1] sm:$0xff]
        %v353 = vld [vmem:[%s1 + $0x8] sm:$0xff]
        %v354 = vld [vmem:[%s1 + $0x10] sm:$0xff]
        %v355 = vld [vmem:[%s1 + $0x18] sm:$0xff]
        %v356 = vld [vmem:[%s1 + $0x20] sm:$0xff]
        %v357 = vld [vmem:[%s1 + $0x28] sm:$0xff]
        %v358 = vld [vmem:[%s1 + $0x30] sm:$0xff]
        %v359 = vld [vmem:[%s1 + $0x38] sm:$0xff]
        %v360 = vld [vmem:[%s3] sm:$0xf]
        %v362 = vlaneseq
        %v363 = vshrl.u32 %v362, 7
        %v364 = vsub.s32 0, %v363
        %v365 = vrot.slane %v360, %v364
        %v366 = vlaneseq
        %v367 = vshrl.u32 %v366, 7
        %v368 = vsub.s32 1, %v367
        %v369 = vrot.slane %v360, %v368
        %v370 = vlaneseq
        %v371 = vshrl.u32 %v370, 7
        %v372 = vsub.s32 2, %v371
        %v373 = vrot.slane %v360, %v372
        %v374 = vlaneseq
        %v375 = vshrl.u32 %v374, 7
        %v376 = vsub.s32 3, %v375
        %v377 = vrot.slane %v360, %v376
        %vm382 = vcmask 130048
        %v384 = vsel %vm382, %v344, 0
        %v387 = vsel %vm382, %v345, 0
        %v390 = vsel %vm382, %v346, 0
        %v393 = vsel %vm382, %v347, 0
        %v396 = vsel %vm382, %v348, 0
        %v399 = vsel %vm382, %v349, 0
        %v402 = vsel %vm382, %v350, 0
        %v405 = vsel %vm382, %v351, 0
        %407 = vmatprep.subr.mxu0 %v353
        %408 = vmatpush1.msra.mxu0 %v352
        %409 = vmatprep.subr.mxu0 %v357
        %410 = vmatpush1.msra.mxu0 %v356
        %411 = vmatprep.subr.mxu0 0.0
        %412 = vmatpush1.msra.mxu0 0.0
        %413 = vmatprep.subr.mxu0 0.0
        %414 = vmatpush1.msra.mxu0 0.0
        %415 = vmatprep.subr.mxu0 0.0
        %416 = vmatpush1.msra.mxu0 0.0
        %417 = vmatprep.subr.mxu0 0.0
        %418 = vmatpush1.msra.mxu0 0.0
        %419 = vmatprep.subr.mxu0 0.0
        %420 = vmatpush1.msra.mxu0 0.0
        %421 = vmatprep.subr.mxu0 0.0
        %422 = vmatpush1.msra.mxu0 0.0
        %423 = vmatprep.subr.mxu0 0.0
        %424 = vmatpush1.msra.mxu0 0.0
        %425 = vmatprep.subr.mxu0 0.0
        %426 = vmatpush1.msra.mxu0 0.0
        %427 = vmatprep.subr.mxu0 0.0
        %428 = vmatpush1.msra.mxu0 0.0
        %429 = vmatprep.subr.mxu0 0.0
        %430 = vmatpush1.msra.mxu0 0.0
        %431 = vmatprep.subr.mxu0 0.0
        %432 = vmatpush1.msra.mxu0 0.0
        %433 = vmatprep.subr.mxu0 0.0
        %434 = vmatpush1.msra.mxu0 0.0
        %435 = vmatprep.subr.mxu0 0.0
        %436 = vmatpush1.msra.mxu0 0.0
        %437 = vmatprep.subr.mxu0 0.0
        %438 = vmatpush1.msra.mxu0 0.0
        %439 = vmatprep.subr.mxu0 0.0
        %440 = vmatpush1.msra.mxu0 0.0
        %441 = vmatprep.subr.mxu0 0.0
        %442 = vmatpush1.msra.mxu0 0.0
        %443 = vmatprep.subr.mxu0 0.0
        %444 = vmatpush1.msra.mxu0 0.0
        %445 = vmatprep.subr.mxu0 0.0
        %446 = vmatpush1.msra.mxu0 0.0
        %447 = vmatprep.subr.mxu0 0.0
        %448 = vmatpush1.msra.mxu0 0.0
        %449 = vmatprep.subr.mxu0 0.0
        %450 = vmatpush1.msra.mxu0 0.0
        %451 = vmatprep.subr.mxu0 0.0
        %452 = vmatpush1.msra.mxu0 0.0
        %453 = vmatprep.subr.mxu0 0.0
        %454 = vmatpush1.msra.mxu0 0.0
        %455 = vmatprep.subr.mxu0 0.0
        %456 = vmatpush1.msra.mxu0 0.0
        %457 = vmatprep.subr.mxu0 0.0
        %458 = vmatpush1.msra.mxu0 0.0
        %459 = vmatprep.subr.mxu0 0.0
        %460 = vmatpush1.msra.mxu0 0.0
        %461 = vmatprep.subr.mxu0 0.0
        %462 = vmatpush1.msra.mxu0 0.0
        %463 = vmatprep.subr.mxu0 0.0
        %464 = vmatpush1.msra.mxu0 0.0
        %465 = vmatprep.subr.mxu0 0.0
        %466 = vmatpush1.msra.mxu0 0.0
        %467 = vmatprep.subr.mxu0 0.0
        %468 = vmatpush1.msra.mxu0 0.0
        %469 = vmatprep.subr.mxu0 0.0
        %470 = vmatpush1.msra.mxu0 0.0
        %471 = vmatprep.mubr.f32.mxu0 0.0
        %472 = vmatmul.mubr.f32.gmra.mrb[0].mxu0 %v384
        %v473 = vpop.f32.mrb[0].mxu0
        %v474 = vadd.f32 %v365, %v473
        %v475 = vpop.f32.mrb[0].mxu0
        %v476 = vadd.f32 %v369, %v475
        %477 = vmatprep.mubr.f32.mxu0 0.0
        %478 = vmatmul.mubr.f32.gmra.mrb[0].mxu0 %v387
        %v479 = vpop.f32.mrb[0].mxu0
        %v480 = vadd.f32 %v365, %v479
        %v481 = vpop.f32.mrb[0].mxu0
        %v482 = vadd.f32 %v369, %v481
        %483 = vmatprep.mubr.f32.mxu0 0.0
        %484 = vmatmul.mubr.f32.gmra.mrb[0].mxu0 %v390
        %v485 = vpop.f32.mrb[0].mxu0
        %v486 = vadd.f32 %v365, %v485
        %v487 = vpop.f32.mrb[0].mxu0
        %v488 = vadd.f32 %v369, %v487
        %489 = vmatprep.mubr.f32.mxu0 0.0
        %490 = vmatmul.mubr.f32.gmra.mrb[0].mxu0 %v393
        %v491 = vpop.f32.mrb[0].mxu0
        %v492 = vadd.f32 %v365, %v491
        %v493 = vpop.f32.mrb[0].mxu0
        %v494 = vadd.f32 %v369, %v493
        %495 = vmatprep.mubr.f32.mxu0 0.0
        %496 = vmatmul.mubr.f32.gmra.mrb[0].mxu0 %v396
        %v497 = vpop.f32.mrb[0].mxu0
        %v498 = vadd.f32 %v365, %v497
        %v499 = vpop.f32.mrb[0].mxu0
        %v500 = vadd.f32 %v369, %v499
        %501 = vmatprep.mubr.f32.mxu0 0.0
        %502 = vmatmul.mubr.f32.gmra.mrb[0].mxu0 %v399
        %v503 = vpop.f32.mrb[0].mxu0
        %v504 = vadd.f32 %v365, %v503
        %v505 = vpop.f32.mrb[0].mxu0
        %v506 = vadd.f32 %v369, %v505
        %507 = vmatprep.mubr.f32.mxu0 0.0
        %508 = vmatmul.mubr.f32.gmra.mrb[0].mxu0 %v402
        %v509 = vpop.f32.mrb[0].mxu0
        %v510 = vadd.f32 %v365, %v509
        %v511 = vpop.f32.mrb[0].mxu0
        %v512 = vadd.f32 %v369, %v511
        %513 = vmatprep.mubr.f32.mxu0 0.0
        %514 = vmatmul.mubr.f32.gmra.mrb[0].mxu0 %v405
        %v515 = vpop.f32.mrb[0].mxu0
        %v516 = vadd.f32 %v365, %v515
        %v517 = vpop.f32.mrb[0].mxu0
        %v518 = vadd.f32 %v369, %v517
        %519 = vdwg.mxu0
        %520 = vmatprep.subr.mxu0 %v355
        %521 = vmatpush1.msra.mxu0 %v354
        %522 = vmatprep.subr.mxu0 %v359
        %523 = vmatpush1.msra.mxu0 %v358
        %524 = vmatprep.subr.mxu0 0.0
        %525 = vmatpush1.msra.mxu0 0.0
        %526 = vmatprep.subr.mxu0 0.0
        %527 = vmatpush1.msra.mxu0 0.0
        %528 = vmatprep.subr.mxu0 0.0
        %529 = vmatpush1.msra.mxu0 0.0
        %530 = vmatprep.subr.mxu0 0.0
        %531 = vmatpush1.msra.mxu0 0.0
        %532 = vmatprep.subr.mxu0 0.0
        %533 = vmatpush1.msra.mxu0 0.0
        %534 = vmatprep.subr.mxu0 0.0
        %535 = vmatpush1.msra.mxu0 0.0
        %536 = vmatprep.subr.mxu0 0.0
        %537 = vmatpush1.msra.mxu0 0.0
        %538 = vmatprep.subr.mxu0 0.0
        %539 = vmatpush1.msra.mxu0 0.0
        %540 = vmatprep.subr.mxu0 0.0
        %541 = vmatpush1.msra.mxu0 0.0
        %542 = vmatprep.subr.mxu0 0.0
        %543 = vmatpush1.msra.mxu0 0.0
        %544 = vmatprep.subr.mxu0 0.0
        %545 = vmatpush1.msra.mxu0 0.0
        %546 = vmatprep.subr.mxu0 0.0
        %547 = vmatpush1.msra.mxu0 0.0
        %548 = vmatprep.subr.mxu0 0.0
        %549 = vmatpush1.msra.mxu0 0.0
        %550 = vmatprep.subr.mxu0 0.0
        %551 = vmatpush1.msra.mxu0 0.0
        %552 = vmatprep.subr.mxu0 0.0
        %553 = vmatpush1.msra.mxu0 0.0
        %554 = vmatprep.subr.mxu0 0.0
        %555 = vmatpush1.msra.mxu0 0.0
        %556 = vmatprep.subr.mxu0 0.0
        %557 = vmatpush1.msra.mxu0 0.0
        %558 = vmatprep.subr.mxu0 0.0
        %559 = vmatpush1.msra.mxu0 0.0
        %560 = vmatprep.subr.mxu0 0.0
        %561 = vmatpush1.msra.mxu0 0.0
        %562 = vmatprep.subr.mxu0 0.0
        %563 = vmatpush1.msra.mxu0 0.0
        %564 = vmatprep.subr.mxu0 0.0
        %565 = vmatpush1.msra.mxu0 0.0
        %566 = vmatprep.subr.mxu0 0.0
        %567 = vmatpush1.msra.mxu0 0.0
        %568 = vmatprep.subr.mxu0 0.0
        %569 = vmatpush1.msra.mxu0 0.0
        %570 = vmatprep.subr.mxu0 0.0
        %571 = vmatpush1.msra.mxu0 0.0
        %572 = vmatprep.subr.mxu0 0.0
        %573 = vmatpush1.msra.mxu0 0.0
        %574 = vmatprep.subr.mxu0 0.0
        %575 = vmatpush1.msra.mxu0 0.0
        %576 = vmatprep.subr.mxu0 0.0
        %577 = vmatpush1.msra.mxu0 0.0
        %578 = vmatprep.subr.mxu0 0.0
        %579 = vmatpush1.msra.mxu0 0.0
        %580 = vmatprep.subr.mxu0 0.0
        %581 = vmatpush1.msra.mxu0 0.0
        %582 = vmatprep.subr.mxu0 0.0
        %583 = vmatpush1.msra.mxu0 0.0
        %584 = vmatprep.mubr.f32.mxu0 0.0
        %585 = vmatmul.mubr.f32.gmra.mrb[0].mxu0 %v384
        %v586 = vpop.f32.mrb[0].mxu0
        %v587 = vadd.f32 %v373, %v586
        %v588 = vpop.f32.mrb[0].mxu0
        %v589 = vadd.f32 %v377, %v588
        %590 = vmatprep.mubr.f32.mxu0 0.0
        %591 = vmatmul.mubr.f32.gmra.mrb[0].mxu0 %v387
        %v592 = vpop.f32.mrb[0].mxu0
        %v593 = vadd.f32 %v373, %v592
        %v594 = vpop.f32.mrb[0].mxu0
        %v595 = vadd.f32 %v377, %v594
        %596 = vmatprep.mubr.f32.mxu0 0.0
        %597 = vmatmul.mubr.f32.gmra.mrb[0].mxu0 %v390
        %v598 = vpop.f32.mrb[0].mxu0
        %v599 = vadd.f32 %v373, %v598
        %v600 = vpop.f32.mrb[0].mxu0
        %v601 = vadd.f32 %v377, %v600
        %602 = vmatprep.mubr.f32.mxu0 0.0
        %603 = vmatmul.mubr.f32.gmra.mrb[0].mxu0 %v393
        %v604 = vpop.f32.mrb[0].mxu0
        %v605 = vadd.f32 %v373, %v604
        %v606 = vpop.f32.mrb[0].mxu0
        %v607 = vadd.f32 %v377, %v606
        %608 = vmatprep.mubr.f32.mxu0 0.0
        %609 = vmatmul.mubr.f32.gmra.mrb[0].mxu0 %v396
        %v610 = vpop.f32.mrb[0].mxu0
        %v611 = vadd.f32 %v373, %v610
        %v612 = vpop.f32.mrb[0].mxu0
        %v613 = vadd.f32 %v377, %v612
        %614 = vmatprep.mubr.f32.mxu0 0.0
        %615 = vmatmul.mubr.f32.gmra.mrb[0].mxu0 %v399
        %v616 = vpop.f32.mrb[0].mxu0
        %v617 = vadd.f32 %v373, %v616
        %v618 = vpop.f32.mrb[0].mxu0
        %v619 = vadd.f32 %v377, %v618
        %620 = vmatprep.mubr.f32.mxu0 0.0
        %621 = vmatmul.mubr.f32.gmra.mrb[0].mxu0 %v402
        %v622 = vpop.f32.mrb[0].mxu0
        %v623 = vadd.f32 %v373, %v622
        %v624 = vpop.f32.mrb[0].mxu0
        %v625 = vadd.f32 %v377, %v624
        %626 = vmatprep.mubr.f32.mxu0 0.0
        %627 = vmatmul.mubr.f32.gmra.mrb[0].mxu0 %v405
        %v628 = vpop.f32.mrb[0].mxu0
        %v629 = vadd.f32 %v373, %v628
        %v630 = vpop.f32.mrb[0].mxu0
        %v631 = vadd.f32 %v377, %v630
        %632 = vdwg.mxu0
        %v665 = vrot.slane %v480, 7
        %vm666 = vcmask 1041409
        %v667 = vsel %vm666, %v665, %v474
        %v668 = vrot.slane %v486, 6
        %vm669 = vcmask 1042434
        %v670 = vsel %vm669, %v668, %v667
        %v671 = vrot.slane %v492, 5
        %vm672 = vcmask 1043459
        %v673 = vsel %vm672, %v671, %v670
        %v674 = vrot.slane %v498, 4
        %vm675 = vcmask 1044484
        %v676 = vsel %vm675, %v674, %v673
        %v677 = vrot.slane %v504, 3
        %vm678 = vcmask 1045509
        %v679 = vsel %vm678, %v677, %v676
        %v680 = vrot.slane %v510, 2
        %vm681 = vcmask 1046534
        %v682 = vsel %vm681, %v680, %v679
        %v683 = vrot.slane %v516, 1
        %vm684 = vcmask 1047559
        %v685 = vsel %vm684, %v683, %v682
        %v686 = vrot.slane %v482, 7
        %v687 = vsel %vm666, %v686, %v476
        %v688 = vrot.slane %v488, 6
        %v689 = vsel %vm669, %v688, %v687
        %v690 = vrot.slane %v494, 5
        %v691 = vsel %vm672, %v690, %v689
        %v692 = vrot.slane %v500, 4
        %v693 = vsel %vm675, %v692, %v691
        %v694 = vrot.slane %v506, 3
        %v695 = vsel %vm678, %v694, %v693
        %v696 = vrot.slane %v512, 2
        %v697 = vsel %vm681, %v696, %v695
        %v698 = vrot.slane %v518, 1
        %v699 = vsel %vm684, %v698, %v697
        %v700 = vrot.slane %v593, 7
        %v701 = vsel %vm666, %v700, %v587
        %v702 = vrot.slane %v599, 6
        %v703 = vsel %vm669, %v702, %v701
        %v704 = vrot.slane %v605, 5
        %v705 = vsel %vm672, %v704, %v703
        %v706 = vrot.slane %v611, 4
        %v707 = vsel %vm675, %v706, %v705
        %v708 = vrot.slane %v617, 3
        %v709 = vsel %vm678, %v708, %v707
        %v710 = vrot.slane %v623, 2
        %v711 = vsel %vm681, %v710, %v709
        %v712 = vrot.slane %v629, 1
        %v713 = vsel %vm684, %v712, %v711
        %v714 = vrot.slane %v595, 7
        %v715 = vsel %vm666, %v714, %v589
        %v716 = vrot.slane %v601, 6
        %v717 = vsel %vm669, %v716, %v715
        %v718 = vrot.slane %v607, 5
        %v719 = vsel %vm672, %v718, %v717
        %v720 = vrot.slane %v613, 4
        %v721 = vsel %vm675, %v720, %v719
        %v722 = vrot.slane %v619, 3
        %v723 = vsel %vm678, %v722, %v721
        %v724 = vrot.slane %v625, 2
        %v725 = vsel %vm681, %v724, %v723
        %v726 = vrot.slane %v631, 1
        %v727 = vsel %vm684, %v726, %v725
        %732 = vst [vmem:[#allocation4] sm:$0xff] %v685
        %733 = vst [vmem:[#allocation4 + $0x8] sm:$0xff] %v699
        %734 = vst [vmem:[#allocation4 + $0x10] sm:$0xff] %v713
        %735 = vst [vmem:[#allocation4 + $0x18] sm:$0xff] %v727
        %v736 = vrot.slane %v474, 1
        %v737 = vsel %vm666, %v480, %v736
        %v738 = vrot.slane %v486, 7
        %v739 = vsel %vm669, %v738, %v737
        %v740 = vrot.slane %v492, 6
        %v741 = vsel %vm672, %v740, %v739
        %v742 = vrot.slane %v498, 5
        %v743 = vsel %vm675, %v742, %v741
        %v744 = vrot.slane %v504, 4
        %v745 = vsel %vm678, %v744, %v743
        %v746 = vrot.slane %v510, 3
        %v747 = vsel %vm681, %v746, %v745
        %v748 = vrot.slane %v516, 2
        %v749 = vsel %vm684, %v748, %v747
        %v750 = vrot.slane %v476, 1
        %v751 = vsel %vm666, %v482, %v750
        %v752 = vrot.slane %v488, 7
        %v753 = vsel %vm669, %v752, %v751
        %v754 = vrot.slane %v494, 6
        %v755 = vsel %vm672, %v754, %v753
        %v756 = vrot.slane %v500, 5
        %v757 = vsel %vm675, %v756, %v755
        %v758 = vrot.slane %v506, 4
        %v759 = vsel %vm678, %v758, %v757
        %v760 = vrot.slane %v512, 3
        %v761 = vsel %vm681, %v760, %v759
        %v762 = vrot.slane %v518, 2
        %v763 = vsel %vm684, %v762, %v761
        %v764 = vrot.slane %v587, 1
        %v765 = vsel %vm666, %v593, %v764
        %v766 = vrot.slane %v599, 7
        %v767 = vsel %vm669, %v766, %v765
        %v768 = vrot.slane %v605, 6
        %v769 = vsel %vm672, %v768, %v767
        %v770 = vrot.slane %v611, 5
        %v771 = vsel %vm675, %v770, %v769
        %v772 = vrot.slane %v617, 4
        %v773 = vsel %vm678, %v772, %v771
        %v774 = vrot.slane %v623, 3
        %v775 = vsel %vm681, %v774, %v773
        %v776 = vrot.slane %v629, 2
        %v777 = vsel %vm684, %v776, %v775
        %v778 = vrot.slane %v589, 1
        %v779 = vsel %vm666, %v595, %v778
        %v780 = vrot.slane %v601, 7
        %v781 = vsel %vm669, %v780, %v779
        %v782 = vrot.slane %v607, 6
        %v783 = vsel %vm672, %v782, %v781
        %v784 = vrot.slane %v613, 5
        %v785 = vsel %vm675, %v784, %v783
        %v786 = vrot.slane %v619, 4
        %v787 = vsel %vm678, %v786, %v785
        %v788 = vrot.slane %v625, 3
        %v789 = vsel %vm681, %v788, %v787
        %v790 = vrot.slane %v631, 2
        %v791 = vsel %vm684, %v790, %v789
        %s796 = scalar_lea.vmem [#allocation4], 32
        %797 = vst [vmem:[%s796] sm:$0xff] %v749
        %798 = vst [vmem:[%s796 + $0x8] sm:$0xff] %v763
        %799 = vst [vmem:[%s796 + $0x10] sm:$0xff] %v777
        %800 = vst [vmem:[%s796 + $0x18] sm:$0xff] %v791
        %v801 = vrot.slane %v474, 2
        %v802 = vrot.slane %v480, 1
        %v803 = vsel %vm666, %v802, %v801
        %v804 = vsel %vm669, %v486, %v803
        %v805 = vrot.slane %v492, 7
        %v806 = vsel %vm672, %v805, %v804
        %v807 = vrot.slane %v498, 6
        %v808 = vsel %vm675, %v807, %v806
        %v809 = vrot.slane %v504, 5
        %v810 = vsel %vm678, %v809, %v808
        %v811 = vrot.slane %v510, 4
        %v812 = vsel %vm681, %v811, %v810
        %v813 = vrot.slane %v516, 3
        %v814 = vsel %vm684, %v813, %v812
        %v815 = vrot.slane %v476, 2
        %v816 = vrot.slane %v482, 1
        %v817 = vsel %vm666, %v816, %v815
        %v818 = vsel %vm669, %v488, %v817
        %v819 = vrot.slane %v494, 7
        %v820 = vsel %vm672, %v819, %v818
        %v821 = vrot.slane %v500, 6
        %v822 = vsel %vm675, %v821, %v820
        %v823 = vrot.slane %v506, 5
        %v824 = vsel %vm678, %v823, %v822
        %v825 = vrot.slane %v512, 4
        %v826 = vsel %vm681, %v825, %v824
        %v827 = vrot.slane %v518, 3
        %v828 = vsel %vm684, %v827, %v826
        %v829 = vrot.slane %v587, 2
        %v830 = vrot.slane %v593, 1
        %v831 = vsel %vm666, %v830, %v829
        %v832 = vsel %vm669, %v599, %v831
        %v833 = vrot.slane %v605, 7
        %v834 = vsel %vm672, %v833, %v832
        %v835 = vrot.slane %v611, 6
        %v836 = vsel %vm675, %v835, %v834
        %v837 = vrot.slane %v617, 5
        %v838 = vsel %vm678, %v837, %v836
        %v839 = vrot.slane %v623, 4
        %v840 = vsel %vm681, %v839, %v838
        %v841 = vrot.slane %v629, 3
        %v842 = vsel %vm684, %v841, %v840
        %v843 = vrot.slane %v589, 2
        %v844 = vrot.slane %v595, 1
        %v845 = vsel %vm666, %v844, %v843
        %v846 = vsel %vm669, %v601, %v845
        %v847 = vrot.slane %v607, 7
        %v848 = vsel %vm672, %v847, %v846
        %v849 = vrot.slane %v613, 6
        %v850 = vsel %vm675, %v849, %v848
        %v851 = vrot.slane %v619, 5
        %v852 = vsel %vm678, %v851, %v850
        %v853 = vrot.slane %v625, 4
        %v854 = vsel %vm681, %v853, %v852
        %v855 = vrot.slane %v631, 3
        %v856 = vsel %vm684, %v855, %v854
        %s861 = scalar_lea.vmem [#allocation4], 64
        %862 = vst [vmem:[%s861] sm:$0xff] %v814
        %863 = vst [vmem:[%s861 + $0x8] sm:$0xff] %v828
        %864 = vst [vmem:[%s861 + $0x10] sm:$0xff] %v842
        %865 = vst [vmem:[%s861 + $0x18] sm:$0xff] %v856
        %v866 = vrot.slane %v474, 3
        %v867 = vrot.slane %v480, 2
        %v868 = vsel %vm666, %v867, %v866
        %v869 = vrot.slane %v486, 1
        %v870 = vsel %vm669, %v869, %v868
        %v871 = vsel %vm672, %v492, %v870
        %v872 = vrot.slane %v498, 7
        %v873 = vsel %vm675, %v872, %v871
        %v874 = vrot.slane %v504, 6
        %v875 = vsel %vm678, %v874, %v873
        %v876 = vrot.slane %v510, 5
        %v877 = vsel %vm681, %v876, %v875
        %v878 = vrot.slane %v516, 4
        %v879 = vsel %vm684, %v878, %v877
        %v880 = vrot.slane %v476, 3
        %v881 = vrot.slane %v482, 2
        %v882 = vsel %vm666, %v881, %v880
        %v883 = vrot.slane %v488, 1
        %v884 = vsel %vm669, %v883, %v882
        %v885 = vsel %vm672, %v494, %v884
        %v886 = vrot.slane %v500, 7
        %v887 = vsel %vm675, %v886, %v885
        %v888 = vrot.slane %v506, 6
        %v889 = vsel %vm678, %v888, %v887
        %v890 = vrot.slane %v512, 5
        %v891 = vsel %vm681, %v890, %v889
        %v892 = vrot.slane %v518, 4
        %v893 = vsel %vm684, %v892, %v891
        %v894 = vrot.slane %v587, 3
        %v895 = vrot.slane %v593, 2
        %v896 = vsel %vm666, %v895, %v894
        %v897 = vrot.slane %v599, 1
        %v898 = vsel %vm669, %v897, %v896
        %v899 = vsel %vm672, %v605, %v898
        %v900 = vrot.slane %v611, 7
        %v901 = vsel %vm675, %v900, %v899
        %v902 = vrot.slane %v617, 6
        %v903 = vsel %vm678, %v902, %v901
        %v904 = vrot.slane %v623, 5
        %v905 = vsel %vm681, %v904, %v903
        %v906 = vrot.slane %v629, 4
        %v907 = vsel %vm684, %v906, %v905
        %v908 = vrot.slane %v589, 3
        %v909 = vrot.slane %v595, 2
        %v910 = vsel %vm666, %v909, %v908
        %v911 = vrot.slane %v601, 1
        %v912 = vsel %vm669, %v911, %v910
        %v913 = vsel %vm672, %v607, %v912
        %v914 = vrot.slane %v613, 7
        %v915 = vsel %vm675, %v914, %v913
        %v916 = vrot.slane %v619, 6
        %v917 = vsel %vm678, %v916, %v915
        %v918 = vrot.slane %v625, 5
        %v919 = vsel %vm681, %v918, %v917
        %v920 = vrot.slane %v631, 4
        %v921 = vsel %vm684, %v920, %v919
        %s926 = scalar_lea.vmem [#allocation4], 96
        %927 = vst [vmem:[%s926] sm:$0xff] %v879
        %928 = vst [vmem:[%s926 + $0x8] sm:$0xff] %v893
        %929 = vst [vmem:[%s926 + $0x10] sm:$0xff] %v907
        %930 = vst [vmem:[%s926 + $0x18] sm:$0xff] %v921
        %v931 = vrot.slane %v474, 4
        %v932 = vrot.slane %v480, 3
        %v933 = vsel %vm666, %v932, %v931
        %v934 = vrot.slane %v486, 2
        %v935 = vsel %vm669, %v934, %v933
        %v936 = vrot.slane %v492, 1
        %v937 = vsel %vm672, %v936, %v935
        %v938 = vsel %vm675, %v498, %v937
        %v939 = vrot.slane %v504, 7
        %v940 = vsel %vm678, %v939, %v938
        %v941 = vrot.slane %v510, 6
        %v942 = vsel %vm681, %v941, %v940
        %v943 = vrot.slane %v516, 5
        %v944 = vsel %vm684, %v943, %v942
        %v945 = vrot.slane %v476, 4
        %v946 = vrot.slane %v482, 3
        %v947 = vsel %vm666, %v946, %v945
        %v948 = vrot.slane %v488, 2
        %v949 = vsel %vm669, %v948, %v947
        %v950 = vrot.slane %v494, 1
        %v951 = vsel %vm672, %v950, %v949
        %v952 = vsel %vm675, %v500, %v951
        %v953 = vrot.slane %v506, 7
        %v954 = vsel %vm678, %v953, %v952
        %v955 = vrot.slane %v512, 6
        %v956 = vsel %vm681, %v955, %v954
        %v957 = vrot.slane %v518, 5
        %v958 = vsel %vm684, %v957, %v956
        %v959 = vrot.slane %v587, 4
        %v960 = vrot.slane %v593, 3
        %v961 = vsel %vm666, %v960, %v959
        %v962 = vrot.slane %v599, 2
        %v963 = vsel %vm669, %v962, %v961
        %v964 = vrot.slane %v605, 1
        %v965 = vsel %vm672, %v964, %v963
        %v966 = vsel %vm675, %v611, %v965
        %v967 = vrot.slane %v617, 7
        %v968 = vsel %vm678, %v967, %v966
        %v969 = vrot.slane %v623, 6
        %v970 = vsel %vm681, %v969, %v968
        %v971 = vrot.slane %v629, 5
        %v972 = vsel %vm684, %v971, %v970
        %v973 = vrot.slane %v589, 4
        %v974 = vrot.slane %v595, 3
        %v975 = vsel %vm666, %v974, %v973
        %v976 = vrot.slane %v601, 2
        %v977 = vsel %vm669, %v976, %v975
        %v978 = vrot.slane %v607, 1
        %v979 = vsel %vm672, %v978, %v977
        %v980 = vsel %vm675, %v613, %v979
        %v981 = vrot.slane %v619, 7
        %v982 = vsel %vm678, %v981, %v980
        %v983 = vrot.slane %v625, 6
        %v984 = vsel %vm681, %v983, %v982
        %v985 = vrot.slane %v631, 5
        %v986 = vsel %vm684, %v985, %v984
        %s991 = scalar_lea.vmem [#allocation4], 128
        %992 = vst [vmem:[%s991] sm:$0xff] %v944
        %993 = vst [vmem:[%s991 + $0x8] sm:$0xff] %v958
        %994 = vst [vmem:[%s991 + $0x10] sm:$0xff] %v972
        %995 = vst [vmem:[%s991 + $0x18] sm:$0xff] %v986
        %v996 = vrot.slane %v474, 5
        %v997 = vrot.slane %v480, 4
        %v998 = vsel %vm666, %v997, %v996
        %v999 = vrot.slane %v486, 3
        %v1000 = vsel %vm669, %v999, %v998
        %v1001 = vrot.slane %v492, 2
        %v1002 = vsel %vm672, %v1001, %v1000
        %v1003 = vrot.slane %v498, 1
        %v1004 = vsel %vm675, %v1003, %v1002
        %v1005 = vsel %vm678, %v504, %v1004
        %v1006 = vrot.slane %v510, 7
        %v1007 = vsel %vm681, %v1006, %v1005
        %v1008 = vrot.slane %v516, 6
        %v1009 = vsel %vm684, %v1008, %v1007
        %v1010 = vrot.slane %v476, 5
        %v1011 = vrot.slane %v482, 4
        %v1012 = vsel %vm666, %v1011, %v1010
        %v1013 = vrot.slane %v488, 3
        %v1014 = vsel %vm669, %v1013, %v1012
        %v1015 = vrot.slane %v494, 2
        %v1016 = vsel %vm672, %v1015, %v1014
        %v1017 = vrot.slane %v500, 1
        %v1018 = vsel %vm675, %v1017, %v1016
        %v1019 = vsel %vm678, %v506, %v1018
        %v1020 = vrot.slane %v512, 7
        %v1021 = vsel %vm681, %v1020, %v1019
        %v1022 = vrot.slane %v518, 6
        %v1023 = vsel %vm684, %v1022, %v1021
        %v1024 = vrot.slane %v587, 5
        %v1025 = vrot.slane %v593, 4
        %v1026 = vsel %vm666, %v1025, %v1024
        %v1027 = vrot.slane %v599, 3
        %v1028 = vsel %vm669, %v1027, %v1026
        %v1029 = vrot.slane %v605, 2
        %v1030 = vsel %vm672, %v1029, %v1028
        %v1031 = vrot.slane %v611, 1
        %v1032 = vsel %vm675, %v1031, %v1030
        %v1033 = vsel %vm678, %v617, %v1032
        %v1034 = vrot.slane %v623, 7
        %v1035 = vsel %vm681, %v1034, %v1033
        %v1036 = vrot.slane %v629, 6
        %v1037 = vsel %vm684, %v1036, %v1035
        %v1038 = vrot.slane %v589, 5
        %v1039 = vrot.slane %v595, 4
        %v1040 = vsel %vm666, %v1039, %v1038
        %v1041 = vrot.slane %v601, 3
        %v1042 = vsel %vm669, %v1041, %v1040
        %v1043 = vrot.slane %v607, 2
        %v1044 = vsel %vm672, %v1043, %v1042
        %v1045 = vrot.slane %v613, 1
        %v1046 = vsel %vm675, %v1045, %v1044
        %v1047 = vsel %vm678, %v619, %v1046
        %v1048 = vrot.slane %v625, 7
        %v1049 = vsel %vm681, %v1048, %v1047
        %v1050 = vrot.slane %v631, 6
        %v1051 = vsel %vm684, %v1050, %v1049
        %s1056 = scalar_lea.vmem [#allocation4], 160
        %1057 = vst [vmem:[%s1056] sm:$0xff] %v1009
        %1058 = vst [vmem:[%s1056 + $0x8] sm:$0xff] %v1023
        %1059 = vst [vmem:[%s1056 + $0x10] sm:$0xff] %v1037
        %1060 = vst [vmem:[%s1056 + $0x18] sm:$0xff] %v1051
        %v1061 = vrot.slane %v474, 6
        %v1062 = vrot.slane %v480, 5
        %v1063 = vsel %vm666, %v1062, %v1061
        %v1064 = vrot.slane %v486, 4
        %v1065 = vsel %vm669, %v1064, %v1063
        %v1066 = vrot.slane %v492, 3
        %v1067 = vsel %vm672, %v1066, %v1065
        %v1068 = vrot.slane %v498, 2
        %v1069 = vsel %vm675, %v1068, %v1067
        %v1070 = vrot.slane %v504, 1
        %v1071 = vsel %vm678, %v1070, %v1069
        %v1072 = vsel %vm681, %v510, %v1071
        %v1073 = vrot.slane %v516, 7
        %v1074 = vsel %vm684, %v1073, %v1072
        %v1075 = vrot.slane %v476, 6
        %v1076 = vrot.slane %v482, 5
        %v1077 = vsel %vm666, %v1076, %v1075
        %v1078 = vrot.slane %v488, 4
        %v1079 = vsel %vm669, %v1078, %v1077
        %v1080 = vrot.slane %v494, 3
        %v1081 = vsel %vm672, %v1080, %v1079
        %v1082 = vrot.slane %v500, 2
        %v1083 = vsel %vm675, %v1082, %v1081
        %v1084 = vrot.slane %v506, 1
        %v1085 = vsel %vm678, %v1084, %v1083
        %v1086 = vsel %vm681, %v512, %v1085
        %v1087 = vrot.slane %v518, 7
        %v1088 = vsel %vm684, %v1087, %v1086
        %v1089 = vrot.slane %v587, 6
        %v1090 = vrot.slane %v593, 5
        %v1091 = vsel %vm666, %v1090, %v1089
        %v1092 = vrot.slane %v599, 4
        %v1093 = vsel %vm669, %v1092, %v1091
        %v1094 = vrot.slane %v605, 3
        %v1095 = vsel %vm672, %v1094, %v1093
        %v1096 = vrot.slane %v611, 2
        %v1097 = vsel %vm675, %v1096, %v1095
        %v1098 = vrot.slane %v617, 1
        %v1099 = vsel %vm678, %v1098, %v1097
        %v1100 = vsel %vm681, %v623, %v1099
        %v1101 = vrot.slane %v629, 7
        %v1102 = vsel %vm684, %v1101, %v1100
        %v1103 = vrot.slane %v589, 6
        %v1104 = vrot.slane %v595, 5
        %v1105 = vsel %vm666, %v1104, %v1103
        %v1106 = vrot.slane %v601, 4
        %v1107 = vsel %vm669, %v1106, %v1105
        %v1108 = vrot.slane %v607, 3
        %v1109 = vsel %vm672, %v1108, %v1107
        %v1110 = vrot.slane %v613, 2
        %v1111 = vsel %vm675, %v1110, %v1109
        %v1112 = vrot.slane %v619, 1
        %v1113 = vsel %vm678, %v1112, %v1111
        %v1114 = vsel %vm681, %v625, %v1113
        %v1115 = vrot.slane %v631, 7
        %v1116 = vsel %vm684, %v1115, %v1114
        %s1121 = scalar_lea.vmem [#allocation4], 192
        %1122 = vst [vmem:[%s1121] sm:$0xff] %v1074
        %1123 = vst [vmem:[%s1121 + $0x8] sm:$0xff] %v1088
        %1124 = vst [vmem:[%s1121 + $0x10] sm:$0xff] %v1102
        %1125 = vst [vmem:[%s1121 + $0x18] sm:$0xff] %v1116
        %v1126 = vrot.slane %v474, 7
        %v1127 = vrot.slane %v480, 6
        %v1128 = vsel %vm666, %v1127, %v1126
        %v1129 = vrot.slane %v486, 5
        %v1130 = vsel %vm669, %v1129, %v1128
        %v1131 = vrot.slane %v492, 4
        %v1132 = vsel %vm672, %v1131, %v1130
        %v1133 = vrot.slane %v498, 3
        %v1134 = vsel %vm675, %v1133, %v1132
        %v1135 = vrot.slane %v504, 2
        %v1136 = vsel %vm678, %v1135, %v1134
        %v1137 = vrot.slane %v510, 1
        %v1138 = vsel %vm681, %v1137, %v1136
        %v1139 = vsel %vm684, %v516, %v1138
        %v1140 = vrot.slane %v476, 7
        %v1141 = vrot.slane %v482, 6
        %v1142 = vsel %vm666, %v1141, %v1140
        %v1143 = vrot.slane %v488, 5
        %v1144 = vsel %vm669, %v1143, %v1142
        %v1145 = vrot.slane %v494, 4
        %v1146 = vsel %vm672, %v1145, %v1144
        %v1147 = vrot.slane %v500, 3
        %v1148 = vsel %vm675, %v1147, %v1146
        %v1149 = vrot.slane %v506, 2
        %v1150 = vsel %vm678, %v1149, %v1148
        %v1151 = vrot.slane %v512, 1
        %v1152 = vsel %vm681, %v1151, %v1150
        %v1153 = vsel %vm684, %v518, %v1152
        %v1154 = vrot.slane %v587, 7
        %v1155 = vrot.slane %v593, 6
        %v1156 = vsel %vm666, %v1155, %v1154
        %v1157 = vrot.slane %v599, 5
        %v1158 = vsel %vm669, %v1157, %v1156
        %v1159 = vrot.slane %v605, 4
        %v1160 = vsel %vm672, %v1159, %v1158
        %v1161 = vrot.slane %v611, 3
        %v1162 = vsel %vm675, %v1161, %v1160
        %v1163 = vrot.slane %v617, 2
        %v1164 = vsel %vm678, %v1163, %v1162
        %v1165 = vrot.slane %v623, 1
        %v1166 = vsel %vm681, %v1165, %v1164
        %v1167 = vsel %vm684, %v629, %v1166
        %v1168 = vrot.slane %v589, 7
        %v1169 = vrot.slane %v595, 6
        %v1170 = vsel %vm666, %v1169, %v1168
        %v1171 = vrot.slane %v601, 5
        %v1172 = vsel %vm669, %v1171, %v1170
        %v1173 = vrot.slane %v607, 4
        %v1174 = vsel %vm672, %v1173, %v1172
        %v1175 = vrot.slane %v613, 3
        %v1176 = vsel %vm675, %v1175, %v1174
        %v1177 = vrot.slane %v619, 2
        %v1178 = vsel %vm678, %v1177, %v1176
        %v1179 = vrot.slane %v625, 1
        %v1180 = vsel %vm681, %v1179, %v1178
        %v1181 = vsel %vm684, %v631, %v1180
        %s1186 = scalar_lea.vmem [#allocation4], 224
        %1187 = vst [vmem:[%s1186] sm:$0xff] %v1139
        %1188 = vst [vmem:[%s1186 + $0x8] sm:$0xff] %v1153
        %1189 = vst [vmem:[%s1186 + $0x10] sm:$0xff] %v1167
        %1190 = vst [vmem:[%s1186 + $0x18] sm:$0xff] %v1181
        %v1191 = vlaneseq
        %v1192 = vand.u32 %v1191, 127
        %v1193 = vadd.s32 %v1192, 128
        %v1194 = vadd.s32 %v1192, 256
        %v1195 = vadd.s32 %v1192, 384
        %vm1196 = vcmp.ge.s32.totalorder %v1192, 256
        %vm1197 = vcmp.ge.s32.totalorder %v1193, 256
        %vm1198 = vcmp.ge.s32.totalorder %v1194, 256
        %vm1199 = vcmp.ge.s32.totalorder %v1195, 256
        %vm1200 = vcmp.lt.s32.totalorder %v1192, 384
        %vm1201 = vcmp.lt.s32.totalorder %v1193, 384
        %vm1202 = vcmp.lt.s32.totalorder %v1194, 384
        %vm1203 = vcmp.lt.s32.totalorder %v1195, 384
        %vm1204 = vmand %vm1196, %vm1200
        %vm1205 = vmand %vm1197, %vm1201
        %vm1206 = vmand %vm1198, %vm1202
        %vm1207 = vmand %vm1199, %vm1203
        %v1208 = vsel %vm1204, 1.0, 0.5
        %v1209 = vsel %vm1205, 1.0, 0.5
        %v1210 = vsel %vm1206, 1.0, 0.5
        %v1211 = vsel %vm1207, 1.0, 0.5
        %v1212 = vsel %vm1204, 0.0, 0.5
        %v1213 = vsel %vm1205, 0.0, 0.5
        %v1214 = vsel %vm1206, 0.0, 0.5
        %v1215 = vsel %vm1207, 0.0, 0.5
        %v1216 = vld [vmem:[#allocation6] sm:$0xff]
        %v1217 = vld [vmem:[#allocation6 + $0x8] sm:$0xff]
        %v1218 = vld [vmem:[#allocation6 + $0x10] sm:$0xff]
        %v1219 = vld [vmem:[#allocation6 + $0x18] sm:$0xff]
        %v1220 = vld [vmem:[#allocation6 + $0x20] sm:$0xff]
        %v1221 = vld [vmem:[#allocation6 + $0x28] sm:$0xff]
        %v1222 = vld [vmem:[#allocation6 + $0x30] sm:$0xff]
        %v1223 = vld [vmem:[#allocation6 + $0x38] sm:$0xff]
        %v1224 = vld [vmem:[#allocation6 + $0x40] sm:$0xff]
        %v1225 = vld [vmem:[#allocation6 + $0x48] sm:$0xff]
        %v1226 = vld [vmem:[#allocation6 + $0x50] sm:$0xff]
        %v1227 = vld [vmem:[#allocation6 + $0x58] sm:$0xff]
        %v1228 = vld [vmem:[#allocation6 + $0x60] sm:$0xff]
        %v1229 = vld [vmem:[#allocation6 + $0x68] sm:$0xff]
        %v1230 = vld [vmem:[#allocation6 + $0x70] sm:$0xff]
        %v1231 = vld [vmem:[#allocation6 + $0x78] sm:$0xff]
        %v1232 = vld [vmem:[#allocation6 + $0x80] sm:$0xff]
        %v1233 = vld [vmem:[#allocation6 + $0x88] sm:$0xff]
        %v1234 = vld [vmem:[#allocation6 + $0x90] sm:$0xff]
        %v1235 = vld [vmem:[#allocation6 + $0x98] sm:$0xff]
        %v1236 = vld [vmem:[#allocation6 + $0xa0] sm:$0xff]
        %v1237 = vld [vmem:[#allocation6 + $0xa8] sm:$0xff]
        %v1238 = vld [vmem:[#allocation6 + $0xb0] sm:$0xff]
        %v1239 = vld [vmem:[#allocation6 + $0xb8] sm:$0xff]
        %v1240 = vld [vmem:[#allocation6 + $0xc0] sm:$0xff]
        %v1241 = vld [vmem:[#allocation6 + $0xc8] sm:$0xff]
        %v1242 = vld [vmem:[#allocation6 + $0xd0] sm:$0xff]
        %v1243 = vld [vmem:[#allocation6 + $0xd8] sm:$0xff]
        %v1244 = vld [vmem:[#allocation6 + $0xe0] sm:$0xff]
        %v1245 = vld [vmem:[#allocation6 + $0xe8] sm:$0xff]
        %v1246 = vld [vmem:[#allocation6 + $0xf0] sm:$0xff]
        %v1247 = vld [vmem:[#allocation6 + $0xf8] sm:$0xff]
        %v1248 = vld [vmem:[#allocation6 + $0x100] sm:$0xff]
        %v1249 = vld [vmem:[#allocation6 + $0x108] sm:$0xff]
        %v1250 = vld [vmem:[#allocation6 + $0x110] sm:$0xff]
        %v1251 = vld [vmem:[#allocation6 + $0x118] sm:$0xff]
        %v1252 = vld [vmem:[#allocation6 + $0x120] sm:$0xff]
        %v1253 = vld [vmem:[#allocation6 + $0x128] sm:$0xff]
        %v1254 = vld [vmem:[#allocation6 + $0x130] sm:$0xff]
        %v1255 = vld [vmem:[#allocation6 + $0x138] sm:$0xff]
        %v1256 = vld [vmem:[#allocation6 + $0x140] sm:$0xff]
        %v1257 = vld [vmem:[#allocation6 + $0x148] sm:$0xff]
        %v1258 = vld [vmem:[#allocation6 + $0x150] sm:$0xff]
        %v1259 = vld [vmem:[#allocation6 + $0x158] sm:$0xff]
        %v1260 = vld [vmem:[#allocation6 + $0x160] sm:$0xff]
        %v1261 = vld [vmem:[#allocation6 + $0x168] sm:$0xff]
        %v1262 = vld [vmem:[#allocation6 + $0x170] sm:$0xff]
        %v1263 = vld [vmem:[#allocation6 + $0x178] sm:$0xff]
        %v1264 = vld [vmem:[#allocation6 + $0x180] sm:$0xff]
        %v1265 = vld [vmem:[#allocation6 + $0x188] sm:$0xff]
        %v1266 = vld [vmem:[#allocation6 + $0x190] sm:$0xff]
        %v1267 = vld [vmem:[#allocation6 + $0x198] sm:$0xff]
        %v1268 = vld [vmem:[#allocation6 + $0x1a0] sm:$0xff]
        %v1269 = vld [vmem:[#allocation6 + $0x1a8] sm:$0xff]
        %v1270 = vld [vmem:[#allocation6 + $0x1b0] sm:$0xff]
        %v1271 = vld [vmem:[#allocation6 + $0x1b8] sm:$0xff]
        %v1272 = vld [vmem:[#allocation6 + $0x1c0] sm:$0xff]
        %v1273 = vld [vmem:[#allocation6 + $0x1c8] sm:$0xff]
        %v1274 = vld [vmem:[#allocation6 + $0x1d0] sm:$0xff]
        %v1275 = vld [vmem:[#allocation6 + $0x1d8] sm:$0xff]
        %v1276 = vld [vmem:[#allocation6 + $0x1e0] sm:$0xff]
        %v1277 = vld [vmem:[#allocation6 + $0x1e8] sm:$0xff]
        %v1278 = vld [vmem:[#allocation6 + $0x1f0] sm:$0xff]
        %v1279 = vld [vmem:[#allocation6 + $0x1f8] sm:$0xff]
        %s1280 = smul.u32 %s24, 8
        %v1281 = vld [vmem:[#allocation2] sm:$0xff]
        %v1282 = vld [vmem:[#allocation3] sm:$0xff]
        %v1283 = vld [vmem:[#allocation4] sm:$0xff]
        %v1284 = vld [vmem:[#allocation4 + $0x8] sm:$0xff]
        %v1285 = vld [vmem:[#allocation4 + $0x10] sm:$0xff]
        %v1286 = vld [vmem:[#allocation4 + $0x18] sm:$0xff]
        %1287 = vmatprep.subr.mxu0 %v1217
        %1288 = vmatpush1.msra.mxu0 %v1216
        %1289 = vmatprep.subr.mxu0 %v1221
        %1290 = vmatpush1.msra.mxu0 %v1220
        %1291 = vmatprep.subr.mxu0 %v1225
        %1292 = vmatpush1.msra.mxu0 %v1224
        %1293 = vmatprep.subr.mxu0 %v1229
        %1294 = vmatpush1.msra.mxu0 %v1228
        %1295 = vmatprep.subr.mxu0 %v1233
        %1296 = vmatpush1.msra.mxu0 %v1232
        %1297 = vmatprep.subr.mxu0 %v1237
        %1298 = vmatpush1.msra.mxu0 %v1236
        %1299 = vmatprep.subr.mxu0 %v1241
        %1300 = vmatpush1.msra.mxu0 %v1240
        %1301 = vmatprep.subr.mxu0 %v1245
        %1302 = vmatpush1.msra.mxu0 %v1244
        %1303 = vmatprep.subr.mxu0 %v1249
        %1304 = vmatpush1.msra.mxu0 %v1248
        %1305 = vmatprep.subr.mxu0 %v1253
        %1306 = vmatpush1.msra.mxu0 %v1252
        %1307 = vmatprep.subr.mxu0 %v1257
        %1308 = vmatpush1.msra.mxu0 %v1256
        %1309 = vmatprep.subr.mxu0 %v1261
        %1310 = vmatpush1.msra.mxu0 %v1260
        %1311 = vmatprep.subr.mxu0 %v1265
        %1312 = vmatpush1.msra.mxu0 %v1264
        %1313 = vmatprep.subr.mxu0 %v1269
        %1314 = vmatpush1.msra.mxu0 %v1268
        %1315 = vmatprep.subr.mxu0 %v1273
        %1316 = vmatpush1.msra.mxu0 %v1272
        %1317 = vmatprep.subr.mxu0 %v1277
        %1318 = vmatpush1.msra.mxu0 %v1276
        %1319 = vmatprep.subr.mxu0 0.0
        %1320 = vmatpush1.msra.mxu0 0.0
        %1321 = vmatprep.subr.mxu0 0.0
        %1322 = vmatpush1.msra.mxu0 0.0
        %1323 = vmatprep.subr.mxu0 0.0
        %1324 = vmatpush1.msra.mxu0 0.0
        %1325 = vmatprep.subr.mxu0 0.0
        %1326 = vmatpush1.msra.mxu0 0.0
        %1327 = vmatprep.subr.mxu0 0.0
        %1328 = vmatpush1.msra.mxu0 0.0
        %1329 = vmatprep.subr.mxu0 0.0
        %1330 = vmatpush1.msra.mxu0 0.0
        %1331 = vmatprep.subr.mxu0 0.0
        %1332 = vmatpush1.msra.mxu0 0.0
        %1333 = vmatprep.subr.mxu0 0.0
        %1334 = vmatpush1.msra.mxu0 0.0
        %1335 = vmatprep.subr.mxu0 0.0
        %1336 = vmatpush1.msra.mxu0 0.0
        %1337 = vmatprep.subr.mxu0 0.0
        %1338 = vmatpush1.msra.mxu0 0.0
        %1339 = vmatprep.subr.mxu0 0.0
        %1340 = vmatpush1.msra.mxu0 0.0
        %1341 = vmatprep.subr.mxu0 0.0
        %1342 = vmatpush1.msra.mxu0 0.0
        %1343 = vmatprep.subr.mxu0 0.0
        %1344 = vmatpush1.msra.mxu0 0.0
        %1345 = vmatprep.subr.mxu0 0.0
        %1346 = vmatpush1.msra.mxu0 0.0
        %1347 = vmatprep.subr.mxu0 0.0
        %1348 = vmatpush1.msra.mxu0 0.0
        %1349 = vmatprep.subr.mxu0 0.0
        %1350 = vmatpush1.msra.mxu0 0.0
        %1351 = vmatprep.mubr.f32.mxu0 0.0
        %1352 = vmatmul.mubr.f32.gmra.mrb[0].mxu0 %v1281
        %v1353 = vpop.f32.mrb[0].mxu0
        %v1354 = vadd.f32 0.0, %v1353
        %v1355 = vpop.f32.mrb[0].mxu0
        %v1356 = vadd.f32 0.0, %v1355
        %1357 = vdwg.mxu0
        %1358 = vmatprep.subr.mxu0 %v1219
        %1359 = vmatpush1.msra.mxu0 %v1218
        %1360 = vmatprep.subr.mxu0 %v1223
        %1361 = vmatpush1.msra.mxu0 %v1222
        %1362 = vmatprep.subr.mxu0 %v1227
        %1363 = vmatpush1.msra.mxu0 %v1226
        %1364 = vmatprep.subr.mxu0 %v1231
        %1365 = vmatpush1.msra.mxu0 %v1230
        %1366 = vmatprep.subr.mxu0 %v1235
        %1367 = vmatpush1.msra.mxu0 %v1234
        %1368 = vmatprep.subr.mxu0 %v1239
        %1369 = vmatpush1.msra.mxu0 %v1238
        %1370 = vmatprep.subr.mxu0 %v1243
        %1371 = vmatpush1.msra.mxu0 %v1242
        %1372 = vmatprep.subr.mxu0 %v1247
        %1373 = vmatpush1.msra.mxu0 %v1246
        %1374 = vmatprep.subr.mxu0 %v1251
        %1375 = vmatpush1.msra.mxu0 %v1250
        %1376 = vmatprep.subr.mxu0 %v1255
        %1377 = vmatpush1.msra.mxu0 %v1254
        %1378 = vmatprep.subr.mxu0 %v1259
        %1379 = vmatpush1.msra.mxu0 %v1258
        %1380 = vmatprep.subr.mxu0 %v1263
        %1381 = vmatpush1.msra.mxu0 %v1262
        %1382 = vmatprep.subr.mxu0 %v1267
        %1383 = vmatpush1.msra.mxu0 %v1266
        %1384 = vmatprep.subr.mxu0 %v1271
        %1385 = vmatpush1.msra.mxu0 %v1270
        %1386 = vmatprep.subr.mxu0 %v1275
        %1387 = vmatpush1.msra.mxu0 %v1274
        %1388 = vmatprep.subr.mxu0 %v1279
        %1389 = vmatpush1.msra.mxu0 %v1278
        %1390 = vmatprep.subr.mxu0 0.0
        %1391 = vmatpush1.msra.mxu0 0.0
        %1392 = vmatprep.subr.mxu0 0.0
        %1393 = vmatpush1.msra.mxu0 0.0
        %1394 = vmatprep.subr.mxu0 0.0
        %1395 = vmatpush1.msra.mxu0 0.0
        %1396 = vmatprep.subr.mxu0 0.0
        %1397 = vmatpush1.msra.mxu0 0.0
        %1398 = vmatprep.subr.mxu0 0.0
        %1399 = vmatpush1.msra.mxu0 0.0
        %1400 = vmatprep.subr.mxu0 0.0
        %1401 = vmatpush1.msra.mxu0 0.0
        %1402 = vmatprep.subr.mxu0 0.0
        %1403 = vmatpush1.msra.mxu0 0.0
        %1404 = vmatprep.subr.mxu0 0.0
        %1405 = vmatpush1.msra.mxu0 0.0
        %1406 = vmatprep.subr.mxu0 0.0
        %1407 = vmatpush1.msra.mxu0 0.0
        %1408 = vmatprep.subr.mxu0 0.0
        %1409 = vmatpush1.msra.mxu0 0.0
        %1410 = vmatprep.subr.mxu0 0.0
        %1411 = vmatpush1.msra.mxu0 0.0
        %1412 = vmatprep.subr.mxu0 0.0
        %1413 = vmatpush1.msra.mxu0 0.0
        %1414 = vmatprep.subr.mxu0 0.0
        %1415 = vmatpush1.msra.mxu0 0.0
        %1416 = vmatprep.subr.mxu0 0.0
        %1417 = vmatpush1.msra.mxu0 0.0
        %1418 = vmatprep.subr.mxu0 0.0
        %1419 = vmatpush1.msra.mxu0 0.0
        %1420 = vmatprep.subr.mxu0 0.0
        %1421 = vmatpush1.msra.mxu0 0.0
        %1422 = vmatprep.mubr.f32.mxu0 0.0
        %1423 = vmatmul.mubr.f32.gmra.mrb[0].mxu0 %v1281
        %v1424 = vpop.f32.mrb[0].mxu0
        %v1425 = vadd.f32 0.0, %v1424
        %v1426 = vpop.f32.mrb[0].mxu0
        %v1427 = vadd.f32 0.0, %v1426
        %1428 = vdwg.mxu0
        %v1429 = vadd.f32 %v1283, %v1354
        %v1430 = vadd.f32 %v1284, %v1356
        %v1431 = vadd.f32 %v1285, %v1425
        %v1432 = vadd.f32 %v1286, %v1427
        %v1433 = vmul.f32 %v1429, %v1208
        %v1434 = vmul.f32 %v1430, %v1209
        %v1435 = vmul.f32 %v1431, %v1210
        %v1436 = vmul.f32 %v1432, %v1211
        %v1437 = vtanh.pop %v1433
        %v1438 = vtanh.pop %v1434
        %v1439 = vtanh.pop %v1435
        %v1440 = vtanh.pop %v1436
        %v1441 = vmul.f32 %v1437, %v1208
        %v1442 = vmul.f32 %v1438, %v1209
        %v1443 = vmul.f32 %v1439, %v1210
        %v1444 = vmul.f32 %v1440, %v1211
        %v1445 = vadd.f32 %v1441, %v1212
        %v1446 = vadd.f32 %v1442, %v1213
        %v1447 = vadd.f32 %v1443, %v1214
        %v1448 = vadd.f32 %v1444, %v1215
        %v1449 = vmul.f32 %v1446, %v1282
        %v1450 = vmul.f32 %v1445, %v1447
        %v1451 = vadd.f32 %v1449, %v1450
        %v1452 = vtanh.pop %v1451
        %v1453 = vmul.f32 %v1448, %v1452
        %p1454 = scmp.lt.s32.totalorder %s1280, 20
        %s1455 = scalar_select %p1454, 1, 0
        %v1456 = vstv %s1455
        %vm1457 = vcmp.eq.s32.totalorder %v1456, 1
        %v1458 = vsel %vm1457, %v1453, %v1281
        %v1459 = vsel %vm1457, %v1451, %v1282
        %v1460 = vld [vmem:[%s796] sm:$0xff]
        %v1461 = vld [vmem:[%s796 + $0x8] sm:$0xff]
        %v1462 = vld [vmem:[%s796 + $0x10] sm:$0xff]
        %v1463 = vld [vmem:[%s796 + $0x18] sm:$0xff]
        %1464 = vmatprep.subr.mxu0 %v1217
        %1465 = vmatpush1.msra.mxu0 %v1216
        %1466 = vmatprep.subr.mxu0 %v1221
        %1467 = vmatpush1.msra.mxu0 %v1220
        %1468 = vmatprep.subr.mxu0 %v1225
        %1469 = vmatpush1.msra.mxu0 %v1224
        %1470 = vmatprep.subr.mxu0 %v1229
        %1471 = vmatpush1.msra.mxu0 %v1228
        %1472 = vmatprep.subr.mxu0 %v1233
        %1473 = vmatpush1.msra.mxu0 %v1232
        %1474 = vmatprep.subr.mxu0 %v1237
        %1475 = vmatpush1.msra.mxu0 %v1236
        %1476 = vmatprep.subr.mxu0 %v1241
        %1477 = vmatpush1.msra.mxu0 %v1240
        %1478 = vmatprep.subr.mxu0 %v1245
        %1479 = vmatpush1.msra.mxu0 %v1244
        %1480 = vmatprep.subr.mxu0 %v1249
        %1481 = vmatpush1.msra.mxu0 %v1248
        %1482 = vmatprep.subr.mxu0 %v1253
        %1483 = vmatpush1.msra.mxu0 %v1252
        %1484 = vmatprep.subr.mxu0 %v1257
        %1485 = vmatpush1.msra.mxu0 %v1256
        %1486 = vmatprep.subr.mxu0 %v1261
        %1487 = vmatpush1.msra.mxu0 %v1260
        %1488 = vmatprep.subr.mxu0 %v1265
        %1489 = vmatpush1.msra.mxu0 %v1264
        %1490 = vmatprep.subr.mxu0 %v1269
        %1491 = vmatpush1.msra.mxu0 %v1268
        %1492 = vmatprep.subr.mxu0 %v1273
        %1493 = vmatpush1.msra.mxu0 %v1272
        %1494 = vmatprep.subr.mxu0 %v1277
        %1495 = vmatpush1.msra.mxu0 %v1276
        %1496 = vmatprep.subr.mxu0 0.0
        %1497 = vmatpush1.msra.mxu0 0.0
        %1498 = vmatprep.subr.mxu0 0.0
        %1499 = vmatpush1.msra.mxu0 0.0
        %1500 = vmatprep.subr.mxu0 0.0
        %1501 = vmatpush1.msra.mxu0 0.0
        %1502 = vmatprep.subr.mxu0 0.0
        %1503 = vmatpush1.msra.mxu0 0.0
        %1504 = vmatprep.subr.mxu0 0.0
        %1505 = vmatpush1.msra.mxu0 0.0
        %1506 = vmatprep.subr.mxu0 0.0
        %1507 = vmatpush1.msra.mxu0 0.0
        %1508 = vmatprep.subr.mxu0 0.0
        %1509 = vmatpush1.msra.mxu0 0.0
        %1510 = vmatprep.subr.mxu0 0.0
        %1511 = vmatpush1.msra.mxu0 0.0
        %1512 = vmatprep.subr.mxu0 0.0
        %1513 = vmatpush1.msra.mxu0 0.0
        %1514 = vmatprep.subr.mxu0 0.0
        %1515 = vmatpush1.msra.mxu0 0.0
        %1516 = vmatprep.subr.mxu0 0.0
        %1517 = vmatpush1.msra.mxu0 0.0
        %1518 = vmatprep.subr.mxu0 0.0
        %1519 = vmatpush1.msra.mxu0 0.0
        %1520 = vmatprep.subr.mxu0 0.0
        %1521 = vmatpush1.msra.mxu0 0.0
        %1522 = vmatprep.subr.mxu0 0.0
        %1523 = vmatpush1.msra.mxu0 0.0
        %1524 = vmatprep.subr.mxu0 0.0
        %1525 = vmatpush1.msra.mxu0 0.0
        %1526 = vmatprep.subr.mxu0 0.0
        %1527 = vmatpush1.msra.mxu0 0.0
        %1528 = vmatprep.mubr.f32.mxu0 0.0
        %1529 = vmatmul.mubr.f32.gmra.mrb[0].mxu0 %v1458
        %v1530 = vpop.f32.mrb[0].mxu0
        %v1531 = vadd.f32 0.0, %v1530
        %v1532 = vpop.f32.mrb[0].mxu0
        %v1533 = vadd.f32 0.0, %v1532
        %1534 = vdwg.mxu0
        %1535 = vmatprep.subr.mxu0 %v1219
        %1536 = vmatpush1.msra.mxu0 %v1218
        %1537 = vmatprep.subr.mxu0 %v1223
        %1538 = vmatpush1.msra.mxu0 %v1222
        %1539 = vmatprep.subr.mxu0 %v1227
        %1540 = vmatpush1.msra.mxu0 %v1226
        %1541 = vmatprep.subr.mxu0 %v1231
        %1542 = vmatpush1.msra.mxu0 %v1230
        %1543 = vmatprep.subr.mxu0 %v1235
        %1544 = vmatpush1.msra.mxu0 %v1234
        %1545 = vmatprep.subr.mxu0 %v1239
        %1546 = vmatpush1.msra.mxu0 %v1238
        %1547 = vmatprep.subr.mxu0 %v1243
        %1548 = vmatpush1.msra.mxu0 %v1242
        %1549 = vmatprep.subr.mxu0 %v1247
        %1550 = vmatpush1.msra.mxu0 %v1246
        %1551 = vmatprep.subr.mxu0 %v1251
        %1552 = vmatpush1.msra.mxu0 %v1250
        %1553 = vmatprep.subr.mxu0 %v1255
        %1554 = vmatpush1.msra.mxu0 %v1254
        %1555 = vmatprep.subr.mxu0 %v1259
        %1556 = vmatpush1.msra.mxu0 %v1258
        %1557 = vmatprep.subr.mxu0 %v1263
        %1558 = vmatpush1.msra.mxu0 %v1262
        %1559 = vmatprep.subr.mxu0 %v1267
        %1560 = vmatpush1.msra.mxu0 %v1266
        %1561 = vmatprep.subr.mxu0 %v1271
        %1562 = vmatpush1.msra.mxu0 %v1270
        %1563 = vmatprep.subr.mxu0 %v1275
        %1564 = vmatpush1.msra.mxu0 %v1274
        %1565 = vmatprep.subr.mxu0 %v1279
        %1566 = vmatpush1.msra.mxu0 %v1278
        %1567 = vmatprep.subr.mxu0 0.0
        %1568 = vmatpush1.msra.mxu0 0.0
        %1569 = vmatprep.subr.mxu0 0.0
        %1570 = vmatpush1.msra.mxu0 0.0
        %1571 = vmatprep.subr.mxu0 0.0
        %1572 = vmatpush1.msra.mxu0 0.0
        %1573 = vmatprep.subr.mxu0 0.0
        %1574 = vmatpush1.msra.mxu0 0.0
        %1575 = vmatprep.subr.mxu0 0.0
        %1576 = vmatpush1.msra.mxu0 0.0
        %1577 = vmatprep.subr.mxu0 0.0
        %1578 = vmatpush1.msra.mxu0 0.0
        %1579 = vmatprep.subr.mxu0 0.0
        %1580 = vmatpush1.msra.mxu0 0.0
        %1581 = vmatprep.subr.mxu0 0.0
        %1582 = vmatpush1.msra.mxu0 0.0
        %1583 = vmatprep.subr.mxu0 0.0
        %1584 = vmatpush1.msra.mxu0 0.0
        %1585 = vmatprep.subr.mxu0 0.0
        %1586 = vmatpush1.msra.mxu0 0.0
        %1587 = vmatprep.subr.mxu0 0.0
        %1588 = vmatpush1.msra.mxu0 0.0
        %1589 = vmatprep.subr.mxu0 0.0
        %1590 = vmatpush1.msra.mxu0 0.0
        %1591 = vmatprep.subr.mxu0 0.0
        %1592 = vmatpush1.msra.mxu0 0.0
        %1593 = vmatprep.subr.mxu0 0.0
        %1594 = vmatpush1.msra.mxu0 0.0
        %1595 = vmatprep.subr.mxu0 0.0
        %1596 = vmatpush1.msra.mxu0 0.0
        %1597 = vmatprep.subr.mxu0 0.0
        %1598 = vmatpush1.msra.mxu0 0.0
        %1599 = vmatprep.mubr.f32.mxu0 0.0
        %1600 = vmatmul.mubr.f32.gmra.mrb[0].mxu0 %v1458
        %v1601 = vpop.f32.mrb[0].mxu0
        %v1602 = vadd.f32 0.0, %v1601
        %v1603 = vpop.f32.mrb[0].mxu0
        %v1604 = vadd.f32 0.0, %v1603
        %1605 = vdwg.mxu0
        %v1606 = vadd.f32 %v1460, %v1531
        %v1607 = vadd.f32 %v1461, %v1533
        %v1608 = vadd.f32 %v1462, %v1602
        %v1609 = vadd.f32 %v1463, %v1604
        %v1610 = vmul.f32 %v1606, %v1208
        %v1611 = vmul.f32 %v1607, %v1209
        %v1612 = vmul.f32 %v1608, %v1210
        %v1613 = vmul.f32 %v1609, %v1211
        %v1614 = vtanh.pop %v1610
        %v1615 = vtanh.pop %v1611
        %v1616 = vtanh.pop %v1612
        %v1617 = vtanh.pop %v1613
        %v1618 = vmul.f32 %v1614, %v1208
        %v1619 = vmul.f32 %v1615, %v1209
        %v1620 = vmul.f32 %v1616, %v1210
        %v1621 = vmul.f32 %v1617, %v1211
        %v1622 = vadd.f32 %v1618, %v1212
        %v1623 = vadd.f32 %v1619, %v1213
        %v1624 = vadd.f32 %v1620, %v1214
        %v1625 = vadd.f32 %v1621, %v1215
        %v1626 = vmul.f32 %v1623, %v1459
        %v1627 = vmul.f32 %v1622, %v1624
        %v1628 = vadd.f32 %v1626, %v1627
        %v1629 = vtanh.pop %v1628
        %v1630 = vmul.f32 %v1625, %v1629
        %s1631 = sadd.s32 %s1280, 1
        %p1632 = scmp.lt.s32.totalorder %s1631, 20
        %s1633 = scalar_select %p1632, 1, 0
        %v1634 = vstv %s1633
        %vm1635 = vcmp.eq.s32.totalorder %v1634, 1
        %v1636 = vsel %vm1635, %v1630, %v1458
        %v1637 = vsel %vm1635, %v1628, %v1459
        %v1638 = vld [vmem:[%s861] sm:$0xff]
        %v1639 = vld [vmem:[%s861 + $0x8] sm:$0xff]
        %v1640 = vld [vmem:[%s861 + $0x10] sm:$0xff]
        %v1641 = vld [vmem:[%s861 + $0x18] sm:$0xff]
        %1642 = vmatprep.subr.mxu0 %v1217
        %1643 = vmatpush1.msra.mxu0 %v1216
        %1644 = vmatprep.subr.mxu0 %v1221
        %1645 = vmatpush1.msra.mxu0 %v1220
        %1646 = vmatprep.subr.mxu0 %v1225
        %1647 = vmatpush1.msra.mxu0 %v1224
        %1648 = vmatprep.subr.mxu0 %v1229
        %1649 = vmatpush1.msra.mxu0 %v1228
        %1650 = vmatprep.subr.mxu0 %v1233
        %1651 = vmatpush1.msra.mxu0 %v1232
        %1652 = vmatprep.subr.mxu0 %v1237
        %1653 = vmatpush1.msra.mxu0 %v1236
        %1654 = vmatprep.subr.mxu0 %v1241
        %1655 = vmatpush1.msra.mxu0 %v1240
        %1656 = vmatprep.subr.mxu0 %v1245
        %1657 = vmatpush1.msra.mxu0 %v1244
        %1658 = vmatprep.subr.mxu0 %v1249
        %1659 = vmatpush1.msra.mxu0 %v1248
        %1660 = vmatprep.subr.mxu0 %v1253
        %1661 = vmatpush1.msra.mxu0 %v1252
        %1662 = vmatprep.subr.mxu0 %v1257
        %1663 = vmatpush1.msra.mxu0 %v1256
        %1664 = vmatprep.subr.mxu0 %v1261
        %1665 = vmatpush1.msra.mxu0 %v1260
        %1666 = vmatprep.subr.mxu0 %v1265
        %1667 = vmatpush1.msra.mxu0 %v1264
        %1668 = vmatprep.subr.mxu0 %v1269
        %1669 = vmatpush1.msra.mxu0 %v1268
        %1670 = vmatprep.subr.mxu0 %v1273
        %1671 = vmatpush1.msra.mxu0 %v1272
        %1672 = vmatprep.subr.mxu0 %v1277
        %1673 = vmatpush1.msra.mxu0 %v1276
        %1674 = vmatprep.subr.mxu0 0.0
        %1675 = vmatpush1.msra.mxu0 0.0
        %1676 = vmatprep.subr.mxu0 0.0
        %1677 = vmatpush1.msra.mxu0 0.0
        %1678 = vmatprep.subr.mxu0 0.0
        %1679 = vmatpush1.msra.mxu0 0.0
        %1680 = vmatprep.subr.mxu0 0.0
        %1681 = vmatpush1.msra.mxu0 0.0
        %1682 = vmatprep.subr.mxu0 0.0
        %1683 = vmatpush1.msra.mxu0 0.0
        %1684 = vmatprep.subr.mxu0 0.0
        %1685 = vmatpush1.msra.mxu0 0.0
        %1686 = vmatprep.subr.mxu0 0.0
        %1687 = vmatpush1.msra.mxu0 0.0
        %1688 = vmatprep.subr.mxu0 0.0
        %1689 = vmatpush1.msra.mxu0 0.0
        %1690 = vmatprep.subr.mxu0 0.0
        %1691 = vmatpush1.msra.mxu0 0.0
        %1692 = vmatprep.subr.mxu0 0.0
        %1693 = vmatpush1.msra.mxu0 0.0
        %1694 = vmatprep.subr.mxu0 0.0
        %1695 = vmatpush1.msra.mxu0 0.0
        %1696 = vmatprep.subr.mxu0 0.0
        %1697 = vmatpush1.msra.mxu0 0.0
        %1698 = vmatprep.subr.mxu0 0.0
        %1699 = vmatpush1.msra.mxu0 0.0
        %1700 = vmatprep.subr.mxu0 0.0
        %1701 = vmatpush1.msra.mxu0 0.0
        %1702 = vmatprep.subr.mxu0 0.0
        %1703 = vmatpush1.msra.mxu0 0.0
        %1704 = vmatprep.subr.mxu0 0.0
        %1705 = vmatpush1.msra.mxu0 0.0
        %1706 = vmatprep.mubr.f32.mxu0 0.0
        %1707 = vmatmul.mubr.f32.gmra.mrb[0].mxu0 %v1636
        %v1708 = vpop.f32.mrb[0].mxu0
        %v1709 = vadd.f32 0.0, %v1708
        %v1710 = vpop.f32.mrb[0].mxu0
        %v1711 = vadd.f32 0.0, %v1710
        %1712 = vdwg.mxu0
        %1713 = vmatprep.subr.mxu0 %v1219
        %1714 = vmatpush1.msra.mxu0 %v1218
        %1715 = vmatprep.subr.mxu0 %v1223
        %1716 = vmatpush1.msra.mxu0 %v1222
        %1717 = vmatprep.subr.mxu0 %v1227
        %1718 = vmatpush1.msra.mxu0 %v1226
        %1719 = vmatprep.subr.mxu0 %v1231
        %1720 = vmatpush1.msra.mxu0 %v1230
        %1721 = vmatprep.subr.mxu0 %v1235
        %1722 = vmatpush1.msra.mxu0 %v1234
        %1723 = vmatprep.subr.mxu0 %v1239
        %1724 = vmatpush1.msra.mxu0 %v1238
        %1725 = vmatprep.subr.mxu0 %v1243
        %1726 = vmatpush1.msra.mxu0 %v1242
        %1727 = vmatprep.subr.mxu0 %v1247
        %1728 = vmatpush1.msra.mxu0 %v1246
        %1729 = vmatprep.subr.mxu0 %v1251
        %1730 = vmatpush1.msra.mxu0 %v1250
        %1731 = vmatprep.subr.mxu0 %v1255
        %1732 = vmatpush1.msra.mxu0 %v1254
        %1733 = vmatprep.subr.mxu0 %v1259
        %1734 = vmatpush1.msra.mxu0 %v1258
        %1735 = vmatprep.subr.mxu0 %v1263
        %1736 = vmatpush1.msra.mxu0 %v1262
        %1737 = vmatprep.subr.mxu0 %v1267
        %1738 = vmatpush1.msra.mxu0 %v1266
        %1739 = vmatprep.subr.mxu0 %v1271
        %1740 = vmatpush1.msra.mxu0 %v1270
        %1741 = vmatprep.subr.mxu0 %v1275
        %1742 = vmatpush1.msra.mxu0 %v1274
        %1743 = vmatprep.subr.mxu0 %v1279
        %1744 = vmatpush1.msra.mxu0 %v1278
        %1745 = vmatprep.subr.mxu0 0.0
        %1746 = vmatpush1.msra.mxu0 0.0
        %1747 = vmatprep.subr.mxu0 0.0
        %1748 = vmatpush1.msra.mxu0 0.0
        %1749 = vmatprep.subr.mxu0 0.0
        %1750 = vmatpush1.msra.mxu0 0.0
        %1751 = vmatprep.subr.mxu0 0.0
        %1752 = vmatpush1.msra.mxu0 0.0
        %1753 = vmatprep.subr.mxu0 0.0
        %1754 = vmatpush1.msra.mxu0 0.0
        %1755 = vmatprep.subr.mxu0 0.0
        %1756 = vmatpush1.msra.mxu0 0.0
        %1757 = vmatprep.subr.mxu0 0.0
        %1758 = vmatpush1.msra.mxu0 0.0
        %1759 = vmatprep.subr.mxu0 0.0
        %1760 = vmatpush1.msra.mxu0 0.0
        %1761 = vmatprep.subr.mxu0 0.0
        %1762 = vmatpush1.msra.mxu0 0.0
        %1763 = vmatprep.subr.mxu0 0.0
        %1764 = vmatpush1.msra.mxu0 0.0
        %1765 = vmatprep.subr.mxu0 0.0
        %1766 = vmatpush1.msra.mxu0 0.0
        %1767 = vmatprep.subr.mxu0 0.0
        %1768 = vmatpush1.msra.mxu0 0.0
        %1769 = vmatprep.subr.mxu0 0.0
        %1770 = vmatpush1.msra.mxu0 0.0
        %1771 = vmatprep.subr.mxu0 0.0
        %1772 = vmatpush1.msra.mxu0 0.0
        %1773 = vmatprep.subr.mxu0 0.0
        %1774 = vmatpush1.msra.mxu0 0.0
        %1775 = vmatprep.subr.mxu0 0.0
        %1776 = vmatpush1.msra.mxu0 0.0
        %1777 = vmatprep.mubr.f32.mxu0 0.0
        %1778 = vmatmul.mubr.f32.gmra.mrb[0].mxu0 %v1636
        %v1779 = vpop.f32.mrb[0].mxu0
        %v1780 = vadd.f32 0.0, %v1779
        %v1781 = vpop.f32.mrb[0].mxu0
        %v1782 = vadd.f32 0.0, %v1781
        %1783 = vdwg.mxu0
        %v1784 = vadd.f32 %v1638, %v1709
        %v1785 = vadd.f32 %v1639, %v1711
        %v1786 = vadd.f32 %v1640, %v1780
        %v1787 = vadd.f32 %v1641, %v1782
        %v1788 = vmul.f32 %v1784, %v1208
        %v1789 = vmul.f32 %v1785, %v1209
        %v1790 = vmul.f32 %v1786, %v1210
        %v1791 = vmul.f32 %v1787, %v1211
        %v1792 = vtanh.pop %v1788
        %v1793 = vtanh.pop %v1789
        %v1794 = vtanh.pop %v1790
        %v1795 = vtanh.pop %v1791
        %v1796 = vmul.f32 %v1792, %v1208
        %v1797 = vmul.f32 %v1793, %v1209
        %v1798 = vmul.f32 %v1794, %v1210
        %v1799 = vmul.f32 %v1795, %v1211
        %v1800 = vadd.f32 %v1796, %v1212
        %v1801 = vadd.f32 %v1797, %v1213
        %v1802 = vadd.f32 %v1798, %v1214
        %v1803 = vadd.f32 %v1799, %v1215
        %v1804 = vmul.f32 %v1801, %v1637
        %v1805 = vmul.f32 %v1800, %v1802
        %v1806 = vadd.f32 %v1804, %v1805
        %v1807 = vtanh.pop %v1806
        %v1808 = vmul.f32 %v1803, %v1807
        %s1809 = sadd.s32 %s1280, 2
        %p1810 = scmp.lt.s32.totalorder %s1809, 20
        %s1811 = scalar_select %p1810, 1, 0
        %v1812 = vstv %s1811
        %vm1813 = vcmp.eq.s32.totalorder %v1812, 1
        %v1814 = vsel %vm1813, %v1808, %v1636
        %v1815 = vsel %vm1813, %v1806, %v1637
        %v1816 = vld [vmem:[%s926] sm:$0xff]
        %v1817 = vld [vmem:[%s926 + $0x8] sm:$0xff]
        %v1818 = vld [vmem:[%s926 + $0x10] sm:$0xff]
        %v1819 = vld [vmem:[%s926 + $0x18] sm:$0xff]
        %1820 = vmatprep.subr.mxu0 %v1217
        %1821 = vmatpush1.msra.mxu0 %v1216
        %1822 = vmatprep.subr.mxu0 %v1221
        %1823 = vmatpush1.msra.mxu0 %v1220
        %1824 = vmatprep.subr.mxu0 %v1225
        %1825 = vmatpush1.msra.mxu0 %v1224
        %1826 = vmatprep.subr.mxu0 %v1229
        %1827 = vmatpush1.msra.mxu0 %v1228
        %1828 = vmatprep.subr.mxu0 %v1233
        %1829 = vmatpush1.msra.mxu0 %v1232
        %1830 = vmatprep.subr.mxu0 %v1237
        %1831 = vmatpush1.msra.mxu0 %v1236
        %1832 = vmatprep.subr.mxu0 %v1241
        %1833 = vmatpush1.msra.mxu0 %v1240
        %1834 = vmatprep.subr.mxu0 %v1245
        %1835 = vmatpush1.msra.mxu0 %v1244
        %1836 = vmatprep.subr.mxu0 %v1249
        %1837 = vmatpush1.msra.mxu0 %v1248
        %1838 = vmatprep.subr.mxu0 %v1253
        %1839 = vmatpush1.msra.mxu0 %v1252
        %1840 = vmatprep.subr.mxu0 %v1257
        %1841 = vmatpush1.msra.mxu0 %v1256
        %1842 = vmatprep.subr.mxu0 %v1261
        %1843 = vmatpush1.msra.mxu0 %v1260
        %1844 = vmatprep.subr.mxu0 %v1265
        %1845 = vmatpush1.msra.mxu0 %v1264
        %1846 = vmatprep.subr.mxu0 %v1269
        %1847 = vmatpush1.msra.mxu0 %v1268
        %1848 = vmatprep.subr.mxu0 %v1273
        %1849 = vmatpush1.msra.mxu0 %v1272
        %1850 = vmatprep.subr.mxu0 %v1277
        %1851 = vmatpush1.msra.mxu0 %v1276
        %1852 = vmatprep.subr.mxu0 0.0
        %1853 = vmatpush1.msra.mxu0 0.0
        %1854 = vmatprep.subr.mxu0 0.0
        %1855 = vmatpush1.msra.mxu0 0.0
        %1856 = vmatprep.subr.mxu0 0.0
        %1857 = vmatpush1.msra.mxu0 0.0
        %1858 = vmatprep.subr.mxu0 0.0
        %1859 = vmatpush1.msra.mxu0 0.0
        %1860 = vmatprep.subr.mxu0 0.0
        %1861 = vmatpush1.msra.mxu0 0.0
        %1862 = vmatprep.subr.mxu0 0.0
        %1863 = vmatpush1.msra.mxu0 0.0
        %1864 = vmatprep.subr.mxu0 0.0
        %1865 = vmatpush1.msra.mxu0 0.0
        %1866 = vmatprep.subr.mxu0 0.0
        %1867 = vmatpush1.msra.mxu0 0.0
        %1868 = vmatprep.subr.mxu0 0.0
        %1869 = vmatpush1.msra.mxu0 0.0
        %1870 = vmatprep.subr.mxu0 0.0
        %1871 = vmatpush1.msra.mxu0 0.0
        %1872 = vmatprep.subr.mxu0 0.0
        %1873 = vmatpush1.msra.mxu0 0.0
        %1874 = vmatprep.subr.mxu0 0.0
        %1875 = vmatpush1.msra.mxu0 0.0
        %1876 = vmatprep.subr.mxu0 0.0
        %1877 = vmatpush1.msra.mxu0 0.0
        %1878 = vmatprep.subr.mxu0 0.0
        %1879 = vmatpush1.msra.mxu0 0.0
        %1880 = vmatprep.subr.mxu0 0.0
        %1881 = vmatpush1.msra.mxu0 0.0
        %1882 = vmatprep.subr.mxu0 0.0
        %1883 = vmatpush1.msra.mxu0 0.0
        %1884 = vmatprep.mubr.f32.mxu0 0.0
        %1885 = vmatmul.mubr.f32.gmra.mrb[0].mxu0 %v1814
        %v1886 = vpop.f32.mrb[0].mxu0
        %v1887 = vadd.f32 0.0, %v1886
        %v1888 = vpop.f32.mrb[0].mxu0
        %v1889 = vadd.f32 0.0, %v1888
        %1890 = vdwg.mxu0
        %1891 = vmatprep.subr.mxu0 %v1219
        %1892 = vmatpush1.msra.mxu0 %v1218
        %1893 = vmatprep.subr.mxu0 %v1223
        %1894 = vmatpush1.msra.mxu0 %v1222
        %1895 = vmatprep.subr.mxu0 %v1227
        %1896 = vmatpush1.msra.mxu0 %v1226
        %1897 = vmatprep.subr.mxu0 %v1231
        %1898 = vmatpush1.msra.mxu0 %v1230
        %1899 = vmatprep.subr.mxu0 %v1235
        %1900 = vmatpush1.msra.mxu0 %v1234
        %1901 = vmatprep.subr.mxu0 %v1239
        %1902 = vmatpush1.msra.mxu0 %v1238
        %1903 = vmatprep.subr.mxu0 %v1243
        %1904 = vmatpush1.msra.mxu0 %v1242
        %1905 = vmatprep.subr.mxu0 %v1247
        %1906 = vmatpush1.msra.mxu0 %v1246
        %1907 = vmatprep.subr.mxu0 %v1251
        %1908 = vmatpush1.msra.mxu0 %v1250
        %1909 = vmatprep.subr.mxu0 %v1255
        %1910 = vmatpush1.msra.mxu0 %v1254
        %1911 = vmatprep.subr.mxu0 %v1259
        %1912 = vmatpush1.msra.mxu0 %v1258
        %1913 = vmatprep.subr.mxu0 %v1263
        %1914 = vmatpush1.msra.mxu0 %v1262
        %1915 = vmatprep.subr.mxu0 %v1267
        %1916 = vmatpush1.msra.mxu0 %v1266
        %1917 = vmatprep.subr.mxu0 %v1271
        %1918 = vmatpush1.msra.mxu0 %v1270
        %1919 = vmatprep.subr.mxu0 %v1275
        %1920 = vmatpush1.msra.mxu0 %v1274
        %1921 = vmatprep.subr.mxu0 %v1279
        %1922 = vmatpush1.msra.mxu0 %v1278
        %1923 = vmatprep.subr.mxu0 0.0
        %1924 = vmatpush1.msra.mxu0 0.0
        %1925 = vmatprep.subr.mxu0 0.0
        %1926 = vmatpush1.msra.mxu0 0.0
        %1927 = vmatprep.subr.mxu0 0.0
        %1928 = vmatpush1.msra.mxu0 0.0
        %1929 = vmatprep.subr.mxu0 0.0
        %1930 = vmatpush1.msra.mxu0 0.0
        %1931 = vmatprep.subr.mxu0 0.0
        %1932 = vmatpush1.msra.mxu0 0.0
        %1933 = vmatprep.subr.mxu0 0.0
        %1934 = vmatpush1.msra.mxu0 0.0
        %1935 = vmatprep.subr.mxu0 0.0
        %1936 = vmatpush1.msra.mxu0 0.0
        %1937 = vmatprep.subr.mxu0 0.0
        %1938 = vmatpush1.msra.mxu0 0.0
        %1939 = vmatprep.subr.mxu0 0.0
        %1940 = vmatpush1.msra.mxu0 0.0
        %1941 = vmatprep.subr.mxu0 0.0
        %1942 = vmatpush1.msra.mxu0 0.0
        %1943 = vmatprep.subr.mxu0 0.0
        %1944 = vmatpush1.msra.mxu0 0.0
        %1945 = vmatprep.subr.mxu0 0.0
        %1946 = vmatpush1.msra.mxu0 0.0
        %1947 = vmatprep.subr.mxu0 0.0
        %1948 = vmatpush1.msra.mxu0 0.0
        %1949 = vmatprep.subr.mxu0 0.0
        %1950 = vmatpush1.msra.mxu0 0.0
        %1951 = vmatprep.subr.mxu0 0.0
        %1952 = vmatpush1.msra.mxu0 0.0
        %1953 = vmatprep.subr.mxu0 0.0
        %1954 = vmatpush1.msra.mxu0 0.0
        %1955 = vmatprep.mubr.f32.mxu0 0.0
        %1956 = vmatmul.mubr.f32.gmra.mrb[0].mxu0 %v1814
        %v1957 = vpop.f32.mrb[0].mxu0
        %v1958 = vadd.f32 0.0, %v1957
        %v1959 = vpop.f32.mrb[0].mxu0
        %v1960 = vadd.f32 0.0, %v1959
        %1961 = vdwg.mxu0
        %v1962 = vadd.f32 %v1816, %v1887
        %v1963 = vadd.f32 %v1817, %v1889
        %v1964 = vadd.f32 %v1818, %v1958
        %v1965 = vadd.f32 %v1819, %v1960
        %v1966 = vmul.f32 %v1962, %v1208
        %v1967 = vmul.f32 %v1963, %v1209
        %v1968 = vmul.f32 %v1964, %v1210
        %v1969 = vmul.f32 %v1965, %v1211
        %v1970 = vtanh.pop %v1966
        %v1971 = vtanh.pop %v1967
        %v1972 = vtanh.pop %v1968
        %v1973 = vtanh.pop %v1969
        %v1974 = vmul.f32 %v1970, %v1208
        %v1975 = vmul.f32 %v1971, %v1209
        %v1976 = vmul.f32 %v1972, %v1210
        %v1977 = vmul.f32 %v1973, %v1211
        %v1978 = vadd.f32 %v1974, %v1212
        %v1979 = vadd.f32 %v1975, %v1213
        %v1980 = vadd.f32 %v1976, %v1214
        %v1981 = vadd.f32 %v1977, %v1215
        %v1982 = vmul.f32 %v1979, %v1815
        %v1983 = vmul.f32 %v1978, %v1980
        %v1984 = vadd.f32 %v1982, %v1983
        %v1985 = vtanh.pop %v1984
        %v1986 = vmul.f32 %v1981, %v1985
        %s1987 = sadd.s32 %s1280, 3
        %p1988 = scmp.lt.s32.totalorder %s1987, 20
        %s1989 = scalar_select %p1988, 1, 0
        %v1990 = vstv %s1989
        %vm1991 = vcmp.eq.s32.totalorder %v1990, 1
        %v1992 = vsel %vm1991, %v1986, %v1814
        %v1993 = vsel %vm1991, %v1984, %v1815
        %v1994 = vld [vmem:[%s991] sm:$0xff]
        %v1995 = vld [vmem:[%s991 + $0x8] sm:$0xff]
        %v1996 = vld [vmem:[%s991 + $0x10] sm:$0xff]
        %v1997 = vld [vmem:[%s991 + $0x18] sm:$0xff]
        %1998 = vmatprep.subr.mxu0 %v1217
        %1999 = vmatpush1.msra.mxu0 %v1216
        %2000 = vmatprep.subr.mxu0 %v1221
        %2001 = vmatpush1.msra.mxu0 %v1220
        %2002 = vmatprep.subr.mxu0 %v1225
        %2003 = vmatpush1.msra.mxu0 %v1224
        %2004 = vmatprep.subr.mxu0 %v1229
        %2005 = vmatpush1.msra.mxu0 %v1228
        %2006 = vmatprep.subr.mxu0 %v1233
        %2007 = vmatpush1.msra.mxu0 %v1232
        %2008 = vmatprep.subr.mxu0 %v1237
        %2009 = vmatpush1.msra.mxu0 %v1236
        %2010 = vmatprep.subr.mxu0 %v1241
        %2011 = vmatpush1.msra.mxu0 %v1240
        %2012 = vmatprep.subr.mxu0 %v1245
        %2013 = vmatpush1.msra.mxu0 %v1244
        %2014 = vmatprep.subr.mxu0 %v1249
        %2015 = vmatpush1.msra.mxu0 %v1248
        %2016 = vmatprep.subr.mxu0 %v1253
        %2017 = vmatpush1.msra.mxu0 %v1252
        %2018 = vmatprep.subr.mxu0 %v1257
        %2019 = vmatpush1.msra.mxu0 %v1256
        %2020 = vmatprep.subr.mxu0 %v1261
        %2021 = vmatpush1.msra.mxu0 %v1260
        %2022 = vmatprep.subr.mxu0 %v1265
        %2023 = vmatpush1.msra.mxu0 %v1264
        %2024 = vmatprep.subr.mxu0 %v1269
        %2025 = vmatpush1.msra.mxu0 %v1268
        %2026 = vmatprep.subr.mxu0 %v1273
        %2027 = vmatpush1.msra.mxu0 %v1272
        %2028 = vmatprep.subr.mxu0 %v1277
        %2029 = vmatpush1.msra.mxu0 %v1276
        %2030 = vmatprep.subr.mxu0 0.0
        %2031 = vmatpush1.msra.mxu0 0.0
        %2032 = vmatprep.subr.mxu0 0.0
        %2033 = vmatpush1.msra.mxu0 0.0
        %2034 = vmatprep.subr.mxu0 0.0
        %2035 = vmatpush1.msra.mxu0 0.0
        %2036 = vmatprep.subr.mxu0 0.0
        %2037 = vmatpush1.msra.mxu0 0.0
        %2038 = vmatprep.subr.mxu0 0.0
        %2039 = vmatpush1.msra.mxu0 0.0
        %2040 = vmatprep.subr.mxu0 0.0
        %2041 = vmatpush1.msra.mxu0 0.0
        %2042 = vmatprep.subr.mxu0 0.0
        %2043 = vmatpush1.msra.mxu0 0.0
        %2044 = vmatprep.subr.mxu0 0.0
        %2045 = vmatpush1.msra.mxu0 0.0
        %2046 = vmatprep.subr.mxu0 0.0
        %2047 = vmatpush1.msra.mxu0 0.0
        %2048 = vmatprep.subr.mxu0 0.0
        %2049 = vmatpush1.msra.mxu0 0.0
        %2050 = vmatprep.subr.mxu0 0.0
        %2051 = vmatpush1.msra.mxu0 0.0
        %2052 = vmatprep.subr.mxu0 0.0
        %2053 = vmatpush1.msra.mxu0 0.0
        %2054 = vmatprep.subr.mxu0 0.0
        %2055 = vmatpush1.msra.mxu0 0.0
        %2056 = vmatprep.subr.mxu0 0.0
        %2057 = vmatpush1.msra.mxu0 0.0
        %2058 = vmatprep.subr.mxu0 0.0
        %2059 = vmatpush1.msra.mxu0 0.0
        %2060 = vmatprep.subr.mxu0 0.0
        %2061 = vmatpush1.msra.mxu0 0.0
        %2062 = vmatprep.mubr.f32.mxu0 0.0
        %2063 = vmatmul.mubr.f32.gmra.mrb[0].mxu0 %v1992
        %v2064 = vpop.f32.mrb[0].mxu0
        %v2065 = vadd.f32 0.0, %v2064
        %v2066 = vpop.f32.mrb[0].mxu0
        %v2067 = vadd.f32 0.0, %v2066
        %2068 = vdwg.mxu0
        %2069 = vmatprep.subr.mxu0 %v1219
        %2070 = vmatpush1.msra.mxu0 %v1218
        %2071 = vmatprep.subr.mxu0 %v1223
        %2072 = vmatpush1.msra.mxu0 %v1222
        %2073 = vmatprep.subr.mxu0 %v1227
        %2074 = vmatpush1.msra.mxu0 %v1226
        %2075 = vmatprep.subr.mxu0 %v1231
        %2076 = vmatpush1.msra.mxu0 %v1230
        %2077 = vmatprep.subr.mxu0 %v1235
        %2078 = vmatpush1.msra.mxu0 %v1234
        %2079 = vmatprep.subr.mxu0 %v1239
        %2080 = vmatpush1.msra.mxu0 %v1238
        %2081 = vmatprep.subr.mxu0 %v1243
        %2082 = vmatpush1.msra.mxu0 %v1242
        %2083 = vmatprep.subr.mxu0 %v1247
        %2084 = vmatpush1.msra.mxu0 %v1246
        %2085 = vmatprep.subr.mxu0 %v1251
        %2086 = vmatpush1.msra.mxu0 %v1250
        %2087 = vmatprep.subr.mxu0 %v1255
        %2088 = vmatpush1.msra.mxu0 %v1254
        %2089 = vmatprep.subr.mxu0 %v1259
        %2090 = vmatpush1.msra.mxu0 %v1258
        %2091 = vmatprep.subr.mxu0 %v1263
        %2092 = vmatpush1.msra.mxu0 %v1262
        %2093 = vmatprep.subr.mxu0 %v1267
        %2094 = vmatpush1.msra.mxu0 %v1266
        %2095 = vmatprep.subr.mxu0 %v1271
        %2096 = vmatpush1.msra.mxu0 %v1270
        %2097 = vmatprep.subr.mxu0 %v1275
        %2098 = vmatpush1.msra.mxu0 %v1274
        %2099 = vmatprep.subr.mxu0 %v1279
        %2100 = vmatpush1.msra.mxu0 %v1278
        %2101 = vmatprep.subr.mxu0 0.0
        %2102 = vmatpush1.msra.mxu0 0.0
        %2103 = vmatprep.subr.mxu0 0.0
        %2104 = vmatpush1.msra.mxu0 0.0
        %2105 = vmatprep.subr.mxu0 0.0
        %2106 = vmatpush1.msra.mxu0 0.0
        %2107 = vmatprep.subr.mxu0 0.0
        %2108 = vmatpush1.msra.mxu0 0.0
        %2109 = vmatprep.subr.mxu0 0.0
        %2110 = vmatpush1.msra.mxu0 0.0
        %2111 = vmatprep.subr.mxu0 0.0
        %2112 = vmatpush1.msra.mxu0 0.0
        %2113 = vmatprep.subr.mxu0 0.0
        %2114 = vmatpush1.msra.mxu0 0.0
        %2115 = vmatprep.subr.mxu0 0.0
        %2116 = vmatpush1.msra.mxu0 0.0
        %2117 = vmatprep.subr.mxu0 0.0
        %2118 = vmatpush1.msra.mxu0 0.0
        %2119 = vmatprep.subr.mxu0 0.0
        %2120 = vmatpush1.msra.mxu0 0.0
        %2121 = vmatprep.subr.mxu0 0.0
        %2122 = vmatpush1.msra.mxu0 0.0
        %2123 = vmatprep.subr.mxu0 0.0
        %2124 = vmatpush1.msra.mxu0 0.0
        %2125 = vmatprep.subr.mxu0 0.0
        %2126 = vmatpush1.msra.mxu0 0.0
        %2127 = vmatprep.subr.mxu0 0.0
        %2128 = vmatpush1.msra.mxu0 0.0
        %2129 = vmatprep.subr.mxu0 0.0
        %2130 = vmatpush1.msra.mxu0 0.0
        %2131 = vmatprep.subr.mxu0 0.0
        %2132 = vmatpush1.msra.mxu0 0.0
        %2133 = vmatprep.mubr.f32.mxu0 0.0
        %2134 = vmatmul.mubr.f32.gmra.mrb[0].mxu0 %v1992
        %v2135 = vpop.f32.mrb[0].mxu0
        %v2136 = vadd.f32 0.0, %v2135
        %v2137 = vpop.f32.mrb[0].mxu0
        %v2138 = vadd.f32 0.0, %v2137
        %2139 = vdwg.mxu0
        %v2140 = vadd.f32 %v1994, %v2065
        %v2141 = vadd.f32 %v1995, %v2067
        %v2142 = vadd.f32 %v1996, %v2136
        %v2143 = vadd.f32 %v1997, %v2138
        %v2144 = vmul.f32 %v2140, %v1208
        %v2145 = vmul.f32 %v2141, %v1209
        %v2146 = vmul.f32 %v2142, %v1210
        %v2147 = vmul.f32 %v2143, %v1211
        %v2148 = vtanh.pop %v2144
        %v2149 = vtanh.pop %v2145
        %v2150 = vtanh.pop %v2146
        %v2151 = vtanh.pop %v2147
        %v2152 = vmul.f32 %v2148, %v1208
        %v2153 = vmul.f32 %v2149, %v1209
        %v2154 = vmul.f32 %v2150, %v1210
        %v2155 = vmul.f32 %v2151, %v1211
        %v2156 = vadd.f32 %v2152, %v1212
        %v2157 = vadd.f32 %v2153, %v1213
        %v2158 = vadd.f32 %v2154, %v1214
        %v2159 = vadd.f32 %v2155, %v1215
        %v2160 = vmul.f32 %v2157, %v1993
        %v2161 = vmul.f32 %v2156, %v2158
        %v2162 = vadd.f32 %v2160, %v2161
        %v2163 = vtanh.pop %v2162
        %v2164 = vmul.f32 %v2159, %v2163
        %s2165 = sadd.s32 %s1280, 4
        %p2166 = scmp.lt.s32.totalorder %s2165, 20
        %s2167 = scalar_select %p2166, 1, 0
        %v2168 = vstv %s2167
        %vm2169 = vcmp.eq.s32.totalorder %v2168, 1
        %v2170 = vsel %vm2169, %v2164, %v1992
        %v2171 = vsel %vm2169, %v2162, %v1993
        %v2172 = vld [vmem:[%s1056] sm:$0xff]
        %v2173 = vld [vmem:[%s1056 + $0x8] sm:$0xff]
        %v2174 = vld [vmem:[%s1056 + $0x10] sm:$0xff]
        %v2175 = vld [vmem:[%s1056 + $0x18] sm:$0xff]
        %2176 = vmatprep.subr.mxu0 %v1217
        %2177 = vmatpush1.msra.mxu0 %v1216
        %2178 = vmatprep.subr.mxu0 %v1221
        %2179 = vmatpush1.msra.mxu0 %v1220
        %2180 = vmatprep.subr.mxu0 %v1225
        %2181 = vmatpush1.msra.mxu0 %v1224
        %2182 = vmatprep.subr.mxu0 %v1229
        %2183 = vmatpush1.msra.mxu0 %v1228
        %2184 = vmatprep.subr.mxu0 %v1233
        %2185 = vmatpush1.msra.mxu0 %v1232
        %2186 = vmatprep.subr.mxu0 %v1237
        %2187 = vmatpush1.msra.mxu0 %v1236
        %2188 = vmatprep.subr.mxu0 %v1241
        %2189 = vmatpush1.msra.mxu0 %v1240
        %2190 = vmatprep.subr.mxu0 %v1245
        %2191 = vmatpush1.msra.mxu0 %v1244
        %2192 = vmatprep.subr.mxu0 %v1249
        %2193 = vmatpush1.msra.mxu0 %v1248
        %2194 = vmatprep.subr.mxu0 %v1253
        %2195 = vmatpush1.msra.mxu0 %v1252
        %2196 = vmatprep.subr.mxu0 %v1257
        %2197 = vmatpush1.msra.mxu0 %v1256
        %2198 = vmatprep.subr.mxu0 %v1261
        %2199 = vmatpush1.msra.mxu0 %v1260
        %2200 = vmatprep.subr.mxu0 %v1265
        %2201 = vmatpush1.msra.mxu0 %v1264
        %2202 = vmatprep.subr.mxu0 %v1269
        %2203 = vmatpush1.msra.mxu0 %v1268
        %2204 = vmatprep.subr.mxu0 %v1273
        %2205 = vmatpush1.msra.mxu0 %v1272
        %2206 = vmatprep.subr.mxu0 %v1277
        %2207 = vmatpush1.msra.mxu0 %v1276
        %2208 = vmatprep.subr.mxu0 0.0
        %2209 = vmatpush1.msra.mxu0 0.0
        %2210 = vmatprep.subr.mxu0 0.0
        %2211 = vmatpush1.msra.mxu0 0.0
        %2212 = vmatprep.subr.mxu0 0.0
        %2213 = vmatpush1.msra.mxu0 0.0
        %2214 = vmatprep.subr.mxu0 0.0
        %2215 = vmatpush1.msra.mxu0 0.0
        %2216 = vmatprep.subr.mxu0 0.0
        %2217 = vmatpush1.msra.mxu0 0.0
        %2218 = vmatprep.subr.mxu0 0.0
        %2219 = vmatpush1.msra.mxu0 0.0
        %2220 = vmatprep.subr.mxu0 0.0
        %2221 = vmatpush1.msra.mxu0 0.0
        %2222 = vmatprep.subr.mxu0 0.0
        %2223 = vmatpush1.msra.mxu0 0.0
        %2224 = vmatprep.subr.mxu0 0.0
        %2225 = vmatpush1.msra.mxu0 0.0
        %2226 = vmatprep.subr.mxu0 0.0
        %2227 = vmatpush1.msra.mxu0 0.0
        %2228 = vmatprep.subr.mxu0 0.0
        %2229 = vmatpush1.msra.mxu0 0.0
        %2230 = vmatprep.subr.mxu0 0.0
        %2231 = vmatpush1.msra.mxu0 0.0
        %2232 = vmatprep.subr.mxu0 0.0
        %2233 = vmatpush1.msra.mxu0 0.0
        %2234 = vmatprep.subr.mxu0 0.0
        %2235 = vmatpush1.msra.mxu0 0.0
        %2236 = vmatprep.subr.mxu0 0.0
        %2237 = vmatpush1.msra.mxu0 0.0
        %2238 = vmatprep.subr.mxu0 0.0
        %2239 = vmatpush1.msra.mxu0 0.0
        %2240 = vmatprep.mubr.f32.mxu0 0.0
        %2241 = vmatmul.mubr.f32.gmra.mrb[0].mxu0 %v2170
        %v2242 = vpop.f32.mrb[0].mxu0
        %v2243 = vadd.f32 0.0, %v2242
        %v2244 = vpop.f32.mrb[0].mxu0
        %v2245 = vadd.f32 0.0, %v2244
        %2246 = vdwg.mxu0
        %2247 = vmatprep.subr.mxu0 %v1219
        %2248 = vmatpush1.msra.mxu0 %v1218
        %2249 = vmatprep.subr.mxu0 %v1223
        %2250 = vmatpush1.msra.mxu0 %v1222
        %2251 = vmatprep.subr.mxu0 %v1227
        %2252 = vmatpush1.msra.mxu0 %v1226
        %2253 = vmatprep.subr.mxu0 %v1231
        %2254 = vmatpush1.msra.mxu0 %v1230
        %2255 = vmatprep.subr.mxu0 %v1235
        %2256 = vmatpush1.msra.mxu0 %v1234
        %2257 = vmatprep.subr.mxu0 %v1239
        %2258 = vmatpush1.msra.mxu0 %v1238
        %2259 = vmatprep.subr.mxu0 %v1243
        %2260 = vmatpush1.msra.mxu0 %v1242
        %2261 = vmatprep.subr.mxu0 %v1247
        %2262 = vmatpush1.msra.mxu0 %v1246
        %2263 = vmatprep.subr.mxu0 %v1251
        %2264 = vmatpush1.msra.mxu0 %v1250
        %2265 = vmatprep.subr.mxu0 %v1255
        %2266 = vmatpush1.msra.mxu0 %v1254
        %2267 = vmatprep.subr.mxu0 %v1259
        %2268 = vmatpush1.msra.mxu0 %v1258
        %2269 = vmatprep.subr.mxu0 %v1263
        %2270 = vmatpush1.msra.mxu0 %v1262
        %2271 = vmatprep.subr.mxu0 %v1267
        %2272 = vmatpush1.msra.mxu0 %v1266
        %2273 = vmatprep.subr.mxu0 %v1271
        %2274 = vmatpush1.msra.mxu0 %v1270
        %2275 = vmatprep.subr.mxu0 %v1275
        %2276 = vmatpush1.msra.mxu0 %v1274
        %2277 = vmatprep.subr.mxu0 %v1279
        %2278 = vmatpush1.msra.mxu0 %v1278
        %2279 = vmatprep.subr.mxu0 0.0
        %2280 = vmatpush1.msra.mxu0 0.0
        %2281 = vmatprep.subr.mxu0 0.0
        %2282 = vmatpush1.msra.mxu0 0.0
        %2283 = vmatprep.subr.mxu0 0.0
        %2284 = vmatpush1.msra.mxu0 0.0
        %2285 = vmatprep.subr.mxu0 0.0
        %2286 = vmatpush1.msra.mxu0 0.0
        %2287 = vmatprep.subr.mxu0 0.0
        %2288 = vmatpush1.msra.mxu0 0.0
        %2289 = vmatprep.subr.mxu0 0.0
        %2290 = vmatpush1.msra.mxu0 0.0
        %2291 = vmatprep.subr.mxu0 0.0
        %2292 = vmatpush1.msra.mxu0 0.0
        %2293 = vmatprep.subr.mxu0 0.0
        %2294 = vmatpush1.msra.mxu0 0.0
        %2295 = vmatprep.subr.mxu0 0.0
        %2296 = vmatpush1.msra.mxu0 0.0
        %2297 = vmatprep.subr.mxu0 0.0
        %2298 = vmatpush1.msra.mxu0 0.0
        %2299 = vmatprep.subr.mxu0 0.0
        %2300 = vmatpush1.msra.mxu0 0.0
        %2301 = vmatprep.subr.mxu0 0.0
        %2302 = vmatpush1.msra.mxu0 0.0
        %2303 = vmatprep.subr.mxu0 0.0
        %2304 = vmatpush1.msra.mxu0 0.0
        %2305 = vmatprep.subr.mxu0 0.0
        %2306 = vmatpush1.msra.mxu0 0.0
        %2307 = vmatprep.subr.mxu0 0.0
        %2308 = vmatpush1.msra.mxu0 0.0
        %2309 = vmatprep.subr.mxu0 0.0
        %2310 = vmatpush1.msra.mxu0 0.0
        %2311 = vmatprep.mubr.f32.mxu0 0.0
        %2312 = vmatmul.mubr.f32.gmra.mrb[0].mxu0 %v2170
        %v2313 = vpop.f32.mrb[0].mxu0
        %v2314 = vadd.f32 0.0, %v2313
        %v2315 = vpop.f32.mrb[0].mxu0
        %v2316 = vadd.f32 0.0, %v2315
        %2317 = vdwg.mxu0
        %v2318 = vadd.f32 %v2172, %v2243
        %v2319 = vadd.f32 %v2173, %v2245
        %v2320 = vadd.f32 %v2174, %v2314
        %v2321 = vadd.f32 %v2175, %v2316
        %v2322 = vmul.f32 %v2318, %v1208
        %v2323 = vmul.f32 %v2319, %v1209
        %v2324 = vmul.f32 %v2320, %v1210
        %v2325 = vmul.f32 %v2321, %v1211
        %v2326 = vtanh.pop %v2322
        %v2327 = vtanh.pop %v2323
        %v2328 = vtanh.pop %v2324
        %v2329 = vtanh.pop %v2325
        %v2330 = vmul.f32 %v2326, %v1208
        %v2331 = vmul.f32 %v2327, %v1209
        %v2332 = vmul.f32 %v2328, %v1210
        %v2333 = vmul.f32 %v2329, %v1211
        %v2334 = vadd.f32 %v2330, %v1212
        %v2335 = vadd.f32 %v2331, %v1213
        %v2336 = vadd.f32 %v2332, %v1214
        %v2337 = vadd.f32 %v2333, %v1215
        %v2338 = vmul.f32 %v2335, %v2171
        %v2339 = vmul.f32 %v2334, %v2336
        %v2340 = vadd.f32 %v2338, %v2339
        %v2341 = vtanh.pop %v2340
        %v2342 = vmul.f32 %v2337, %v2341
        %s2343 = sadd.s32 %s1280, 5
        %p2344 = scmp.lt.s32.totalorder %s2343, 20
        %s2345 = scalar_select %p2344, 1, 0
        %v2346 = vstv %s2345
        %vm2347 = vcmp.eq.s32.totalorder %v2346, 1
        %v2348 = vsel %vm2347, %v2342, %v2170
        %v2349 = vsel %vm2347, %v2340, %v2171
        %v2350 = vld [vmem:[%s1121] sm:$0xff]
        %v2351 = vld [vmem:[%s1121 + $0x8] sm:$0xff]
        %v2352 = vld [vmem:[%s1121 + $0x10] sm:$0xff]
        %v2353 = vld [vmem:[%s1121 + $0x18] sm:$0xff]
        %2354 = vmatprep.subr.mxu0 %v1217
        %2355 = vmatpush1.msra.mxu0 %v1216
        %2356 = vmatprep.subr.mxu0 %v1221
        %2357 = vmatpush1.msra.mxu0 %v1220
        %2358 = vmatprep.subr.mxu0 %v1225
        %2359 = vmatpush1.msra.mxu0 %v1224
        %2360 = vmatprep.subr.mxu0 %v1229
        %2361 = vmatpush1.msra.mxu0 %v1228
        %2362 = vmatprep.subr.mxu0 %v1233
        %2363 = vmatpush1.msra.mxu0 %v1232
        %2364 = vmatprep.subr.mxu0 %v1237
        %2365 = vmatpush1.msra.mxu0 %v1236
        %2366 = vmatprep.subr.mxu0 %v1241
        %2367 = vmatpush1.msra.mxu0 %v1240
        %2368 = vmatprep.subr.mxu0 %v1245
        %2369 = vmatpush1.msra.mxu0 %v1244
        %2370 = vmatprep.subr.mxu0 %v1249
        %2371 = vmatpush1.msra.mxu0 %v1248
        %2372 = vmatprep.subr.mxu0 %v1253
        %2373 = vmatpush1.msra.mxu0 %v1252
        %2374 = vmatprep.subr.mxu0 %v1257
        %2375 = vmatpush1.msra.mxu0 %v1256
        %2376 = vmatprep.subr.mxu0 %v1261
        %2377 = vmatpush1.msra.mxu0 %v1260
        %2378 = vmatprep.subr.mxu0 %v1265
        %2379 = vmatpush1.msra.mxu0 %v1264
        %2380 = vmatprep.subr.mxu0 %v1269
        %2381 = vmatpush1.msra.mxu0 %v1268
        %2382 = vmatprep.subr.mxu0 %v1273
        %2383 = vmatpush1.msra.mxu0 %v1272
        %2384 = vmatprep.subr.mxu0 %v1277
        %2385 = vmatpush1.msra.mxu0 %v1276
        %2386 = vmatprep.subr.mxu0 0.0
        %2387 = vmatpush1.msra.mxu0 0.0
        %2388 = vmatprep.subr.mxu0 0.0
        %2389 = vmatpush1.msra.mxu0 0.0
        %2390 = vmatprep.subr.mxu0 0.0
        %2391 = vmatpush1.msra.mxu0 0.0
        %2392 = vmatprep.subr.mxu0 0.0
        %2393 = vmatpush1.msra.mxu0 0.0
        %2394 = vmatprep.subr.mxu0 0.0
        %2395 = vmatpush1.msra.mxu0 0.0
        %2396 = vmatprep.subr.mxu0 0.0
        %2397 = vmatpush1.msra.mxu0 0.0
        %2398 = vmatprep.subr.mxu0 0.0
        %2399 = vmatpush1.msra.mxu0 0.0
        %2400 = vmatprep.subr.mxu0 0.0
        %2401 = vmatpush1.msra.mxu0 0.0
        %2402 = vmatprep.subr.mxu0 0.0
        %2403 = vmatpush1.msra.mxu0 0.0
        %2404 = vmatprep.subr.mxu0 0.0
        %2405 = vmatpush1.msra.mxu0 0.0
        %2406 = vmatprep.subr.mxu0 0.0
        %2407 = vmatpush1.msra.mxu0 0.0
        %2408 = vmatprep.subr.mxu0 0.0
        %2409 = vmatpush1.msra.mxu0 0.0
        %2410 = vmatprep.subr.mxu0 0.0
        %2411 = vmatpush1.msra.mxu0 0.0
        %2412 = vmatprep.subr.mxu0 0.0
        %2413 = vmatpush1.msra.mxu0 0.0
        %2414 = vmatprep.subr.mxu0 0.0
        %2415 = vmatpush1.msra.mxu0 0.0
        %2416 = vmatprep.subr.mxu0 0.0
        %2417 = vmatpush1.msra.mxu0 0.0
        %2418 = vmatprep.mubr.f32.mxu0 0.0
        %2419 = vmatmul.mubr.f32.gmra.mrb[0].mxu0 %v2348
        %v2420 = vpop.f32.mrb[0].mxu0
        %v2421 = vadd.f32 0.0, %v2420
        %v2422 = vpop.f32.mrb[0].mxu0
        %v2423 = vadd.f32 0.0, %v2422
        %2424 = vdwg.mxu0
        %2425 = vmatprep.subr.mxu0 %v1219
        %2426 = vmatpush1.msra.mxu0 %v1218
        %2427 = vmatprep.subr.mxu0 %v1223
        %2428 = vmatpush1.msra.mxu0 %v1222
        %2429 = vmatprep.subr.mxu0 %v1227
        %2430 = vmatpush1.msra.mxu0 %v1226
        %2431 = vmatprep.subr.mxu0 %v1231
        %2432 = vmatpush1.msra.mxu0 %v1230
        %2433 = vmatprep.subr.mxu0 %v1235
        %2434 = vmatpush1.msra.mxu0 %v1234
        %2435 = vmatprep.subr.mxu0 %v1239
        %2436 = vmatpush1.msra.mxu0 %v1238
        %2437 = vmatprep.subr.mxu0 %v1243
        %2438 = vmatpush1.msra.mxu0 %v1242
        %2439 = vmatprep.subr.mxu0 %v1247
        %2440 = vmatpush1.msra.mxu0 %v1246
        %2441 = vmatprep.subr.mxu0 %v1251
        %2442 = vmatpush1.msra.mxu0 %v1250
        %2443 = vmatprep.subr.mxu0 %v1255
        %2444 = vmatpush1.msra.mxu0 %v1254
        %2445 = vmatprep.subr.mxu0 %v1259
        %2446 = vmatpush1.msra.mxu0 %v1258
        %2447 = vmatprep.subr.mxu0 %v1263
        %2448 = vmatpush1.msra.mxu0 %v1262
        %2449 = vmatprep.subr.mxu0 %v1267
        %2450 = vmatpush1.msra.mxu0 %v1266
        %2451 = vmatprep.subr.mxu0 %v1271
        %2452 = vmatpush1.msra.mxu0 %v1270
        %2453 = vmatprep.subr.mxu0 %v1275
        %2454 = vmatpush1.msra.mxu0 %v1274
        %2455 = vmatprep.subr.mxu0 %v1279
        %2456 = vmatpush1.msra.mxu0 %v1278
        %2457 = vmatprep.subr.mxu0 0.0
        %2458 = vmatpush1.msra.mxu0 0.0
        %2459 = vmatprep.subr.mxu0 0.0
        %2460 = vmatpush1.msra.mxu0 0.0
        %2461 = vmatprep.subr.mxu0 0.0
        %2462 = vmatpush1.msra.mxu0 0.0
        %2463 = vmatprep.subr.mxu0 0.0
        %2464 = vmatpush1.msra.mxu0 0.0
        %2465 = vmatprep.subr.mxu0 0.0
        %2466 = vmatpush1.msra.mxu0 0.0
        %2467 = vmatprep.subr.mxu0 0.0
        %2468 = vmatpush1.msra.mxu0 0.0
        %2469 = vmatprep.subr.mxu0 0.0
        %2470 = vmatpush1.msra.mxu0 0.0
        %2471 = vmatprep.subr.mxu0 0.0
        %2472 = vmatpush1.msra.mxu0 0.0
        %2473 = vmatprep.subr.mxu0 0.0
        %2474 = vmatpush1.msra.mxu0 0.0
        %2475 = vmatprep.subr.mxu0 0.0
        %2476 = vmatpush1.msra.mxu0 0.0
        %2477 = vmatprep.subr.mxu0 0.0
        %2478 = vmatpush1.msra.mxu0 0.0
        %2479 = vmatprep.subr.mxu0 0.0
        %2480 = vmatpush1.msra.mxu0 0.0
        %2481 = vmatprep.subr.mxu0 0.0
        %2482 = vmatpush1.msra.mxu0 0.0
        %2483 = vmatprep.subr.mxu0 0.0
        %2484 = vmatpush1.msra.mxu0 0.0
        %2485 = vmatprep.subr.mxu0 0.0
        %2486 = vmatpush1.msra.mxu0 0.0
        %2487 = vmatprep.subr.mxu0 0.0
        %2488 = vmatpush1.msra.mxu0 0.0
        %2489 = vmatprep.mubr.f32.mxu0 0.0
        %2490 = vmatmul.mubr.f32.gmra.mrb[0].mxu0 %v2348
        %v2491 = vpop.f32.mrb[0].mxu0
        %v2492 = vadd.f32 0.0, %v2491
        %v2493 = vpop.f32.mrb[0].mxu0
        %v2494 = vadd.f32 0.0, %v2493
        %2495 = vdwg.mxu0
        %v2496 = vadd.f32 %v2350, %v2421
        %v2497 = vadd.f32 %v2351, %v2423
        %v2498 = vadd.f32 %v2352, %v2492
        %v2499 = vadd.f32 %v2353, %v2494
        %v2500 = vmul.f32 %v2496, %v1208
        %v2501 = vmul.f32 %v2497, %v1209
        %v2502 = vmul.f32 %v2498, %v1210
        %v2503 = vmul.f32 %v2499, %v1211
        %v2504 = vtanh.pop %v2500
        %v2505 = vtanh.pop %v2501
        %v2506 = vtanh.pop %v2502
        %v2507 = vtanh.pop %v2503
        %v2508 = vmul.f32 %v2504, %v1208
        %v2509 = vmul.f32 %v2505, %v1209
        %v2510 = vmul.f32 %v2506, %v1210
        %v2511 = vmul.f32 %v2507, %v1211
        %v2512 = vadd.f32 %v2508, %v1212
        %v2513 = vadd.f32 %v2509, %v1213
        %v2514 = vadd.f32 %v2510, %v1214
        %v2515 = vadd.f32 %v2511, %v1215
        %v2516 = vmul.f32 %v2513, %v2349
        %v2517 = vmul.f32 %v2512, %v2514
        %v2518 = vadd.f32 %v2516, %v2517
        %v2519 = vtanh.pop %v2518
        %v2520 = vmul.f32 %v2515, %v2519
        %s2521 = sadd.s32 %s1280, 6
        %p2522 = scmp.lt.s32.totalorder %s2521, 20
        %s2523 = scalar_select %p2522, 1, 0
        %v2524 = vstv %s2523
        %vm2525 = vcmp.eq.s32.totalorder %v2524, 1
        %v2526 = vsel %vm2525, %v2520, %v2348
        %v2527 = vsel %vm2525, %v2518, %v2349
        %v2528 = vld [vmem:[%s1186] sm:$0xff]
        %v2529 = vld [vmem:[%s1186 + $0x8] sm:$0xff]
        %v2530 = vld [vmem:[%s1186 + $0x10] sm:$0xff]
        %v2531 = vld [vmem:[%s1186 + $0x18] sm:$0xff]
        %2532 = vmatprep.subr.mxu0 %v1217
        %2533 = vmatpush1.msra.mxu0 %v1216
        %2534 = vmatprep.subr.mxu0 %v1221
        %2535 = vmatpush1.msra.mxu0 %v1220
        %2536 = vmatprep.subr.mxu0 %v1225
        %2537 = vmatpush1.msra.mxu0 %v1224
        %2538 = vmatprep.subr.mxu0 %v1229
        %2539 = vmatpush1.msra.mxu0 %v1228
        %2540 = vmatprep.subr.mxu0 %v1233
        %2541 = vmatpush1.msra.mxu0 %v1232
        %2542 = vmatprep.subr.mxu0 %v1237
        %2543 = vmatpush1.msra.mxu0 %v1236
        %2544 = vmatprep.subr.mxu0 %v1241
        %2545 = vmatpush1.msra.mxu0 %v1240
        %2546 = vmatprep.subr.mxu0 %v1245
        %2547 = vmatpush1.msra.mxu0 %v1244
        %2548 = vmatprep.subr.mxu0 %v1249
        %2549 = vmatpush1.msra.mxu0 %v1248
        %2550 = vmatprep.subr.mxu0 %v1253
        %2551 = vmatpush1.msra.mxu0 %v1252
        %2552 = vmatprep.subr.mxu0 %v1257
        %2553 = vmatpush1.msra.mxu0 %v1256
        %2554 = vmatprep.subr.mxu0 %v1261
        %2555 = vmatpush1.msra.mxu0 %v1260
        %2556 = vmatprep.subr.mxu0 %v1265
        %2557 = vmatpush1.msra.mxu0 %v1264
        %2558 = vmatprep.subr.mxu0 %v1269
        %2559 = vmatpush1.msra.mxu0 %v1268
        %2560 = vmatprep.subr.mxu0 %v1273
        %2561 = vmatpush1.msra.mxu0 %v1272
        %2562 = vmatprep.subr.mxu0 %v1277
        %2563 = vmatpush1.msra.mxu0 %v1276
        %2564 = vmatprep.subr.mxu0 0.0
        %2565 = vmatpush1.msra.mxu0 0.0
        %2566 = vmatprep.subr.mxu0 0.0
        %2567 = vmatpush1.msra.mxu0 0.0
        %2568 = vmatprep.subr.mxu0 0.0
        %2569 = vmatpush1.msra.mxu0 0.0
        %2570 = vmatprep.subr.mxu0 0.0
        %2571 = vmatpush1.msra.mxu0 0.0
        %2572 = vmatprep.subr.mxu0 0.0
        %2573 = vmatpush1.msra.mxu0 0.0
        %2574 = vmatprep.subr.mxu0 0.0
        %2575 = vmatpush1.msra.mxu0 0.0
        %2576 = vmatprep.subr.mxu0 0.0
        %2577 = vmatpush1.msra.mxu0 0.0
        %2578 = vmatprep.subr.mxu0 0.0
        %2579 = vmatpush1.msra.mxu0 0.0
        %2580 = vmatprep.subr.mxu0 0.0
        %2581 = vmatpush1.msra.mxu0 0.0
        %2582 = vmatprep.subr.mxu0 0.0
        %2583 = vmatpush1.msra.mxu0 0.0
        %2584 = vmatprep.subr.mxu0 0.0
        %2585 = vmatpush1.msra.mxu0 0.0
        %2586 = vmatprep.subr.mxu0 0.0
        %2587 = vmatpush1.msra.mxu0 0.0
        %2588 = vmatprep.subr.mxu0 0.0
        %2589 = vmatpush1.msra.mxu0 0.0
        %2590 = vmatprep.subr.mxu0 0.0
        %2591 = vmatpush1.msra.mxu0 0.0
        %2592 = vmatprep.subr.mxu0 0.0
        %2593 = vmatpush1.msra.mxu0 0.0
        %2594 = vmatprep.subr.mxu0 0.0
        %2595 = vmatpush1.msra.mxu0 0.0
        %2596 = vmatprep.mubr.f32.mxu0 0.0
        %2597 = vmatmul.mubr.f32.gmra.mrb[0].mxu0 %v2526
        %v2598 = vpop.f32.mrb[0].mxu0
        %v2599 = vadd.f32 0.0, %v2598
        %v2600 = vpop.f32.mrb[0].mxu0
        %v2601 = vadd.f32 0.0, %v2600
        %2602 = vdwg.mxu0
        %2603 = vmatprep.subr.mxu0 %v1219
        %2604 = vmatpush1.msra.mxu0 %v1218
        %2605 = vmatprep.subr.mxu0 %v1223
        %2606 = vmatpush1.msra.mxu0 %v1222
        %2607 = vmatprep.subr.mxu0 %v1227
        %2608 = vmatpush1.msra.mxu0 %v1226
        %2609 = vmatprep.subr.mxu0 %v1231
        %2610 = vmatpush1.msra.mxu0 %v1230
        %2611 = vmatprep.subr.mxu0 %v1235
        %2612 = vmatpush1.msra.mxu0 %v1234
        %2613 = vmatprep.subr.mxu0 %v1239
        %2614 = vmatpush1.msra.mxu0 %v1238
        %2615 = vmatprep.subr.mxu0 %v1243
        %2616 = vmatpush1.msra.mxu0 %v1242
        %2617 = vmatprep.subr.mxu0 %v1247
        %2618 = vmatpush1.msra.mxu0 %v1246
        %2619 = vmatprep.subr.mxu0 %v1251
        %2620 = vmatpush1.msra.mxu0 %v1250
        %2621 = vmatprep.subr.mxu0 %v1255
        %2622 = vmatpush1.msra.mxu0 %v1254
        %2623 = vmatprep.subr.mxu0 %v1259
        %2624 = vmatpush1.msra.mxu0 %v1258
        %2625 = vmatprep.subr.mxu0 %v1263
        %2626 = vmatpush1.msra.mxu0 %v1262
        %2627 = vmatprep.subr.mxu0 %v1267
        %2628 = vmatpush1.msra.mxu0 %v1266
        %2629 = vmatprep.subr.mxu0 %v1271
        %2630 = vmatpush1.msra.mxu0 %v1270
        %2631 = vmatprep.subr.mxu0 %v1275
        %2632 = vmatpush1.msra.mxu0 %v1274
        %2633 = vmatprep.subr.mxu0 %v1279
        %2634 = vmatpush1.msra.mxu0 %v1278
        %2635 = vmatprep.subr.mxu0 0.0
        %2636 = vmatpush1.msra.mxu0 0.0
        %2637 = vmatprep.subr.mxu0 0.0
        %2638 = vmatpush1.msra.mxu0 0.0
        %2639 = vmatprep.subr.mxu0 0.0
        %2640 = vmatpush1.msra.mxu0 0.0
        %2641 = vmatprep.subr.mxu0 0.0
        %2642 = vmatpush1.msra.mxu0 0.0
        %2643 = vmatprep.subr.mxu0 0.0
        %2644 = vmatpush1.msra.mxu0 0.0
        %2645 = vmatprep.subr.mxu0 0.0
        %2646 = vmatpush1.msra.mxu0 0.0
        %2647 = vmatprep.subr.mxu0 0.0
        %2648 = vmatpush1.msra.mxu0 0.0
        %2649 = vmatprep.subr.mxu0 0.0
        %2650 = vmatpush1.msra.mxu0 0.0
        %2651 = vmatprep.subr.mxu0 0.0
        %2652 = vmatpush1.msra.mxu0 0.0
        %2653 = vmatprep.subr.mxu0 0.0
        %2654 = vmatpush1.msra.mxu0 0.0
        %2655 = vmatprep.subr.mxu0 0.0
        %2656 = vmatpush1.msra.mxu0 0.0
        %2657 = vmatprep.subr.mxu0 0.0
        %2658 = vmatpush1.msra.mxu0 0.0
        %2659 = vmatprep.subr.mxu0 0.0
        %2660 = vmatpush1.msra.mxu0 0.0
        %2661 = vmatprep.subr.mxu0 0.0
        %2662 = vmatpush1.msra.mxu0 0.0
        %2663 = vmatprep.subr.mxu0 0.0
        %2664 = vmatpush1.msra.mxu0 0.0
        %2665 = vmatprep.subr.mxu0 0.0
        %2666 = vmatpush1.msra.mxu0 0.0
        %2667 = vmatprep.mubr.f32.mxu0 0.0
        %2668 = vmatmul.mubr.f32.gmra.mrb[0].mxu0 %v2526
        %v2669 = vpop.f32.mrb[0].mxu0
        %v2670 = vadd.f32 0.0, %v2669
        %v2671 = vpop.f32.mrb[0].mxu0
        %v2672 = vadd.f32 0.0, %v2671
        %2673 = vdwg.mxu0
        %v2674 = vadd.f32 %v2528, %v2599
        %v2675 = vadd.f32 %v2529, %v2601
        %v2676 = vadd.f32 %v2530, %v2670
        %v2677 = vadd.f32 %v2531, %v2672
        %v2678 = vmul.f32 %v2674, %v1208
        %v2679 = vmul.f32 %v2675, %v1209
        %v2680 = vmul.f32 %v2676, %v1210
        %v2681 = vmul.f32 %v2677, %v1211
        %v2682 = vtanh.pop %v2678
        %v2683 = vtanh.pop %v2679
        %v2684 = vtanh.pop %v2680
        %v2685 = vtanh.pop %v2681
        %v2686 = vmul.f32 %v2682, %v1208
        %v2687 = vmul.f32 %v2683, %v1209
        %v2688 = vmul.f32 %v2684, %v1210
        %v2689 = vmul.f32 %v2685, %v1211
        %v2690 = vadd.f32 %v2686, %v1212
        %v2691 = vadd.f32 %v2687, %v1213
        %v2692 = vadd.f32 %v2688, %v1214
        %v2693 = vadd.f32 %v2689, %v1215
        %v2694 = vmul.f32 %v2691, %v2527
        %v2695 = vmul.f32 %v2690, %v2692
        %v2696 = vadd.f32 %v2694, %v2695
        %v2697 = vtanh.pop %v2696
        %v2698 = vmul.f32 %v2693, %v2697
        %s2699 = sadd.s32 %s1280, 7
        %p2700 = scmp.lt.s32.totalorder %s2699, 20
        %s2701 = scalar_select %p2700, 1, 0
        %v2702 = vstv %s2701
        %vm2703 = vcmp.eq.s32.totalorder %v2702, 1
        %v2704 = vsel %vm2703, %v2698, %v2526
        %v2705 = vsel %vm2703, %v2696, %v2527
        %2706 = vst [vmem:[#allocation2] sm:$0xff] %v2704
        %2707 = vst [vmem:[#allocation3] sm:$0xff] %v2705
        %p2708 = scmp.eq.s32.totalorder %s24, 2
        // Predicated region
        $region91: #{tpu_custom_call.1} parent=77 // pred_check
          %p2709 = pneg %p2708
        $region92: #{tpu_custom_call.1} parent=77 // pred_check_branch
          %2711 = sbr.rel (%p2709) target = $region94
        $region93: #{tpu_custom_call.1} parent=77 // pred_region
          %v2712 = vld [vmem:[%s4] sm:$0xff]
          %v2713 = vld [vmem:[%s4 + $0x8] sm:$0xff]
          %v2714 = vld [vmem:[%s4 + $0x10] sm:$0xff]
          %v2715 = vld [vmem:[%s4 + $0x18] sm:$0xff]
          %v2716 = vld [vmem:[%s4 + $0x20] sm:$0xff]
          %v2717 = vld [vmem:[%s4 + $0x28] sm:$0xff]
          %v2718 = vld [vmem:[%s4 + $0x30] sm:$0xff]
          %v2719 = vld [vmem:[%s4 + $0x38] sm:$0xff]
          %v2720 = vld [vmem:[%s4 + $0x40] sm:$0xff]
          %v2721 = vld [vmem:[%s4 + $0x48] sm:$0xff]
          %v2722 = vld [vmem:[%s4 + $0x50] sm:$0xff]
          %v2723 = vld [vmem:[%s4 + $0x58] sm:$0xff]
          %v2724 = vld [vmem:[%s4 + $0x60] sm:$0xff]
          %v2725 = vld [vmem:[%s4 + $0x68] sm:$0xff]
          %v2726 = vld [vmem:[%s4 + $0x70] sm:$0xff]
          %v2727 = vld [vmem:[%s4 + $0x78] sm:$0xff]
          %v2728 = vld [vmem:[%s5] sm:$0x1]
          %v2730 = vlaneseq
          %v2731 = vshrl.u32 %v2730, 7
          %v2732 = vsub.s32 0, %v2731
          %v2733 = vrot.slane %v2728, %v2732
          %2735 = vmatprep.subr.mxu0 0.0
          %2736 = vmatpush1.msra.mxu0 %v2712
          %2737 = vmatprep.subr.mxu0 0.0
          %2738 = vmatpush1.msra.mxu0 %v2713
          %2739 = vmatprep.subr.mxu0 0.0
          %2740 = vmatpush1.msra.mxu0 %v2714
          %2741 = vmatprep.subr.mxu0 0.0
          %2742 = vmatpush1.msra.mxu0 %v2715
          %2743 = vmatprep.subr.mxu0 0.0
          %2744 = vmatpush1.msra.mxu0 %v2716
          %2745 = vmatprep.subr.mxu0 0.0
          %2746 = vmatpush1.msra.mxu0 %v2717
          %2747 = vmatprep.subr.mxu0 0.0
          %2748 = vmatpush1.msra.mxu0 %v2718
          %2749 = vmatprep.subr.mxu0 0.0
          %2750 = vmatpush1.msra.mxu0 %v2719
          %2751 = vmatprep.subr.mxu0 0.0
          %2752 = vmatpush1.msra.mxu0 %v2720
          %2753 = vmatprep.subr.mxu0 0.0
          %2754 = vmatpush1.msra.mxu0 %v2721
          %2755 = vmatprep.subr.mxu0 0.0
          %2756 = vmatpush1.msra.mxu0 %v2722
          %2757 = vmatprep.subr.mxu0 0.0
          %2758 = vmatpush1.msra.mxu0 %v2723
          %2759 = vmatprep.subr.mxu0 0.0
          %2760 = vmatpush1.msra.mxu0 %v2724
          %2761 = vmatprep.subr.mxu0 0.0
          %2762 = vmatpush1.msra.mxu0 %v2725
          %2763 = vmatprep.subr.mxu0 0.0
          %2764 = vmatpush1.msra.mxu0 %v2726
          %2765 = vmatprep.subr.mxu0 0.0
          %2766 = vmatpush1.msra.mxu0 %v2727
          %2767 = vmatprep.subr.mxu0 0.0
          %2768 = vmatpush1.msra.mxu0 0.0
          %2769 = vmatprep.subr.mxu0 0.0
          %2770 = vmatpush1.msra.mxu0 0.0
          %2771 = vmatprep.subr.mxu0 0.0
          %2772 = vmatpush1.msra.mxu0 0.0
          %2773 = vmatprep.subr.mxu0 0.0
          %2774 = vmatpush1.msra.mxu0 0.0
          %2775 = vmatprep.subr.mxu0 0.0
          %2776 = vmatpush1.msra.mxu0 0.0
          %2777 = vmatprep.subr.mxu0 0.0
          %2778 = vmatpush1.msra.mxu0 0.0
          %2779 = vmatprep.subr.mxu0 0.0
          %2780 = vmatpush1.msra.mxu0 0.0
          %2781 = vmatprep.subr.mxu0 0.0
          %2782 = vmatpush1.msra.mxu0 0.0
          %2783 = vmatprep.subr.mxu0 0.0
          %2784 = vmatpush1.msra.mxu0 0.0
          %2785 = vmatprep.subr.mxu0 0.0
          %2786 = vmatpush1.msra.mxu0 0.0
          %2787 = vmatprep.subr.mxu0 0.0
          %2788 = vmatpush1.msra.mxu0 0.0
          %2789 = vmatprep.subr.mxu0 0.0
          %2790 = vmatpush1.msra.mxu0 0.0
          %2791 = vmatprep.subr.mxu0 0.0
          %2792 = vmatpush1.msra.mxu0 0.0
          %2793 = vmatprep.subr.mxu0 0.0
          %2794 = vmatpush1.msra.mxu0 0.0
          %2795 = vmatprep.subr.mxu0 0.0
          %2796 = vmatpush1.msra.mxu0 0.0
          %2797 = vmatprep.subr.mxu0 0.0
          %2798 = vmatpush1.msra.mxu0 0.0
          %2799 = vmatprep.mubr.f32.mxu0 0.0
          %2800 = vmatmul.mubr.f32.gmra.mrb[0].mxu0 %v2704
          %v2801 = vpop.f32.mrb[0].mxu0
          %v2802 = vadd.f32 %v2733, %v2801
          %v2803 = vpop.f32.mrb[0].mxu0
          %2804 = vdwg.mxu0
          %2805 = vst [vmem:[#allocation9] sm:$0xff] %v2802
        $region94: #{tpu_custom_call.1} parent=77 // pred_fallthru
          _
        // Predicated region
        $region95: #{tpu_custom_call.1} parent=77 // pred_check
          %p2806 = pneg %p182
        $region96: #{tpu_custom_call.1} parent=77 // pred_check_branch
          %2808 = sbr.rel (%p2806) target = $region98
        $region97: #{tpu_custom_call.1} parent=77 // pred_region
          %s2810 = ssub.s32 128, 128
          %2811 = vsyncadd [#allocation8], %s2810
          %s2812 = smul.addr %s23, 128
          %s2813 = scalar_lea.hbm %s6, %s2812
          %s2815 = sshll.u32 [#allocation9], 4
          %s2816 = int_to_ptr.vmem [resolvable:$true] %s2815
          %2818 = dma.vmem_to_hbm [thread:$0]  %s2816, 128, %s2813, [#allocation8]
        $region98: #{tpu_custom_call.1} parent=77 // pred_fallthru
          _
        // Predicated region
        $region99: #{tpu_custom_call.1} parent=77 // pred_check
          %p2819 = pneg %p182
        $region100: #{tpu_custom_call.1} parent=77 // pred_check_branch
          %2821 = sbr.rel (%p2819) target = $region102
        $region101: #{tpu_custom_call.1} parent=77 // pred_region
          %2822 = dma.done [#allocation8], 128
        $region102: #{tpu_custom_call.1} parent=77 // pred_fallthru
          _
      $region78: #{tpu_custom_call.1} parent=5 // pred_fallthru
        _
      %p2823 = scmp.le.s32.totalorder 2, %s14
      // Predicated region
      $region103: #{tpu_custom_call.1} parent=5 // pred_check
        %p2824 = pneg %p2823
      $region104: #{tpu_custom_call.1} parent=5 // pred_check_branch
        %2826 = sbr.rel (%p2824) target = $region106
      $region105: #{tpu_custom_call.1} parent=5 // pred_region
        %s2827 = ssub.s32 %s14, 2
      $region106: #{tpu_custom_call.1} parent=5 // pred_fallthru
        _
    $region6: #{tpu_custom_call.1} parent=1 // loop_footer
      %s18 = sadd.s32 1, %s14
    $region7: #{tpu_custom_call.1} parent=1 // loop_footer_branch
      %13 = sbr.rel target = $region3
    $region8: #{tpu_custom_call.1} parent=1 // loop_exit
      _
    %2828 = vsyncpa [#allocation7], 1
    %s2829 = scalar_lea.sflag [#allocation7], 1
    %2830 = vsyncpa %s2829, 1
    %2831 = vsyncpa [#allocation8], 1
    %s2832 = scalar_lea.sflag [#allocation8], 1
    %2833 = vsyncpa %s2832, 1

// kernel: tpu_custom_call.1
$region0: #{tpu_custom_call.1}
  #allocation0 [shape = 'u32[]', space=smem, size = 0x4, offset = 0x4, fixed_abs, tag = 'smem constant byte address 0x4 - core index']
  #allocation1 [shape = 'u32[144,128]{1,0:T(1,128)}', space=vmem, size = 0x12000, scoped, tag = 'internal scratch']
  #allocation2 [shape = 'f32[8,128]{1,0:T(8,128)}', space=vmem, size = 0x1000, scoped, tag = 'scratch operand']
  #allocation3 [shape = 'f32[8,128]{1,0:T(8,128)}', space=vmem, size = 0x1000, scoped, tag = 'scratch operand']
  #allocation4 [shape = 'f32[8,8,512]{2,1,0:T(8,128)}', space=vmem, size = 0x20000, scoped, tag = 'scratch operand']
  %s0 = inlined_call_operand.vmem [shape: f32[8,24,16], index: 0, kind: input, shape index: {}]
  %s1 = inlined_call_operand.vmem [shape: f32[16,512], index: 1, kind: input, shape index: {}]
  %s2 = inlined_call_operand.hbm [shape: f32[128,512], index: 2, kind: input, shape index: {}]
  %s3 = inlined_call_operand.vmem [shape: f32[1,512], index: 3, kind: input, shape index: {}]
  %s4 = inlined_call_operand.vmem [shape: f32[128,128], index: 4, kind: input, shape index: {}]
  %s5 = inlined_call_operand.vmem [shape: f32[1,128], index: 5, kind: input, shape index: {}]
  %s6 = inlined_call_operand.hbm [shape: f32[8,128], index: 6, kind: output, shape index: {}]
  %s7 = sld [smem:[#allocation0]]
  $region107: #{tpu_custom_call.1} parent=0
    _
  %s9 = ssub.s32 1, %s7
  %s10 = scalar_select 0, %s9, %s7
  $region1: #{tpu_custom_call.1} parent=0
    #allocation5 [shape = 'u8[65536]{0}', space=vmem, size = 0x10000, scoped, tag = 'input window, operand 0']
    #allocation6 [shape = 'u8[262144]{0}', space=vmem, size = 0x40000, scoped, tag = 'input window, operand 2, single buffered']
    #allocation7 [shape = 's32[2]{0}', space=sflag, size = 0x8, scoped, tag = 'scoped memory for tpu_custom_call.1']
    #allocation8 [shape = 's32[2]{0}', space=sflag, size = 0x8, scoped, tag = 'scoped memory for tpu_custom_call.1']
    #allocation9 [shape = 'u8[4096]{0}', space=vmem, size = 0x1000, scoped, tag = 'output window, operand 0, single buffered']
    %11 = vsyncpa [#allocation7], 0
    %12 = vsyncpa [#allocation8], 0
    loop: start=0, step=1, limit=5
    $region2: #{tpu_custom_call.1} parent=1 // loop_pre_header
      _
    $region3: #{tpu_custom_call.1} parent=1 // loop_header
      %s14 = sphi 0, %s18
      %p15 = scmp.ge.s32.totalorder %s14, 5
      %s21 = sphi 0, %s33
      %s22 = sphi 0, %s29
      %s23 = sphi 0, %s21
      %s24 = sphi 0, %s22
      %s25 = sphi 0, %s23
      %s26 = sphi 0, %s24
      %s38 = sphi 0, %s40
      %s41 = sphi 0, %s38
      %s42 = sphi 0, %s41
      %s58 = sphi 0, %s42
      %s62 = sphi 0, %s62
      %s64 = sphi 0, %s62
      %s65 = sphi 0, %s64
      %s79 = sphi 0, %s65
      %s83 = sphi 0, %s83
      %s85 = sphi 0, %s83
      %s86 = sphi 0, %s85
      %s100 = sphi 0, %s86
      %s104 = sphi 0, %s104
      %s106 = sphi 0, %s104
      %s107 = sphi 0, %s106
      %s121 = sphi 0, %s107
      %s125 = sphi 0, %s125
      %s127 = sphi 0, %s125
      %s128 = sphi 0, %s127
      %s142 = sphi 0, %s128
      %s146 = sphi 0, %s146
      %s148 = sphi 0, %s146
      %s149 = sphi 0, %s148
      %s163 = sphi 0, %s149
      %s169 = sphi 0, %s171
      %s172 = sphi 0, %s169
      %s173 = sphi 0, %s172
      %s189 = sphi 0, %s173
    $region4: #{tpu_custom_call.1} parent=1 // loop_header_branch
      %17 = sbr.rel (%p15) target = $region8
    $region5: #{tpu_custom_call.1} parent=1 // loop_body
      %s19 = ssub.s32 %s14, 1
      %s20 = ssub.s32 %s14, 2
      %s27 = sadd.s32 1, %s22
      %p28 = scmp.ge.s32.totalorder %s27, 3
      %s29 = scalar_select %p28, 0, %s27
      %s30 = sadd.s32 1, %s21
      %s31 = scalar_select %p28, %s30, %s21
      %p32 = scmp.ge.s32.totalorder %s31, 1
      %s33 = scalar_select %p32, 0, %s31
      %s34 = ssub.s32 %s21, %s33
      %s35 = ssub.s32 %s22, %s29
      %s36 = sor.u32 %s34, %s35
      %p37 = scmp.eq.s32.totalorder %s36, 0
      %s39 = sadd.s32 %s38, 1
      %s40 = scalar_select %p37, %s38, %s39
      %p43 = pneg %p37
      %p44 = scmp.eq.s32.totalorder %s14, 2
      %p45 = por %p43, %p44
      %p46 = scmp.ne.s32.totalorder %s38, %s41
      %p47 = scmp.eq.s32.totalorder %s14, 0
      %p48 = por %p46, %p47
      %p49 = scmp.ne.s32.totalorder %s38, %s41
      %p50 = scmp.eq.s32.totalorder %s19, 2
      %p51 = por %p49, %p50
      %p52 = scmp.ne.s32.totalorder %s41, %s42
      %p53 = scmp.eq.s32.totalorder %s19, 0
      %p54 = por %p52, %p53
      %p55 = scmp.ne.s32.totalorder %s41, %s42
      %p56 = scmp.eq.s32.totalorder %s20, 2
      %p57 = por %p55, %p56
      %p59 = scmp.ne.s32.totalorder %s42, %s58
      %p60 = scmp.eq.s32.totalorder %s20, 0
      %p61 = por %p59, %p60
      %s63 = sadd.s32 %s62, 1
      %p66 = scmp.eq.s32.totalorder %s14, 2
      %p67 = scmp.ne.s32.totalorder %s62, %s64
      %p68 = scmp.eq.s32.totalorder %s14, 0
      %p69 = por %p67, %p68
      %p70 = scmp.ne.s32.totalorder %s62, %s64
      %p71 = scmp.eq.s32.totalorder %s19, 2
      %p72 = por %p70, %p71
      %p73 = scmp.ne.s32.totalorder %s64, %s65
      %p74 = scmp.eq.s32.totalorder %s19, 0
      %p75 = por %p73, %p74
      %p76 = scmp.ne.s32.totalorder %s64, %s65
      %p77 = scmp.eq.s32.totalorder %s20, 2
      %p78 = por %p76, %p77
      %p80 = scmp.ne.s32.totalorder %s65, %s79
      %p81 = scmp.eq.s32.totalorder %s20, 0
      %p82 = por %p80, %p81
      %s84 = sadd.s32 %s83, 1
      %p87 = scmp.eq.s32.totalorder %s14, 2
      %p88 = scmp.ne.s32.totalorder %s83, %s85
      %p89 = scmp.eq.s32.totalorder %s14, 0
      %p90 = por %p88, %p89
      %p91 = scmp.ne.s32.totalorder %s83, %s85
      %p92 = scmp.eq.s32.totalorder %s19, 2
      %p93 = por %p91, %p92
      %p94 = scmp.ne.s32.totalorder %s85, %s86
      %p95 = scmp.eq.s32.totalorder %s19, 0
      %p96 = por %p94, %p95
      %p97 = scmp.ne.s32.totalorder %s85, %s86
      %p98 = scmp.eq.s32.totalorder %s20, 2
      %p99 = por %p97, %p98
      %p101 = scmp.ne.s32.totalorder %s86, %s100
      %p102 = scmp.eq.s32.totalorder %s20, 0
      %p103 = por %p101, %p102
      %s105 = sadd.s32 %s104, 1
      %p108 = scmp.eq.s32.totalorder %s14, 2
      %p109 = scmp.ne.s32.totalorder %s104, %s106
      %p110 = scmp.eq.s32.totalorder %s14, 0
      %p111 = por %p109, %p110
      %p112 = scmp.ne.s32.totalorder %s104, %s106
      %p113 = scmp.eq.s32.totalorder %s19, 2
      %p114 = por %p112, %p113
      %p115 = scmp.ne.s32.totalorder %s106, %s107
      %p116 = scmp.eq.s32.totalorder %s19, 0
      %p117 = por %p115, %p116
      %p118 = scmp.ne.s32.totalorder %s106, %s107
      %p119 = scmp.eq.s32.totalorder %s20, 2
      %p120 = por %p118, %p119
      %p122 = scmp.ne.s32.totalorder %s107, %s121
      %p123 = scmp.eq.s32.totalorder %s20, 0
      %p124 = por %p122, %p123
      %s126 = sadd.s32 %s125, 1
      %p129 = scmp.eq.s32.totalorder %s14, 2
      %p130 = scmp.ne.s32.totalorder %s125, %s127
      %p131 = scmp.eq.s32.totalorder %s14, 0
      %p132 = por %p130, %p131
      %p133 = scmp.ne.s32.totalorder %s125, %s127
      %p134 = scmp.eq.s32.totalorder %s19, 2
      %p135 = por %p133, %p134
      %p136 = scmp.ne.s32.totalorder %s127, %s128
      %p137 = scmp.eq.s32.totalorder %s19, 0
      %p138 = por %p136, %p137
      %p139 = scmp.ne.s32.totalorder %s127, %s128
      %p140 = scmp.eq.s32.totalorder %s20, 2
      %p141 = por %p139, %p140
      %p143 = scmp.ne.s32.totalorder %s128, %s142
      %p144 = scmp.eq.s32.totalorder %s20, 0
      %p145 = por %p143, %p144
      %s147 = sadd.s32 %s146, 1
      %p150 = scmp.eq.s32.totalorder %s14, 2
      %p151 = scmp.ne.s32.totalorder %s146, %s148
      %p152 = scmp.eq.s32.totalorder %s14, 0
      %p153 = por %p151, %p152
      %p154 = scmp.ne.s32.totalorder %s146, %s148
      %p155 = scmp.eq.s32.totalorder %s19, 2
      %p156 = por %p154, %p155
      %p157 = scmp.ne.s32.totalorder %s148, %s149
      %p158 = scmp.eq.s32.totalorder %s19, 0
      %p159 = por %p157, %p158
      %p160 = scmp.ne.s32.totalorder %s148, %s149
      %p161 = scmp.eq.s32.totalorder %s20, 2
      %p162 = por %p160, %p161
      %p164 = scmp.ne.s32.totalorder %s149, %s163
      %p165 = scmp.eq.s32.totalorder %s20, 0
      %p166 = por %p164, %p165
      %s167 = ssub.s32 %s21, %s33
      %p168 = scmp.eq.s32.totalorder %s167, 0
      %s170 = sadd.s32 %s169, 1
      %s171 = scalar_select %p168, %s169, %s170
      %p174 = pneg %p168
      %p175 = scmp.eq.s32.totalorder %s14, 2
      %p176 = por %p174, %p175
      %p177 = scmp.ne.s32.totalorder %s169, %s172
      %p178 = scmp.eq.s32.totalorder %s14, 0
      %p179 = por %p177, %p178
      %p180 = scmp.ne.s32.totalorder %s169, %s172
      %p181 = scmp.eq.s32.totalorder %s19, 2
      %p182 = por %p180, %p181
      %p183 = scmp.ne.s32.totalorder %s172, %s173
      %p184 = scmp.eq.s32.totalorder %s19, 0
      %p185 = por %p183, %p184
      %p186 = scmp.ne.s32.totalorder %s172, %s173
      %p187 = scmp.eq.s32.totalorder %s20, 2
      %p188 = por %p186, %p187
      %p190 = scmp.ne.s32.totalorder %s173, %s189
      %p191 = scmp.eq.s32.totalorder %s20, 0
      %p192 = por %p190, %p191
      %p193 = scmp.le.s32.totalorder 1, %s14
      %p194 = scmp.lt.s32.totalorder %s14, 4
      %p195 = pnand %p193, %p194
      %p196 = pneg %p195
      // Predicated region
      $region9: #{tpu_custom_call.1} parent=5 // pred_check
        _
      $region10: #{tpu_custom_call.1} parent=5 // pred_check_branch
        %198 = sbr.rel (%p195) target = $region12
      $region11: #{tpu_custom_call.1} parent=5 // pred_region
        %s199 = ssub.s32 %s14, 1
        // Predicated region
        $region13: #{tpu_custom_call.1} parent=11 // pred_check
          %p200 = pneg %p75
        $region14: #{tpu_custom_call.1} parent=11 // pred_check_branch
          %202 = sbr.rel (%p200) target = $region16
        $region15: #{tpu_custom_call.1} parent=11 // pred_region
          _
        $region16: #{tpu_custom_call.1} parent=11 // pred_fallthru
          _
        // Predicated region
        $region17: #{tpu_custom_call.1} parent=11 // pred_check
          %p203 = pneg %p96
        $region18: #{tpu_custom_call.1} parent=11 // pred_check_branch
          %205 = sbr.rel (%p203) target = $region20
        $region19: #{tpu_custom_call.1} parent=11 // pred_region
          %s207 = ssub.s32 8192, 8192
          %208 = vsyncadd [#allocation7], %s207
          %s209 = sshll.u32 [#allocation6], 4
          %s210 = int_to_ptr.vmem [resolvable:$true] %s209
          %215 = dma.hbm_to_vmem [thread:$0]  %s2, 8192, %s210, [#allocation7], 512, 512, 32
        $region20: #{tpu_custom_call.1} parent=11 // pred_fallthru
          _
        // Predicated region
        $region21: #{tpu_custom_call.1} parent=11 // pred_check
          %p216 = pneg %p117
        $region22: #{tpu_custom_call.1} parent=11 // pred_check_branch
          %218 = sbr.rel (%p216) target = $region24
        $region23: #{tpu_custom_call.1} parent=11 // pred_region
          _
        $region24: #{tpu_custom_call.1} parent=11 // pred_fallthru
          _
        // Predicated region
        $region25: #{tpu_custom_call.1} parent=11 // pred_check
          %p219 = pneg %p138
        $region26: #{tpu_custom_call.1} parent=11 // pred_check_branch
          %221 = sbr.rel (%p219) target = $region28
        $region27: #{tpu_custom_call.1} parent=11 // pred_region
          _
        $region28: #{tpu_custom_call.1} parent=11 // pred_fallthru
          _
        // Predicated region
        $region29: #{tpu_custom_call.1} parent=11 // pred_check
          %p222 = pneg %p159
        $region30: #{tpu_custom_call.1} parent=11 // pred_check_branch
          %224 = sbr.rel (%p222) target = $region32
        $region31: #{tpu_custom_call.1} parent=11 // pred_region
          _
        $region32: #{tpu_custom_call.1} parent=11 // pred_fallthru
          _
      $region12: #{tpu_custom_call.1} parent=5 // pred_fallthru
        _
      %p225 = scmp.lt.s32.totalorder %s14, 3
      // Predicated region
      $region33: #{tpu_custom_call.1} parent=5 // pred_check
        %p226 = pneg %p225
      $region34: #{tpu_custom_call.1} parent=5 // pred_check_branch
        %228 = sbr.rel (%p226) target = $region36
      $region35: #{tpu_custom_call.1} parent=5 // pred_region
        // Predicated region
        $region37: #{tpu_custom_call.1} parent=35 // pred_check
          %p229 = pneg %p48
        $region38: #{tpu_custom_call.1} parent=35 // pred_check_branch
          %231 = sbr.rel (%p229) target = $region40
        $region39: #{tpu_custom_call.1} parent=35 // pred_region
          %s232 = sand.u32 %s38, 1
          %s233 = sand.u32 %s38, 1
          %s234 = smul.addr %s233, 64
          %s235 = scalar_lea.vmem [#allocation5], %s234
          %s236 = smul.u32 8, %s21
          %s237 = smul.addr %s236, 3
          %s238 = sadd.s32 %s22, %s237
          %s239 = smul.addr %s238, 8
          %s240 = scalar_lea.vmem %s0, %s239
          // Predicated region
          $region41: #{tpu_custom_call.1} parent=39 // pred_check
            _
          $region42: #{tpu_custom_call.1} parent=39 // pred_check_branch
            %242 = sbr.rel (0) target = $region44
          $region43: #{tpu_custom_call.1} parent=39 // pred_region
            // Predicated region
            $region45: #{tpu_custom_call.1} parent=43 // pred_check
              _
            $region46: #{tpu_custom_call.1} parent=43 // pred_check_branch
              %244 = sbr.rel (0) target = $region48
            $region47: #{tpu_custom_call.1} parent=43 // pred_region
              // Predicated region
              $region60: #{tpu_custom_call.1} parent=47 // pred_check
                _
              $region61: #{tpu_custom_call.1} parent=47 // pred_check_branch
                %273 = sbr.rel (0) target = $region63
              $region62: #{tpu_custom_call.1} parent=47 // pred_region
                loop: start=0, step=1, limit=1
                $region64: #{tpu_custom_call.1} parent=62 // loop_pre_header
                  _
                $region65: #{tpu_custom_call.1} parent=62 // loop_header
                  %s275 = sphi 0, %s279
                  %p276 = scmp.ge.s32.totalorder %s275, 1
                  %s280 = sphi %s240, %s240
                  %s281 = sphi %s235, %s235
                $region66: #{tpu_custom_call.1} parent=62 // loop_header_branch
                  %278 = sbr.rel (%p276) target = $region70
                $region67: #{tpu_custom_call.1} parent=62 // loop_body
                  %v282 = vld [vmem:[%s280] sm:$0xff]
                  %283 = vst [vmem:[%s281] sm:$0xff] %v282
                  %v284 = vld [vmem:[%s280 + $0x18] sm:$0xff]
                  %285 = vst [vmem:[%s281 + $0x8] sm:$0xff] %v284
                  %v286 = vld [vmem:[%s280 + $0x30] sm:$0xff]
                  %287 = vst [vmem:[%s281 + $0x10] sm:$0xff] %v286
                  %v288 = vld [vmem:[%s280 + $0x48] sm:$0xff]
                  %289 = vst [vmem:[%s281 + $0x18] sm:$0xff] %v288
                  %v290 = vld [vmem:[%s280 + $0x60] sm:$0xff]
                  %291 = vst [vmem:[%s281 + $0x20] sm:$0xff] %v290
                  %v292 = vld [vmem:[%s280 + $0x78] sm:$0xff]
                  %293 = vst [vmem:[%s281 + $0x28] sm:$0xff] %v292
                  %v294 = vld [vmem:[%s280 + $0x90] sm:$0xff]
                  %295 = vst [vmem:[%s281 + $0x30] sm:$0xff] %v294
                  %v296 = vld [vmem:[%s280 + $0xa8] sm:$0xff]
                  %297 = vst [vmem:[%s281 + $0x38] sm:$0xff] %v296
                $region68: #{tpu_custom_call.1} parent=62 // loop_footer
                  %s279 = sadd.s32 1, %s275
                $region69: #{tpu_custom_call.1} parent=62 // loop_footer_branch
                  %274 = sbr.rel target = $region65
                $region70: #{tpu_custom_call.1} parent=62 // loop_exit
                  _
              $region63: #{tpu_custom_call.1} parent=47 // pred_fallthru
                _
              // Predicated region
              $region71: #{tpu_custom_call.1} parent=47 // pred_check
                _
              $region72: #{tpu_custom_call.1} parent=47 // pred_check_branch
                %299 = sbr.rel target = $region74
              $region73: #{tpu_custom_call.1} parent=47 // pred_region
                _
              $region74: #{tpu_custom_call.1} parent=47 // pred_fallthru
                _
            $region48: #{tpu_custom_call.1} parent=43 // pred_fallthru
              _
            // Predicated region
            $region49: #{tpu_custom_call.1} parent=43 // pred_check
              _
            $region50: #{tpu_custom_call.1} parent=43 // pred_check_branch
              %246 = sbr.rel target = $region52
            $region51: #{tpu_custom_call.1} parent=43 // pred_region
              loop: start=0, step=1, limit=1
              $region53: #{tpu_custom_call.1} parent=51 // loop_pre_header
                _
              $region54: #{tpu_custom_call.1} parent=51 // loop_header
                %s249 = sphi 0, %s253
                %p250 = scmp.ge.s32.totalorder %s249, 1
                %s254 = sphi %s240, %s240
                %s255 = sphi %s235, %s235
              $region55: #{tpu_custom_call.1} parent=51 // loop_header_branch
                %252 = sbr.rel (%p250) target = $region59
              $region56: #{tpu_custom_call.1} parent=51 // loop_body
                %v256 = vld [vmem:[%s254] sm:$0xff]
                %257 = vst [vmem:[%s255] sm:$0xff] %v256
                %v258 = vld [vmem:[%s254 + $0x18] sm:$0xff]
                %259 = vst [vmem:[%s255 + $0x8] sm:$0xff] %v258
                %v260 = vld [vmem:[%s254 + $0x30] sm:$0xff]
                %261 = vst [vmem:[%s255 + $0x10] sm:$0xff] %v260
                %v262 = vld [vmem:[%s254 + $0x48] sm:$0xff]
                %263 = vst [vmem:[%s255 + $0x18] sm:$0xff] %v262
                %v264 = vld [vmem:[%s254 + $0x60] sm:$0xff]
                %265 = vst [vmem:[%s255 + $0x20] sm:$0xff] %v264
                %v266 = vld [vmem:[%s254 + $0x78] sm:$0xff]
                %267 = vst [vmem:[%s255 + $0x28] sm:$0xff] %v266
                %v268 = vld [vmem:[%s254 + $0x90] sm:$0xff]
                %269 = vst [vmem:[%s255 + $0x30] sm:$0xff] %v268
                %v270 = vld [vmem:[%s254 + $0xa8] sm:$0xff]
                %271 = vst [vmem:[%s255 + $0x38] sm:$0xff] %v270
              $region57: #{tpu_custom_call.1} parent=51 // loop_footer
                %s253 = sadd.s32 1, %s249
              $region58: #{tpu_custom_call.1} parent=51 // loop_footer_branch
                %248 = sbr.rel target = $region54
              $region59: #{tpu_custom_call.1} parent=51 // loop_exit
                _
            $region52: #{tpu_custom_call.1} parent=43 // pred_fallthru
              _
          $region44: #{tpu_custom_call.1} parent=39 // pred_fallthru
            _
          %300 = vnop
        $region40: #{tpu_custom_call.1} parent=35 // pred_fallthru
          _
      $region36: #{tpu_custom_call.1} parent=5 // pred_fallthru
        _
      %p301 = scmp.le.s32.totalorder 1, %s14
      %p302 = scmp.lt.s32.totalorder %s14, 4
      %p303 = pnand %p301, %p302
      %p304 = pneg %p303
      // Predicated region
      $region75: #{tpu_custom_call.1} parent=5 // pred_check
        _
      $region76: #{tpu_custom_call.1} parent=5 // pred_check_branch
        %306 = sbr.rel (%p303) target = $region78
      $region77: #{tpu_custom_call.1} parent=5 // pred_region
        %s307 = ssub.s32 %s14, 1
        %s308 = sand.u32 %s41, 1
        %s309 = sand.u32 %s41, 1
        %s310 = smul.addr %s309, 64
        %s311 = scalar_lea.vmem [#allocation5], %s310
        // Predicated region
        $region79: #{tpu_custom_call.1} parent=77 // pred_check
          %p312 = pneg %p54
        $region80: #{tpu_custom_call.1} parent=77 // pred_check_branch
          %314 = sbr.rel (%p312) target = $region82
        $region81: #{tpu_custom_call.1} parent=77 // pred_region
          _
        $region82: #{tpu_custom_call.1} parent=77 // pred_fallthru
          _
        // Predicated region
        $region83: #{tpu_custom_call.1} parent=77 // pred_check
          %p315 = pneg %p96
        $region84: #{tpu_custom_call.1} parent=77 // pred_check_branch
          %317 = sbr.rel (%p315) target = $region86
        $region85: #{tpu_custom_call.1} parent=77 // pred_region
          %318 = dma.done [#allocation7], 8192
        $region86: #{tpu_custom_call.1} parent=77 // pred_fallthru
          _
        %s319 = sand.u32 %s41, 1
        %s320 = sand.u32 %s41, 1
        %s321 = smul.addr %s320, 64
        %s322 = scalar_lea.vmem [#allocation5], %s321
        %p323 = pneg %p54
        %p324 = pneg %p51
        %p325 = pneg %p75
        %p326 = pneg %p72
        %p327 = pneg %p96
        %p328 = pneg %p93
        %p329 = pneg %p117
        %p330 = pneg %p114
        %p331 = pneg %p138
        %p332 = pneg %p135
        %p333 = pneg %p159
        %p334 = pneg %p156
        %p335 = pneg %p185
        %p336 = pneg %p182
        %s337 = smul.u32 8, %s23
        %p338 = scmp.eq.s32.totalorder %s24, 0
        // Predicated region
        $region87: #{tpu_custom_call.1} parent=77 // pred_check
          %p339 = pneg %p338
        $region88: #{tpu_custom_call.1} parent=77 // pred_check_branch
          %341 = sbr.rel (%p339) target = $region90
        $region89: #{tpu_custom_call.1} parent=77 // pred_region
          %342 = vst [vmem:[#allocation2] sm:$0xff] 0.0
          %343 = vst [vmem:[#allocation3] sm:$0xff] 0.0
        $region90: #{tpu_custom_call.1} parent=77 // pred_fallthru
          _
        %v344 = vld [vmem:[%s311] sm:$0xff]
        %v345 = vld [vmem:[%s311 + $0x8] sm:$0xff]
        %v346 = vld [vmem:[%s311 + $0x10] sm:$0xff]
        %v347 = vld [vmem:[%s311 + $0x18] sm:$0xff]
        %v348 = vld [vmem:[%s311 + $0x20] sm:$0xff]
        %v349 = vld [vmem:[%s311 + $0x28] sm:$0xff]
        %v350 = vld [vmem:[%s311 + $0x30] sm:$0xff]
        %v351 = vld [vmem:[%s311 + $0x38] sm:$0xff]
        %v352 = vld [vmem:[%s1] sm:$0xff]
        %v353 = vld [vmem:[%s1 + $0x8] sm:$0xff]
        %v354 = vld [vmem:[%s1 + $0x10] sm:$0xff]
        %v355 = vld [vmem:[%s1 + $0x18] sm:$0xff]
        %v356 = vld [vmem:[%s1 + $0x20] sm:$0xff]
        %v357 = vld [vmem:[%s1 + $0x28] sm:$0xff]
        %v358 = vld [vmem:[%s1 + $0x30] sm:$0xff]
        %v359 = vld [vmem:[%s1 + $0x38] sm:$0xff]
        %v360 = vld [vmem:[%s3] sm:$0xf]
        %v362 = vlaneseq
        %v363 = vshrl.u32 %v362, 7
        %v364 = vsub.s32 0, %v363
        %v365 = vrot.slane %v360, %v364
        %v366 = vlaneseq
        %v367 = vshrl.u32 %v366, 7
        %v368 = vsub.s32 1, %v367
        %v369 = vrot.slane %v360, %v368
        %v370 = vlaneseq
        %v371 = vshrl.u32 %v370, 7
        %v372 = vsub.s32 2, %v371
        %v373 = vrot.slane %v360, %v372
        %v374 = vlaneseq
        %v375 = vshrl.u32 %v374, 7
        %v376 = vsub.s32 3, %v375
        %v377 = vrot.slane %v360, %v376
        %vm382 = vcmask 130048
        %v384 = vsel %vm382, %v344, 0
        %v387 = vsel %vm382, %v345, 0
        %v390 = vsel %vm382, %v346, 0
        %v393 = vsel %vm382, %v347, 0
        %v396 = vsel %vm382, %v348, 0
        %v399 = vsel %vm382, %v349, 0
        %v402 = vsel %vm382, %v350, 0
        %v405 = vsel %vm382, %v351, 0
        %407 = vmatprep.subr.mxu0 %v353
        %408 = vmatpush1.msra.mxu0 %v352
        %409 = vmatprep.subr.mxu0 %v357
        %410 = vmatpush1.msra.mxu0 %v356
        %411 = vmatprep.subr.mxu0 0.0
        %412 = vmatpush1.msra.mxu0 0.0
        %413 = vmatprep.subr.mxu0 0.0
        %414 = vmatpush1.msra.mxu0 0.0
        %415 = vmatprep.subr.mxu0 0.0
        %416 = vmatpush1.msra.mxu0 0.0
        %417 = vmatprep.subr.mxu0 0.0
        %418 = vmatpush1.msra.mxu0 0.0
        %419 = vmatprep.subr.mxu0 0.0
        %420 = vmatpush1.msra.mxu0 0.0
        %421 = vmatprep.subr.mxu0 0.0
        %422 = vmatpush1.msra.mxu0 0.0
        %423 = vmatprep.subr.mxu0 0.0
        %424 = vmatpush1.msra.mxu0 0.0
        %425 = vmatprep.subr.mxu0 0.0
        %426 = vmatpush1.msra.mxu0 0.0
        %427 = vmatprep.subr.mxu0 0.0
        %428 = vmatpush1.msra.mxu0 0.0
        %429 = vmatprep.subr.mxu0 0.0
        %430 = vmatpush1.msra.mxu0 0.0
        %431 = vmatprep.subr.mxu0 0.0
        %432 = vmatpush1.msra.mxu0 0.0
        %433 = vmatprep.subr.mxu0 0.0
        %434 = vmatpush1.msra.mxu0 0.0
        %435 = vmatprep.subr.mxu0 0.0
        %436 = vmatpush1.msra.mxu0 0.0
        %437 = vmatprep.subr.mxu0 0.0
        %438 = vmatpush1.msra.mxu0 0.0
        %439 = vmatprep.subr.mxu0 0.0
        %440 = vmatpush1.msra.mxu0 0.0
        %441 = vmatprep.subr.mxu0 0.0
        %442 = vmatpush1.msra.mxu0 0.0
        %443 = vmatprep.subr.mxu0 0.0
        %444 = vmatpush1.msra.mxu0 0.0
        %445 = vmatprep.subr.mxu0 0.0
        %446 = vmatpush1.msra.mxu0 0.0
        %447 = vmatprep.subr.mxu0 0.0
        %448 = vmatpush1.msra.mxu0 0.0
        %449 = vmatprep.subr.mxu0 0.0
        %450 = vmatpush1.msra.mxu0 0.0
        %451 = vmatprep.subr.mxu0 0.0
        %452 = vmatpush1.msra.mxu0 0.0
        %453 = vmatprep.subr.mxu0 0.0
        %454 = vmatpush1.msra.mxu0 0.0
        %455 = vmatprep.subr.mxu0 0.0
        %456 = vmatpush1.msra.mxu0 0.0
        %457 = vmatprep.subr.mxu0 0.0
        %458 = vmatpush1.msra.mxu0 0.0
        %459 = vmatprep.subr.mxu0 0.0
        %460 = vmatpush1.msra.mxu0 0.0
        %461 = vmatprep.subr.mxu0 0.0
        %462 = vmatpush1.msra.mxu0 0.0
        %463 = vmatprep.subr.mxu0 0.0
        %464 = vmatpush1.msra.mxu0 0.0
        %465 = vmatprep.subr.mxu0 0.0
        %466 = vmatpush1.msra.mxu0 0.0
        %467 = vmatprep.subr.mxu0 0.0
        %468 = vmatpush1.msra.mxu0 0.0
        %469 = vmatprep.subr.mxu0 0.0
        %470 = vmatpush1.msra.mxu0 0.0
        %471 = vmatprep.mubr.f32.mxu0 0.0
        %472 = vmatmul.mubr.f32.gmra.mrb[0].mxu0 %v384
        %v473 = vpop.f32.mrb[0].mxu0
        %v474 = vadd.f32 %v365, %v473
        %v475 = vpop.f32.mrb[0].mxu0
        %v476 = vadd.f32 %v369, %v475
        %477 = vmatprep.mubr.f32.mxu0 0.0
        %478 = vmatmul.mubr.f32.gmra.mrb[0].mxu0 %v387
        %v479 = vpop.f32.mrb[0].mxu0
        %v480 = vadd.f32 %v365, %v479
        %v481 = vpop.f32.mrb[0].mxu0
        %v482 = vadd.f32 %v369, %v481
        %483 = vmatprep.mubr.f32.mxu0 0.0
        %484 = vmatmul.mubr.f32.gmra.mrb[0].mxu0 %v390
        %v485 = vpop.f32.mrb[0].mxu0
        %v486 = vadd.f32 %v365, %v485
        %v487 = vpop.f32.mrb[0].mxu0
        %v488 = vadd.f32 %v369, %v487
        %489 = vmatprep.mubr.f32.mxu0 0.0
        %490 = vmatmul.mubr.f32.gmra.mrb[0].mxu0 %v393
        %v491 = vpop.f32.mrb[0].mxu0
        %v492 = vadd.f32 %v365, %v491
        %v493 = vpop.f32.mrb[0].mxu0
        %v494 = vadd.f32 %v369, %v493
        %495 = vmatprep.mubr.f32.mxu0 0.0
        %496 = vmatmul.mubr.f32.gmra.mrb[0].mxu0 %v396
        %v497 = vpop.f32.mrb[0].mxu0
        %v498 = vadd.f32 %v365, %v497
        %v499 = vpop.f32.mrb[0].mxu0
        %v500 = vadd.f32 %v369, %v499
        %501 = vmatprep.mubr.f32.mxu0 0.0
        %502 = vmatmul.mubr.f32.gmra.mrb[0].mxu0 %v399
        %v503 = vpop.f32.mrb[0].mxu0
        %v504 = vadd.f32 %v365, %v503
        %v505 = vpop.f32.mrb[0].mxu0
        %v506 = vadd.f32 %v369, %v505
        %507 = vmatprep.mubr.f32.mxu0 0.0
        %508 = vmatmul.mubr.f32.gmra.mrb[0].mxu0 %v402
        %v509 = vpop.f32.mrb[0].mxu0
        %v510 = vadd.f32 %v365, %v509
        %v511 = vpop.f32.mrb[0].mxu0
        %v512 = vadd.f32 %v369, %v511
        %513 = vmatprep.mubr.f32.mxu0 0.0
        %514 = vmatmul.mubr.f32.gmra.mrb[0].mxu0 %v405
        %v515 = vpop.f32.mrb[0].mxu0
        %v516 = vadd.f32 %v365, %v515
        %v517 = vpop.f32.mrb[0].mxu0
        %v518 = vadd.f32 %v369, %v517
        %519 = vdwg.mxu0
        %520 = vmatprep.subr.mxu0 %v355
        %521 = vmatpush1.msra.mxu0 %v354
        %522 = vmatprep.subr.mxu0 %v359
        %523 = vmatpush1.msra.mxu0 %v358
        %524 = vmatprep.subr.mxu0 0.0
        %525 = vmatpush1.msra.mxu0 0.0
        %526 = vmatprep.subr.mxu0 0.0
        %527 = vmatpush1.msra.mxu0 0.0
        %528 = vmatprep.subr.mxu0 0.0
        %529 = vmatpush1.msra.mxu0 0.0
        %530 = vmatprep.subr.mxu0 0.0
        %531 = vmatpush1.msra.mxu0 0.0
        %532 = vmatprep.subr.mxu0 0.0
        %533 = vmatpush1.msra.mxu0 0.0
        %534 = vmatprep.subr.mxu0 0.0
        %535 = vmatpush1.msra.mxu0 0.0
        %536 = vmatprep.subr.mxu0 0.0
        %537 = vmatpush1.msra.mxu0 0.0
        %538 = vmatprep.subr.mxu0 0.0
        %539 = vmatpush1.msra.mxu0 0.0
        %540 = vmatprep.subr.mxu0 0.0
        %541 = vmatpush1.msra.mxu0 0.0
        %542 = vmatprep.subr.mxu0 0.0
        %543 = vmatpush1.msra.mxu0 0.0
        %544 = vmatprep.subr.mxu0 0.0
        %545 = vmatpush1.msra.mxu0 0.0
        %546 = vmatprep.subr.mxu0 0.0
        %547 = vmatpush1.msra.mxu0 0.0
        %548 = vmatprep.subr.mxu0 0.0
        %549 = vmatpush1.msra.mxu0 0.0
        %550 = vmatprep.subr.mxu0 0.0
        %551 = vmatpush1.msra.mxu0 0.0
        %552 = vmatprep.subr.mxu0 0.0
        %553 = vmatpush1.msra.mxu0 0.0
        %554 = vmatprep.subr.mxu0 0.0
        %555 = vmatpush1.msra.mxu0 0.0
        %556 = vmatprep.subr.mxu0 0.0
        %557 = vmatpush1.msra.mxu0 0.0
        %558 = vmatprep.subr.mxu0 0.0
        %559 = vmatpush1.msra.mxu0 0.0
        %560 = vmatprep.subr.mxu0 0.0
        %561 = vmatpush1.msra.mxu0 0.0
        %562 = vmatprep.subr.mxu0 0.0
        %563 = vmatpush1.msra.mxu0 0.0
        %564 = vmatprep.subr.mxu0 0.0
        %565 = vmatpush1.msra.mxu0 0.0
        %566 = vmatprep.subr.mxu0 0.0
        %567 = vmatpush1.msra.mxu0 0.0
        %568 = vmatprep.subr.mxu0 0.0
        %569 = vmatpush1.msra.mxu0 0.0
        %570 = vmatprep.subr.mxu0 0.0
        %571 = vmatpush1.msra.mxu0 0.0
        %572 = vmatprep.subr.mxu0 0.0
        %573 = vmatpush1.msra.mxu0 0.0
        %574 = vmatprep.subr.mxu0 0.0
        %575 = vmatpush1.msra.mxu0 0.0
        %576 = vmatprep.subr.mxu0 0.0
        %577 = vmatpush1.msra.mxu0 0.0
        %578 = vmatprep.subr.mxu0 0.0
        %579 = vmatpush1.msra.mxu0 0.0
        %580 = vmatprep.subr.mxu0 0.0
        %581 = vmatpush1.msra.mxu0 0.0
        %582 = vmatprep.subr.mxu0 0.0
        %583 = vmatpush1.msra.mxu0 0.0
        %584 = vmatprep.mubr.f32.mxu0 0.0
        %585 = vmatmul.mubr.f32.gmra.mrb[0].mxu0 %v384
        %v586 = vpop.f32.mrb[0].mxu0
        %v587 = vadd.f32 %v373, %v586
        %v588 = vpop.f32.mrb[0].mxu0
        %v589 = vadd.f32 %v377, %v588
        %590 = vmatprep.mubr.f32.mxu0 0.0
        %591 = vmatmul.mubr.f32.gmra.mrb[0].mxu0 %v387
        %v592 = vpop.f32.mrb[0].mxu0
        %v593 = vadd.f32 %v373, %v592
        %v594 = vpop.f32.mrb[0].mxu0
        %v595 = vadd.f32 %v377, %v594
        %596 = vmatprep.mubr.f32.mxu0 0.0
        %597 = vmatmul.mubr.f32.gmra.mrb[0].mxu0 %v390
        %v598 = vpop.f32.mrb[0].mxu0
        %v599 = vadd.f32 %v373, %v598
        %v600 = vpop.f32.mrb[0].mxu0
        %v601 = vadd.f32 %v377, %v600
        %602 = vmatprep.mubr.f32.mxu0 0.0
        %603 = vmatmul.mubr.f32.gmra.mrb[0].mxu0 %v393
        %v604 = vpop.f32.mrb[0].mxu0
        %v605 = vadd.f32 %v373, %v604
        %v606 = vpop.f32.mrb[0].mxu0
        %v607 = vadd.f32 %v377, %v606
        %608 = vmatprep.mubr.f32.mxu0 0.0
        %609 = vmatmul.mubr.f32.gmra.mrb[0].mxu0 %v396
        %v610 = vpop.f32.mrb[0].mxu0
        %v611 = vadd.f32 %v373, %v610
        %v612 = vpop.f32.mrb[0].mxu0
        %v613 = vadd.f32 %v377, %v612
        %614 = vmatprep.mubr.f32.mxu0 0.0
        %615 = vmatmul.mubr.f32.gmra.mrb[0].mxu0 %v399
        %v616 = vpop.f32.mrb[0].mxu0
        %v617 = vadd.f32 %v373, %v616
        %v618 = vpop.f32.mrb[0].mxu0
        %v619 = vadd.f32 %v377, %v618
        %620 = vmatprep.mubr.f32.mxu0 0.0
        %621 = vmatmul.mubr.f32.gmra.mrb[0].mxu0 %v402
        %v622 = vpop.f32.mrb[0].mxu0
        %v623 = vadd.f32 %v373, %v622
        %v624 = vpop.f32.mrb[0].mxu0
        %v625 = vadd.f32 %v377, %v624
        %626 = vmatprep.mubr.f32.mxu0 0.0
        %627 = vmatmul.mubr.f32.gmra.mrb[0].mxu0 %v405
        %v628 = vpop.f32.mrb[0].mxu0
        %v629 = vadd.f32 %v373, %v628
        %v630 = vpop.f32.mrb[0].mxu0
        %v631 = vadd.f32 %v377, %v630
        %632 = vdwg.mxu0
        %v665 = vrot.slane %v480, 7
        %vm666 = vcmask 1041409
        %v667 = vsel %vm666, %v665, %v474
        %v668 = vrot.slane %v486, 6
        %vm669 = vcmask 1042434
        %v670 = vsel %vm669, %v668, %v667
        %v671 = vrot.slane %v492, 5
        %vm672 = vcmask 1043459
        %v673 = vsel %vm672, %v671, %v670
        %v674 = vrot.slane %v498, 4
        %vm675 = vcmask 1044484
        %v676 = vsel %vm675, %v674, %v673
        %v677 = vrot.slane %v504, 3
        %vm678 = vcmask 1045509
        %v679 = vsel %vm678, %v677, %v676
        %v680 = vrot.slane %v510, 2
        %vm681 = vcmask 1046534
        %v682 = vsel %vm681, %v680, %v679
        %v683 = vrot.slane %v516, 1
        %vm684 = vcmask 1047559
        %v685 = vsel %vm684, %v683, %v682
        %v686 = vrot.slane %v482, 7
        %v687 = vsel %vm666, %v686, %v476
        %v688 = vrot.slane %v488, 6
        %v689 = vsel %vm669, %v688, %v687
        %v690 = vrot.slane %v494, 5
        %v691 = vsel %vm672, %v690, %v689
        %v692 = vrot.slane %v500, 4
        %v693 = vsel %vm675, %v692, %v691
        %v694 = vrot.slane %v506, 3
        %v695 = vsel %vm678, %v694, %v693
        %v696 = vrot.slane %v512, 2
        %v697 = vsel %vm681, %v696, %v695
        %v698 = vrot.slane %v518, 1
        %v699 = vsel %vm684, %v698, %v697
        %v700 = vrot.slane %v593, 7
        %v701 = vsel %vm666, %v700, %v587
        %v702 = vrot.slane %v599, 6
        %v703 = vsel %vm669, %v702, %v701
        %v704 = vrot.slane %v605, 5
        %v705 = vsel %vm672, %v704, %v703
        %v706 = vrot.slane %v611, 4
        %v707 = vsel %vm675, %v706, %v705
        %v708 = vrot.slane %v617, 3
        %v709 = vsel %vm678, %v708, %v707
        %v710 = vrot.slane %v623, 2
        %v711 = vsel %vm681, %v710, %v709
        %v712 = vrot.slane %v629, 1
        %v713 = vsel %vm684, %v712, %v711
        %v714 = vrot.slane %v595, 7
        %v715 = vsel %vm666, %v714, %v589
        %v716 = vrot.slane %v601, 6
        %v717 = vsel %vm669, %v716, %v715
        %v718 = vrot.slane %v607, 5
        %v719 = vsel %vm672, %v718, %v717
        %v720 = vrot.slane %v613, 4
        %v721 = vsel %vm675, %v720, %v719
        %v722 = vrot.slane %v619, 3
        %v723 = vsel %vm678, %v722, %v721
        %v724 = vrot.slane %v625, 2
        %v725 = vsel %vm681, %v724, %v723
        %v726 = vrot.slane %v631, 1
        %v727 = vsel %vm684, %v726, %v725
        %732 = vst [vmem:[#allocation4] sm:$0xff] %v685
        %733 = vst [vmem:[#allocation4 + $0x8] sm:$0xff] %v699
        %734 = vst [vmem:[#allocation4 + $0x10] sm:$0xff] %v713
        %735 = vst [vmem:[#allocation4 + $0x18] sm:$0xff] %v727
        %v736 = vrot.slane %v474, 1
        %v737 = vsel %vm666, %v480, %v736
        %v738 = vrot.slane %v486, 7
        %v739 = vsel %vm669, %v738, %v737
        %v740 = vrot.slane %v492, 6
        %v741 = vsel %vm672, %v740, %v739
        %v742 = vrot.slane %v498, 5
        %v743 = vsel %vm675, %v742, %v741
        %v744 = vrot.slane %v504, 4
        %v745 = vsel %vm678, %v744, %v743
        %v746 = vrot.slane %v510, 3
        %v747 = vsel %vm681, %v746, %v745
        %v748 = vrot.slane %v516, 2
        %v749 = vsel %vm684, %v748, %v747
        %v750 = vrot.slane %v476, 1
        %v751 = vsel %vm666, %v482, %v750
        %v752 = vrot.slane %v488, 7
        %v753 = vsel %vm669, %v752, %v751
        %v754 = vrot.slane %v494, 6
        %v755 = vsel %vm672, %v754, %v753
        %v756 = vrot.slane %v500, 5
        %v757 = vsel %vm675, %v756, %v755
        %v758 = vrot.slane %v506, 4
        %v759 = vsel %vm678, %v758, %v757
        %v760 = vrot.slane %v512, 3
        %v761 = vsel %vm681, %v760, %v759
        %v762 = vrot.slane %v518, 2
        %v763 = vsel %vm684, %v762, %v761
        %v764 = vrot.slane %v587, 1
        %v765 = vsel %vm666, %v593, %v764
        %v766 = vrot.slane %v599, 7
        %v767 = vsel %vm669, %v766, %v765
        %v768 = vrot.slane %v605, 6
        %v769 = vsel %vm672, %v768, %v767
        %v770 = vrot.slane %v611, 5
        %v771 = vsel %vm675, %v770, %v769
        %v772 = vrot.slane %v617, 4
        %v773 = vsel %vm678, %v772, %v771
        %v774 = vrot.slane %v623, 3
        %v775 = vsel %vm681, %v774, %v773
        %v776 = vrot.slane %v629, 2
        %v777 = vsel %vm684, %v776, %v775
        %v778 = vrot.slane %v589, 1
        %v779 = vsel %vm666, %v595, %v778
        %v780 = vrot.slane %v601, 7
        %v781 = vsel %vm669, %v780, %v779
        %v782 = vrot.slane %v607, 6
        %v783 = vsel %vm672, %v782, %v781
        %v784 = vrot.slane %v613, 5
        %v785 = vsel %vm675, %v784, %v783
        %v786 = vrot.slane %v619, 4
        %v787 = vsel %vm678, %v786, %v785
        %v788 = vrot.slane %v625, 3
        %v789 = vsel %vm681, %v788, %v787
        %v790 = vrot.slane %v631, 2
        %v791 = vsel %vm684, %v790, %v789
        %s796 = scalar_lea.vmem [#allocation4], 32
        %797 = vst [vmem:[%s796] sm:$0xff] %v749
        %798 = vst [vmem:[%s796 + $0x8] sm:$0xff] %v763
        %799 = vst [vmem:[%s796 + $0x10] sm:$0xff] %v777
        %800 = vst [vmem:[%s796 + $0x18] sm:$0xff] %v791
        %v801 = vrot.slane %v474, 2
        %v802 = vrot.slane %v480, 1
        %v803 = vsel %vm666, %v802, %v801
        %v804 = vsel %vm669, %v486, %v803
        %v805 = vrot.slane %v492, 7
        %v806 = vsel %vm672, %v805, %v804
        %v807 = vrot.slane %v498, 6
        %v808 = vsel %vm675, %v807, %v806
        %v809 = vrot.slane %v504, 5
        %v810 = vsel %vm678, %v809, %v808
        %v811 = vrot.slane %v510, 4
        %v812 = vsel %vm681, %v811, %v810
        %v813 = vrot.slane %v516, 3
        %v814 = vsel %vm684, %v813, %v812
        %v815 = vrot.slane %v476, 2
        %v816 = vrot.slane %v482, 1
        %v817 = vsel %vm666, %v816, %v815
        %v818 = vsel %vm669, %v488, %v817
        %v819 = vrot.slane %v494, 7
        %v820 = vsel %vm672, %v819, %v818
        %v821 = vrot.slane %v500, 6
        %v822 = vsel %vm675, %v821, %v820
        %v823 = vrot.slane %v506, 5
        %v824 = vsel %vm678, %v823, %v822
        %v825 = vrot.slane %v512, 4
        %v826 = vsel %vm681, %v825, %v824
        %v827 = vrot.slane %v518, 3
        %v828 = vsel %vm684, %v827, %v826
        %v829 = vrot.slane %v587, 2
        %v830 = vrot.slane %v593, 1
        %v831 = vsel %vm666, %v830, %v829
        %v832 = vsel %vm669, %v599, %v831
        %v833 = vrot.slane %v605, 7
        %v834 = vsel %vm672, %v833, %v832
        %v835 = vrot.slane %v611, 6
        %v836 = vsel %vm675, %v835, %v834
        %v837 = vrot.slane %v617, 5
        %v838 = vsel %vm678, %v837, %v836
        %v839 = vrot.slane %v623, 4
        %v840 = vsel %vm681, %v839, %v838
        %v841 = vrot.slane %v629, 3
        %v842 = vsel %vm684, %v841, %v840
        %v843 = vrot.slane %v589, 2
        %v844 = vrot.slane %v595, 1
        %v845 = vsel %vm666, %v844, %v843
        %v846 = vsel %vm669, %v601, %v845
        %v847 = vrot.slane %v607, 7
        %v848 = vsel %vm672, %v847, %v846
        %v849 = vrot.slane %v613, 6
        %v850 = vsel %vm675, %v849, %v848
        %v851 = vrot.slane %v619, 5
        %v852 = vsel %vm678, %v851, %v850
        %v853 = vrot.slane %v625, 4
        %v854 = vsel %vm681, %v853, %v852
        %v855 = vrot.slane %v631, 3
        %v856 = vsel %vm684, %v855, %v854
        %s861 = scalar_lea.vmem [#allocation4], 64
        %862 = vst [vmem:[%s861] sm:$0xff] %v814
        %863 = vst [vmem:[%s861 + $0x8] sm:$0xff] %v828
        %864 = vst [vmem:[%s861 + $0x10] sm:$0xff] %v842
        %865 = vst [vmem:[%s861 + $0x18] sm:$0xff] %v856
        %v866 = vrot.slane %v474, 3
        %v867 = vrot.slane %v480, 2
        %v868 = vsel %vm666, %v867, %v866
        %v869 = vrot.slane %v486, 1
        %v870 = vsel %vm669, %v869, %v868
        %v871 = vsel %vm672, %v492, %v870
        %v872 = vrot.slane %v498, 7
        %v873 = vsel %vm675, %v872, %v871
        %v874 = vrot.slane %v504, 6
        %v875 = vsel %vm678, %v874, %v873
        %v876 = vrot.slane %v510, 5
        %v877 = vsel %vm681, %v876, %v875
        %v878 = vrot.slane %v516, 4
        %v879 = vsel %vm684, %v878, %v877
        %v880 = vrot.slane %v476, 3
        %v881 = vrot.slane %v482, 2
        %v882 = vsel %vm666, %v881, %v880
        %v883 = vrot.slane %v488, 1
        %v884 = vsel %vm669, %v883, %v882
        %v885 = vsel %vm672, %v494, %v884
        %v886 = vrot.slane %v500, 7
        %v887 = vsel %vm675, %v886, %v885
        %v888 = vrot.slane %v506, 6
        %v889 = vsel %vm678, %v888, %v887
        %v890 = vrot.slane %v512, 5
        %v891 = vsel %vm681, %v890, %v889
        %v892 = vrot.slane %v518, 4
        %v893 = vsel %vm684, %v892, %v891
        %v894 = vrot.slane %v587, 3
        %v895 = vrot.slane %v593, 2
        %v896 = vsel %vm666, %v895, %v894
        %v897 = vrot.slane %v599, 1
        %v898 = vsel %vm669, %v897, %v896
        %v899 = vsel %vm672, %v605, %v898
        %v900 = vrot.slane %v611, 7
        %v901 = vsel %vm675, %v900, %v899
        %v902 = vrot.slane %v617, 6
        %v903 = vsel %vm678, %v902, %v901
        %v904 = vrot.slane %v623, 5
        %v905 = vsel %vm681, %v904, %v903
        %v906 = vrot.slane %v629, 4
        %v907 = vsel %vm684, %v906, %v905
        %v908 = vrot.slane %v589, 3
        %v909 = vrot.slane %v595, 2
        %v910 = vsel %vm666, %v909, %v908
        %v911 = vrot.slane %v601, 1
        %v912 = vsel %vm669, %v911, %v910
        %v913 = vsel %vm672, %v607, %v912
        %v914 = vrot.slane %v613, 7
        %v915 = vsel %vm675, %v914, %v913
        %v916 = vrot.slane %v619, 6
        %v917 = vsel %vm678, %v916, %v915
        %v918 = vrot.slane %v625, 5
        %v919 = vsel %vm681, %v918, %v917
        %v920 = vrot.slane %v631, 4
        %v921 = vsel %vm684, %v920, %v919
        %s926 = scalar_lea.vmem [#allocation4], 96
        %927 = vst [vmem:[%s926] sm:$0xff] %v879
        %928 = vst [vmem:[%s926 + $0x8] sm:$0xff] %v893
        %929 = vst [vmem:[%s926 + $0x10] sm:$0xff] %v907
        %930 = vst [vmem:[%s926 + $0x18] sm:$0xff] %v921
        %v931 = vrot.slane %v474, 4
        %v932 = vrot.slane %v480, 3
        %v933 = vsel %vm666, %v932, %v931
        %v934 = vrot.slane %v486, 2
        %v935 = vsel %vm669, %v934, %v933
        %v936 = vrot.slane %v492, 1
        %v937 = vsel %vm672, %v936, %v935
        %v938 = vsel %vm675, %v498, %v937
        %v939 = vrot.slane %v504, 7
        %v940 = vsel %vm678, %v939, %v938
        %v941 = vrot.slane %v510, 6
        %v942 = vsel %vm681, %v941, %v940
        %v943 = vrot.slane %v516, 5
        %v944 = vsel %vm684, %v943, %v942
        %v945 = vrot.slane %v476, 4
        %v946 = vrot.slane %v482, 3
        %v947 = vsel %vm666, %v946, %v945
        %v948 = vrot.slane %v488, 2
        %v949 = vsel %vm669, %v948, %v947
        %v950 = vrot.slane %v494, 1
        %v951 = vsel %vm672, %v950, %v949
        %v952 = vsel %vm675, %v500, %v951
        %v953 = vrot.slane %v506, 7
        %v954 = vsel %vm678, %v953, %v952
        %v955 = vrot.slane %v512, 6
        %v956 = vsel %vm681, %v955, %v954
        %v957 = vrot.slane %v518, 5
        %v958 = vsel %vm684, %v957, %v956
        %v959 = vrot.slane %v587, 4
        %v960 = vrot.slane %v593, 3
        %v961 = vsel %vm666, %v960, %v959
        %v962 = vrot.slane %v599, 2
        %v963 = vsel %vm669, %v962, %v961
        %v964 = vrot.slane %v605, 1
        %v965 = vsel %vm672, %v964, %v963
        %v966 = vsel %vm675, %v611, %v965
        %v967 = vrot.slane %v617, 7
        %v968 = vsel %vm678, %v967, %v966
        %v969 = vrot.slane %v623, 6
        %v970 = vsel %vm681, %v969, %v968
        %v971 = vrot.slane %v629, 5
        %v972 = vsel %vm684, %v971, %v970
        %v973 = vrot.slane %v589, 4
        %v974 = vrot.slane %v595, 3
        %v975 = vsel %vm666, %v974, %v973
        %v976 = vrot.slane %v601, 2
        %v977 = vsel %vm669, %v976, %v975
        %v978 = vrot.slane %v607, 1
        %v979 = vsel %vm672, %v978, %v977
        %v980 = vsel %vm675, %v613, %v979
        %v981 = vrot.slane %v619, 7
        %v982 = vsel %vm678, %v981, %v980
        %v983 = vrot.slane %v625, 6
        %v984 = vsel %vm681, %v983, %v982
        %v985 = vrot.slane %v631, 5
        %v986 = vsel %vm684, %v985, %v984
        %s991 = scalar_lea.vmem [#allocation4], 128
        %992 = vst [vmem:[%s991] sm:$0xff] %v944
        %993 = vst [vmem:[%s991 + $0x8] sm:$0xff] %v958
        %994 = vst [vmem:[%s991 + $0x10] sm:$0xff] %v972
        %995 = vst [vmem:[%s991 + $0x18] sm:$0xff] %v986
        %v996 = vrot.slane %v474, 5
        %v997 = vrot.slane %v480, 4
        %v998 = vsel %vm666, %v997, %v996
        %v999 = vrot.slane %v486, 3
        %v1000 = vsel %vm669, %v999, %v998
        %v1001 = vrot.slane %v492, 2
        %v1002 = vsel %vm672, %v1001, %v1000
        %v1003 = vrot.slane %v498, 1
        %v1004 = vsel %vm675, %v1003, %v1002
        %v1005 = vsel %vm678, %v504, %v1004
        %v1006 = vrot.slane %v510, 7
        %v1007 = vsel %vm681, %v1006, %v1005
        %v1008 = vrot.slane %v516, 6
        %v1009 = vsel %vm684, %v1008, %v1007
        %v1010 = vrot.slane %v476, 5
        %v1011 = vrot.slane %v482, 4
        %v1012 = vsel %vm666, %v1011, %v1010
        %v1013 = vrot.slane %v488, 3
        %v1014 = vsel %vm669, %v1013, %v1012
        %v1015 = vrot.slane %v494, 2
        %v1016 = vsel %vm672, %v1015, %v1014
        %v1017 = vrot.slane %v500, 1
        %v1018 = vsel %vm675, %v1017, %v1016
        %v1019 = vsel %vm678, %v506, %v1018
        %v1020 = vrot.slane %v512, 7
        %v1021 = vsel %vm681, %v1020, %v1019
        %v1022 = vrot.slane %v518, 6
        %v1023 = vsel %vm684, %v1022, %v1021
        %v1024 = vrot.slane %v587, 5
        %v1025 = vrot.slane %v593, 4
        %v1026 = vsel %vm666, %v1025, %v1024
        %v1027 = vrot.slane %v599, 3
        %v1028 = vsel %vm669, %v1027, %v1026
        %v1029 = vrot.slane %v605, 2
        %v1030 = vsel %vm672, %v1029, %v1028
        %v1031 = vrot.slane %v611, 1
        %v1032 = vsel %vm675, %v1031, %v1030
        %v1033 = vsel %vm678, %v617, %v1032
        %v1034 = vrot.slane %v623, 7
        %v1035 = vsel %vm681, %v1034, %v1033
        %v1036 = vrot.slane %v629, 6
        %v1037 = vsel %vm684, %v1036, %v1035
        %v1038 = vrot.slane %v589, 5
        %v1039 = vrot.slane %v595, 4
        %v1040 = vsel %vm666, %v1039, %v1038
        %v1041 = vrot.slane %v601, 3
        %v1042 = vsel %vm669, %v1041, %v1040
        %v1043 = vrot.slane %v607, 2
        %v1044 = vsel %vm672, %v1043, %v1042
        %v1045 = vrot.slane %v613, 1
        %v1046 = vsel %vm675, %v1045, %v1044
        %v1047 = vsel %vm678, %v619, %v1046
        %v1048 = vrot.slane %v625, 7
        %v1049 = vsel %vm681, %v1048, %v1047
        %v1050 = vrot.slane %v631, 6
        %v1051 = vsel %vm684, %v1050, %v1049
        %s1056 = scalar_lea.vmem [#allocation4], 160
        %1057 = vst [vmem:[%s1056] sm:$0xff] %v1009
        %1058 = vst [vmem:[%s1056 + $0x8] sm:$0xff] %v1023
        %1059 = vst [vmem:[%s1056 + $0x10] sm:$0xff] %v1037
        %1060 = vst [vmem:[%s1056 + $0x18] sm:$0xff] %v1051
        %v1061 = vrot.slane %v474, 6
        %v1062 = vrot.slane %v480, 5
        %v1063 = vsel %vm666, %v1062, %v1061
        %v1064 = vrot.slane %v486, 4
        %v1065 = vsel %vm669, %v1064, %v1063
        %v1066 = vrot.slane %v492, 3
        %v1067 = vsel %vm672, %v1066, %v1065
        %v1068 = vrot.slane %v498, 2
        %v1069 = vsel %vm675, %v1068, %v1067
        %v1070 = vrot.slane %v504, 1
        %v1071 = vsel %vm678, %v1070, %v1069
        %v1072 = vsel %vm681, %v510, %v1071
        %v1073 = vrot.slane %v516, 7
        %v1074 = vsel %vm684, %v1073, %v1072
        %v1075 = vrot.slane %v476, 6
        %v1076 = vrot.slane %v482, 5
        %v1077 = vsel %vm666, %v1076, %v1075
        %v1078 = vrot.slane %v488, 4
        %v1079 = vsel %vm669, %v1078, %v1077
        %v1080 = vrot.slane %v494, 3
        %v1081 = vsel %vm672, %v1080, %v1079
        %v1082 = vrot.slane %v500, 2
        %v1083 = vsel %vm675, %v1082, %v1081
        %v1084 = vrot.slane %v506, 1
        %v1085 = vsel %vm678, %v1084, %v1083
        %v1086 = vsel %vm681, %v512, %v1085
        %v1087 = vrot.slane %v518, 7
        %v1088 = vsel %vm684, %v1087, %v1086
        %v1089 = vrot.slane %v587, 6
        %v1090 = vrot.slane %v593, 5
        %v1091 = vsel %vm666, %v1090, %v1089
        %v1092 = vrot.slane %v599, 4
        %v1093 = vsel %vm669, %v1092, %v1091
        %v1094 = vrot.slane %v605, 3
        %v1095 = vsel %vm672, %v1094, %v1093
        %v1096 = vrot.slane %v611, 2
        %v1097 = vsel %vm675, %v1096, %v1095
        %v1098 = vrot.slane %v617, 1
        %v1099 = vsel %vm678, %v1098, %v1097
        %v1100 = vsel %vm681, %v623, %v1099
        %v1101 = vrot.slane %v629, 7
        %v1102 = vsel %vm684, %v1101, %v1100
        %v1103 = vrot.slane %v589, 6
        %v1104 = vrot.slane %v595, 5
        %v1105 = vsel %vm666, %v1104, %v1103
        %v1106 = vrot.slane %v601, 4
        %v1107 = vsel %vm669, %v1106, %v1105
        %v1108 = vrot.slane %v607, 3
        %v1109 = vsel %vm672, %v1108, %v1107
        %v1110 = vrot.slane %v613, 2
        %v1111 = vsel %vm675, %v1110, %v1109
        %v1112 = vrot.slane %v619, 1
        %v1113 = vsel %vm678, %v1112, %v1111
        %v1114 = vsel %vm681, %v625, %v1113
        %v1115 = vrot.slane %v631, 7
        %v1116 = vsel %vm684, %v1115, %v1114
        %s1121 = scalar_lea.vmem [#allocation4], 192
        %1122 = vst [vmem:[%s1121] sm:$0xff] %v1074
        %1123 = vst [vmem:[%s1121 + $0x8] sm:$0xff] %v1088
        %1124 = vst [vmem:[%s1121 + $0x10] sm:$0xff] %v1102
        %1125 = vst [vmem:[%s1121 + $0x18] sm:$0xff] %v1116
        %v1126 = vrot.slane %v474, 7
        %v1127 = vrot.slane %v480, 6
        %v1128 = vsel %vm666, %v1127, %v1126
        %v1129 = vrot.slane %v486, 5
        %v1130 = vsel %vm669, %v1129, %v1128
        %v1131 = vrot.slane %v492, 4
        %v1132 = vsel %vm672, %v1131, %v1130
        %v1133 = vrot.slane %v498, 3
        %v1134 = vsel %vm675, %v1133, %v1132
        %v1135 = vrot.slane %v504, 2
        %v1136 = vsel %vm678, %v1135, %v1134
        %v1137 = vrot.slane %v510, 1
        %v1138 = vsel %vm681, %v1137, %v1136
        %v1139 = vsel %vm684, %v516, %v1138
        %v1140 = vrot.slane %v476, 7
        %v1141 = vrot.slane %v482, 6
        %v1142 = vsel %vm666, %v1141, %v1140
        %v1143 = vrot.slane %v488, 5
        %v1144 = vsel %vm669, %v1143, %v1142
        %v1145 = vrot.slane %v494, 4
        %v1146 = vsel %vm672, %v1145, %v1144
        %v1147 = vrot.slane %v500, 3
        %v1148 = vsel %vm675, %v1147, %v1146
        %v1149 = vrot.slane %v506, 2
        %v1150 = vsel %vm678, %v1149, %v1148
        %v1151 = vrot.slane %v512, 1
        %v1152 = vsel %vm681, %v1151, %v1150
        %v1153 = vsel %vm684, %v518, %v1152
        %v1154 = vrot.slane %v587, 7
        %v1155 = vrot.slane %v593, 6
        %v1156 = vsel %vm666, %v1155, %v1154
        %v1157 = vrot.slane %v599, 5
        %v1158 = vsel %vm669, %v1157, %v1156
        %v1159 = vrot.slane %v605, 4
        %v1160 = vsel %vm672, %v1159, %v1158
        %v1161 = vrot.slane %v611, 3
        %v1162 = vsel %vm675, %v1161, %v1160
        %v1163 = vrot.slane %v617, 2
        %v1164 = vsel %vm678, %v1163, %v1162
        %v1165 = vrot.slane %v623, 1
        %v1166 = vsel %vm681, %v1165, %v1164
        %v1167 = vsel %vm684, %v629, %v1166
        %v1168 = vrot.slane %v589, 7
        %v1169 = vrot.slane %v595, 6
        %v1170 = vsel %vm666, %v1169, %v1168
        %v1171 = vrot.slane %v601, 5
        %v1172 = vsel %vm669, %v1171, %v1170
        %v1173 = vrot.slane %v607, 4
        %v1174 = vsel %vm672, %v1173, %v1172
        %v1175 = vrot.slane %v613, 3
        %v1176 = vsel %vm675, %v1175, %v1174
        %v1177 = vrot.slane %v619, 2
        %v1178 = vsel %vm678, %v1177, %v1176
        %v1179 = vrot.slane %v625, 1
        %v1180 = vsel %vm681, %v1179, %v1178
        %v1181 = vsel %vm684, %v631, %v1180
        %s1186 = scalar_lea.vmem [#allocation4], 224
        %1187 = vst [vmem:[%s1186] sm:$0xff] %v1139
        %1188 = vst [vmem:[%s1186 + $0x8] sm:$0xff] %v1153
        %1189 = vst [vmem:[%s1186 + $0x10] sm:$0xff] %v1167
        %1190 = vst [vmem:[%s1186 + $0x18] sm:$0xff] %v1181
        %v1191 = vlaneseq
        %v1192 = vand.u32 %v1191, 127
        %v1193 = vadd.s32 %v1192, 128
        %v1194 = vadd.s32 %v1192, 256
        %v1195 = vadd.s32 %v1192, 384
        %vm1196 = vcmp.ge.s32.totalorder %v1192, 256
        %vm1197 = vcmp.ge.s32.totalorder %v1193, 256
        %vm1198 = vcmp.ge.s32.totalorder %v1194, 256
        %vm1199 = vcmp.ge.s32.totalorder %v1195, 256
        %vm1200 = vcmp.lt.s32.totalorder %v1192, 384
        %vm1201 = vcmp.lt.s32.totalorder %v1193, 384
        %vm1202 = vcmp.lt.s32.totalorder %v1194, 384
        %vm1203 = vcmp.lt.s32.totalorder %v1195, 384
        %vm1204 = vmand %vm1196, %vm1200
        %vm1205 = vmand %vm1197, %vm1201
        %vm1206 = vmand %vm1198, %vm1202
        %vm1207 = vmand %vm1199, %vm1203
        %v1208 = vsel %vm1204, 1.0, 0.5
        %v1209 = vsel %vm1205, 1.0, 0.5
        %v1210 = vsel %vm1206, 1.0, 0.5
        %v1211 = vsel %vm1207, 1.0, 0.5
        %v1212 = vsel %vm1204, 0.0, 0.5
        %v1213 = vsel %vm1205, 0.0, 0.5
        %v1214 = vsel %vm1206, 0.0, 0.5
        %v1215 = vsel %vm1207, 0.0, 0.5
        %v1216 = vld [vmem:[#allocation6] sm:$0xff]
        %v1217 = vld [vmem:[#allocation6 + $0x8] sm:$0xff]
        %v1218 = vld [vmem:[#allocation6 + $0x10] sm:$0xff]
        %v1219 = vld [vmem:[#allocation6 + $0x18] sm:$0xff]
        %v1220 = vld [vmem:[#allocation6 + $0x20] sm:$0xff]
        %v1221 = vld [vmem:[#allocation6 + $0x28] sm:$0xff]
        %v1222 = vld [vmem:[#allocation6 + $0x30] sm:$0xff]
        %v1223 = vld [vmem:[#allocation6 + $0x38] sm:$0xff]
        %v1224 = vld [vmem:[#allocation6 + $0x40] sm:$0xff]
        %v1225 = vld [vmem:[#allocation6 + $0x48] sm:$0xff]
        %v1226 = vld [vmem:[#allocation6 + $0x50] sm:$0xff]
        %v1227 = vld [vmem:[#allocation6 + $0x58] sm:$0xff]
        %v1228 = vld [vmem:[#allocation6 + $0x60] sm:$0xff]
        %v1229 = vld [vmem:[#allocation6 + $0x68] sm:$0xff]
        %v1230 = vld [vmem:[#allocation6 + $0x70] sm:$0xff]
        %v1231 = vld [vmem:[#allocation6 + $0x78] sm:$0xff]
        %v1232 = vld [vmem:[#allocation6 + $0x80] sm:$0xff]
        %v1233 = vld [vmem:[#allocation6 + $0x88] sm:$0xff]
        %v1234 = vld [vmem:[#allocation6 + $0x90] sm:$0xff]
        %v1235 = vld [vmem:[#allocation6 + $0x98] sm:$0xff]
        %v1236 = vld [vmem:[#allocation6 + $0xa0] sm:$0xff]
        %v1237 = vld [vmem:[#allocation6 + $0xa8] sm:$0xff]
        %v1238 = vld [vmem:[#allocation6 + $0xb0] sm:$0xff]
        %v1239 = vld [vmem:[#allocation6 + $0xb8] sm:$0xff]
        %v1240 = vld [vmem:[#allocation6 + $0xc0] sm:$0xff]
        %v1241 = vld [vmem:[#allocation6 + $0xc8] sm:$0xff]
        %v1242 = vld [vmem:[#allocation6 + $0xd0] sm:$0xff]
        %v1243 = vld [vmem:[#allocation6 + $0xd8] sm:$0xff]
        %v1244 = vld [vmem:[#allocation6 + $0xe0] sm:$0xff]
        %v1245 = vld [vmem:[#allocation6 + $0xe8] sm:$0xff]
        %v1246 = vld [vmem:[#allocation6 + $0xf0] sm:$0xff]
        %v1247 = vld [vmem:[#allocation6 + $0xf8] sm:$0xff]
        %v1248 = vld [vmem:[#allocation6 + $0x100] sm:$0xff]
        %v1249 = vld [vmem:[#allocation6 + $0x108] sm:$0xff]
        %v1250 = vld [vmem:[#allocation6 + $0x110] sm:$0xff]
        %v1251 = vld [vmem:[#allocation6 + $0x118] sm:$0xff]
        %v1252 = vld [vmem:[#allocation6 + $0x120] sm:$0xff]
        %v1253 = vld [vmem:[#allocation6 + $0x128] sm:$0xff]
        %v1254 = vld [vmem:[#allocation6 + $0x130] sm:$0xff]
        %v1255 = vld [vmem:[#allocation6 + $0x138] sm:$0xff]
        %v1256 = vld [vmem:[#allocation6 + $0x140] sm:$0xff]
        %v1257 = vld [vmem:[#allocation6 + $0x148] sm:$0xff]
        %v1258 = vld [vmem:[#allocation6 + $0x150] sm:$0xff]
        %v1259 = vld [vmem:[#allocation6 + $0x158] sm:$0xff]
        %v1260 = vld [vmem:[#allocation6 + $0x160] sm:$0xff]
        %v1261 = vld [vmem:[#allocation6 + $0x168] sm:$0xff]
        %v1262 = vld [vmem:[#allocation6 + $0x170] sm:$0xff]
        %v1263 = vld [vmem:[#allocation6 + $0x178] sm:$0xff]
        %v1264 = vld [vmem:[#allocation6 + $0x180] sm:$0xff]
        %v1265 = vld [vmem:[#allocation6 + $0x188] sm:$0xff]
        %v1266 = vld [vmem:[#allocation6 + $0x190] sm:$0xff]
        %v1267 = vld [vmem:[#allocation6 + $0x198] sm:$0xff]
        %v1268 = vld [vmem:[#allocation6 + $0x1a0] sm:$0xff]
        %v1269 = vld [vmem:[#allocation6 + $0x1a8] sm:$0xff]
        %v1270 = vld [vmem:[#allocation6 + $0x1b0] sm:$0xff]
        %v1271 = vld [vmem:[#allocation6 + $0x1b8] sm:$0xff]
        %v1272 = vld [vmem:[#allocation6 + $0x1c0] sm:$0xff]
        %v1273 = vld [vmem:[#allocation6 + $0x1c8] sm:$0xff]
        %v1274 = vld [vmem:[#allocation6 + $0x1d0] sm:$0xff]
        %v1275 = vld [vmem:[#allocation6 + $0x1d8] sm:$0xff]
        %v1276 = vld [vmem:[#allocation6 + $0x1e0] sm:$0xff]
        %v1277 = vld [vmem:[#allocation6 + $0x1e8] sm:$0xff]
        %v1278 = vld [vmem:[#allocation6 + $0x1f0] sm:$0xff]
        %v1279 = vld [vmem:[#allocation6 + $0x1f8] sm:$0xff]
        %s1280 = smul.u32 %s24, 8
        %v1281 = vld [vmem:[#allocation2] sm:$0xff]
        %v1282 = vld [vmem:[#allocation3] sm:$0xff]
        %v1283 = vld [vmem:[#allocation4] sm:$0xff]
        %v1284 = vld [vmem:[#allocation4 + $0x8] sm:$0xff]
        %v1285 = vld [vmem:[#allocation4 + $0x10] sm:$0xff]
        %v1286 = vld [vmem:[#allocation4 + $0x18] sm:$0xff]
        %1287 = vmatprep.subr.mxu0 %v1217
        %1288 = vmatpush1.msra.mxu0 %v1216
        %1289 = vmatprep.subr.mxu0 %v1221
        %1290 = vmatpush1.msra.mxu0 %v1220
        %1291 = vmatprep.subr.mxu0 %v1225
        %1292 = vmatpush1.msra.mxu0 %v1224
        %1293 = vmatprep.subr.mxu0 %v1229
        %1294 = vmatpush1.msra.mxu0 %v1228
        %1295 = vmatprep.subr.mxu0 %v1233
        %1296 = vmatpush1.msra.mxu0 %v1232
        %1297 = vmatprep.subr.mxu0 %v1237
        %1298 = vmatpush1.msra.mxu0 %v1236
        %1299 = vmatprep.subr.mxu0 %v1241
        %1300 = vmatpush1.msra.mxu0 %v1240
        %1301 = vmatprep.subr.mxu0 %v1245
        %1302 = vmatpush1.msra.mxu0 %v1244
        %1303 = vmatprep.subr.mxu0 %v1249
        %1304 = vmatpush1.msra.mxu0 %v1248
        %1305 = vmatprep.subr.mxu0 %v1253
        %1306 = vmatpush1.msra.mxu0 %v1252
        %1307 = vmatprep.subr.mxu0 %v1257
        %1308 = vmatpush1.msra.mxu0 %v1256
        %1309 = vmatprep.subr.mxu0 %v1261
        %1310 = vmatpush1.msra.mxu0 %v1260
        %1311 = vmatprep.subr.mxu0 %v1265
        %1312 = vmatpush1.msra.mxu0 %v1264
        %1313 = vmatprep.subr.mxu0 %v1269
        %1314 = vmatpush1.msra.mxu0 %v1268
        %1315 = vmatprep.subr.mxu0 %v1273
        %1316 = vmatpush1.msra.mxu0 %v1272
        %1317 = vmatprep.subr.mxu0 %v1277
        %1318 = vmatpush1.msra.mxu0 %v1276
        %1319 = vmatprep.subr.mxu0 0.0
        %1320 = vmatpush1.msra.mxu0 0.0
        %1321 = vmatprep.subr.mxu0 0.0
        %1322 = vmatpush1.msra.mxu0 0.0
        %1323 = vmatprep.subr.mxu0 0.0
        %1324 = vmatpush1.msra.mxu0 0.0
        %1325 = vmatprep.subr.mxu0 0.0
        %1326 = vmatpush1.msra.mxu0 0.0
        %1327 = vmatprep.subr.mxu0 0.0
        %1328 = vmatpush1.msra.mxu0 0.0
        %1329 = vmatprep.subr.mxu0 0.0
        %1330 = vmatpush1.msra.mxu0 0.0
        %1331 = vmatprep.subr.mxu0 0.0
        %1332 = vmatpush1.msra.mxu0 0.0
        %1333 = vmatprep.subr.mxu0 0.0
        %1334 = vmatpush1.msra.mxu0 0.0
        %1335 = vmatprep.subr.mxu0 0.0
        %1336 = vmatpush1.msra.mxu0 0.0
        %1337 = vmatprep.subr.mxu0 0.0
        %1338 = vmatpush1.msra.mxu0 0.0
        %1339 = vmatprep.subr.mxu0 0.0
        %1340 = vmatpush1.msra.mxu0 0.0
        %1341 = vmatprep.subr.mxu0 0.0
        %1342 = vmatpush1.msra.mxu0 0.0
        %1343 = vmatprep.subr.mxu0 0.0
        %1344 = vmatpush1.msra.mxu0 0.0
        %1345 = vmatprep.subr.mxu0 0.0
        %1346 = vmatpush1.msra.mxu0 0.0
        %1347 = vmatprep.subr.mxu0 0.0
        %1348 = vmatpush1.msra.mxu0 0.0
        %1349 = vmatprep.subr.mxu0 0.0
        %1350 = vmatpush1.msra.mxu0 0.0
        %1351 = vmatprep.mubr.f32.mxu0 0.0
        %1352 = vmatmul.mubr.f32.gmra.mrb[0].mxu0 %v1281
        %v1353 = vpop.f32.mrb[0].mxu0
        %v1354 = vadd.f32 0.0, %v1353
        %v1355 = vpop.f32.mrb[0].mxu0
        %v1356 = vadd.f32 0.0, %v1355
        %1357 = vdwg.mxu0
        %1358 = vmatprep.subr.mxu0 %v1219
        %1359 = vmatpush1.msra.mxu0 %v1218
        %1360 = vmatprep.subr.mxu0 %v1223
        %1361 = vmatpush1.msra.mxu0 %v1222
        %1362 = vmatprep.subr.mxu0 %v1227
        %1363 = vmatpush1.msra.mxu0 %v1226
        %1364 = vmatprep.subr.mxu0 %v1231
        %1365 = vmatpush1.msra.mxu0 %v1230
        %1366 = vmatprep.subr.mxu0 %v1235
        %1367 = vmatpush1.msra.mxu0 %v1234
        %1368 = vmatprep.subr.mxu0 %v1239
        %1369 = vmatpush1.msra.mxu0 %v1238
        %1370 = vmatprep.subr.mxu0 %v1243
        %1371 = vmatpush1.msra.mxu0 %v1242
        %1372 = vmatprep.subr.mxu0 %v1247
        %1373 = vmatpush1.msra.mxu0 %v1246
        %1374 = vmatprep.subr.mxu0 %v1251
        %1375 = vmatpush1.msra.mxu0 %v1250
        %1376 = vmatprep.subr.mxu0 %v1255
        %1377 = vmatpush1.msra.mxu0 %v1254
        %1378 = vmatprep.subr.mxu0 %v1259
        %1379 = vmatpush1.msra.mxu0 %v1258
        %1380 = vmatprep.subr.mxu0 %v1263
        %1381 = vmatpush1.msra.mxu0 %v1262
        %1382 = vmatprep.subr.mxu0 %v1267
        %1383 = vmatpush1.msra.mxu0 %v1266
        %1384 = vmatprep.subr.mxu0 %v1271
        %1385 = vmatpush1.msra.mxu0 %v1270
        %1386 = vmatprep.subr.mxu0 %v1275
        %1387 = vmatpush1.msra.mxu0 %v1274
        %1388 = vmatprep.subr.mxu0 %v1279
        %1389 = vmatpush1.msra.mxu0 %v1278
        %1390 = vmatprep.subr.mxu0 0.0
        %1391 = vmatpush1.msra.mxu0 0.0
        %1392 = vmatprep.subr.mxu0 0.0
        %1393 = vmatpush1.msra.mxu0 0.0
        %1394 = vmatprep.subr.mxu0 0.0
        %1395 = vmatpush1.msra.mxu0 0.0
        %1396 = vmatprep.subr.mxu0 0.0
        %1397 = vmatpush1.msra.mxu0 0.0
        %1398 = vmatprep.subr.mxu0 0.0
        %1399 = vmatpush1.msra.mxu0 0.0
        %1400 = vmatprep.subr.mxu0 0.0
        %1401 = vmatpush1.msra.mxu0 0.0
        %1402 = vmatprep.subr.mxu0 0.0
        %1403 = vmatpush1.msra.mxu0 0.0
        %1404 = vmatprep.subr.mxu0 0.0
        %1405 = vmatpush1.msra.mxu0 0.0
        %1406 = vmatprep.subr.mxu0 0.0
        %1407 = vmatpush1.msra.mxu0 0.0
        %1408 = vmatprep.subr.mxu0 0.0
        %1409 = vmatpush1.msra.mxu0 0.0
        %1410 = vmatprep.subr.mxu0 0.0
        %1411 = vmatpush1.msra.mxu0 0.0
        %1412 = vmatprep.subr.mxu0 0.0
        %1413 = vmatpush1.msra.mxu0 0.0
        %1414 = vmatprep.subr.mxu0 0.0
        %1415 = vmatpush1.msra.mxu0 0.0
        %1416 = vmatprep.subr.mxu0 0.0
        %1417 = vmatpush1.msra.mxu0 0.0
        %1418 = vmatprep.subr.mxu0 0.0
        %1419 = vmatpush1.msra.mxu0 0.0
        %1420 = vmatprep.subr.mxu0 0.0
        %1421 = vmatpush1.msra.mxu0 0.0
        %1422 = vmatprep.mubr.f32.mxu0 0.0
        %1423 = vmatmul.mubr.f32.gmra.mrb[0].mxu0 %v1281
        %v1424 = vpop.f32.mrb[0].mxu0
        %v1425 = vadd.f32 0.0, %v1424
        %v1426 = vpop.f32.mrb[0].mxu0
        %v1427 = vadd.f32 0.0, %v1426
        %1428 = vdwg.mxu0
        %v1429 = vadd.f32 %v1283, %v1354
        %v1430 = vadd.f32 %v1284, %v1356
        %v1431 = vadd.f32 %v1285, %v1425
        %v1432 = vadd.f32 %v1286, %v1427
        %v1433 = vmul.f32 %v1429, %v1208
        %v1434 = vmul.f32 %v1430, %v1209
        %v1435 = vmul.f32 %v1431, %v1210
        %v1436 = vmul.f32 %v1432, %v1211
        %v1437 = vtanh.pop %v1433
        %v1438 = vtanh.pop %v1434
        %v1439 = vtanh.pop %v1435
        %v1440 = vtanh.pop %v1436
        %v1441 = vmul.f32 %v1437, %v1208
        %v1442 = vmul.f32 %v1438, %v1209
        %v1443 = vmul.f32 %v1439, %v1210
        %v1444 = vmul.f32 %v1440, %v1211
        %v1445 = vadd.f32 %v1441, %v1212
        %v1446 = vadd.f32 %v1442, %v1213
        %v1447 = vadd.f32 %v1443, %v1214
        %v1448 = vadd.f32 %v1444, %v1215
        %v1449 = vmul.f32 %v1446, %v1282
        %v1450 = vmul.f32 %v1445, %v1447
        %v1451 = vadd.f32 %v1449, %v1450
        %v1452 = vtanh.pop %v1451
        %v1453 = vmul.f32 %v1448, %v1452
        %p1454 = scmp.lt.s32.totalorder %s1280, 20
        %s1455 = scalar_select %p1454, 1, 0
        %v1456 = vstv %s1455
        %vm1457 = vcmp.eq.s32.totalorder %v1456, 1
        %v1458 = vsel %vm1457, %v1453, %v1281
        %v1459 = vsel %vm1457, %v1451, %v1282
        %v1460 = vld [vmem:[%s796] sm:$0xff]
        %v1461 = vld [vmem:[%s796 + $0x8] sm:$0xff]
        %v1462 = vld [vmem:[%s796 + $0x10] sm:$0xff]
        %v1463 = vld [vmem:[%s796 + $0x18] sm:$0xff]
        %1464 = vmatprep.subr.mxu0 %v1217
        %1465 = vmatpush1.msra.mxu0 %v1216
        %1466 = vmatprep.subr.mxu0 %v1221
        %1467 = vmatpush1.msra.mxu0 %v1220
        %1468 = vmatprep.subr.mxu0 %v1225
        %1469 = vmatpush1.msra.mxu0 %v1224
        %1470 = vmatprep.subr.mxu0 %v1229
        %1471 = vmatpush1.msra.mxu0 %v1228
        %1472 = vmatprep.subr.mxu0 %v1233
        %1473 = vmatpush1.msra.mxu0 %v1232
        %1474 = vmatprep.subr.mxu0 %v1237
        %1475 = vmatpush1.msra.mxu0 %v1236
        %1476 = vmatprep.subr.mxu0 %v1241
        %1477 = vmatpush1.msra.mxu0 %v1240
        %1478 = vmatprep.subr.mxu0 %v1245
        %1479 = vmatpush1.msra.mxu0 %v1244
        %1480 = vmatprep.subr.mxu0 %v1249
        %1481 = vmatpush1.msra.mxu0 %v1248
        %1482 = vmatprep.subr.mxu0 %v1253
        %1483 = vmatpush1.msra.mxu0 %v1252
        %1484 = vmatprep.subr.mxu0 %v1257
        %1485 = vmatpush1.msra.mxu0 %v1256
        %1486 = vmatprep.subr.mxu0 %v1261
        %1487 = vmatpush1.msra.mxu0 %v1260
        %1488 = vmatprep.subr.mxu0 %v1265
        %1489 = vmatpush1.msra.mxu0 %v1264
        %1490 = vmatprep.subr.mxu0 %v1269
        %1491 = vmatpush1.msra.mxu0 %v1268
        %1492 = vmatprep.subr.mxu0 %v1273
        %1493 = vmatpush1.msra.mxu0 %v1272
        %1494 = vmatprep.subr.mxu0 %v1277
        %1495 = vmatpush1.msra.mxu0 %v1276
        %1496 = vmatprep.subr.mxu0 0.0
        %1497 = vmatpush1.msra.mxu0 0.0
        %1498 = vmatprep.subr.mxu0 0.0
        %1499 = vmatpush1.msra.mxu0 0.0
        %1500 = vmatprep.subr.mxu0 0.0
        %1501 = vmatpush1.msra.mxu0 0.0
        %1502 = vmatprep.subr.mxu0 0.0
        %1503 = vmatpush1.msra.mxu0 0.0
        %1504 = vmatprep.subr.mxu0 0.0
        %1505 = vmatpush1.msra.mxu0 0.0
        %1506 = vmatprep.subr.mxu0 0.0
        %1507 = vmatpush1.msra.mxu0 0.0
        %1508 = vmatprep.subr.mxu0 0.0
        %1509 = vmatpush1.msra.mxu0 0.0
        %1510 = vmatprep.subr.mxu0 0.0
        %1511 = vmatpush1.msra.mxu0 0.0
        %1512 = vmatprep.subr.mxu0 0.0
        %1513 = vmatpush1.msra.mxu0 0.0
        %1514 = vmatprep.subr.mxu0 0.0
        %1515 = vmatpush1.msra.mxu0 0.0
        %1516 = vmatprep.subr.mxu0 0.0
        %1517 = vmatpush1.msra.mxu0 0.0
        %1518 = vmatprep.subr.mxu0 0.0
        %1519 = vmatpush1.msra.mxu0 0.0
        %1520 = vmatprep.subr.mxu0 0.0
        %1521 = vmatpush1.msra.mxu0 0.0
        %1522 = vmatprep.subr.mxu0 0.0
        %1523 = vmatpush1.msra.mxu0 0.0
        %1524 = vmatprep.subr.mxu0 0.0
        %1525 = vmatpush1.msra.mxu0 0.0
        %1526 = vmatprep.subr.mxu0 0.0
        %1527 = vmatpush1.msra.mxu0 0.0
        %1528 = vmatprep.mubr.f32.mxu0 0.0
        %1529 = vmatmul.mubr.f32.gmra.mrb[0].mxu0 %v1458
        %v1530 = vpop.f32.mrb[0].mxu0
        %v1531 = vadd.f32 0.0, %v1530
        %v1532 = vpop.f32.mrb[0].mxu0
        %v1533 = vadd.f32 0.0, %v1532
        %1534 = vdwg.mxu0
        %1535 = vmatprep.subr.mxu0 %v1219
        %1536 = vmatpush1.msra.mxu0 %v1218
        %1537 = vmatprep.subr.mxu0 %v1223
        %1538 = vmatpush1.msra.mxu0 %v1222
        %1539 = vmatprep.subr.mxu0 %v1227
        %1540 = vmatpush1.msra.mxu0 %v1226
        %1541 = vmatprep.subr.mxu0 %v1231
        %1542 = vmatpush1.msra.mxu0 %v1230
        %1543 = vmatprep.subr.mxu0 %v1235
        %1544 = vmatpush1.msra.mxu0 %v1234
        %1545 = vmatprep.subr.mxu0 %v1239
        %1546 = vmatpush1.msra.mxu0 %v1238
        %1547 = vmatprep.subr.mxu0 %v1243
        %1548 = vmatpush1.msra.mxu0 %v1242
        %1549 = vmatprep.subr.mxu0 %v1247
        %1550 = vmatpush1.msra.mxu0 %v1246
        %1551 = vmatprep.subr.mxu0 %v1251
        %1552 = vmatpush1.msra.mxu0 %v1250
        %1553 = vmatprep.subr.mxu0 %v1255
        %1554 = vmatpush1.msra.mxu0 %v1254
        %1555 = vmatprep.subr.mxu0 %v1259
        %1556 = vmatpush1.msra.mxu0 %v1258
        %1557 = vmatprep.subr.mxu0 %v1263
        %1558 = vmatpush1.msra.mxu0 %v1262
        %1559 = vmatprep.subr.mxu0 %v1267
        %1560 = vmatpush1.msra.mxu0 %v1266
        %1561 = vmatprep.subr.mxu0 %v1271
        %1562 = vmatpush1.msra.mxu0 %v1270
        %1563 = vmatprep.subr.mxu0 %v1275
        %1564 = vmatpush1.msra.mxu0 %v1274
        %1565 = vmatprep.subr.mxu0 %v1279
        %1566 = vmatpush1.msra.mxu0 %v1278
        %1567 = vmatprep.subr.mxu0 0.0
        %1568 = vmatpush1.msra.mxu0 0.0
        %1569 = vmatprep.subr.mxu0 0.0
        %1570 = vmatpush1.msra.mxu0 0.0
        %1571 = vmatprep.subr.mxu0 0.0
        %1572 = vmatpush1.msra.mxu0 0.0
        %1573 = vmatprep.subr.mxu0 0.0
        %1574 = vmatpush1.msra.mxu0 0.0
        %1575 = vmatprep.subr.mxu0 0.0
        %1576 = vmatpush1.msra.mxu0 0.0
        %1577 = vmatprep.subr.mxu0 0.0
        %1578 = vmatpush1.msra.mxu0 0.0
        %1579 = vmatprep.subr.mxu0 0.0
        %1580 = vmatpush1.msra.mxu0 0.0
        %1581 = vmatprep.subr.mxu0 0.0
        %1582 = vmatpush1.msra.mxu0 0.0
        %1583 = vmatprep.subr.mxu0 0.0
        %1584 = vmatpush1.msra.mxu0 0.0
        %1585 = vmatprep.subr.mxu0 0.0
        %1586 = vmatpush1.msra.mxu0 0.0
        %1587 = vmatprep.subr.mxu0 0.0
        %1588 = vmatpush1.msra.mxu0 0.0
        %1589 = vmatprep.subr.mxu0 0.0
        %1590 = vmatpush1.msra.mxu0 0.0
        %1591 = vmatprep.subr.mxu0 0.0
        %1592 = vmatpush1.msra.mxu0 0.0
        %1593 = vmatprep.subr.mxu0 0.0
        %1594 = vmatpush1.msra.mxu0 0.0
        %1595 = vmatprep.subr.mxu0 0.0
        %1596 = vmatpush1.msra.mxu0 0.0
        %1597 = vmatprep.subr.mxu0 0.0
        %1598 = vmatpush1.msra.mxu0 0.0
        %1599 = vmatprep.mubr.f32.mxu0 0.0
        %1600 = vmatmul.mubr.f32.gmra.mrb[0].mxu0 %v1458
        %v1601 = vpop.f32.mrb[0].mxu0
        %v1602 = vadd.f32 0.0, %v1601
        %v1603 = vpop.f32.mrb[0].mxu0
        %v1604 = vadd.f32 0.0, %v1603
        %1605 = vdwg.mxu0
        %v1606 = vadd.f32 %v1460, %v1531
        %v1607 = vadd.f32 %v1461, %v1533
        %v1608 = vadd.f32 %v1462, %v1602
        %v1609 = vadd.f32 %v1463, %v1604
        %v1610 = vmul.f32 %v1606, %v1208
        %v1611 = vmul.f32 %v1607, %v1209
        %v1612 = vmul.f32 %v1608, %v1210
        %v1613 = vmul.f32 %v1609, %v1211
        %v1614 = vtanh.pop %v1610
        %v1615 = vtanh.pop %v1611
        %v1616 = vtanh.pop %v1612
        %v1617 = vtanh.pop %v1613
        %v1618 = vmul.f32 %v1614, %v1208
        %v1619 = vmul.f32 %v1615, %v1209
        %v1620 = vmul.f32 %v1616, %v1210
        %v1621 = vmul.f32 %v1617, %v1211
        %v1622 = vadd.f32 %v1618, %v1212
        %v1623 = vadd.f32 %v1619, %v1213
        %v1624 = vadd.f32 %v1620, %v1214
        %v1625 = vadd.f32 %v1621, %v1215
        %v1626 = vmul.f32 %v1623, %v1459
        %v1627 = vmul.f32 %v1622, %v1624
        %v1628 = vadd.f32 %v1626, %v1627
        %v1629 = vtanh.pop %v1628
        %v1630 = vmul.f32 %v1625, %v1629
        %s1631 = sadd.s32 %s1280, 1
        %p1632 = scmp.lt.s32.totalorder %s1631, 20
        %s1633 = scalar_select %p1632, 1, 0
        %v1634 = vstv %s1633
        %vm1635 = vcmp.eq.s32.totalorder %v1634, 1
        %v1636 = vsel %vm1635, %v1630, %v1458
        %v1637 = vsel %vm1635, %v1628, %v1459
        %v1638 = vld [vmem:[%s861] sm:$0xff]
        %v1639 = vld [vmem:[%s861 + $0x8] sm:$0xff]
        %v1640 = vld [vmem:[%s861 + $0x10] sm:$0xff]
        %v1641 = vld [vmem:[%s861 + $0x18] sm:$0xff]
        %1642 = vmatprep.subr.mxu0 %v1217
        %1643 = vmatpush1.msra.mxu0 %v1216
        %1644 = vmatprep.subr.mxu0 %v1221
        %1645 = vmatpush1.msra.mxu0 %v1220
        %1646 = vmatprep.subr.mxu0 %v1225
        %1647 = vmatpush1.msra.mxu0 %v1224
        %1648 = vmatprep.subr.mxu0 %v1229
        %1649 = vmatpush1.msra.mxu0 %v1228
        %1650 = vmatprep.subr.mxu0 %v1233
        %1651 = vmatpush1.msra.mxu0 %v1232
        %1652 = vmatprep.subr.mxu0 %v1237
        %1653 = vmatpush1.msra.mxu0 %v1236
        %1654 = vmatprep.subr.mxu0 %v1241
        %1655 = vmatpush1.msra.mxu0 %v1240
        %1656 = vmatprep.subr.mxu0 %v1245
        %1657 = vmatpush1.msra.mxu0 %v1244
        %1658 = vmatprep.subr.mxu0 %v1249
        %1659 = vmatpush1.msra.mxu0 %v1248
        %1660 = vmatprep.subr.mxu0 %v1253
        %1661 = vmatpush1.msra.mxu0 %v1252
        %1662 = vmatprep.subr.mxu0 %v1257
        %1663 = vmatpush1.msra.mxu0 %v1256
        %1664 = vmatprep.subr.mxu0 %v1261
        %1665 = vmatpush1.msra.mxu0 %v1260
        %1666 = vmatprep.subr.mxu0 %v1265
        %1667 = vmatpush1.msra.mxu0 %v1264
        %1668 = vmatprep.subr.mxu0 %v1269
        %1669 = vmatpush1.msra.mxu0 %v1268
        %1670 = vmatprep.subr.mxu0 %v1273
        %1671 = vmatpush1.msra.mxu0 %v1272
        %1672 = vmatprep.subr.mxu0 %v1277
        %1673 = vmatpush1.msra.mxu0 %v1276
        %1674 = vmatprep.subr.mxu0 0.0
        %1675 = vmatpush1.msra.mxu0 0.0
        %1676 = vmatprep.subr.mxu0 0.0
        %1677 = vmatpush1.msra.mxu0 0.0
        %1678 = vmatprep.subr.mxu0 0.0
        %1679 = vmatpush1.msra.mxu0 0.0
        %1680 = vmatprep.subr.mxu0 0.0
        %1681 = vmatpush1.msra.mxu0 0.0
        %1682 = vmatprep.subr.mxu0 0.0
        %1683 = vmatpush1.msra.mxu0 0.0
        %1684 = vmatprep.subr.mxu0 0.0
        %1685 = vmatpush1.msra.mxu0 0.0
        %1686 = vmatprep.subr.mxu0 0.0
        %1687 = vmatpush1.msra.mxu0 0.0
        %1688 = vmatprep.subr.mxu0 0.0
        %1689 = vmatpush1.msra.mxu0 0.0
        %1690 = vmatprep.subr.mxu0 0.0
        %1691 = vmatpush1.msra.mxu0 0.0
        %1692 = vmatprep.subr.mxu0 0.0
        %1693 = vmatpush1.msra.mxu0 0.0
        %1694 = vmatprep.subr.mxu0 0.0
        %1695 = vmatpush1.msra.mxu0 0.0
        %1696 = vmatprep.subr.mxu0 0.0
        %1697 = vmatpush1.msra.mxu0 0.0
        %1698 = vmatprep.subr.mxu0 0.0
        %1699 = vmatpush1.msra.mxu0 0.0
        %1700 = vmatprep.subr.mxu0 0.0
        %1701 = vmatpush1.msra.mxu0 0.0
        %1702 = vmatprep.subr.mxu0 0.0
        %1703 = vmatpush1.msra.mxu0 0.0
        %1704 = vmatprep.subr.mxu0 0.0
        %1705 = vmatpush1.msra.mxu0 0.0
        %1706 = vmatprep.mubr.f32.mxu0 0.0
        %1707 = vmatmul.mubr.f32.gmra.mrb[0].mxu0 %v1636
        %v1708 = vpop.f32.mrb[0].mxu0
        %v1709 = vadd.f32 0.0, %v1708
        %v1710 = vpop.f32.mrb[0].mxu0
        %v1711 = vadd.f32 0.0, %v1710
        %1712 = vdwg.mxu0
        %1713 = vmatprep.subr.mxu0 %v1219
        %1714 = vmatpush1.msra.mxu0 %v1218
        %1715 = vmatprep.subr.mxu0 %v1223
        %1716 = vmatpush1.msra.mxu0 %v1222
        %1717 = vmatprep.subr.mxu0 %v1227
        %1718 = vmatpush1.msra.mxu0 %v1226
        %1719 = vmatprep.subr.mxu0 %v1231
        %1720 = vmatpush1.msra.mxu0 %v1230
        %1721 = vmatprep.subr.mxu0 %v1235
        %1722 = vmatpush1.msra.mxu0 %v1234
        %1723 = vmatprep.subr.mxu0 %v1239
        %1724 = vmatpush1.msra.mxu0 %v1238
        %1725 = vmatprep.subr.mxu0 %v1243
        %1726 = vmatpush1.msra.mxu0 %v1242
        %1727 = vmatprep.subr.mxu0 %v1247
        %1728 = vmatpush1.msra.mxu0 %v1246
        %1729 = vmatprep.subr.mxu0 %v1251
        %1730 = vmatpush1.msra.mxu0 %v1250
        %1731 = vmatprep.subr.mxu0 %v1255
        %1732 = vmatpush1.msra.mxu0 %v1254
        %1733 = vmatprep.subr.mxu0 %v1259
        %1734 = vmatpush1.msra.mxu0 %v1258
        %1735 = vmatprep.subr.mxu0 %v1263
        %1736 = vmatpush1.msra.mxu0 %v1262
        %1737 = vmatprep.subr.mxu0 %v1267
        %1738 = vmatpush1.msra.mxu0 %v1266
        %1739 = vmatprep.subr.mxu0 %v1271
        %1740 = vmatpush1.msra.mxu0 %v1270
        %1741 = vmatprep.subr.mxu0 %v1275
        %1742 = vmatpush1.msra.mxu0 %v1274
        %1743 = vmatprep.subr.mxu0 %v1279
        %1744 = vmatpush1.msra.mxu0 %v1278
        %1745 = vmatprep.subr.mxu0 0.0
        %1746 = vmatpush1.msra.mxu0 0.0
        %1747 = vmatprep.subr.mxu0 0.0
        %1748 = vmatpush1.msra.mxu0 0.0
        %1749 = vmatprep.subr.mxu0 0.0
        %1750 = vmatpush1.msra.mxu0 0.0
        %1751 = vmatprep.subr.mxu0 0.0
        %1752 = vmatpush1.msra.mxu0 0.0
        %1753 = vmatprep.subr.mxu0 0.0
        %1754 = vmatpush1.msra.mxu0 0.0
        %1755 = vmatprep.subr.mxu0 0.0
        %1756 = vmatpush1.msra.mxu0 0.0
        %1757 = vmatprep.subr.mxu0 0.0
        %1758 = vmatpush1.msra.mxu0 0.0
        %1759 = vmatprep.subr.mxu0 0.0
        %1760 = vmatpush1.msra.mxu0 0.0
        %1761 = vmatprep.subr.mxu0 0.0
        %1762 = vmatpush1.msra.mxu0 0.0
        %1763 = vmatprep.subr.mxu0 0.0
        %1764 = vmatpush1.msra.mxu0 0.0
        %1765 = vmatprep.subr.mxu0 0.0
        %1766 = vmatpush1.msra.mxu0 0.0
        %1767 = vmatprep.subr.mxu0 0.0
        %1768 = vmatpush1.msra.mxu0 0.0
        %1769 = vmatprep.subr.mxu0 0.0
        %1770 = vmatpush1.msra.mxu0 0.0
        %1771 = vmatprep.subr.mxu0 0.0
        %1772 = vmatpush1.msra.mxu0 0.0
        %1773 = vmatprep.subr.mxu0 0.0
        %1774 = vmatpush1.msra.mxu0 0.0
        %1775 = vmatprep.subr.mxu0 0.0
        %1776 = vmatpush1.msra.mxu0 0.0
        %1777 = vmatprep.mubr.f32.mxu0 0.0
        %1778 = vmatmul.mubr.f32.gmra.mrb[0].mxu0 %v1636
        %v1779 = vpop.f32.mrb[0].mxu0
        %v1780 = vadd.f32 0.0, %v1779
        %v1781 = vpop.f32.mrb[0].mxu0
        %v1782 = vadd.f32 0.0, %v1781
        %1783 = vdwg.mxu0
        %v1784 = vadd.f32 %v1638, %v1709
        %v1785 = vadd.f32 %v1639, %v1711
        %v1786 = vadd.f32 %v1640, %v1780
        %v1787 = vadd.f32 %v1641, %v1782
        %v1788 = vmul.f32 %v1784, %v1208
        %v1789 = vmul.f32 %v1785, %v1209
        %v1790 = vmul.f32 %v1786, %v1210
        %v1791 = vmul.f32 %v1787, %v1211
        %v1792 = vtanh.pop %v1788
        %v1793 = vtanh.pop %v1789
        %v1794 = vtanh.pop %v1790
        %v1795 = vtanh.pop %v1791
        %v1796 = vmul.f32 %v1792, %v1208
        %v1797 = vmul.f32 %v1793, %v1209
        %v1798 = vmul.f32 %v1794, %v1210
        %v1799 = vmul.f32 %v1795, %v1211
        %v1800 = vadd.f32 %v1796, %v1212
        %v1801 = vadd.f32 %v1797, %v1213
        %v1802 = vadd.f32 %v1798, %v1214
        %v1803 = vadd.f32 %v1799, %v1215
        %v1804 = vmul.f32 %v1801, %v1637
        %v1805 = vmul.f32 %v1800, %v1802
        %v1806 = vadd.f32 %v1804, %v1805
        %v1807 = vtanh.pop %v1806
        %v1808 = vmul.f32 %v1803, %v1807
        %s1809 = sadd.s32 %s1280, 2
        %p1810 = scmp.lt.s32.totalorder %s1809, 20
        %s1811 = scalar_select %p1810, 1, 0
        %v1812 = vstv %s1811
        %vm1813 = vcmp.eq.s32.totalorder %v1812, 1
        %v1814 = vsel %vm1813, %v1808, %v1636
        %v1815 = vsel %vm1813, %v1806, %v1637
        %v1816 = vld [vmem:[%s926] sm:$0xff]
        %v1817 = vld [vmem:[%s926 + $0x8] sm:$0xff]
        %v1818 = vld [vmem:[%s926 + $0x10] sm:$0xff]
        %v1819 = vld [vmem:[%s926 + $0x18] sm:$0xff]
        %1820 = vmatprep.subr.mxu0 %v1217
        %1821 = vmatpush1.msra.mxu0 %v1216
        %1822 = vmatprep.subr.mxu0 %v1221
        %1823 = vmatpush1.msra.mxu0 %v1220
        %1824 = vmatprep.subr.mxu0 %v1225
        %1825 = vmatpush1.msra.mxu0 %v1224
        %1826 = vmatprep.subr.mxu0 %v1229
        %1827 = vmatpush1.msra.mxu0 %v1228
        %1828 = vmatprep.subr.mxu0 %v1233
        %1829 = vmatpush1.msra.mxu0 %v1232
        %1830 = vmatprep.subr.mxu0 %v1237
        %1831 = vmatpush1.msra.mxu0 %v1236
        %1832 = vmatprep.subr.mxu0 %v1241
        %1833 = vmatpush1.msra.mxu0 %v1240
        %1834 = vmatprep.subr.mxu0 %v1245
        %1835 = vmatpush1.msra.mxu0 %v1244
        %1836 = vmatprep.subr.mxu0 %v1249
        %1837 = vmatpush1.msra.mxu0 %v1248
        %1838 = vmatprep.subr.mxu0 %v1253
        %1839 = vmatpush1.msra.mxu0 %v1252
        %1840 = vmatprep.subr.mxu0 %v1257
        %1841 = vmatpush1.msra.mxu0 %v1256
        %1842 = vmatprep.subr.mxu0 %v1261
        %1843 = vmatpush1.msra.mxu0 %v1260
        %1844 = vmatprep.subr.mxu0 %v1265
        %1845 = vmatpush1.msra.mxu0 %v1264
        %1846 = vmatprep.subr.mxu0 %v1269
        %1847 = vmatpush1.msra.mxu0 %v1268
        %1848 = vmatprep.subr.mxu0 %v1273
        %1849 = vmatpush1.msra.mxu0 %v1272
        %1850 = vmatprep.subr.mxu0 %v1277
        %1851 = vmatpush1.msra.mxu0 %v1276
        %1852 = vmatprep.subr.mxu0 0.0
        %1853 = vmatpush1.msra.mxu0 0.0
        %1854 = vmatprep.subr.mxu0 0.0
        %1855 = vmatpush1.msra.mxu0 0.0
        %1856 = vmatprep.subr.mxu0 0.0
        %1857 = vmatpush1.msra.mxu0 0.0
        %1858 = vmatprep.subr.mxu0 0.0
        %1859 = vmatpush1.msra.mxu0 0.0
        %1860 = vmatprep.subr.mxu0 0.0
        %1861 = vmatpush1.msra.mxu0 0.0
        %1862 = vmatprep.subr.mxu0 0.0
        %1863 = vmatpush1.msra.mxu0 0.0
        %1864 = vmatprep.subr.mxu0 0.0
        %1865 = vmatpush1.msra.mxu0 0.0
        %1866 = vmatprep.subr.mxu0 0.0
        %1867 = vmatpush1.msra.mxu0 0.0
        %1868 = vmatprep.subr.mxu0 0.0
        %1869 = vmatpush1.msra.mxu0 0.0
        %1870 = vmatprep.subr.mxu0 0.0
        %1871 = vmatpush1.msra.mxu0 0.0
        %1872 = vmatprep.subr.mxu0 0.0
        %1873 = vmatpush1.msra.mxu0 0.0
        %1874 = vmatprep.subr.mxu0 0.0
        %1875 = vmatpush1.msra.mxu0 0.0
        %1876 = vmatprep.subr.mxu0 0.0
        %1877 = vmatpush1.msra.mxu0 0.0
        %1878 = vmatprep.subr.mxu0 0.0
        %1879 = vmatpush1.msra.mxu0 0.0
        %1880 = vmatprep.subr.mxu0 0.0
        %1881 = vmatpush1.msra.mxu0 0.0
        %1882 = vmatprep.subr.mxu0 0.0
        %1883 = vmatpush1.msra.mxu0 0.0
        %1884 = vmatprep.mubr.f32.mxu0 0.0
        %1885 = vmatmul.mubr.f32.gmra.mrb[0].mxu0 %v1814
        %v1886 = vpop.f32.mrb[0].mxu0
        %v1887 = vadd.f32 0.0, %v1886
        %v1888 = vpop.f32.mrb[0].mxu0
        %v1889 = vadd.f32 0.0, %v1888
        %1890 = vdwg.mxu0
        %1891 = vmatprep.subr.mxu0 %v1219
        %1892 = vmatpush1.msra.mxu0 %v1218
        %1893 = vmatprep.subr.mxu0 %v1223
        %1894 = vmatpush1.msra.mxu0 %v1222
        %1895 = vmatprep.subr.mxu0 %v1227
        %1896 = vmatpush1.msra.mxu0 %v1226
        %1897 = vmatprep.subr.mxu0 %v1231
        %1898 = vmatpush1.msra.mxu0 %v1230
        %1899 = vmatprep.subr.mxu0 %v1235
        %1900 = vmatpush1.msra.mxu0 %v1234
        %1901 = vmatprep.subr.mxu0 %v1239
        %1902 = vmatpush1.msra.mxu0 %v1238
        %1903 = vmatprep.subr.mxu0 %v1243
        %1904 = vmatpush1.msra.mxu0 %v1242
        %1905 = vmatprep.subr.mxu0 %v1247
        %1906 = vmatpush1.msra.mxu0 %v1246
        %1907 = vmatprep.subr.mxu0 %v1251
        %1908 = vmatpush1.msra.mxu0 %v1250
        %1909 = vmatprep.subr.mxu0 %v1255
        %1910 = vmatpush1.msra.mxu0 %v1254
        %1911 = vmatprep.subr.mxu0 %v1259
        %1912 = vmatpush1.msra.mxu0 %v1258
        %1913 = vmatprep.subr.mxu0 %v1263
        %1914 = vmatpush1.msra.mxu0 %v1262
        %1915 = vmatprep.subr.mxu0 %v1267
        %1916 = vmatpush1.msra.mxu0 %v1266
        %1917 = vmatprep.subr.mxu0 %v1271
        %1918 = vmatpush1.msra.mxu0 %v1270
        %1919 = vmatprep.subr.mxu0 %v1275
        %1920 = vmatpush1.msra.mxu0 %v1274
        %1921 = vmatprep.subr.mxu0 %v1279
        %1922 = vmatpush1.msra.mxu0 %v1278
        %1923 = vmatprep.subr.mxu0 0.0
        %1924 = vmatpush1.msra.mxu0 0.0
        %1925 = vmatprep.subr.mxu0 0.0
        %1926 = vmatpush1.msra.mxu0 0.0
        %1927 = vmatprep.subr.mxu0 0.0
        %1928 = vmatpush1.msra.mxu0 0.0
        %1929 = vmatprep.subr.mxu0 0.0
        %1930 = vmatpush1.msra.mxu0 0.0
        %1931 = vmatprep.subr.mxu0 0.0
        %1932 = vmatpush1.msra.mxu0 0.0
        %1933 = vmatprep.subr.mxu0 0.0
        %1934 = vmatpush1.msra.mxu0 0.0
        %1935 = vmatprep.subr.mxu0 0.0
        %1936 = vmatpush1.msra.mxu0 0.0
        %1937 = vmatprep.subr.mxu0 0.0
        %1938 = vmatpush1.msra.mxu0 0.0
        %1939 = vmatprep.subr.mxu0 0.0
        %1940 = vmatpush1.msra.mxu0 0.0
        %1941 = vmatprep.subr.mxu0 0.0
        %1942 = vmatpush1.msra.mxu0 0.0
        %1943 = vmatprep.subr.mxu0 0.0
        %1944 = vmatpush1.msra.mxu0 0.0
        %1945 = vmatprep.subr.mxu0 0.0
        %1946 = vmatpush1.msra.mxu0 0.0
        %1947 = vmatprep.subr.mxu0 0.0
        %1948 = vmatpush1.msra.mxu0 0.0
        %1949 = vmatprep.subr.mxu0 0.0
        %1950 = vmatpush1.msra.mxu0 0.0
        %1951 = vmatprep.subr.mxu0 0.0
        %1952 = vmatpush1.msra.mxu0 0.0
        %1953 = vmatprep.subr.mxu0 0.0
        %1954 = vmatpush1.msra.mxu0 0.0
        %1955 = vmatprep.mubr.f32.mxu0 0.0
        %1956 = vmatmul.mubr.f32.gmra.mrb[0].mxu0 %v1814
        %v1957 = vpop.f32.mrb[0].mxu0
        %v1958 = vadd.f32 0.0, %v1957
        %v1959 = vpop.f32.mrb[0].mxu0
        %v1960 = vadd.f32 0.0, %v1959
        %1961 = vdwg.mxu0
        %v1962 = vadd.f32 %v1816, %v1887
        %v1963 = vadd.f32 %v1817, %v1889
        %v1964 = vadd.f32 %v1818, %v1958
        %v1965 = vadd.f32 %v1819, %v1960
        %v1966 = vmul.f32 %v1962, %v1208
        %v1967 = vmul.f32 %v1963, %v1209
        %v1968 = vmul.f32 %v1964, %v1210
        %v1969 = vmul.f32 %v1965, %v1211
        %v1970 = vtanh.pop %v1966
        %v1971 = vtanh.pop %v1967
        %v1972 = vtanh.pop %v1968
        %v1973 = vtanh.pop %v1969
        %v1974 = vmul.f32 %v1970, %v1208
        %v1975 = vmul.f32 %v1971, %v1209
        %v1976 = vmul.f32 %v1972, %v1210
        %v1977 = vmul.f32 %v1973, %v1211
        %v1978 = vadd.f32 %v1974, %v1212
        %v1979 = vadd.f32 %v1975, %v1213
        %v1980 = vadd.f32 %v1976, %v1214
        %v1981 = vadd.f32 %v1977, %v1215
        %v1982 = vmul.f32 %v1979, %v1815
        %v1983 = vmul.f32 %v1978, %v1980
        %v1984 = vadd.f32 %v1982, %v1983
        %v1985 = vtanh.pop %v1984
        %v1986 = vmul.f32 %v1981, %v1985
        %s1987 = sadd.s32 %s1280, 3
        %p1988 = scmp.lt.s32.totalorder %s1987, 20
        %s1989 = scalar_select %p1988, 1, 0
        %v1990 = vstv %s1989
        %vm1991 = vcmp.eq.s32.totalorder %v1990, 1
        %v1992 = vsel %vm1991, %v1986, %v1814
        %v1993 = vsel %vm1991, %v1984, %v1815
        %v1994 = vld [vmem:[%s991] sm:$0xff]
        %v1995 = vld [vmem:[%s991 + $0x8] sm:$0xff]
        %v1996 = vld [vmem:[%s991 + $0x10] sm:$0xff]
        %v1997 = vld [vmem:[%s991 + $0x18] sm:$0xff]
        %1998 = vmatprep.subr.mxu0 %v1217
        %1999 = vmatpush1.msra.mxu0 %v1216
        %2000 = vmatprep.subr.mxu0 %v1221
        %2001 = vmatpush1.msra.mxu0 %v1220
        %2002 = vmatprep.subr.mxu0 %v1225
        %2003 = vmatpush1.msra.mxu0 %v1224
        %2004 = vmatprep.subr.mxu0 %v1229
        %2005 = vmatpush1.msra.mxu0 %v1228
        %2006 = vmatprep.subr.mxu0 %v1233
        %2007 = vmatpush1.msra.mxu0 %v1232
        %2008 = vmatprep.subr.mxu0 %v1237
        %2009 = vmatpush1.msra.mxu0 %v1236
        %2010 = vmatprep.subr.mxu0 %v1241
        %2011 = vmatpush1.msra.mxu0 %v1240
        %2012 = vmatprep.subr.mxu0 %v1245
        %2013 = vmatpush1.msra.mxu0 %v1244
        %2014 = vmatprep.subr.mxu0 %v1249
        %2015 = vmatpush1.msra.mxu0 %v1248
        %2016 = vmatprep.subr.mxu0 %v1253
        %2017 = vmatpush1.msra.mxu0 %v1252
        %2018 = vmatprep.subr.mxu0 %v1257
        %2019 = vmatpush1.msra.mxu0 %v1256
        %2020 = vmatprep.subr.mxu0 %v1261
        %2021 = vmatpush1.msra.mxu0 %v1260
        %2022 = vmatprep.subr.mxu0 %v1265
        %2023 = vmatpush1.msra.mxu0 %v1264
        %2024 = vmatprep.subr.mxu0 %v1269
        %2025 = vmatpush1.msra.mxu0 %v1268
        %2026 = vmatprep.subr.mxu0 %v1273
        %2027 = vmatpush1.msra.mxu0 %v1272
        %2028 = vmatprep.subr.mxu0 %v1277
        %2029 = vmatpush1.msra.mxu0 %v1276
        %2030 = vmatprep.subr.mxu0 0.0
        %2031 = vmatpush1.msra.mxu0 0.0
        %2032 = vmatprep.subr.mxu0 0.0
        %2033 = vmatpush1.msra.mxu0 0.0
        %2034 = vmatprep.subr.mxu0 0.0
        %2035 = vmatpush1.msra.mxu0 0.0
        %2036 = vmatprep.subr.mxu0 0.0
        %2037 = vmatpush1.msra.mxu0 0.0
        %2038 = vmatprep.subr.mxu0 0.0
        %2039 = vmatpush1.msra.mxu0 0.0
        %2040 = vmatprep.subr.mxu0 0.0
        %2041 = vmatpush1.msra.mxu0 0.0
        %2042 = vmatprep.subr.mxu0 0.0
        %2043 = vmatpush1.msra.mxu0 0.0
        %2044 = vmatprep.subr.mxu0 0.0
        %2045 = vmatpush1.msra.mxu0 0.0
        %2046 = vmatprep.subr.mxu0 0.0
        %2047 = vmatpush1.msra.mxu0 0.0
        %2048 = vmatprep.subr.mxu0 0.0
        %2049 = vmatpush1.msra.mxu0 0.0
        %2050 = vmatprep.subr.mxu0 0.0
        %2051 = vmatpush1.msra.mxu0 0.0
        %2052 = vmatprep.subr.mxu0 0.0
        %2053 = vmatpush1.msra.mxu0 0.0
        %2054 = vmatprep.subr.mxu0 0.0
        %2055 = vmatpush1.msra.mxu0 0.0
        %2056 = vmatprep.subr.mxu0 0.0
        %2057 = vmatpush1.msra.mxu0 0.0
        %2058 = vmatprep.subr.mxu0 0.0
        %2059 = vmatpush1.msra.mxu0 0.0
        %2060 = vmatprep.subr.mxu0 0.0
        %2061 = vmatpush1.msra.mxu0 0.0
        %2062 = vmatprep.mubr.f32.mxu0 0.0
        %2063 = vmatmul.mubr.f32.gmra.mrb[0].mxu0 %v1992
        %v2064 = vpop.f32.mrb[0].mxu0
        %v2065 = vadd.f32 0.0, %v2064
        %v2066 = vpop.f32.mrb[0].mxu0
        %v2067 = vadd.f32 0.0, %v2066
        %2068 = vdwg.mxu0
        %2069 = vmatprep.subr.mxu0 %v1219
        %2070 = vmatpush1.msra.mxu0 %v1218
        %2071 = vmatprep.subr.mxu0 %v1223
        %2072 = vmatpush1.msra.mxu0 %v1222
        %2073 = vmatprep.subr.mxu0 %v1227
        %2074 = vmatpush1.msra.mxu0 %v1226
        %2075 = vmatprep.subr.mxu0 %v1231
        %2076 = vmatpush1.msra.mxu0 %v1230
        %2077 = vmatprep.subr.mxu0 %v1235
        %2078 = vmatpush1.msra.mxu0 %v1234
        %2079 = vmatprep.subr.mxu0 %v1239
        %2080 = vmatpush1.msra.mxu0 %v1238
        %2081 = vmatprep.subr.mxu0 %v1243
        %2082 = vmatpush1.msra.mxu0 %v1242
        %2083 = vmatprep.subr.mxu0 %v1247
        %2084 = vmatpush1.msra.mxu0 %v1246
        %2085 = vmatprep.subr.mxu0 %v1251
        %2086 = vmatpush1.msra.mxu0 %v1250
        %2087 = vmatprep.subr.mxu0 %v1255
        %2088 = vmatpush1.msra.mxu0 %v1254
        %2089 = vmatprep.subr.mxu0 %v1259
        %2090 = vmatpush1.msra.mxu0 %v1258
        %2091 = vmatprep.subr.mxu0 %v1263
        %2092 = vmatpush1.msra.mxu0 %v1262
        %2093 = vmatprep.subr.mxu0 %v1267
        %2094 = vmatpush1.msra.mxu0 %v1266
        %2095 = vmatprep.subr.mxu0 %v1271
        %2096 = vmatpush1.msra.mxu0 %v1270
        %2097 = vmatprep.subr.mxu0 %v1275
        %2098 = vmatpush1.msra.mxu0 %v1274
        %2099 = vmatprep.subr.mxu0 %v1279
        %2100 = vmatpush1.msra.mxu0 %v1278
        %2101 = vmatprep.subr.mxu0 0.0
        %2102 = vmatpush1.msra.mxu0 0.0
        %2103 = vmatprep.subr.mxu0 0.0
        %2104 = vmatpush1.msra.mxu0 0.0
        %2105 = vmatprep.subr.mxu0 0.0
        %2106 = vmatpush1.msra.mxu0 0.0
        %2107 = vmatprep.subr.mxu0 0.0
        %2108 = vmatpush1.msra.mxu0 0.0
        %2109 = vmatprep.subr.mxu0 0.0
        %2110 = vmatpush1.msra.mxu0 0.0
        %2111 = vmatprep.subr.mxu0 0.0
        %2112 = vmatpush1.msra.mxu0 0.0
        %2113 = vmatprep.subr.mxu0 0.0
        %2114 = vmatpush1.msra.mxu0 0.0
        %2115 = vmatprep.subr.mxu0 0.0
        %2116 = vmatpush1.msra.mxu0 0.0
        %2117 = vmatprep.subr.mxu0 0.0
        %2118 = vmatpush1.msra.mxu0 0.0
        %2119 = vmatprep.subr.mxu0 0.0
        %2120 = vmatpush1.msra.mxu0 0.0
        %2121 = vmatprep.subr.mxu0 0.0
        %2122 = vmatpush1.msra.mxu0 0.0
        %2123 = vmatprep.subr.mxu0 0.0
        %2124 = vmatpush1.msra.mxu0 0.0
        %2125 = vmatprep.subr.mxu0 0.0
        %2126 = vmatpush1.msra.mxu0 0.0
        %2127 = vmatprep.subr.mxu0 0.0
        %2128 = vmatpush1.msra.mxu0 0.0
        %2129 = vmatprep.subr.mxu0 0.0
        %2130 = vmatpush1.msra.mxu0 0.0
        %2131 = vmatprep.subr.mxu0 0.0
        %2132 = vmatpush1.msra.mxu0 0.0
        %2133 = vmatprep.mubr.f32.mxu0 0.0
        %2134 = vmatmul.mubr.f32.gmra.mrb[0].mxu0 %v1992
        %v2135 = vpop.f32.mrb[0].mxu0
        %v2136 = vadd.f32 0.0, %v2135
        %v2137 = vpop.f32.mrb[0].mxu0
        %v2138 = vadd.f32 0.0, %v2137
        %2139 = vdwg.mxu0
        %v2140 = vadd.f32 %v1994, %v2065
        %v2141 = vadd.f32 %v1995, %v2067
        %v2142 = vadd.f32 %v1996, %v2136
        %v2143 = vadd.f32 %v1997, %v2138
        %v2144 = vmul.f32 %v2140, %v1208
        %v2145 = vmul.f32 %v2141, %v1209
        %v2146 = vmul.f32 %v2142, %v1210
        %v2147 = vmul.f32 %v2143, %v1211
        %v2148 = vtanh.pop %v2144
        %v2149 = vtanh.pop %v2145
        %v2150 = vtanh.pop %v2146
        %v2151 = vtanh.pop %v2147
        %v2152 = vmul.f32 %v2148, %v1208
        %v2153 = vmul.f32 %v2149, %v1209
        %v2154 = vmul.f32 %v2150, %v1210
        %v2155 = vmul.f32 %v2151, %v1211
        %v2156 = vadd.f32 %v2152, %v1212
        %v2157 = vadd.f32 %v2153, %v1213
        %v2158 = vadd.f32 %v2154, %v1214
        %v2159 = vadd.f32 %v2155, %v1215
        %v2160 = vmul.f32 %v2157, %v1993
        %v2161 = vmul.f32 %v2156, %v2158
        %v2162 = vadd.f32 %v2160, %v2161
        %v2163 = vtanh.pop %v2162
        %v2164 = vmul.f32 %v2159, %v2163
        %s2165 = sadd.s32 %s1280, 4
        %p2166 = scmp.lt.s32.totalorder %s2165, 20
        %s2167 = scalar_select %p2166, 1, 0
        %v2168 = vstv %s2167
        %vm2169 = vcmp.eq.s32.totalorder %v2168, 1
        %v2170 = vsel %vm2169, %v2164, %v1992
        %v2171 = vsel %vm2169, %v2162, %v1993
        %v2172 = vld [vmem:[%s1056] sm:$0xff]
        %v2173 = vld [vmem:[%s1056 + $0x8] sm:$0xff]
        %v2174 = vld [vmem:[%s1056 + $0x10] sm:$0xff]
        %v2175 = vld [vmem:[%s1056 + $0x18] sm:$0xff]
        %2176 = vmatprep.subr.mxu0 %v1217
        %2177 = vmatpush1.msra.mxu0 %v1216
        %2178 = vmatprep.subr.mxu0 %v1221
        %2179 = vmatpush1.msra.mxu0 %v1220
        %2180 = vmatprep.subr.mxu0 %v1225
        %2181 = vmatpush1.msra.mxu0 %v1224
        %2182 = vmatprep.subr.mxu0 %v1229
        %2183 = vmatpush1.msra.mxu0 %v1228
        %2184 = vmatprep.subr.mxu0 %v1233
        %2185 = vmatpush1.msra.mxu0 %v1232
        %2186 = vmatprep.subr.mxu0 %v1237
        %2187 = vmatpush1.msra.mxu0 %v1236
        %2188 = vmatprep.subr.mxu0 %v1241
        %2189 = vmatpush1.msra.mxu0 %v1240
        %2190 = vmatprep.subr.mxu0 %v1245
        %2191 = vmatpush1.msra.mxu0 %v1244
        %2192 = vmatprep.subr.mxu0 %v1249
        %2193 = vmatpush1.msra.mxu0 %v1248
        %2194 = vmatprep.subr.mxu0 %v1253
        %2195 = vmatpush1.msra.mxu0 %v1252
        %2196 = vmatprep.subr.mxu0 %v1257
        %2197 = vmatpush1.msra.mxu0 %v1256
        %2198 = vmatprep.subr.mxu0 %v1261
        %2199 = vmatpush1.msra.mxu0 %v1260
        %2200 = vmatprep.subr.mxu0 %v1265
        %2201 = vmatpush1.msra.mxu0 %v1264
        %2202 = vmatprep.subr.mxu0 %v1269
        %2203 = vmatpush1.msra.mxu0 %v1268
        %2204 = vmatprep.subr.mxu0 %v1273
        %2205 = vmatpush1.msra.mxu0 %v1272
        %2206 = vmatprep.subr.mxu0 %v1277
        %2207 = vmatpush1.msra.mxu0 %v1276
        %2208 = vmatprep.subr.mxu0 0.0
        %2209 = vmatpush1.msra.mxu0 0.0
        %2210 = vmatprep.subr.mxu0 0.0
        %2211 = vmatpush1.msra.mxu0 0.0
        %2212 = vmatprep.subr.mxu0 0.0
        %2213 = vmatpush1.msra.mxu0 0.0
        %2214 = vmatprep.subr.mxu0 0.0
        %2215 = vmatpush1.msra.mxu0 0.0
        %2216 = vmatprep.subr.mxu0 0.0
        %2217 = vmatpush1.msra.mxu0 0.0
        %2218 = vmatprep.subr.mxu0 0.0
        %2219 = vmatpush1.msra.mxu0 0.0
        %2220 = vmatprep.subr.mxu0 0.0
        %2221 = vmatpush1.msra.mxu0 0.0
        %2222 = vmatprep.subr.mxu0 0.0
        %2223 = vmatpush1.msra.mxu0 0.0
        %2224 = vmatprep.subr.mxu0 0.0
        %2225 = vmatpush1.msra.mxu0 0.0
        %2226 = vmatprep.subr.mxu0 0.0
        %2227 = vmatpush1.msra.mxu0 0.0
        %2228 = vmatprep.subr.mxu0 0.0
        %2229 = vmatpush1.msra.mxu0 0.0
        %2230 = vmatprep.subr.mxu0 0.0
        %2231 = vmatpush1.msra.mxu0 0.0
        %2232 = vmatprep.subr.mxu0 0.0
        %2233 = vmatpush1.msra.mxu0 0.0
        %2234 = vmatprep.subr.mxu0 0.0
        %2235 = vmatpush1.msra.mxu0 0.0
        %2236 = vmatprep.subr.mxu0 0.0
        %2237 = vmatpush1.msra.mxu0 0.0
        %2238 = vmatprep.subr.mxu0 0.0
        %2239 = vmatpush1.msra.mxu0 0.0
        %2240 = vmatprep.mubr.f32.mxu0 0.0
        %2241 = vmatmul.mubr.f32.gmra.mrb[0].mxu0 %v2170
        %v2242 = vpop.f32.mrb[0].mxu0
        %v2243 = vadd.f32 0.0, %v2242
        %v2244 = vpop.f32.mrb[0].mxu0
        %v2245 = vadd.f32 0.0, %v2244
        %2246 = vdwg.mxu0
        %2247 = vmatprep.subr.mxu0 %v1219
        %2248 = vmatpush1.msra.mxu0 %v1218
        %2249 = vmatprep.subr.mxu0 %v1223
        %2250 = vmatpush1.msra.mxu0 %v1222
        %2251 = vmatprep.subr.mxu0 %v1227
        %2252 = vmatpush1.msra.mxu0 %v1226
        %2253 = vmatprep.subr.mxu0 %v1231
        %2254 = vmatpush1.msra.mxu0 %v1230
        %2255 = vmatprep.subr.mxu0 %v1235
        %2256 = vmatpush1.msra.mxu0 %v1234
        %2257 = vmatprep.subr.mxu0 %v1239
        %2258 = vmatpush1.msra.mxu0 %v1238
        %2259 = vmatprep.subr.mxu0 %v1243
        %2260 = vmatpush1.msra.mxu0 %v1242
        %2261 = vmatprep.subr.mxu0 %v1247
        %2262 = vmatpush1.msra.mxu0 %v1246
        %2263 = vmatprep.subr.mxu0 %v1251
        %2264 = vmatpush1.msra.mxu0 %v1250
        %2265 = vmatprep.subr.mxu0 %v1255
        %2266 = vmatpush1.msra.mxu0 %v1254
        %2267 = vmatprep.subr.mxu0 %v1259
        %2268 = vmatpush1.msra.mxu0 %v1258
        %2269 = vmatprep.subr.mxu0 %v1263
        %2270 = vmatpush1.msra.mxu0 %v1262
        %2271 = vmatprep.subr.mxu0 %v1267
        %2272 = vmatpush1.msra.mxu0 %v1266
        %2273 = vmatprep.subr.mxu0 %v1271
        %2274 = vmatpush1.msra.mxu0 %v1270
        %2275 = vmatprep.subr.mxu0 %v1275
        %2276 = vmatpush1.msra.mxu0 %v1274
        %2277 = vmatprep.subr.mxu0 %v1279
        %2278 = vmatpush1.msra.mxu0 %v1278
        %2279 = vmatprep.subr.mxu0 0.0
        %2280 = vmatpush1.msra.mxu0 0.0
        %2281 = vmatprep.subr.mxu0 0.0
        %2282 = vmatpush1.msra.mxu0 0.0
        %2283 = vmatprep.subr.mxu0 0.0
        %2284 = vmatpush1.msra.mxu0 0.0
        %2285 = vmatprep.subr.mxu0 0.0
        %2286 = vmatpush1.msra.mxu0 0.0
        %2287 = vmatprep.subr.mxu0 0.0
        %2288 = vmatpush1.msra.mxu0 0.0
        %2289 = vmatprep.subr.mxu0 0.0
        %2290 = vmatpush1.msra.mxu0 0.0
        %2291 = vmatprep.subr.mxu0 0.0
        %2292 = vmatpush1.msra.mxu0 0.0
        %2293 = vmatprep.subr.mxu0 0.0
        %2294 = vmatpush1.msra.mxu0 0.0
        %2295 = vmatprep.subr.mxu0 0.0
        %2296 = vmatpush1.msra.mxu0 0.0
        %2297 = vmatprep.subr.mxu0 0.0
        %2298 = vmatpush1.msra.mxu0 0.0
        %2299 = vmatprep.subr.mxu0 0.0
        %2300 = vmatpush1.msra.mxu0 0.0
        %2301 = vmatprep.subr.mxu0 0.0
        %2302 = vmatpush1.msra.mxu0 0.0
        %2303 = vmatprep.subr.mxu0 0.0
        %2304 = vmatpush1.msra.mxu0 0.0
        %2305 = vmatprep.subr.mxu0 0.0
        %2306 = vmatpush1.msra.mxu0 0.0
        %2307 = vmatprep.subr.mxu0 0.0
        %2308 = vmatpush1.msra.mxu0 0.0
        %2309 = vmatprep.subr.mxu0 0.0
        %2310 = vmatpush1.msra.mxu0 0.0
        %2311 = vmatprep.mubr.f32.mxu0 0.0
        %2312 = vmatmul.mubr.f32.gmra.mrb[0].mxu0 %v2170
        %v2313 = vpop.f32.mrb[0].mxu0
        %v2314 = vadd.f32 0.0, %v2313
        %v2315 = vpop.f32.mrb[0].mxu0
        %v2316 = vadd.f32 0.0, %v2315
        %2317 = vdwg.mxu0
        %v2318 = vadd.f32 %v2172, %v2243
        %v2319 = vadd.f32 %v2173, %v2245
        %v2320 = vadd.f32 %v2174, %v2314
        %v2321 = vadd.f32 %v2175, %v2316
        %v2322 = vmul.f32 %v2318, %v1208
        %v2323 = vmul.f32 %v2319, %v1209
        %v2324 = vmul.f32 %v2320, %v1210
        %v2325 = vmul.f32 %v2321, %v1211
        %v2326 = vtanh.pop %v2322
        %v2327 = vtanh.pop %v2323
        %v2328 = vtanh.pop %v2324
        %v2329 = vtanh.pop %v2325
        %v2330 = vmul.f32 %v2326, %v1208
        %v2331 = vmul.f32 %v2327, %v1209
        %v2332 = vmul.f32 %v2328, %v1210
        %v2333 = vmul.f32 %v2329, %v1211
        %v2334 = vadd.f32 %v2330, %v1212
        %v2335 = vadd.f32 %v2331, %v1213
        %v2336 = vadd.f32 %v2332, %v1214
        %v2337 = vadd.f32 %v2333, %v1215
        %v2338 = vmul.f32 %v2335, %v2171
        %v2339 = vmul.f32 %v2334, %v2336
        %v2340 = vadd.f32 %v2338, %v2339
        %v2341 = vtanh.pop %v2340
        %v2342 = vmul.f32 %v2337, %v2341
        %s2343 = sadd.s32 %s1280, 5
        %p2344 = scmp.lt.s32.totalorder %s2343, 20
        %s2345 = scalar_select %p2344, 1, 0
        %v2346 = vstv %s2345
        %vm2347 = vcmp.eq.s32.totalorder %v2346, 1
        %v2348 = vsel %vm2347, %v2342, %v2170
        %v2349 = vsel %vm2347, %v2340, %v2171
        %v2350 = vld [vmem:[%s1121] sm:$0xff]
        %v2351 = vld [vmem:[%s1121 + $0x8] sm:$0xff]
        %v2352 = vld [vmem:[%s1121 + $0x10] sm:$0xff]
        %v2353 = vld [vmem:[%s1121 + $0x18] sm:$0xff]
        %2354 = vmatprep.subr.mxu0 %v1217
        %2355 = vmatpush1.msra.mxu0 %v1216
        %2356 = vmatprep.subr.mxu0 %v1221
        %2357 = vmatpush1.msra.mxu0 %v1220
        %2358 = vmatprep.subr.mxu0 %v1225
        %2359 = vmatpush1.msra.mxu0 %v1224
        %2360 = vmatprep.subr.mxu0 %v1229
        %2361 = vmatpush1.msra.mxu0 %v1228
        %2362 = vmatprep.subr.mxu0 %v1233
        %2363 = vmatpush1.msra.mxu0 %v1232
        %2364 = vmatprep.subr.mxu0 %v1237
        %2365 = vmatpush1.msra.mxu0 %v1236
        %2366 = vmatprep.subr.mxu0 %v1241
        %2367 = vmatpush1.msra.mxu0 %v1240
        %2368 = vmatprep.subr.mxu0 %v1245
        %2369 = vmatpush1.msra.mxu0 %v1244
        %2370 = vmatprep.subr.mxu0 %v1249
        %2371 = vmatpush1.msra.mxu0 %v1248
        %2372 = vmatprep.subr.mxu0 %v1253
        %2373 = vmatpush1.msra.mxu0 %v1252
        %2374 = vmatprep.subr.mxu0 %v1257
        %2375 = vmatpush1.msra.mxu0 %v1256
        %2376 = vmatprep.subr.mxu0 %v1261
        %2377 = vmatpush1.msra.mxu0 %v1260
        %2378 = vmatprep.subr.mxu0 %v1265
        %2379 = vmatpush1.msra.mxu0 %v1264
        %2380 = vmatprep.subr.mxu0 %v1269
        %2381 = vmatpush1.msra.mxu0 %v1268
        %2382 = vmatprep.subr.mxu0 %v1273
        %2383 = vmatpush1.msra.mxu0 %v1272
        %2384 = vmatprep.subr.mxu0 %v1277
        %2385 = vmatpush1.msra.mxu0 %v1276
        %2386 = vmatprep.subr.mxu0 0.0
        %2387 = vmatpush1.msra.mxu0 0.0
        %2388 = vmatprep.subr.mxu0 0.0
        %2389 = vmatpush1.msra.mxu0 0.0
        %2390 = vmatprep.subr.mxu0 0.0
        %2391 = vmatpush1.msra.mxu0 0.0
        %2392 = vmatprep.subr.mxu0 0.0
        %2393 = vmatpush1.msra.mxu0 0.0
        %2394 = vmatprep.subr.mxu0 0.0
        %2395 = vmatpush1.msra.mxu0 0.0
        %2396 = vmatprep.subr.mxu0 0.0
        %2397 = vmatpush1.msra.mxu0 0.0
        %2398 = vmatprep.subr.mxu0 0.0
        %2399 = vmatpush1.msra.mxu0 0.0
        %2400 = vmatprep.subr.mxu0 0.0
        %2401 = vmatpush1.msra.mxu0 0.0
        %2402 = vmatprep.subr.mxu0 0.0
        %2403 = vmatpush1.msra.mxu0 0.0
        %2404 = vmatprep.subr.mxu0 0.0
        %2405 = vmatpush1.msra.mxu0 0.0
        %2406 = vmatprep.subr.mxu0 0.0
        %2407 = vmatpush1.msra.mxu0 0.0
        %2408 = vmatprep.subr.mxu0 0.0
        %2409 = vmatpush1.msra.mxu0 0.0
        %2410 = vmatprep.subr.mxu0 0.0
        %2411 = vmatpush1.msra.mxu0 0.0
        %2412 = vmatprep.subr.mxu0 0.0
        %2413 = vmatpush1.msra.mxu0 0.0
        %2414 = vmatprep.subr.mxu0 0.0
        %2415 = vmatpush1.msra.mxu0 0.0
        %2416 = vmatprep.subr.mxu0 0.0
        %2417 = vmatpush1.msra.mxu0 0.0
        %2418 = vmatprep.mubr.f32.mxu0 0.0
        %2419 = vmatmul.mubr.f32.gmra.mrb[0].mxu0 %v2348
        %v2420 = vpop.f32.mrb[0].mxu0
        %v2421 = vadd.f32 0.0, %v2420
        %v2422 = vpop.f32.mrb[0].mxu0
        %v2423 = vadd.f32 0.0, %v2422
        %2424 = vdwg.mxu0
        %2425 = vmatprep.subr.mxu0 %v1219
        %2426 = vmatpush1.msra.mxu0 %v1218
        %2427 = vmatprep.subr.mxu0 %v1223
        %2428 = vmatpush1.msra.mxu0 %v1222
        %2429 = vmatprep.subr.mxu0 %v1227
        %2430 = vmatpush1.msra.mxu0 %v1226
        %2431 = vmatprep.subr.mxu0 %v1231
        %2432 = vmatpush1.msra.mxu0 %v1230
        %2433 = vmatprep.subr.mxu0 %v1235
        %2434 = vmatpush1.msra.mxu0 %v1234
        %2435 = vmatprep.subr.mxu0 %v1239
        %2436 = vmatpush1.msra.mxu0 %v1238
        %2437 = vmatprep.subr.mxu0 %v1243
        %2438 = vmatpush1.msra.mxu0 %v1242
        %2439 = vmatprep.subr.mxu0 %v1247
        %2440 = vmatpush1.msra.mxu0 %v1246
        %2441 = vmatprep.subr.mxu0 %v1251
        %2442 = vmatpush1.msra.mxu0 %v1250
        %2443 = vmatprep.subr.mxu0 %v1255
        %2444 = vmatpush1.msra.mxu0 %v1254
        %2445 = vmatprep.subr.mxu0 %v1259
        %2446 = vmatpush1.msra.mxu0 %v1258
        %2447 = vmatprep.subr.mxu0 %v1263
        %2448 = vmatpush1.msra.mxu0 %v1262
        %2449 = vmatprep.subr.mxu0 %v1267
        %2450 = vmatpush1.msra.mxu0 %v1266
        %2451 = vmatprep.subr.mxu0 %v1271
        %2452 = vmatpush1.msra.mxu0 %v1270
        %2453 = vmatprep.subr.mxu0 %v1275
        %2454 = vmatpush1.msra.mxu0 %v1274
        %2455 = vmatprep.subr.mxu0 %v1279
        %2456 = vmatpush1.msra.mxu0 %v1278
        %2457 = vmatprep.subr.mxu0 0.0
        %2458 = vmatpush1.msra.mxu0 0.0
        %2459 = vmatprep.subr.mxu0 0.0
        %2460 = vmatpush1.msra.mxu0 0.0
        %2461 = vmatprep.subr.mxu0 0.0
        %2462 = vmatpush1.msra.mxu0 0.0
        %2463 = vmatprep.subr.mxu0 0.0
        %2464 = vmatpush1.msra.mxu0 0.0
        %2465 = vmatprep.subr.mxu0 0.0
        %2466 = vmatpush1.msra.mxu0 0.0
        %2467 = vmatprep.subr.mxu0 0.0
        %2468 = vmatpush1.msra.mxu0 0.0
        %2469 = vmatprep.subr.mxu0 0.0
        %2470 = vmatpush1.msra.mxu0 0.0
        %2471 = vmatprep.subr.mxu0 0.0
        %2472 = vmatpush1.msra.mxu0 0.0
        %2473 = vmatprep.subr.mxu0 0.0
        %2474 = vmatpush1.msra.mxu0 0.0
        %2475 = vmatprep.subr.mxu0 0.0
        %2476 = vmatpush1.msra.mxu0 0.0
        %2477 = vmatprep.subr.mxu0 0.0
        %2478 = vmatpush1.msra.mxu0 0.0
        %2479 = vmatprep.subr.mxu0 0.0
        %2480 = vmatpush1.msra.mxu0 0.0
        %2481 = vmatprep.subr.mxu0 0.0
        %2482 = vmatpush1.msra.mxu0 0.0
        %2483 = vmatprep.subr.mxu0 0.0
        %2484 = vmatpush1.msra.mxu0 0.0
        %2485 = vmatprep.subr.mxu0 0.0
        %2486 = vmatpush1.msra.mxu0 0.0
        %2487 = vmatprep.subr.mxu0 0.0
        %2488 = vmatpush1.msra.mxu0 0.0
        %2489 = vmatprep.mubr.f32.mxu0 0.0
        %2490 = vmatmul.mubr.f32.gmra.mrb[0].mxu0 %v2348
        %v2491 = vpop.f32.mrb[0].mxu0
        %v2492 = vadd.f32 0.0, %v2491
        %v2493 = vpop.f32.mrb[0].mxu0
        %v2494 = vadd.f32 0.0, %v2493
        %2495 = vdwg.mxu0
        %v2496 = vadd.f32 %v2350, %v2421
        %v2497 = vadd.f32 %v2351, %v2423
        %v2498 = vadd.f32 %v2352, %v2492
        %v2499 = vadd.f32 %v2353, %v2494
        %v2500 = vmul.f32 %v2496, %v1208
        %v2501 = vmul.f32 %v2497, %v1209
        %v2502 = vmul.f32 %v2498, %v1210
        %v2503 = vmul.f32 %v2499, %v1211
        %v2504 = vtanh.pop %v2500
        %v2505 = vtanh.pop %v2501
        %v2506 = vtanh.pop %v2502
        %v2507 = vtanh.pop %v2503
        %v2508 = vmul.f32 %v2504, %v1208
        %v2509 = vmul.f32 %v2505, %v1209
        %v2510 = vmul.f32 %v2506, %v1210
        %v2511 = vmul.f32 %v2507, %v1211
        %v2512 = vadd.f32 %v2508, %v1212
        %v2513 = vadd.f32 %v2509, %v1213
        %v2514 = vadd.f32 %v2510, %v1214
        %v2515 = vadd.f32 %v2511, %v1215
        %v2516 = vmul.f32 %v2513, %v2349
        %v2517 = vmul.f32 %v2512, %v2514
        %v2518 = vadd.f32 %v2516, %v2517
        %v2519 = vtanh.pop %v2518
        %v2520 = vmul.f32 %v2515, %v2519
        %s2521 = sadd.s32 %s1280, 6
        %p2522 = scmp.lt.s32.totalorder %s2521, 20
        %s2523 = scalar_select %p2522, 1, 0
        %v2524 = vstv %s2523
        %vm2525 = vcmp.eq.s32.totalorder %v2524, 1
        %v2526 = vsel %vm2525, %v2520, %v2348
        %v2527 = vsel %vm2525, %v2518, %v2349
        %v2528 = vld [vmem:[%s1186] sm:$0xff]
        %v2529 = vld [vmem:[%s1186 + $0x8] sm:$0xff]
        %v2530 = vld [vmem:[%s1186 + $0x10] sm:$0xff]
        %v2531 = vld [vmem:[%s1186 + $0x18] sm:$0xff]
        %2532 = vmatprep.subr.mxu0 %v1217
        %2533 = vmatpush1.msra.mxu0 %v1216
        %2534 = vmatprep.subr.mxu0 %v1221
        %2535 = vmatpush1.msra.mxu0 %v1220
        %2536 = vmatprep.subr.mxu0 %v1225
        %2537 = vmatpush1.msra.mxu0 %v1224
        %2538 = vmatprep.subr.mxu0 %v1229
        %2539 = vmatpush1.msra.mxu0 %v1228
        %2540 = vmatprep.subr.mxu0 %v1233
        %2541 = vmatpush1.msra.mxu0 %v1232
        %2542 = vmatprep.subr.mxu0 %v1237
        %2543 = vmatpush1.msra.mxu0 %v1236
        %2544 = vmatprep.subr.mxu0 %v1241
        %2545 = vmatpush1.msra.mxu0 %v1240
        %2546 = vmatprep.subr.mxu0 %v1245
        %2547 = vmatpush1.msra.mxu0 %v1244
        %2548 = vmatprep.subr.mxu0 %v1249
        %2549 = vmatpush1.msra.mxu0 %v1248
        %2550 = vmatprep.subr.mxu0 %v1253
        %2551 = vmatpush1.msra.mxu0 %v1252
        %2552 = vmatprep.subr.mxu0 %v1257
        %2553 = vmatpush1.msra.mxu0 %v1256
        %2554 = vmatprep.subr.mxu0 %v1261
        %2555 = vmatpush1.msra.mxu0 %v1260
        %2556 = vmatprep.subr.mxu0 %v1265
        %2557 = vmatpush1.msra.mxu0 %v1264
        %2558 = vmatprep.subr.mxu0 %v1269
        %2559 = vmatpush1.msra.mxu0 %v1268
        %2560 = vmatprep.subr.mxu0 %v1273
        %2561 = vmatpush1.msra.mxu0 %v1272
        %2562 = vmatprep.subr.mxu0 %v1277
        %2563 = vmatpush1.msra.mxu0 %v1276
        %2564 = vmatprep.subr.mxu0 0.0
        %2565 = vmatpush1.msra.mxu0 0.0
        %2566 = vmatprep.subr.mxu0 0.0
        %2567 = vmatpush1.msra.mxu0 0.0
        %2568 = vmatprep.subr.mxu0 0.0
        %2569 = vmatpush1.msra.mxu0 0.0
        %2570 = vmatprep.subr.mxu0 0.0
        %2571 = vmatpush1.msra.mxu0 0.0
        %2572 = vmatprep.subr.mxu0 0.0
        %2573 = vmatpush1.msra.mxu0 0.0
        %2574 = vmatprep.subr.mxu0 0.0
        %2575 = vmatpush1.msra.mxu0 0.0
        %2576 = vmatprep.subr.mxu0 0.0
        %2577 = vmatpush1.msra.mxu0 0.0
        %2578 = vmatprep.subr.mxu0 0.0
        %2579 = vmatpush1.msra.mxu0 0.0
        %2580 = vmatprep.subr.mxu0 0.0
        %2581 = vmatpush1.msra.mxu0 0.0
        %2582 = vmatprep.subr.mxu0 0.0
        %2583 = vmatpush1.msra.mxu0 0.0
        %2584 = vmatprep.subr.mxu0 0.0
        %2585 = vmatpush1.msra.mxu0 0.0
        %2586 = vmatprep.subr.mxu0 0.0
        %2587 = vmatpush1.msra.mxu0 0.0
        %2588 = vmatprep.subr.mxu0 0.0
        %2589 = vmatpush1.msra.mxu0 0.0
        %2590 = vmatprep.subr.mxu0 0.0
        %2591 = vmatpush1.msra.mxu0 0.0
        %2592 = vmatprep.subr.mxu0 0.0
        %2593 = vmatpush1.msra.mxu0 0.0
        %2594 = vmatprep.subr.mxu0 0.0
        %2595 = vmatpush1.msra.mxu0 0.0
        %2596 = vmatprep.mubr.f32.mxu0 0.0
        %2597 = vmatmul.mubr.f32.gmra.mrb[0].mxu0 %v2526
        %v2598 = vpop.f32.mrb[0].mxu0
        %v2599 = vadd.f32 0.0, %v2598
        %v2600 = vpop.f32.mrb[0].mxu0
        %v2601 = vadd.f32 0.0, %v2600
        %2602 = vdwg.mxu0
        %2603 = vmatprep.subr.mxu0 %v1219
        %2604 = vmatpush1.msra.mxu0 %v1218
        %2605 = vmatprep.subr.mxu0 %v1223
        %2606 = vmatpush1.msra.mxu0 %v1222
        %2607 = vmatprep.subr.mxu0 %v1227
        %2608 = vmatpush1.msra.mxu0 %v1226
        %2609 = vmatprep.subr.mxu0 %v1231
        %2610 = vmatpush1.msra.mxu0 %v1230
        %2611 = vmatprep.subr.mxu0 %v1235
        %2612 = vmatpush1.msra.mxu0 %v1234
        %2613 = vmatprep.subr.mxu0 %v1239
        %2614 = vmatpush1.msra.mxu0 %v1238
        %2615 = vmatprep.subr.mxu0 %v1243
        %2616 = vmatpush1.msra.mxu0 %v1242
        %2617 = vmatprep.subr.mxu0 %v1247
        %2618 = vmatpush1.msra.mxu0 %v1246
        %2619 = vmatprep.subr.mxu0 %v1251
        %2620 = vmatpush1.msra.mxu0 %v1250
        %2621 = vmatprep.subr.mxu0 %v1255
        %2622 = vmatpush1.msra.mxu0 %v1254
        %2623 = vmatprep.subr.mxu0 %v1259
        %2624 = vmatpush1.msra.mxu0 %v1258
        %2625 = vmatprep.subr.mxu0 %v1263
        %2626 = vmatpush1.msra.mxu0 %v1262
        %2627 = vmatprep.subr.mxu0 %v1267
        %2628 = vmatpush1.msra.mxu0 %v1266
        %2629 = vmatprep.subr.mxu0 %v1271
        %2630 = vmatpush1.msra.mxu0 %v1270
        %2631 = vmatprep.subr.mxu0 %v1275
        %2632 = vmatpush1.msra.mxu0 %v1274
        %2633 = vmatprep.subr.mxu0 %v1279
        %2634 = vmatpush1.msra.mxu0 %v1278
        %2635 = vmatprep.subr.mxu0 0.0
        %2636 = vmatpush1.msra.mxu0 0.0
        %2637 = vmatprep.subr.mxu0 0.0
        %2638 = vmatpush1.msra.mxu0 0.0
        %2639 = vmatprep.subr.mxu0 0.0
        %2640 = vmatpush1.msra.mxu0 0.0
        %2641 = vmatprep.subr.mxu0 0.0
        %2642 = vmatpush1.msra.mxu0 0.0
        %2643 = vmatprep.subr.mxu0 0.0
        %2644 = vmatpush1.msra.mxu0 0.0
        %2645 = vmatprep.subr.mxu0 0.0
        %2646 = vmatpush1.msra.mxu0 0.0
        %2647 = vmatprep.subr.mxu0 0.0
        %2648 = vmatpush1.msra.mxu0 0.0
        %2649 = vmatprep.subr.mxu0 0.0
        %2650 = vmatpush1.msra.mxu0 0.0
        %2651 = vmatprep.subr.mxu0 0.0
        %2652 = vmatpush1.msra.mxu0 0.0
        %2653 = vmatprep.subr.mxu0 0.0
        %2654 = vmatpush1.msra.mxu0 0.0
        %2655 = vmatprep.subr.mxu0 0.0
        %2656 = vmatpush1.msra.mxu0 0.0
        %2657 = vmatprep.subr.mxu0 0.0
        %2658 = vmatpush1.msra.mxu0 0.0
        %2659 = vmatprep.subr.mxu0 0.0
        %2660 = vmatpush1.msra.mxu0 0.0
        %2661 = vmatprep.subr.mxu0 0.0
        %2662 = vmatpush1.msra.mxu0 0.0
        %2663 = vmatprep.subr.mxu0 0.0
        %2664 = vmatpush1.msra.mxu0 0.0
        %2665 = vmatprep.subr.mxu0 0.0
        %2666 = vmatpush1.msra.mxu0 0.0
        %2667 = vmatprep.mubr.f32.mxu0 0.0
        %2668 = vmatmul.mubr.f32.gmra.mrb[0].mxu0 %v2526
        %v2669 = vpop.f32.mrb[0].mxu0
        %v2670 = vadd.f32 0.0, %v2669
        %v2671 = vpop.f32.mrb[0].mxu0
        %v2672 = vadd.f32 0.0, %v2671
        %2673 = vdwg.mxu0
        %v2674 = vadd.f32 %v2528, %v2599
        %v2675 = vadd.f32 %v2529, %v2601
        %v2676 = vadd.f32 %v2530, %v2670
        %v2677 = vadd.f32 %v2531, %v2672
        %v2678 = vmul.f32 %v2674, %v1208
        %v2679 = vmul.f32 %v2675, %v1209
        %v2680 = vmul.f32 %v2676, %v1210
        %v2681 = vmul.f32 %v2677, %v1211
        %v2682 = vtanh.pop %v2678
        %v2683 = vtanh.pop %v2679
        %v2684 = vtanh.pop %v2680
        %v2685 = vtanh.pop %v2681
        %v2686 = vmul.f32 %v2682, %v1208
        %v2687 = vmul.f32 %v2683, %v1209
        %v2688 = vmul.f32 %v2684, %v1210
        %v2689 = vmul.f32 %v2685, %v1211
        %v2690 = vadd.f32 %v2686, %v1212
        %v2691 = vadd.f32 %v2687, %v1213
        %v2692 = vadd.f32 %v2688, %v1214
        %v2693 = vadd.f32 %v2689, %v1215
        %v2694 = vmul.f32 %v2691, %v2527
        %v2695 = vmul.f32 %v2690, %v2692
        %v2696 = vadd.f32 %v2694, %v2695
        %v2697 = vtanh.pop %v2696
        %v2698 = vmul.f32 %v2693, %v2697
        %s2699 = sadd.s32 %s1280, 7
        %p2700 = scmp.lt.s32.totalorder %s2699, 20
        %s2701 = scalar_select %p2700, 1, 0
        %v2702 = vstv %s2701
        %vm2703 = vcmp.eq.s32.totalorder %v2702, 1
        %v2704 = vsel %vm2703, %v2698, %v2526
        %v2705 = vsel %vm2703, %v2696, %v2527
        %2706 = vst [vmem:[#allocation2] sm:$0xff] %v2704
        %2707 = vst [vmem:[#allocation3] sm:$0xff] %v2705
        %p2708 = scmp.eq.s32.totalorder %s24, 2
        // Predicated region
        $region91: #{tpu_custom_call.1} parent=77 // pred_check
          %p2709 = pneg %p2708
        $region92: #{tpu_custom_call.1} parent=77 // pred_check_branch
          %2711 = sbr.rel (%p2709) target = $region94
        $region93: #{tpu_custom_call.1} parent=77 // pred_region
          %v2712 = vld [vmem:[%s4] sm:$0xff]
          %v2713 = vld [vmem:[%s4 + $0x8] sm:$0xff]
          %v2714 = vld [vmem:[%s4 + $0x10] sm:$0xff]
          %v2715 = vld [vmem:[%s4 + $0x18] sm:$0xff]
          %v2716 = vld [vmem:[%s4 + $0x20] sm:$0xff]
          %v2717 = vld [vmem:[%s4 + $0x28] sm:$0xff]
          %v2718 = vld [vmem:[%s4 + $0x30] sm:$0xff]
          %v2719 = vld [vmem:[%s4 + $0x38] sm:$0xff]
          %v2720 = vld [vmem:[%s4 + $0x40] sm:$0xff]
          %v2721 = vld [vmem:[%s4 + $0x48] sm:$0xff]
          %v2722 = vld [vmem:[%s4 + $0x50] sm:$0xff]
          %v2723 = vld [vmem:[%s4 + $0x58] sm:$0xff]
          %v2724 = vld [vmem:[%s4 + $0x60] sm:$0xff]
          %v2725 = vld [vmem:[%s4 + $0x68] sm:$0xff]
          %v2726 = vld [vmem:[%s4 + $0x70] sm:$0xff]
          %v2727 = vld [vmem:[%s4 + $0x78] sm:$0xff]
          %v2728 = vld [vmem:[%s5] sm:$0x1]
          %v2730 = vlaneseq
          %v2731 = vshrl.u32 %v2730, 7
          %v2732 = vsub.s32 0, %v2731
          %v2733 = vrot.slane %v2728, %v2732
          %2735 = vmatprep.subr.mxu0 0.0
          %2736 = vmatpush1.msra.mxu0 %v2712
          %2737 = vmatprep.subr.mxu0 0.0
          %2738 = vmatpush1.msra.mxu0 %v2713
          %2739 = vmatprep.subr.mxu0 0.0
          %2740 = vmatpush1.msra.mxu0 %v2714
          %2741 = vmatprep.subr.mxu0 0.0
          %2742 = vmatpush1.msra.mxu0 %v2715
          %2743 = vmatprep.subr.mxu0 0.0
          %2744 = vmatpush1.msra.mxu0 %v2716
          %2745 = vmatprep.subr.mxu0 0.0
          %2746 = vmatpush1.msra.mxu0 %v2717
          %2747 = vmatprep.subr.mxu0 0.0
          %2748 = vmatpush1.msra.mxu0 %v2718
          %2749 = vmatprep.subr.mxu0 0.0
          %2750 = vmatpush1.msra.mxu0 %v2719
          %2751 = vmatprep.subr.mxu0 0.0
          %2752 = vmatpush1.msra.mxu0 %v2720
          %2753 = vmatprep.subr.mxu0 0.0
          %2754 = vmatpush1.msra.mxu0 %v2721
          %2755 = vmatprep.subr.mxu0 0.0
          %2756 = vmatpush1.msra.mxu0 %v2722
          %2757 = vmatprep.subr.mxu0 0.0
          %2758 = vmatpush1.msra.mxu0 %v2723
          %2759 = vmatprep.subr.mxu0 0.0
          %2760 = vmatpush1.msra.mxu0 %v2724
          %2761 = vmatprep.subr.mxu0 0.0
          %2762 = vmatpush1.msra.mxu0 %v2725
          %2763 = vmatprep.subr.mxu0 0.0
          %2764 = vmatpush1.msra.mxu0 %v2726
          %2765 = vmatprep.subr.mxu0 0.0
          %2766 = vmatpush1.msra.mxu0 %v2727
          %2767 = vmatprep.subr.mxu0 0.0
          %2768 = vmatpush1.msra.mxu0 0.0
          %2769 = vmatprep.subr.mxu0 0.0
          %2770 = vmatpush1.msra.mxu0 0.0
          %2771 = vmatprep.subr.mxu0 0.0
          %2772 = vmatpush1.msra.mxu0 0.0
          %2773 = vmatprep.subr.mxu0 0.0
          %2774 = vmatpush1.msra.mxu0 0.0
          %2775 = vmatprep.subr.mxu0 0.0
          %2776 = vmatpush1.msra.mxu0 0.0
          %2777 = vmatprep.subr.mxu0 0.0
          %2778 = vmatpush1.msra.mxu0 0.0
          %2779 = vmatprep.subr.mxu0 0.0
          %2780 = vmatpush1.msra.mxu0 0.0
          %2781 = vmatprep.subr.mxu0 0.0
          %2782 = vmatpush1.msra.mxu0 0.0
          %2783 = vmatprep.subr.mxu0 0.0
          %2784 = vmatpush1.msra.mxu0 0.0
          %2785 = vmatprep.subr.mxu0 0.0
          %2786 = vmatpush1.msra.mxu0 0.0
          %2787 = vmatprep.subr.mxu0 0.0
          %2788 = vmatpush1.msra.mxu0 0.0
          %2789 = vmatprep.subr.mxu0 0.0
          %2790 = vmatpush1.msra.mxu0 0.0
          %2791 = vmatprep.subr.mxu0 0.0
          %2792 = vmatpush1.msra.mxu0 0.0
          %2793 = vmatprep.subr.mxu0 0.0
          %2794 = vmatpush1.msra.mxu0 0.0
          %2795 = vmatprep.subr.mxu0 0.0
          %2796 = vmatpush1.msra.mxu0 0.0
          %2797 = vmatprep.subr.mxu0 0.0
          %2798 = vmatpush1.msra.mxu0 0.0
          %2799 = vmatprep.mubr.f32.mxu0 0.0
          %2800 = vmatmul.mubr.f32.gmra.mrb[0].mxu0 %v2704
          %v2801 = vpop.f32.mrb[0].mxu0
          %v2802 = vadd.f32 %v2733, %v2801
          %v2803 = vpop.f32.mrb[0].mxu0
          %2804 = vdwg.mxu0
          %2805 = vst [vmem:[#allocation9] sm:$0xff] %v2802
        $region94: #{tpu_custom_call.1} parent=77 // pred_fallthru
          _
        // Predicated region
        $region95: #{tpu_custom_call.1} parent=77 // pred_check
          %p2806 = pneg %p182
        $region96: #{tpu_custom_call.1} parent=77 // pred_check_branch
          %2808 = sbr.rel (%p2806) target = $region98
        $region97: #{tpu_custom_call.1} parent=77 // pred_region
          %s2810 = ssub.s32 128, 128
          %2811 = vsyncadd [#allocation8], %s2810
          %s2812 = smul.addr %s23, 128
          %s2813 = scalar_lea.hbm %s6, %s2812
          %s2815 = sshll.u32 [#allocation9], 4
          %s2816 = int_to_ptr.vmem [resolvable:$true] %s2815
          %2818 = dma.vmem_to_hbm [thread:$0]  %s2816, 128, %s2813, [#allocation8]
        $region98: #{tpu_custom_call.1} parent=77 // pred_fallthru
          _
        // Predicated region
        $region99: #{tpu_custom_call.1} parent=77 // pred_check
          %p2819 = pneg %p182
        $region100: #{tpu_custom_call.1} parent=77 // pred_check_branch
          %2821 = sbr.rel (%p2819) target = $region102
        $region101: #{tpu_custom_call.1} parent=77 // pred_region
          %2822 = dma.done [#allocation8], 128
        $region102: #{tpu_custom_call.1} parent=77 // pred_fallthru
          _
      $region78: #{tpu_custom_call.1} parent=5 // pred_fallthru
        _
      %p2823 = scmp.le.s32.totalorder 2, %s14
      // Predicated region
      $region103: #{tpu_custom_call.1} parent=5 // pred_check
        %p2824 = pneg %p2823
      $region104: #{tpu_custom_call.1} parent=5 // pred_check_branch
        %2826 = sbr.rel (%p2824) target = $region106
      $region105: #{tpu_custom_call.1} parent=5 // pred_region
        %s2827 = ssub.s32 %s14, 2
      $region106: #{tpu_custom_call.1} parent=5 // pred_fallthru
        _
    $region6: #{tpu_custom_call.1} parent=1 // loop_footer
      %s18 = sadd.s32 1, %s14
    $region7: #{tpu_custom_call.1} parent=1 // loop_footer_branch
      %13 = sbr.rel target = $region3
    $region8: #{tpu_custom_call.1} parent=1 // loop_exit
      _
    %2828 = vsyncpa [#allocation7], 1
    %s2829 = scalar_lea.sflag [#allocation7], 1
    %2830 = vsyncpa %s2829, 1
    %2831 = vsyncpa [#allocation8], 1
    %s2832 = scalar_lea.sflag [#allocation8], 1
    %2833 = vsyncpa %s2832, 1

</llo_original>
